<compile_context>
chip_gen: v5e
topology: v5e:2x2
jax: 0.10.0
libtpu: 0.0.40
codegen_flags: <defaults>
</compile_context>

<pallas_src>
import functools

import numpy as np
import jax
import jax.numpy as jnp
from jax.experimental import pallas as pl
from jax.experimental.pallas import tpu as pltpu

LRELU_SLOPE = 0.01
BN_EPS = 1e-5
# Matmul operand dtype. bf16 gives 2-4x MXU throughput on v6e/v7x (f32 accumulate);
# set to jnp.float32 to restore exact f32 parity with the reference.
MATMUL_DTYPE = jnp.bfloat16


# --------------------------------------------------------------------------
# Capability probes (run once at import, guarded -> always safe to fall back)
# --------------------------------------------------------------------------
def _probe_single_buffer_mode():
    """Return pl.Buffered(1) if single-buffering grid-invariant operands works
    end-to-end on this install, else None (default double buffering)."""
    if not hasattr(pl, "Buffered"):
        return None
    try:
        mode = pl.Buffered(1)
    except TypeError:
        try:
            mode = pl.Buffered(buffer_count=1)
        except Exception:
            return None
    try:
        spec = pl.BlockSpec((8, 128), lambda i: (0, 0), pipeline_mode=mode)

        def _probe_kernel(w_ref, x_ref, o_ref):
            o_ref[...] = x_ref[...] + w_ref[...]

        fn = pl.pallas_call(
            _probe_kernel,
            out_shape=jax.ShapeDtypeStruct((16, 128), jnp.float32),
            grid=(2,),
            in_specs=[spec, pl.BlockSpec((8, 128), lambda i: (i, 0))],
            out_specs=pl.BlockSpec((8, 128), lambda i: (i, 0)),
        )
        jax.block_until_ready(fn(jnp.ones((8, 128), jnp.float32),
                                 jnp.ones((16, 128), jnp.float32)))
        return mode
    except Exception:
        return None


def _vmem_limit_bytes():
    """~85% of physical VMEM, capped at 110 MiB (v5e/v6e ~108 MiB, v7x ~54 MiB)."""
    cap = 64 * 1024 * 1024  # conservative fallback (fits every chip)
    try:
        cap = int(pltpu.get_tpu_info().vmem_capacity_bytes)
    except Exception:
        pass
    return min(int(cap * 0.85), 110 * 1024 * 1024)


_SINGLE_BUFFER_MODE = _probe_single_buffer_mode()


# --------------------------------------------------------------------------
# Fused kernel: down-conv (3x3, stride 2) + Res block 1 + Res block 2
# --------------------------------------------------------------------------
def _down_fused_kernel(xph_ref, wd_ref,
                       s11_ref, b11_ref, w11_ref, s12_ref, b12_ref, w12_ref,
                       s21_ref, b21_ref, w21_ref, s22_ref, b22_ref, w22_ref,
                       o_ref,
                       pad_ref, acc_ref, res_ref,
                       *, Ho, Wo, Cin, C):
    # xph_ref : (1, 4, Ho+1, Wo+1, Cin)  space-to-depth(2) of the padded input
    # wd_ref  : (9, Cin, C)  bf16        down-conv weights, per-tap
    # s/b     : (1, C)       f32         folded BN scale / bias
    # w1/w2   : (9, C, C)    bf16        res-conv weights, per-tap
    # o_ref   : (1, Ho*Wo, C)
    # pad_ref : (Ho+2, Wo+2, C) f32      zero-bordered activation buffer
    # acc_ref : (Ho*Wo, C)      f32      conv accumulator
    # res_ref : (Ho*Wo, C)      f32      residual (skip) carry
    HW = Ho * Wo
    f32 = jnp.float32

    # Zero only the 1-pixel border of the pad buffer, once per grid step
    # (interior is fully overwritten before every res conv; per-step init stays
    #  correct when the batch axis is "parallel"-sharded across cores).
    pad_ref[pl.ds(0, 1), :, :] = jnp.zeros((1, Wo + 2, C), f32)
    pad_ref[pl.ds(Ho + 1, 1), :, :] = jnp.zeros((1, Wo + 2, C), f32)
    pad_ref[:, pl.ds(0, 1), :] = jnp.zeros((Ho + 2, 1, C), f32)
    pad_ref[:, pl.ds(Wo + 1, 1), :] = jnp.zeros((Ho + 2, 1, C), f32)

    def accum(k, lhs, w_ref_):
        # One per-tap MXU matmul (bf16 operands, f32 accumulate) into acc_ref.
        contrib = jnp.dot(lhs.astype(MATMUL_DTYPE), w_ref_[k],
                          preferred_element_type=f32)
        if k == 0:
            acc_ref[...] = contrib
        else:
            acc_ref[...] += contrib

    # ---- down conv (3x3, stride 2, pad 1, no bias): 9 stride-2 taps taken as
    #      unit-stride slices of the phase view, each a (HW,Cin)x(Cin,C) matmul.
    for ky in range(3):
        for kx in range(3):
            k = ky * 3 + kx
            tap = xph_ref[0, (ky % 2) * 2 + (kx % 2),
                          pl.ds(ky // 2, Ho), pl.ds(kx // 2, Wo), :]
            accum(k, tap.reshape(HW, Cin), wd_ref)

    def lrelu(v):
        return jnp.where(v > 0, v, LRELU_SLOPE * v)

    def conv3x3_from_pad(w_ref_):
        # 3x3 / stride 1 / pad 1 / no bias conv of the activation currently
        # sitting in pad_ref; 9 per-tap matmuls, every access at lane offset 0.
        for ky in range(3):
            for kx in range(3):
                k = ky * 3 + kx
                tap = pad_ref[pl.ds(ky, Ho), pl.ds(kx, Wo), :]
                accum(k, tap.reshape(HW, C), w_ref_)

    def bn_act_to_pad(s_ref, b_ref):
        # folded BN + LeakyReLU in f32, write activation into the zero-bordered
        # pad buffer for the following conv.
        a = lrelu(acc_ref[...] * s_ref[...] + b_ref[...])
        pad_ref[pl.ds(1, Ho), pl.ds(1, Wo), :] = a.reshape(Ho, Wo, C)

    def res_block(s1_ref, b1_ref, w1_ref_, s2_ref, b2_ref, w2_ref_):
        res_ref[...] = acc_ref[...]            # keep img_in for the skip add
        bn_act_to_pad(s1_ref, b1_ref)          # BN1 + LeakyReLU
        conv3x3_from_pad(w1_ref_)              # Conv 3x3
        bn_act_to_pad(s2_ref, b2_ref)          # BN2 + LeakyReLU
        conv3x3_from_pad(w2_ref_)              # Conv 3x3
        acc_ref[...] += res_ref[...]           # img_in + img_out

    res_block(s11_ref, b11_ref, w11_ref, s12_ref, b12_ref, w12_ref)   # res_1
    res_block(s21_ref, b21_ref, w21_ref, s22_ref, b22_ref, w22_ref)   # res_2

    o_ref[0] = acc_ref[...].astype(o_ref.dtype)


# --------------------------------------------------------------------------
# pallas_call wrapper
# --------------------------------------------------------------------------
def down_fused(x_nhwc, wd, r1, r2):
    """Fused Down forward in NHWC. wd: (9,Cin,C) bf16; r1/r2: (s1,b1,w1,s2,b2,w2)."""
    N, H, W, Cin = x_nhwc.shape
    C = wd.shape[-1]
    Ho, Wo = (H + 1) // 2, (W + 1) // 2
    Hp2, Wp2 = Ho + 1, Wo + 1
    HW = Ho * Wo

    # Zero-pad (conv padding=1, rounded up to even) and space-to-depth by 2 so
    # every stride-2 tap becomes a unit-stride slice inside the kernel.
    xp = jnp.pad(x_nhwc, ((0, 0),
                          (1, 2 * Hp2 - H - 1),
                          (1, 2 * Wp2 - W - 1),
                          (0, 0)))
    xph = xp.reshape(N, Hp2, 2, Wp2, 2, Cin).transpose(0, 2, 4, 1, 3, 5)
    xph = xph.reshape(N, 4, Hp2, Wp2, Cin)

    (s11, b11, w11, s12, b12, w12) = r1
    (s21, b21, w21, s22, b22, w22) = r2

    mode = _SINGLE_BUFFER_MODE

    def const_spec(shape):
        # Grid-invariant operand: single-buffer it when supported (halves the
        # VMEM spent on weight copies), else default double buffering.
        idx = lambda n: (0,) * len(shape)
        if mode is None:
            return pl.BlockSpec(shape, idx)
        return pl.BlockSpec(shape, idx, pipeline_mode=mode)

    vec_spec = const_spec((1, C))
    wd_spec = const_spec((9, Cin, C))
    wr_spec = const_spec((9, C, C))

    out = pl.pallas_call(
        functools.partial(_down_fused_kernel, Ho=Ho, Wo=Wo, Cin=Cin, C=C),
        out_shape=jax.ShapeDtypeStruct((N, HW, C), x_nhwc.dtype),
        grid_spec=pltpu.PrefetchScalarGridSpec(
            num_scalar_prefetch=0,
            grid=(N,),
            in_specs=[
                pl.BlockSpec((1, 4, Hp2, Wp2, Cin),
                             lambda n: (n, 0, 0, 0, 0)),
                wd_spec,
                vec_spec, vec_spec, wr_spec, vec_spec, vec_spec, wr_spec,
                vec_spec, vec_spec, wr_spec, vec_spec, vec_spec, wr_spec,
            ],
            out_specs=pl.BlockSpec((1, HW, C), lambda n: (n, 0, 0)),
            scratch_shapes=[
                pltpu.VMEM((Ho + 2, Wo + 2, C), jnp.float32),  # pad buffer
                pltpu.VMEM((HW, C), jnp.float32),              # conv accumulator
                pltpu.VMEM((HW, C), jnp.float32),              # residual carry
            ],
        ),
        compiler_params=pltpu.CompilerParams(
            dimension_semantics=("parallel",),      # batch axis -> megacore
            vmem_limit_bytes=_vmem_limit_bytes(),
        ),
    )(xph, wd, s11, b11, w11, s12, b12, w12, s21, b21, w21, s22, b22, w22)

    return out.reshape(N, Ho, Wo, C)


# --------------------------------------------------------------------------
# Parameter setup / glue
# --------------------------------------------------------------------------
def _oihw_to_taps(w):
    # (O, I, 3, 3) -> (9, I, O), tap-major (ky, kx); cast to the matmul dtype.
    O, I, _, _ = w.shape
    return jnp.transpose(w, (2, 3, 1, 0)).reshape(9, I, O).astype(MATMUL_DTYPE)


def _bn_fold(bn):
    gamma, beta, rmean, rvar = bn
    scale = gamma / jnp.sqrt(rvar + BN_EPS)
    bias = beta - rmean * scale
    return scale.reshape(1, -1), bias.reshape(1, -1)


def init_params(key, filters):
    ks = jax.random.split(key, 9)

    def conv_w(k, cout, cin):
        return 0.1 * jax.random.normal(k, (cout, cin, 3, 3), jnp.float32)

    def bn(k):
        k1, k2, k3, k4 = jax.random.split(k, 4)
        gamma = 1.0 + 0.1 * jax.random.normal(k1, (filters,), jnp.float32)
        beta = 0.1 * jax.random.normal(k2, (filters,), jnp.float32)
        rmean = 0.1 * jax.random.normal(k3, (filters,), jnp.float32)
        rvar = jax.random.uniform(k4, (filters,), jnp.float32, 0.5, 1.5)
        return gamma, beta, rmean, rvar

    return {
        'down_w': conv_w(ks[0], filters, filters // 2),
        'res1': {'bn1': bn(ks[1]), 'w1': conv_w(ks[2], filters, filters),
                 'bn2': bn(ks[3]), 'w2': conv_w(ks[4], filters, filters)},
        'res2': {'bn1': bn(ks[5]), 'w1': conv_w(ks[6], filters, filters),
                 'bn2': bn(ks[7]), 'w2': conv_w(ks[8], filters, filters)},
    }


@jax.jit
def down_forward(x_nchw, params):
    # NCHW public interface for PyTorch parity; keep NHWC end-to-end in a real
    # pipeline to avoid these per-layer HBM transposes.
    x = jnp.transpose(x_nchw, (0, 2, 3, 1))                  # NCHW -> NHWC

    def res_params(rb):
        s1, b1 = _bn_fold(rb['bn1'])
        s2, b2 = _bn_fold(rb['bn2'])
        return (s1, b1, _oihw_to_taps(rb['w1']),
                s2, b2, _oihw_to_taps(rb['w2']))

    y = down_fused(x, _oihw_to_taps(params['down_w']),
                   res_params(params['res1']), res_params(params['res2']))
    return jnp.transpose(y, (0, 3, 1, 2))                    # NHWC -> NCHW


# --------------------------------------------------------------------------
# Pure-JAX reference (for correctness check)
# --------------------------------------------------------------------------
def _ref_conv(x, w, stride, pad):
    return jax.lax.conv_general_dilated(
        x, w, (stride, stride), ((pad, pad), (pad, pad)),
        dimension_numbers=('NCHW', 'OIHW', 'NCHW'))


def _ref_bn(x, bn):
    g, b, m, v = (t.reshape(1, -1, 1, 1) for t in bn)
    return (x - m) / jnp.sqrt(v + BN_EPS) * g + b


def _ref_lrelu(x):
    return jnp.where(x > 0, x, LRELU_SLOPE * x)


def ref_forward(x, params):
    y = _ref_conv(x, params['down_w'], 2, 1)
    for name in ('res1', 'res2'):
        rb = params[name]
        t = _ref_conv(_ref_lrelu(_ref_bn(y, rb['bn1'])), rb['w1'], 1, 1)
        t = _ref_conv(_ref_lrelu(_ref_bn(t, rb['bn2'])), rb['w2'], 1, 1)
        y = y + t
    return y


# --------------------------------------------------------------------------
if __name__ == "__main__":
    key = jax.random.PRNGKey(0)
    kx, kp = jax.random.split(key)

    filters = 8
    # Down takes filters//2 input channels (NCHW, like PyTorch).
    x = jax.random.normal(kx, (2, filters // 2, 16, 16), jnp.float32)
    params = init_params(kp, filters)

    out = jax.block_until_ready(down_forward(x, params))
    ref = jax.block_until_ready(ref_forward(x, params))

    assert out.shape == (2, filters, 8, 8), out.shape
    # bf16 MXU operands (f32 accumulate) -> tolerance loosened vs the f32 reference.
    np.testing.assert_allclose(np.asarray(out), np.asarray(ref),
                               rtol=2e-2, atol=2e-2)
    print("KERNEL_OK")
</pallas_src>

<mosaic_0001>
module attributes {stable_mosaic.version = 11 : i64} {
  func.func @_probe_kernel(%arg0: i32, %arg1: memref<8x128xf32, #tpu.memory_space<vmem>>, %arg2: memref<8x128xf32, #tpu.memory_space<vmem>>, %arg3: memref<8x128xf32, #tpu.memory_space<vmem>>) attributes {dimension_semantics = [#tpu.dimension_semantics<arbitrary>], iteration_bounds = array<i64: 2>, scalar_prefetch = 0 : i64, scratch_operands = 0 : i64, tpu.core_type = #tpu.core_type<tc>, window_params = [{pipeline_mode = #tpu.pipeline_mode<synchronous>, transform_indices = @transform_0, window_bounds = array<i64: 8, 128>}, {transform_indices = @transform_1, window_bounds = array<i64: 8, 128>}, {transform_indices = @transform_2, window_bounds = array<i64: 8, 128>}]} {
    %c0 = arith.constant 0 : index
    %c0_0 = arith.constant 0 : index
    %0 = vector.load %arg2[%c0, %c0_0] : memref<8x128xf32, #tpu.memory_space<vmem>>, vector<8x128xf32>
    %c0_1 = arith.constant 0 : index
    %c0_2 = arith.constant 0 : index
    %1 = vector.load %arg1[%c0_1, %c0_2] : memref<8x128xf32, #tpu.memory_space<vmem>>, vector<8x128xf32>
    %2 = arith.addf %0, %1 : vector<8x128xf32>
    %c0_3 = arith.constant 0 : index
    %c0_4 = arith.constant 0 : index
    %3 = vector.load %arg3[%c0_3, %c0_4] : memref<8x128xf32, #tpu.memory_space<vmem>>, vector<8x128xf32>
    tpu.vector_store %arg3[%c0_3, %c0_4], %2 {strides = array<i32>} : memref<8x128xf32, #tpu.memory_space<vmem>>, vector<8x128xf32>,
    return
  }
  func.func @transform_0(%arg0: i32) -> (i32, i32) {
    %c0_i32 = arith.constant 0 : i32
    %c0_i32_0 = arith.constant 0 : i32
    %c0_i32_1 = arith.constant 0 : i32
    return %c0_i32, %c0_i32_0 : i32, i32
  }
  func.func @transform_1(%arg0: i32) -> (i32, i32) {
    %c0_i32 = arith.constant 0 : i32
    %c0_i32_0 = arith.constant 0 : i32
    return %arg0, %c0_i32 : i32, i32
  }
  func.func @transform_2(%arg0: i32) -> (i32, i32) {
    %c0_i32 = arith.constant 0 : i32
    %c0_i32_0 = arith.constant 0 : i32
    return %arg0, %c0_i32 : i32, i32
  }
}

module attributes {stable_mosaic.version = 11 : i64} {
  func.func @_down_fused_kernel(%arg0: i32, %arg1: memref<1x4x9x9x4xf32, #tpu.memory_space<vmem>>, %arg2: memref<9x4x8xbf16, #tpu.memory_space<vmem>>, %arg3: memref<1x8xf32, #tpu.memory_space<vmem>>, %arg4: memref<1x8xf32, #tpu.memory_space<vmem>>, %arg5: memref<9x8x8xbf16, #tpu.memory_space<vmem>>, %arg6: memref<1x8xf32, #tpu.memory_space<vmem>>, %arg7: memref<1x8xf32, #tpu.memory_space<vmem>>, %arg8: memref<9x8x8xbf16, #tpu.memory_space<vmem>>, %arg9: memref<1x8xf32, #tpu.memory_space<vmem>>, %arg10: memref<1x8xf32, #tpu.memory_space<vmem>>, %arg11: memref<9x8x8xbf16, #tpu.memory_space<vmem>>, %arg12: memref<1x8xf32, #tpu.memory_space<vmem>>, %arg13: memref<1x8xf32, #tpu.memory_space<vmem>>, %arg14: memref<9x8x8xbf16, #tpu.memory_space<vmem>>, %arg15: memref<1x64x8xf32, #tpu.memory_space<vmem>>, %arg16: memref<10x10x8xf32, #tpu.memory_space<vmem>>, %arg17: memref<64x8xf32, #tpu.memory_space<vmem>>, %arg18: memref<64x8xf32, #tpu.memory_space<vmem>>) attributes {dimension_semantics = [#tpu.dimension_semantics<parallel>], iteration_bounds = array<i64: 2>, scalar_prefetch = 0 : i64, scratch_operands = 3 : i64, tpu.core_type = #tpu.core_type<tc>, window_params = [{transform_indices = @transform_0, window_bounds = array<i64: 1, 4, 9, 9, 4>}, {pipeline_mode = #tpu.pipeline_mode<synchronous>, transform_indices = @transform_1, window_bounds = array<i64: 9, 4, 8>}, {pipeline_mode = #tpu.pipeline_mode<synchronous>, transform_indices = @transform_2, window_bounds = array<i64: 1, 8>}, {pipeline_mode = #tpu.pipeline_mode<synchronous>, transform_indices = @transform_3, window_bounds = array<i64: 1, 8>}, {pipeline_mode = #tpu.pipeline_mode<synchronous>, transform_indices = @transform_4, window_bounds = array<i64: 9, 8, 8>}, {pipeline_mode = #tpu.pipeline_mode<synchronous>, transform_indices = @transform_5, window_bounds = array<i64: 1, 8>}, {pipeline_mode = #tpu.pipeline_mode<synchronous>, transform_indices = @transform_6, window_bounds = array<i64: 1, 8>}, {pipeline_mode = #tpu.pipeline_mode<synchronous>, transform_indices = @transform_7, window_bounds = array<i64: 9, 8, 8>}, {pipeline_mode = #tpu.pipeline_mode<synchronous>, transform_indices = @transform_8, window_bounds = array<i64: 1, 8>}, {pipeline_mode = #tpu.pipeline_mode<synchronous>, transform_indices = @transform_9, window_bounds = array<i64: 1, 8>}, {pipeline_mode = #tpu.pipeline_mode<synchronous>, transform_indices = @transform_10, window_bounds = array<i64: 9, 8, 8>}, {pipeline_mode = #tpu.pipeline_mode<synchronous>, transform_indices = @transform_11, window_bounds = array<i64: 1, 8>}, {pipeline_mode = #tpu.pipeline_mode<synchronous>, transform_indices = @transform_12, window_bounds = array<i64: 1, 8>}, {pipeline_mode = #tpu.pipeline_mode<synchronous>, transform_indices = @transform_13, window_bounds = array<i64: 9, 8, 8>}, {transform_indices = @transform_14, window_bounds = array<i64: 1, 64, 8>}]} {
    %cst = arith.constant 0.000000e+00 : f32
    %0 = vector.broadcast %cst : f32 to vector<1x10x8xf32>
    %c0 = arith.constant 0 : index
    %c0_0 = arith.constant 0 : index
    %c0_1 = arith.constant 0 : index
    %1 = vector.load %arg16[%c0, %c0_0, %c0_1] : memref<10x10x8xf32, #tpu.memory_space<vmem>>, vector<1x10x8xf32>
    tpu.vector_store %arg16[%c0, %c0_0, %c0_1], %0 {strides = array<i32>} : memref<10x10x8xf32, #tpu.memory_space<vmem>>, vector<1x10x8xf32>,
    %cst_2 = arith.constant 0.000000e+00 : f32
    %2 = vector.broadcast %cst_2 : f32 to vector<1x10x8xf32>
    %c9 = arith.constant 9 : index
    %c0_3 = arith.constant 0 : index
    %c0_4 = arith.constant 0 : index
    %3 = vector.load %arg16[%c9, %c0_3, %c0_4] : memref<10x10x8xf32, #tpu.memory_space<vmem>>, vector<1x10x8xf32>
    tpu.vector_store %arg16[%c9, %c0_3, %c0_4], %2 {strides = array<i32>} : memref<10x10x8xf32, #tpu.memory_space<vmem>>, vector<1x10x8xf32>,
    %cst_5 = arith.constant 0.000000e+00 : f32
    %4 = vector.broadcast %cst_5 : f32 to vector<10x1x8xf32>
    %c0_6 = arith.constant 0 : index
    %c0_7 = arith.constant 0 : index
    %c0_8 = arith.constant 0 : index
    %5 = vector.load %arg16[%c0_6, %c0_7, %c0_8] : memref<10x10x8xf32, #tpu.memory_space<vmem>>, vector<10x1x8xf32>
    tpu.vector_store %arg16[%c0_6, %c0_7, %c0_8], %4 {strides = array<i32>} : memref<10x10x8xf32, #tpu.memory_space<vmem>>, vector<10x1x8xf32>,
    %cst_9 = arith.constant 0.000000e+00 : f32
    %6 = vector.broadcast %cst_9 : f32 to vector<10x1x8xf32>
    %c0_10 = arith.constant 0 : index
    %c9_11 = arith.constant 9 : index
    %c0_12 = arith.constant 0 : index
    %7 = vector.load %arg16[%c0_10, %c9_11, %c0_12] : memref<10x10x8xf32, #tpu.memory_space<vmem>>, vector<10x1x8xf32>
    tpu.vector_store %arg16[%c0_10, %c9_11, %c0_12], %6 {strides = array<i32>} : memref<10x10x8xf32, #tpu.memory_space<vmem>>, vector<10x1x8xf32>,
    %c0_13 = arith.constant 0 : index
    %c0_14 = arith.constant 0 : index
    %c0_15 = arith.constant 0 : index
    %c0_16 = arith.constant 0 : index
    %c0_17 = arith.constant 0 : index
    %8 = vector.load %arg1[%c0_13, %c0_14, %c0_15, %c0_16, %c0_17] : memref<1x4x9x9x4xf32, #tpu.memory_space<vmem>>, vector<1x1x8x8x4xf32>
    %9 = vector.shape_cast %8 : vector<1x1x8x8x4xf32> to vector<8x8x4xf32>
    %10 = vector.shape_cast %9 : vector<8x8x4xf32> to vector<64x4xf32>
    %11 = arith.truncf %10 : vector<64x4xf32> to vector<64x4xbf16>
    %c0_18 = arith.constant 0 : index
    %c0_19 = arith.constant 0 : index
    %c0_20 = arith.constant 0 : index
    %12 = vector.load %arg2[%c0_18, %c0_19, %c0_20] : memref<9x4x8xbf16, #tpu.memory_space<vmem>>, vector<1x4x8xbf16>
    %13 = vector.shape_cast %12 : vector<1x4x8xbf16> to vector<4x8xbf16>
    %cst_21 = arith.constant dense<0.000000e+00> : vector<64x8xf32>
    %14 = tpu.matmul %11, %13, %cst_21 {dimension_numbers = #tpu.dot_dimension_numbers<[1], [0], [0], [1], [0, 0, 1, 1], [], []>} : vector<64x4xbf16>, vector<4x8xbf16>, vector<64x8xf32> -> vector<64x8xf32>
    %c0_22 = arith.constant 0 : index
    %c0_23 = arith.constant 0 : index
    %15 = vector.load %arg17[%c0_22, %c0_23] : memref<64x8xf32, #tpu.memory_space<vmem>>, vector<64x8xf32>
    tpu.vector_store %arg17[%c0_22, %c0_23], %14 {strides = array<i32>} : memref<64x8xf32, #tpu.memory_space<vmem>>, vector<64x8xf32>,
    %c0_24 = arith.constant 0 : index
    %c1 = arith.constant 1 : index
    %c0_25 = arith.constant 0 : index
    %c0_26 = arith.constant 0 : index
    %c0_27 = arith.constant 0 : index
    %16 = vector.load %arg1[%c0_24, %c1, %c0_25, %c0_26, %c0_27] : memref<1x4x9x9x4xf32, #tpu.memory_space<vmem>>, vector<1x1x8x8x4xf32>
    %17 = vector.shape_cast %16 : vector<1x1x8x8x4xf32> to vector<8x8x4xf32>
    %18 = vector.shape_cast %17 : vector<8x8x4xf32> to vector<64x4xf32>
    %19 = arith.truncf %18 : vector<64x4xf32> to vector<64x4xbf16>
    %c1_28 = arith.constant 1 : index
    %c0_29 = arith.constant 0 : index
    %c0_30 = arith.constant 0 : index
    %20 = vector.load %arg2[%c1_28, %c0_29, %c0_30] : memref<9x4x8xbf16, #tpu.memory_space<vmem>>, vector<1x4x8xbf16>
    %21 = vector.shape_cast %20 : vector<1x4x8xbf16> to vector<4x8xbf16>
    %cst_31 = arith.constant dense<0.000000e+00> : vector<64x8xf32>
    %22 = tpu.matmul %19, %21, %cst_31 {dimension_numbers = #tpu.dot_dimension_numbers<[1], [0], [0], [1], [0, 0, 1, 1], [], []>} : vector<64x4xbf16>, vector<4x8xbf16>, vector<64x8xf32> -> vector<64x8xf32>
    %c0_32 = arith.constant 0 : index
    %c0_33 = arith.constant 0 : index
    %23 = vector.load %arg17[%c0_32, %c0_33] : memref<64x8xf32, #tpu.memory_space<vmem>>, vector<64x8xf32>
    %24 = arith.addf %23, %22 : vector<64x8xf32>
    %c0_34 = arith.constant 0 : index
    %c0_35 = arith.constant 0 : index
    %25 = vector.load %arg17[%c0_34, %c0_35] : memref<64x8xf32, #tpu.memory_space<vmem>>, vector<64x8xf32>
    tpu.vector_store %arg17[%c0_34, %c0_35], %24 {strides = array<i32>} : memref<64x8xf32, #tpu.memory_space<vmem>>, vector<64x8xf32>,
    %c0_36 = arith.constant 0 : index
    %c0_37 = arith.constant 0 : index
    %c0_38 = arith.constant 0 : index
    %c1_39 = arith.constant 1 : index
    %c0_40 = arith.constant 0 : index
    %26 = vector.load %arg1[%c0_36, %c0_37, %c0_38, %c1_39, %c0_40] : memref<1x4x9x9x4xf32, #tpu.memory_space<vmem>>, vector<1x1x8x8x4xf32>
    %27 = vector.shape_cast %26 : vector<1x1x8x8x4xf32> to vector<8x8x4xf32>
    %28 = vector.shape_cast %27 : vector<8x8x4xf32> to vector<64x4xf32>
    %29 = arith.truncf %28 : vector<64x4xf32> to vector<64x4xbf16>
    %c2 = arith.constant 2 : index
    %c0_41 = arith.constant 0 : index
    %c0_42 = arith.constant 0 : index
    %30 = vector.load %arg2[%c2, %c0_41, %c0_42] : memref<9x4x8xbf16, #tpu.memory_space<vmem>>, vector<1x4x8xbf16>
    %31 = vector.shape_cast %30 : vector<1x4x8xbf16> to vector<4x8xbf16>
    %cst_43 = arith.constant dense<0.000000e+00> : vector<64x8xf32>
    %32 = tpu.matmul %29, %31, %cst_43 {dimension_numbers = #tpu.dot_dimension_numbers<[1], [0], [0], [1], [0, 0, 1, 1], [], []>} : vector<64x4xbf16>, vector<4x8xbf16>, vector<64x8xf32> -> vector<64x8xf32>
    %c0_44 = arith.constant 0 : index
    %c0_45 = arith.constant 0 : index
    %33 = vector.load %arg17[%c0_44, %c0_45] : memref<64x8xf32, #tpu.memory_space<vmem>>, vector<64x8xf32>
    %34 = arith.addf %33, %32 : vector<64x8xf32>
    %c0_46 = arith.constant 0 : index
    %c0_47 = arith.constant 0 : index
    %35 = vector.load %arg17[%c0_46, %c0_47] : memref<64x8xf32, #tpu.memory_space<vmem>>, vector<64x8xf32>
    tpu.vector_store %arg17[%c0_46, %c0_47], %34 {strides = array<i32>} : memref<64x8xf32, #tpu.memory_space<vmem>>, vector<64x8xf32>,
    %c0_48 = arith.constant 0 : index
    %c2_49 = arith.constant 2 : index
    %c0_50 = arith.constant 0 : index
    %c0_51 = arith.constant 0 : index
    %c0_52 = arith.constant 0 : index
    %36 = vector.load %arg1[%c0_48, %c2_49, %c0_50, %c0_51, %c0_52] : memref<1x4x9x9x4xf32, #tpu.memory_space<vmem>>, vector<1x1x8x8x4xf32>
    %37 = vector.shape_cast %36 : vector<1x1x8x8x4xf32> to vector<8x8x4xf32>
    %38 = vector.shape_cast %37 : vector<8x8x4xf32> to vector<64x4xf32>
    %39 = arith.truncf %38 : vector<64x4xf32> to vector<64x4xbf16>
    %c3 = arith.constant 3 : index
    %c0_53 = arith.constant 0 : index
    %c0_54 = arith.constant 0 : index
    %40 = vector.load %arg2[%c3, %c0_53, %c0_54] : memref<9x4x8xbf16, #tpu.memory_space<vmem>>, vector<1x4x8xbf16>
    %41 = vector.shape_cast %40 : vector<1x4x8xbf16> to vector<4x8xbf16>
    %cst_55 = arith.constant dense<0.000000e+00> : vector<64x8xf32>
    %42 = tpu.matmul %39, %41, %cst_55 {dimension_numbers = #tpu.dot_dimension_numbers<[1], [0], [0], [1], [0, 0, 1, 1], [], []>} : vector<64x4xbf16>, vector<4x8xbf16>, vector<64x8xf32> -> vector<64x8xf32>
    %c0_56 = arith.constant 0 : index
    %c0_57 = arith.constant 0 : index
    %43 = vector.load %arg17[%c0_56, %c0_57] : memref<64x8xf32, #tpu.memory_space<vmem>>, vector<64x8xf32>
    %44 = arith.addf %43, %42 : vector<64x8xf32>
    %c0_58 = arith.constant 0 : index
    %c0_59 = arith.constant 0 : index
    %45 = vector.load %arg17[%c0_58, %c0_59] : memref<64x8xf32, #tpu.memory_space<vmem>>, vector<64x8xf32>
    tpu.vector_store %arg17[%c0_58, %c0_59], %44 {strides = array<i32>} : memref<64x8xf32, #tpu.memory_space<vmem>>, vector<64x8xf32>,
    %c0_60 = arith.constant 0 : index
    %c3_61 = arith.constant 3 : index
    %c0_62 = arith.constant 0 : index
    %c0_63 = arith.constant 0 : index
    %c0_64 = arith.constant 0 : index
    %46 = vector.load %arg1[%c0_60, %c3_61, %c0_62, %c0_63, %c0_64] : memref<1x4x9x9x4xf32, #tpu.memory_space<vmem>>, vector<1x1x8x8x4xf32>
    %47 = vector.shape_cast %46 : vector<1x1x8x8x4xf32> to vector<8x8x4xf32>
    %48 = vector.shape_cast %47 : vector<8x8x4xf32> to vector<64x4xf32>
    %49 = arith.truncf %48 : vector<64x4xf32> to vector<64x4xbf16>
    %c4 = arith.constant 4 : index
    %c0_65 = arith.constant 0 : index
    %c0_66 = arith.constant 0 : index
    %50 = vector.load %arg2[%c4, %c0_65, %c0_66] : memref<9x4x8xbf16, #tpu.memory_space<vmem>>, vector<1x4x8xbf16>
    %51 = vector.shape_cast %50 : vector<1x4x8xbf16> to vector<4x8xbf16>
    %cst_67 = arith.constant dense<0.000000e+00> : vector<64x8xf32>
    %52 = tpu.matmul %49, %51, %cst_67 {dimension_numbers = #tpu.dot_dimension_numbers<[1], [0], [0], [1], [0, 0, 1, 1], [], []>} : vector<64x4xbf16>, vector<4x8xbf16>, vector<64x8xf32> -> vector<64x8xf32>
    %c0_68 = arith.constant 0 : index
    %c0_69 = arith.constant 0 : index
    %53 = vector.load %arg17[%c0_68, %c0_69] : memref<64x8xf32, #tpu.memory_space<vmem>>, vector<64x8xf32>
    %54 = arith.addf %53, %52 : vector<64x8xf32>
    %c0_70 = arith.constant 0 : index
    %c0_71 = arith.constant 0 : index
    %55 = vector.load %arg17[%c0_70, %c0_71] : memref<64x8xf32, #tpu.memory_space<vmem>>, vector<64x8xf32>
    tpu.vector_store %arg17[%c0_70, %c0_71], %54 {strides = array<i32>} : memref<64x8xf32, #tpu.memory_space<vmem>>, vector<64x8xf32>,
    %c0_72 = arith.constant 0 : index
    %c2_73 = arith.constant 2 : index
    %c0_74 = arith.constant 0 : index
    %c1_75 = arith.constant 1 : index
    %c0_76 = arith.constant 0 : index
    %56 = vector.load %arg1[%c0_72, %c2_73, %c0_74, %c1_75, %c0_76] : memref<1x4x9x9x4xf32, #tpu.memory_space<vmem>>, vector<1x1x8x8x4xf32>
    %57 = vector.shape_cast %56 : vector<1x1x8x8x4xf32> to vector<8x8x4xf32>
    %58 = vector.shape_cast %57 : vector<8x8x4xf32> to vector<64x4xf32>
    %59 = arith.truncf %58 : vector<64x4xf32> to vector<64x4xbf16>
    %c5 = arith.constant 5 : index
    %c0_77 = arith.constant 0 : index
    %c0_78 = arith.constant 0 : index
    %60 = vector.load %arg2[%c5, %c0_77, %c0_78] : memref<9x4x8xbf16, #tpu.memory_space<vmem>>, vector<1x4x8xbf16>
    %61 = vector.shape_cast %60 : vector<1x4x8xbf16> to vector<4x8xbf16>
    %cst_79 = arith.constant dense<0.000000e+00> : vector<64x8xf32>
    %62 = tpu.matmul %59, %61, %cst_79 {dimension_numbers = #tpu.dot_dimension_numbers<[1], [0], [0], [1], [0, 0, 1, 1], [], []>} : vector<64x4xbf16>, vector<4x8xbf16>, vector<64x8xf32> -> vector<64x8xf32>
    %c0_80 = arith.constant 0 : index
    %c0_81 = arith.constant 0 : index
    %63 = vector.load %arg17[%c0_80, %c0_81] : memref<64x8xf32, #tpu.memory_space<vmem>>, vector<64x8xf32>
    %64 = arith.addf %63, %62 : vector<64x8xf32>
    %c0_82 = arith.constant 0 : index
    %c0_83 = arith.constant 0 : index
    %65 = vector.load %arg17[%c0_82, %c0_83] : memref<64x8xf32, #tpu.memory_space<vmem>>, vector<64x8xf32>
    tpu.vector_store %arg17[%c0_82, %c0_83], %64 {strides = array<i32>} : memref<64x8xf32, #tpu.memory_space<vmem>>, vector<64x8xf32>,
    %c0_84 = arith.constant 0 : index
    %c0_85 = arith.constant 0 : index
    %c1_86 = arith.constant 1 : index
    %c0_87 = arith.constant 0 : index
    %c0_88 = arith.constant 0 : index
    %66 = vector.load %arg1[%c0_84, %c0_85, %c1_86, %c0_87, %c0_88] : memref<1x4x9x9x4xf32, #tpu.memory_space<vmem>>, vector<1x1x8x8x4xf32>
    %67 = vector.shape_cast %66 : vector<1x1x8x8x4xf32> to vector<8x8x4xf32>
    %68 = vector.shape_cast %67 : vector<8x8x4xf32> to vector<64x4xf32>
    %69 = arith.truncf %68 : vector<64x4xf32> to vector<64x4xbf16>
    %c6 = arith.constant 6 : index
    %c0_89 = arith.constant 0 : index
    %c0_90 = arith.constant 0 : index
    %70 = vector.load %arg2[%c6, %c0_89, %c0_90] : memref<9x4x8xbf16, #tpu.memory_space<vmem>>, vector<1x4x8xbf16>
    %71 = vector.shape_cast %70 : vector<1x4x8xbf16> to vector<4x8xbf16>
    %cst_91 = arith.constant dense<0.000000e+00> : vector<64x8xf32>
    %72 = tpu.matmul %69, %71, %cst_91 {dimension_numbers = #tpu.dot_dimension_numbers<[1], [0], [0], [1], [0, 0, 1, 1], [], []>} : vector<64x4xbf16>, vector<4x8xbf16>, vector<64x8xf32> -> vector<64x8xf32>
    %c0_92 = arith.constant 0 : index
    %c0_93 = arith.constant 0 : index
    %73 = vector.load %arg17[%c0_92, %c0_93] : memref<64x8xf32, #tpu.memory_space<vmem>>, vector<64x8xf32>
    %74 = arith.addf %73, %72 : vector<64x8xf32>
    %c0_94 = arith.constant 0 : index
    %c0_95 = arith.constant 0 : index
    %75 = vector.load %arg17[%c0_94, %c0_95] : memref<64x8xf32, #tpu.memory_space<vmem>>, vector<64x8xf32>
    tpu.vector_store %arg17[%c0_94, %c0_95], %74 {strides = array<i32>} : memref<64x8xf32, #tpu.memory_space<vmem>>, vector<64x8xf32>,
    %c0_96 = arith.constant 0 : index
    %c1_97 = arith.constant 1 : index
    %c1_98 = arith.constant 1 : index
    %c0_99 = arith.constant 0 : index
    %c0_100 = arith.constant 0 : index
    %76 = vector.load %arg1[%c0_96, %c1_97, %c1_98, %c0_99, %c0_100] : memref<1x4x9x9x4xf32, #tpu.memory_space<vmem>>, vector<1x1x8x8x4xf32>
    %77 = vector.shape_cast %76 : vector<1x1x8x8x4xf32> to vector<8x8x4xf32>
    %78 = vector.shape_cast %77 : vector<8x8x4xf32> to vector<64x4xf32>
    %79 = arith.truncf %78 : vector<64x4xf32> to vector<64x4xbf16>
    %c7 = arith.constant 7 : index
    %c0_101 = arith.constant 0 : index
    %c0_102 = arith.constant 0 : index
    %80 = vector.load %arg2[%c7, %c0_101, %c0_102] : memref<9x4x8xbf16, #tpu.memory_space<vmem>>, vector<1x4x8xbf16>
    %81 = vector.shape_cast %80 : vector<1x4x8xbf16> to vector<4x8xbf16>
    %cst_103 = arith.constant dense<0.000000e+00> : vector<64x8xf32>
    %82 = tpu.matmul %79, %81, %cst_103 {dimension_numbers = #tpu.dot_dimension_numbers<[1], [0], [0], [1], [0, 0, 1, 1], [], []>} : vector<64x4xbf16>, vector<4x8xbf16>, vector<64x8xf32> -> vector<64x8xf32>
    %c0_104 = arith.constant 0 : index
    %c0_105 = arith.constant 0 : index
    %83 = vector.load %arg17[%c0_104, %c0_105] : memref<64x8xf32, #tpu.memory_space<vmem>>, vector<64x8xf32>
    %84 = arith.addf %83, %82 : vector<64x8xf32>
    %c0_106 = arith.constant 0 : index
    %c0_107 = arith.constant 0 : index
    %85 = vector.load %arg17[%c0_106, %c0_107] : memref<64x8xf32, #tpu.memory_space<vmem>>, vector<64x8xf32>
    tpu.vector_store %arg17[%c0_106, %c0_107], %84 {strides = array<i32>} : memref<64x8xf32, #tpu.memory_space<vmem>>, vector<64x8xf32>,
    %c0_108 = arith.constant 0 : index
    %c0_109 = arith.constant 0 : index
    %c1_110 = arith.constant 1 : index
    %c1_111 = arith.constant 1 : index
    %c0_112 = arith.constant 0 : index
    %86 = vector.load %arg1[%c0_108, %c0_109, %c1_110, %c1_111, %c0_112] : memref<1x4x9x9x4xf32, #tpu.memory_space<vmem>>, vector<1x1x8x8x4xf32>
    %87 = vector.shape_cast %86 : vector<1x1x8x8x4xf32> to vector<8x8x4xf32>
    %88 = vector.shape_cast %87 : vector<8x8x4xf32> to vector<64x4xf32>
    %89 = arith.truncf %88 : vector<64x4xf32> to vector<64x4xbf16>
    %c8 = arith.constant 8 : index
    %c0_113 = arith.constant 0 : index
    %c0_114 = arith.constant 0 : index
    %90 = vector.load %arg2[%c8, %c0_113, %c0_114] : memref<9x4x8xbf16, #tpu.memory_space<vmem>>, vector<1x4x8xbf16>
    %91 = vector.shape_cast %90 : vector<1x4x8xbf16> to vector<4x8xbf16>
    %cst_115 = arith.constant dense<0.000000e+00> : vector<64x8xf32>
    %92 = tpu.matmul %89, %91, %cst_115 {dimension_numbers = #tpu.dot_dimension_numbers<[1], [0], [0], [1], [0, 0, 1, 1], [], []>} : vector<64x4xbf16>, vector<4x8xbf16>, vector<64x8xf32> -> vector<64x8xf32>
    %c0_116 = arith.constant 0 : index
    %c0_117 = arith.constant 0 : index
    %93 = vector.load %arg17[%c0_116, %c0_117] : memref<64x8xf32, #tpu.memory_space<vmem>>, vector<64x8xf32>
    %94 = arith.addf %93, %92 : vector<64x8xf32>
    %c0_118 = arith.constant 0 : index
    %c0_119 = arith.constant 0 : index
    %95 = vector.load %arg17[%c0_118, %c0_119] : memref<64x8xf32, #tpu.memory_space<vmem>>, vector<64x8xf32>
    tpu.vector_store %arg17[%c0_118, %c0_119], %94 {strides = array<i32>} : memref<64x8xf32, #tpu.memory_space<vmem>>, vector<64x8xf32>,
    %c0_120 = arith.constant 0 : index
    %c0_121 = arith.constant 0 : index
    %96 = vector.load %arg17[%c0_120, %c0_121] : memref<64x8xf32, #tpu.memory_space<vmem>>, vector<64x8xf32>
    %c0_122 = arith.constant 0 : index
    %c0_123 = arith.constant 0 : index
    %97 = vector.load %arg18[%c0_122, %c0_123] : memref<64x8xf32, #tpu.memory_space<vmem>>, vector<64x8xf32>
    tpu.vector_store %arg18[%c0_122, %c0_123], %96 {strides = array<i32>} : memref<64x8xf32, #tpu.memory_space<vmem>>, vector<64x8xf32>,
    %c0_124 = arith.constant 0 : index
    %c0_125 = arith.constant 0 : index
    %98 = vector.load %arg17[%c0_124, %c0_125] : memref<64x8xf32, #tpu.memory_space<vmem>>, vector<64x8xf32>
    %c0_126 = arith.constant 0 : index
    %c0_127 = arith.constant 0 : index
    %99 = vector.load %arg3[%c0_126, %c0_127] : memref<1x8xf32, #tpu.memory_space<vmem>>, vector<1x8xf32>
    %100 = vector.broadcast %99 : vector<1x8xf32> to vector<64x8xf32>
    %101 = arith.mulf %98, %100 : vector<64x8xf32>
    %c0_128 = arith.constant 0 : index
    %c0_129 = arith.constant 0 : index
    %102 = vector.load %arg4[%c0_128, %c0_129] : memref<1x8xf32, #tpu.memory_space<vmem>>, vector<1x8xf32>
    %103 = vector.broadcast %102 : vector<1x8xf32> to vector<64x8xf32>
    %104 = arith.addf %101, %103 : vector<64x8xf32>
    %cst_130 = arith.constant 0.000000e+00 : f32
    %105 = vector.broadcast %cst_130 : f32 to vector<64x8xf32>
    %106 = arith.cmpf ogt, %104, %105 : vector<64x8xf32>
    %cst_131 = arith.constant 0.00999999977 : f32
    %107 = vector.broadcast %cst_131 : f32 to vector<64x8xf32>
    %108 = arith.mulf %107, %104 : vector<64x8xf32>
    %109 = arith.select %106, %104, %108 : vector<64x8xi1>, vector<64x8xf32>
    %110 = vector.shape_cast %109 : vector<64x8xf32> to vector<8x8x8xf32>
    %c1_132 = arith.constant 1 : index
    %c1_133 = arith.constant 1 : index
    %c0_134 = arith.constant 0 : index
    %111 = vector.load %arg16[%c1_132, %c1_133, %c0_134] : memref<10x10x8xf32, #tpu.memory_space<vmem>>, vector<8x8x8xf32>
    tpu.vector_store %arg16[%c1_132, %c1_133, %c0_134], %110 {strides = array<i32>} : memref<10x10x8xf32, #tpu.memory_space<vmem>>, vector<8x8x8xf32>,
    %c0_135 = arith.constant 0 : index
    %c0_136 = arith.constant 0 : index
    %c0_137 = arith.constant 0 : index
    %112 = vector.load %arg16[%c0_135, %c0_136, %c0_137] : memref<10x10x8xf32, #tpu.memory_space<vmem>>, vector<8x8x8xf32>
    %113 = vector.shape_cast %112 : vector<8x8x8xf32> to vector<64x8xf32>
    %114 = arith.truncf %113 : vector<64x8xf32> to vector<64x8xbf16>
    %c0_138 = arith.constant 0 : index
    %c0_139 = arith.constant 0 : index
    %c0_140 = arith.constant 0 : index
    %115 = vector.load %arg5[%c0_138, %c0_139, %c0_140] : memref<9x8x8xbf16, #tpu.memory_space<vmem>>, vector<1x8x8xbf16>
    %116 = vector.shape_cast %115 : vector<1x8x8xbf16> to vector<8x8xbf16>
    %cst_141 = arith.constant dense<0.000000e+00> : vector<64x8xf32>
    %117 = tpu.matmul %114, %116, %cst_141 {dimension_numbers = #tpu.dot_dimension_numbers<[1], [0], [0], [1], [0, 0, 1, 1], [], []>} : vector<64x8xbf16>, vector<8x8xbf16>, vector<64x8xf32> -> vector<64x8xf32>
    %c0_142 = arith.constant 0 : index
    %c0_143 = arith.constant 0 : index
    %118 = vector.load %arg17[%c0_142, %c0_143] : memref<64x8xf32, #tpu.memory_space<vmem>>, vector<64x8xf32>
    tpu.vector_store %arg17[%c0_142, %c0_143], %117 {strides = array<i32>} : memref<64x8xf32, #tpu.memory_space<vmem>>, vector<64x8xf32>,
    %c0_144 = arith.constant 0 : index
    %c1_145 = arith.constant 1 : index
    %c0_146 = arith.constant 0 : index
    %119 = vector.load %arg16[%c0_144, %c1_145, %c0_146] : memref<10x10x8xf32, #tpu.memory_space<vmem>>, vector<8x8x8xf32>
    %120 = vector.shape_cast %119 : vector<8x8x8xf32> to vector<64x8xf32>
    %121 = arith.truncf %120 : vector<64x8xf32> to vector<64x8xbf16>
    %c1_147 = arith.constant 1 : index
    %c0_148 = arith.constant 0 : index
    %c0_149 = arith.constant 0 : index
    %122 = vector.load %arg5[%c1_147, %c0_148, %c0_149] : memref<9x8x8xbf16, #tpu.memory_space<vmem>>, vector<1x8x8xbf16>
    %123 = vector.shape_cast %122 : vector<1x8x8xbf16> to vector<8x8xbf16>
    %cst_150 = arith.constant dense<0.000000e+00> : vector<64x8xf32>
    %124 = tpu.matmul %121, %123, %cst_150 {dimension_numbers = #tpu.dot_dimension_numbers<[1], [0], [0], [1], [0, 0, 1, 1], [], []>} : vector<64x8xbf16>, vector<8x8xbf16>, vector<64x8xf32> -> vector<64x8xf32>
    %c0_151 = arith.constant 0 : index
    %c0_152 = arith.constant 0 : index
    %125 = vector.load %arg17[%c0_151, %c0_152] : memref<64x8xf32, #tpu.memory_space<vmem>>, vector<64x8xf32>
    %126 = arith.addf %125, %124 : vector<64x8xf32>
    %c0_153 = arith.constant 0 : index
    %c0_154 = arith.constant 0 : index
    %127 = vector.load %arg17[%c0_153, %c0_154] : memref<64x8xf32, #tpu.memory_space<vmem>>, vector<64x8xf32>
    tpu.vector_store %arg17[%c0_153, %c0_154], %126 {strides = array<i32>} : memref<64x8xf32, #tpu.memory_space<vmem>>, vector<64x8xf32>,
    %c0_155 = arith.constant 0 : index
    %c2_156 = arith.constant 2 : index
    %c0_157 = arith.constant 0 : index
    %128 = vector.load %arg16[%c0_155, %c2_156, %c0_157] : memref<10x10x8xf32, #tpu.memory_space<vmem>>, vector<8x8x8xf32>
    %129 = vector.shape_cast %128 : vector<8x8x8xf32> to vector<64x8xf32>
    %130 = arith.truncf %129 : vector<64x8xf32> to vector<64x8xbf16>
    %c2_158 = arith.constant 2 : index
    %c0_159 = arith.constant 0 : index
    %c0_160 = arith.constant 0 : index
    %131 = vector.load %arg5[%c2_158, %c0_159, %c0_160] : memref<9x8x8xbf16, #tpu.memory_space<vmem>>, vector<1x8x8xbf16>
    %132 = vector.shape_cast %131 : vector<1x8x8xbf16> to vector<8x8xbf16>
    %cst_161 = arith.constant dense<0.000000e+00> : vector<64x8xf32>
    %133 = tpu.matmul %130, %132, %cst_161 {dimension_numbers = #tpu.dot_dimension_numbers<[1], [0], [0], [1], [0, 0, 1, 1], [], []>} : vector<64x8xbf16>, vector<8x8xbf16>, vector<64x8xf32> -> vector<64x8xf32>
    %c0_162 = arith.constant 0 : index
    %c0_163 = arith.constant 0 : index
    %134 = vector.load %arg17[%c0_162, %c0_163] : memref<64x8xf32, #tpu.memory_space<vmem>>, vector<64x8xf32>
    %135 = arith.addf %134, %133 : vector<64x8xf32>
    %c0_164 = arith.constant 0 : index
    %c0_165 = arith.constant 0 : index
    %136 = vector.load %arg17[%c0_164, %c0_165] : memref<64x8xf32, #tpu.memory_space<vmem>>, vector<64x8xf32>
    tpu.vector_store %arg17[%c0_164, %c0_165], %135 {strides = array<i32>} : memref<64x8xf32, #tpu.memory_space<vmem>>, vector<64x8xf32>,
    %c1_166 = arith.constant 1 : index
    %c0_167 = arith.constant 0 : index
    %c0_168 = arith.constant 0 : index
    %137 = vector.load %arg16[%c1_166, %c0_167, %c0_168] : memref<10x10x8xf32, #tpu.memory_space<vmem>>, vector<8x8x8xf32>
    %138 = vector.shape_cast %137 : vector<8x8x8xf32> to vector<64x8xf32>
    %139 = arith.truncf %138 : vector<64x8xf32> to vector<64x8xbf16>
    %c3_169 = arith.constant 3 : index
    %c0_170 = arith.constant 0 : index
    %c0_171 = arith.constant 0 : index
    %140 = vector.load %arg5[%c3_169, %c0_170, %c0_171] : memref<9x8x8xbf16, #tpu.memory_space<vmem>>, vector<1x8x8xbf16>
    %141 = vector.shape_cast %140 : vector<1x8x8xbf16> to vector<8x8xbf16>
    %cst_172 = arith.constant dense<0.000000e+00> : vector<64x8xf32>
    %142 = tpu.matmul %139, %141, %cst_172 {dimension_numbers = #tpu.dot_dimension_numbers<[1], [0], [0], [1], [0, 0, 1, 1], [], []>} : vector<64x8xbf16>, vector<8x8xbf16>, vector<64x8xf32> -> vector<64x8xf32>
    %c0_173 = arith.constant 0 : index
    %c0_174 = arith.constant 0 : index
    %143 = vector.load %arg17[%c0_173, %c0_174] : memref<64x8xf32, #tpu.memory_space<vmem>>, vector<64x8xf32>
    %144 = arith.addf %143, %142 : vector<64x8xf32>
    %c0_175 = arith.constant 0 : index
    %c0_176 = arith.constant 0 : index
    %145 = vector.load %arg17[%c0_175, %c0_176] : memref<64x8xf32, #tpu.memory_space<vmem>>, vector<64x8xf32>
    tpu.vector_store %arg17[%c0_175, %c0_176], %144 {strides = array<i32>} : memref<64x8xf32, #tpu.memory_space<vmem>>, vector<64x8xf32>,
    %c1_177 = arith.constant 1 : index
    %c1_178 = arith.constant 1 : index
    %c0_179 = arith.constant 0 : index
    %146 = vector.load %arg16[%c1_177, %c1_178, %c0_179] : memref<10x10x8xf32, #tpu.memory_space<vmem>>, vector<8x8x8xf32>
    %147 = vector.shape_cast %146 : vector<8x8x8xf32> to vector<64x8xf32>
    %148 = arith.truncf %147 : vector<64x8xf32> to vector<64x8xbf16>
    %c4_180 = arith.constant 4 : index
    %c0_181 = arith.constant 0 : index
    %c0_182 = arith.constant 0 : index
    %149 = vector.load %arg5[%c4_180, %c0_181, %c0_182] : memref<9x8x8xbf16, #tpu.memory_space<vmem>>, vector<1x8x8xbf16>
    %150 = vector.shape_cast %149 : vector<1x8x8xbf16> to vector<8x8xbf16>
    %cst_183 = arith.constant dense<0.000000e+00> : vector<64x8xf32>
    %151 = tpu.matmul %148, %150, %cst_183 {dimension_numbers = #tpu.dot_dimension_numbers<[1], [0], [0], [1], [0, 0, 1, 1], [], []>} : vector<64x8xbf16>, vector<8x8xbf16>, vector<64x8xf32> -> vector<64x8xf32>
    %c0_184 = arith.constant 0 : index
    %c0_185 = arith.constant 0 : index
    %152 = vector.load %arg17[%c0_184, %c0_185] : memref<64x8xf32, #tpu.memory_space<vmem>>, vector<64x8xf32>
    %153 = arith.addf %152, %151 : vector<64x8xf32>
    %c0_186 = arith.constant 0 : index
    %c0_187 = arith.constant 0 : index
    %154 = vector.load %arg17[%c0_186, %c0_187] : memref<64x8xf32, #tpu.memory_space<vmem>>, vector<64x8xf32>
    tpu.vector_store %arg17[%c0_186, %c0_187], %153 {strides = array<i32>} : memref<64x8xf32, #tpu.memory_space<vmem>>, vector<64x8xf32>,
    %c1_188 = arith.constant 1 : index
    %c2_189 = arith.constant 2 : index
    %c0_190 = arith.constant 0 : index
    %155 = vector.load %arg16[%c1_188, %c2_189, %c0_190] : memref<10x10x8xf32, #tpu.memory_space<vmem>>, vector<8x8x8xf32>
    %156 = vector.shape_cast %155 : vector<8x8x8xf32> to vector<64x8xf32>
    %157 = arith.truncf %156 : vector<64x8xf32> to vector<64x8xbf16>
    %c5_191 = arith.constant 5 : index
    %c0_192 = arith.constant 0 : index
    %c0_193 = arith.constant 0 : index
    %158 = vector.load %arg5[%c5_191, %c0_192, %c0_193] : memref<9x8x8xbf16, #tpu.memory_space<vmem>>, vector<1x8x8xbf16>
    %159 = vector.shape_cast %158 : vector<1x8x8xbf16> to vector<8x8xbf16>
    %cst_194 = arith.constant dense<0.000000e+00> : vector<64x8xf32>
    %160 = tpu.matmul %157, %159, %cst_194 {dimension_numbers = #tpu.dot_dimension_numbers<[1], [0], [0], [1], [0, 0, 1, 1], [], []>} : vector<64x8xbf16>, vector<8x8xbf16>, vector<64x8xf32> -> vector<64x8xf32>
    %c0_195 = arith.constant 0 : index
    %c0_196 = arith.constant 0 : index
    %161 = vector.load %arg17[%c0_195, %c0_196] : memref<64x8xf32, #tpu.memory_space<vmem>>, vector<64x8xf32>
    %162 = arith.addf %161, %160 : vector<64x8xf32>
    %c0_197 = arith.constant 0 : index
    %c0_198 = arith.constant 0 : index
    %163 = vector.load %arg17[%c0_197, %c0_198] : memref<64x8xf32, #tpu.memory_space<vmem>>, vector<64x8xf32>
    tpu.vector_store %arg17[%c0_197, %c0_198], %162 {strides = array<i32>} : memref<64x8xf32, #tpu.memory_space<vmem>>, vector<64x8xf32>,
    %c2_199 = arith.constant 2 : index
    %c0_200 = arith.constant 0 : index
    %c0_201 = arith.constant 0 : index
    %164 = vector.load %arg16[%c2_199, %c0_200, %c0_201] : memref<10x10x8xf32, #tpu.memory_space<vmem>>, vector<8x8x8xf32>
    %165 = vector.shape_cast %164 : vector<8x8x8xf32> to vector<64x8xf32>
    %166 = arith.truncf %165 : vector<64x8xf32> to vector<64x8xbf16>
    %c6_202 = arith.constant 6 : index
    %c0_203 = arith.constant 0 : index
    %c0_204 = arith.constant 0 : index
    %167 = vector.load %arg5[%c6_202, %c0_203, %c0_204] : memref<9x8x8xbf16, #tpu.memory_space<vmem>>, vector<1x8x8xbf16>
    %168 = vector.shape_cast %167 : vector<1x8x8xbf16> to vector<8x8xbf16>
    %cst_205 = arith.constant dense<0.000000e+00> : vector<64x8xf32>
    %169 = tpu.matmul %166, %168, %cst_205 {dimension_numbers = #tpu.dot_dimension_numbers<[1], [0], [0], [1], [0, 0, 1, 1], [], []>} : vector<64x8xbf16>, vector<8x8xbf16>, vector<64x8xf32> -> vector<64x8xf32>
    %c0_206 = arith.constant 0 : index
    %c0_207 = arith.constant 0 : index
    %170 = vector.load %arg17[%c0_206, %c0_207] : memref<64x8xf32, #tpu.memory_space<vmem>>, vector<64x8xf32>
    %171 = arith.addf %170, %169 : vector<64x8xf32>
    %c0_208 = arith.constant 0 : index
    %c0_209 = arith.constant 0 : index
    %172 = vector.load %arg17[%c0_208, %c0_209] : memref<64x8xf32, #tpu.memory_space<vmem>>, vector<64x8xf32>
    tpu.vector_store %arg17[%c0_208, %c0_209], %171 {strides = array<i32>} : memref<64x8xf32, #tpu.memory_space<vmem>>, vector<64x8xf32>,
    %c2_210 = arith.constant 2 : index
    %c1_211 = arith.constant 1 : index
    %c0_212 = arith.constant 0 : index
    %173 = vector.load %arg16[%c2_210, %c1_211, %c0_212] : memref<10x10x8xf32, #tpu.memory_space<vmem>>, vector<8x8x8xf32>
    %174 = vector.shape_cast %173 : vector<8x8x8xf32> to vector<64x8xf32>
    %175 = arith.truncf %174 : vector<64x8xf32> to vector<64x8xbf16>
    %c7_213 = arith.constant 7 : index
    %c0_214 = arith.constant 0 : index
    %c0_215 = arith.constant 0 : index
    %176 = vector.load %arg5[%c7_213, %c0_214, %c0_215] : memref<9x8x8xbf16, #tpu.memory_space<vmem>>, vector<1x8x8xbf16>
    %177 = vector.shape_cast %176 : vector<1x8x8xbf16> to vector<8x8xbf16>
    %cst_216 = arith.constant dense<0.000000e+00> : vector<64x8xf32>
    %178 = tpu.matmul %175, %177, %cst_216 {dimension_numbers = #tpu.dot_dimension_numbers<[1], [0], [0], [1], [0, 0, 1, 1], [], []>} : vector<64x8xbf16>, vector<8x8xbf16>, vector<64x8xf32> -> vector<64x8xf32>
    %c0_217 = arith.constant 0 : index
    %c0_218 = arith.constant 0 : index
    %179 = vector.load %arg17[%c0_217, %c0_218] : memref<64x8xf32, #tpu.memory_space<vmem>>, vector<64x8xf32>
    %180 = arith.addf %179, %178 : vector<64x8xf32>
    %c0_219 = arith.constant 0 : index
    %c0_220 = arith.constant 0 : index
    %181 = vector.load %arg17[%c0_219, %c0_220] : memref<64x8xf32, #tpu.memory_space<vmem>>, vector<64x8xf32>
    tpu.vector_store %arg17[%c0_219, %c0_220], %180 {strides = array<i32>} : memref<64x8xf32, #tpu.memory_space<vmem>>, vector<64x8xf32>,
    %c2_221 = arith.constant 2 : index
    %c2_222 = arith.constant 2 : index
    %c0_223 = arith.constant 0 : index
    %182 = vector.load %arg16[%c2_221, %c2_222, %c0_223] : memref<10x10x8xf32, #tpu.memory_space<vmem>>, vector<8x8x8xf32>
    %183 = vector.shape_cast %182 : vector<8x8x8xf32> to vector<64x8xf32>
    %184 = arith.truncf %183 : vector<64x8xf32> to vector<64x8xbf16>
    %c8_224 = arith.constant 8 : index
    %c0_225 = arith.constant 0 : index
    %c0_226 = arith.constant 0 : index
    %185 = vector.load %arg5[%c8_224, %c0_225, %c0_226] : memref<9x8x8xbf16, #tpu.memory_space<vmem>>, vector<1x8x8xbf16>
    %186 = vector.shape_cast %185 : vector<1x8x8xbf16> to vector<8x8xbf16>
    %cst_227 = arith.constant dense<0.000000e+00> : vector<64x8xf32>
    %187 = tpu.matmul %184, %186, %cst_227 {dimension_numbers = #tpu.dot_dimension_numbers<[1], [0], [0], [1], [0, 0, 1, 1], [], []>} : vector<64x8xbf16>, vector<8x8xbf16>, vector<64x8xf32> -> vector<64x8xf32>
    %c0_228 = arith.constant 0 : index
    %c0_229 = arith.constant 0 : index
    %188 = vector.load %arg17[%c0_228, %c0_229] : memref<64x8xf32, #tpu.memory_space<vmem>>, vector<64x8xf32>
    %189 = arith.addf %188, %187 : vector<64x8xf32>
    %c0_230 = arith.constant 0 : index
    %c0_231 = arith.constant 0 : index
    %190 = vector.load %arg17[%c0_230, %c0_231] : memref<64x8xf32, #tpu.memory_space<vmem>>, vector<64x8xf32>
    tpu.vector_store %arg17[%c0_230, %c0_231], %189 {strides = array<i32>} : memref<64x8xf32, #tpu.memory_space<vmem>>, vector<64x8xf32>,
    %c0_232 = arith.constant 0 : index
    %c0_233 = arith.constant 0 : index
    %191 = vector.load %arg17[%c0_232, %c0_233] : memref<64x8xf32, #tpu.memory_space<vmem>>, vector<64x8xf32>
    %c0_234 = arith.constant 0 : index
    %c0_235 = arith.constant 0 : index
    %192 = vector.load %arg6[%c0_234, %c0_235] : memref<1x8xf32, #tpu.memory_space<vmem>>, vector<1x8xf32>
    %193 = vector.broadcast %192 : vector<1x8xf32> to vector<64x8xf32>
    %194 = arith.mulf %191, %193 : vector<64x8xf32>
    %c0_236 = arith.constant 0 : index
    %c0_237 = arith.constant 0 : index
    %195 = vector.load %arg7[%c0_236, %c0_237] : memref<1x8xf32, #tpu.memory_space<vmem>>, vector<1x8xf32>
    %196 = vector.broadcast %195 : vector<1x8xf32> to vector<64x8xf32>
    %197 = arith.addf %194, %196 : vector<64x8xf32>
    %cst_238 = arith.constant 0.000000e+00 : f32
    %198 = vector.broadcast %cst_238 : f32 to vector<64x8xf32>
    %199 = arith.cmpf ogt, %197, %198 : vector<64x8xf32>
    %cst_239 = arith.constant 0.00999999977 : f32
    %200 = vector.broadcast %cst_239 : f32 to vector<64x8xf32>
    %201 = arith.mulf %200, %197 : vector<64x8xf32>
    %202 = arith.select %199, %197, %201 : vector<64x8xi1>, vector<64x8xf32>
    %203 = vector.shape_cast %202 : vector<64x8xf32> to vector<8x8x8xf32>
    %c1_240 = arith.constant 1 : index
    %c1_241 = arith.constant 1 : index
    %c0_242 = arith.constant 0 : index
    %204 = vector.load %arg16[%c1_240, %c1_241, %c0_242] : memref<10x10x8xf32, #tpu.memory_space<vmem>>, vector<8x8x8xf32>
    tpu.vector_store %arg16[%c1_240, %c1_241, %c0_242], %203 {strides = array<i32>} : memref<10x10x8xf32, #tpu.memory_space<vmem>>, vector<8x8x8xf32>,
    %c0_243 = arith.constant 0 : index
    %c0_244 = arith.constant 0 : index
    %c0_245 = arith.constant 0 : index
    %205 = vector.load %arg16[%c0_243, %c0_244, %c0_245] : memref<10x10x8xf32, #tpu.memory_space<vmem>>, vector<8x8x8xf32>
    %206 = vector.shape_cast %205 : vector<8x8x8xf32> to vector<64x8xf32>
    %207 = arith.truncf %206 : vector<64x8xf32> to vector<64x8xbf16>
    %c0_246 = arith.constant 0 : index
    %c0_247 = arith.constant 0 : index
    %c0_248 = arith.constant 0 : index
    %208 = vector.load %arg8[%c0_246, %c0_247, %c0_248] : memref<9x8x8xbf16, #tpu.memory_space<vmem>>, vector<1x8x8xbf16>
    %209 = vector.shape_cast %208 : vector<1x8x8xbf16> to vector<8x8xbf16>
    %cst_249 = arith.constant dense<0.000000e+00> : vector<64x8xf32>
    %210 = tpu.matmul %207, %209, %cst_249 {dimension_numbers = #tpu.dot_dimension_numbers<[1], [0], [0], [1], [0, 0, 1, 1], [], []>} : vector<64x8xbf16>, vector<8x8xbf16>, vector<64x8xf32> -> vector<64x8xf32>
    %c0_250 = arith.constant 0 : index
    %c0_251 = arith.constant 0 : index
    %211 = vector.load %arg17[%c0_250, %c0_251] : memref<64x8xf32, #tpu.memory_space<vmem>>, vector<64x8xf32>
    tpu.vector_store %arg17[%c0_250, %c0_251], %210 {strides = array<i32>} : memref<64x8xf32, #tpu.memory_space<vmem>>, vector<64x8xf32>,
    %c0_252 = arith.constant 0 : index
    %c1_253 = arith.constant 1 : index
    %c0_254 = arith.constant 0 : index
    %212 = vector.load %arg16[%c0_252, %c1_253, %c0_254] : memref<10x10x8xf32, #tpu.memory_space<vmem>>, vector<8x8x8xf32>
    %213 = vector.shape_cast %212 : vector<8x8x8xf32> to vector<64x8xf32>
    %214 = arith.truncf %213 : vector<64x8xf32> to vector<64x8xbf16>
    %c1_255 = arith.constant 1 : index
    %c0_256 = arith.constant 0 : index
    %c0_257 = arith.constant 0 : index
    %215 = vector.load %arg8[%c1_255, %c0_256, %c0_257] : memref<9x8x8xbf16, #tpu.memory_space<vmem>>, vector<1x8x8xbf16>
    %216 = vector.shape_cast %215 : vector<1x8x8xbf16> to vector<8x8xbf16>
    %cst_258 = arith.constant dense<0.000000e+00> : vector<64x8xf32>
    %217 = tpu.matmul %214, %216, %cst_258 {dimension_numbers = #tpu.dot_dimension_numbers<[1], [0], [0], [1], [0, 0, 1, 1], [], []>} : vector<64x8xbf16>, vector<8x8xbf16>, vector<64x8xf32> -> vector<64x8xf32>
    %c0_259 = arith.constant 0 : index
    %c0_260 = arith.constant 0 : index
    %218 = vector.load %arg17[%c0_259, %c0_260] : memref<64x8xf32, #tpu.memory_space<vmem>>, vector<64x8xf32>
    %219 = arith.addf %218, %217 : vector<64x8xf32>
    %c0_261 = arith.constant 0 : index
    %c0_262 = arith.constant 0 : index
    %220 = vector.load %arg17[%c0_261, %c0_262] : memref<64x8xf32, #tpu.memory_space<vmem>>, vector<64x8xf32>
    tpu.vector_store %arg17[%c0_261, %c0_262], %219 {strides = array<i32>} : memref<64x8xf32, #tpu.memory_space<vmem>>, vector<64x8xf32>,
    %c0_263 = arith.constant 0 : index
    %c2_264 = arith.constant 2 : index
    %c0_265 = arith.constant 0 : index
    %221 = vector.load %arg16[%c0_263, %c2_264, %c0_265] : memref<10x10x8xf32, #tpu.memory_space<vmem>>, vector<8x8x8xf32>
    %222 = vector.shape_cast %221 : vector<8x8x8xf32> to vector<64x8xf32>
    %223 = arith.truncf %222 : vector<64x8xf32> to vector<64x8xbf16>
    %c2_266 = arith.constant 2 : index
    %c0_267 = arith.constant 0 : index
    %c0_268 = arith.constant 0 : index
    %224 = vector.load %arg8[%c2_266, %c0_267, %c0_268] : memref<9x8x8xbf16, #tpu.memory_space<vmem>>, vector<1x8x8xbf16>
    %225 = vector.shape_cast %224 : vector<1x8x8xbf16> to vector<8x8xbf16>
    %cst_269 = arith.constant dense<0.000000e+00> : vector<64x8xf32>
    %226 = tpu.matmul %223, %225, %cst_269 {dimension_numbers = #tpu.dot_dimension_numbers<[1], [0], [0], [1], [0, 0, 1, 1], [], []>} : vector<64x8xbf16>, vector<8x8xbf16>, vector<64x8xf32> -> vector<64x8xf32>
    %c0_270 = arith.constant 0 : index
    %c0_271 = arith.constant 0 : index
    %227 = vector.load %arg17[%c0_270, %c0_271] : memref<64x8xf32, #tpu.memory_space<vmem>>, vector<64x8xf32>
    %228 = arith.addf %227, %226 : vector<64x8xf32>
    %c0_272 = arith.constant 0 : index
    %c0_273 = arith.constant 0 : index
    %229 = vector.load %arg17[%c0_272, %c0_273] : memref<64x8xf32, #tpu.memory_space<vmem>>, vector<64x8xf32>
    tpu.vector_store %arg17[%c0_272, %c0_273], %228 {strides = array<i32>} : memref<64x8xf32, #tpu.memory_space<vmem>>, vector<64x8xf32>,
    %c1_274 = arith.constant 1 : index
    %c0_275 = arith.constant 0 : index
    %c0_276 = arith.constant 0 : index
    %230 = vector.load %arg16[%c1_274, %c0_275, %c0_276] : memref<10x10x8xf32, #tpu.memory_space<vmem>>, vector<8x8x8xf32>
    %231 = vector.shape_cast %230 : vector<8x8x8xf32> to vector<64x8xf32>
    %232 = arith.truncf %231 : vector<64x8xf32> to vector<64x8xbf16>
    %c3_277 = arith.constant 3 : index
    %c0_278 = arith.constant 0 : index
    %c0_279 = arith.constant 0 : index
    %233 = vector.load %arg8[%c3_277, %c0_278, %c0_279] : memref<9x8x8xbf16, #tpu.memory_space<vmem>>, vector<1x8x8xbf16>
    %234 = vector.shape_cast %233 : vector<1x8x8xbf16> to vector<8x8xbf16>
    %cst_280 = arith.constant dense<0.000000e+00> : vector<64x8xf32>
    %235 = tpu.matmul %232, %234, %cst_280 {dimension_numbers = #tpu.dot_dimension_numbers<[1], [0], [0], [1], [0, 0, 1, 1], [], []>} : vector<64x8xbf16>, vector<8x8xbf16>, vector<64x8xf32> -> vector<64x8xf32>
    %c0_281 = arith.constant 0 : index
    %c0_282 = arith.constant 0 : index
    %236 = vector.load %arg17[%c0_281, %c0_282] : memref<64x8xf32, #tpu.memory_space<vmem>>, vector<64x8xf32>
    %237 = arith.addf %236, %235 : vector<64x8xf32>
    %c0_283 = arith.constant 0 : index
    %c0_284 = arith.constant 0 : index
    %238 = vector.load %arg17[%c0_283, %c0_284] : memref<64x8xf32, #tpu.memory_space<vmem>>, vector<64x8xf32>
    tpu.vector_store %arg17[%c0_283, %c0_284], %237 {strides = array<i32>} : memref<64x8xf32, #tpu.memory_space<vmem>>, vector<64x8xf32>,
    %c1_285 = arith.constant 1 : index
    %c1_286 = arith.constant 1 : index
    %c0_287 = arith.constant 0 : index
    %239 = vector.load %arg16[%c1_285, %c1_286, %c0_287] : memref<10x10x8xf32, #tpu.memory_space<vmem>>, vector<8x8x8xf32>
    %240 = vector.shape_cast %239 : vector<8x8x8xf32> to vector<64x8xf32>
    %241 = arith.truncf %240 : vector<64x8xf32> to vector<64x8xbf16>
    %c4_288 = arith.constant 4 : index
    %c0_289 = arith.constant 0 : index
    %c0_290 = arith.constant 0 : index
    %242 = vector.load %arg8[%c4_288, %c0_289, %c0_290] : memref<9x8x8xbf16, #tpu.memory_space<vmem>>, vector<1x8x8xbf16>
    %243 = vector.shape_cast %242 : vector<1x8x8xbf16> to vector<8x8xbf16>
    %cst_291 = arith.constant dense<0.000000e+00> : vector<64x8xf32>
    %244 = tpu.matmul %241, %243, %cst_291 {dimension_numbers = #tpu.dot_dimension_numbers<[1], [0], [0], [1], [0, 0, 1, 1], [], []>} : vector<64x8xbf16>, vector<8x8xbf16>, vector<64x8xf32> -> vector<64x8xf32>
    %c0_292 = arith.constant 0 : index
    %c0_293 = arith.constant 0 : index
    %245 = vector.load %arg17[%c0_292, %c0_293] : memref<64x8xf32, #tpu.memory_space<vmem>>, vector<64x8xf32>
    %246 = arith.addf %245, %244 : vector<64x8xf32>
    %c0_294 = arith.constant 0 : index
    %c0_295 = arith.constant 0 : index
    %247 = vector.load %arg17[%c0_294, %c0_295] : memref<64x8xf32, #tpu.memory_space<vmem>>, vector<64x8xf32>
    tpu.vector_store %arg17[%c0_294, %c0_295], %246 {strides = array<i32>} : memref<64x8xf32, #tpu.memory_space<vmem>>, vector<64x8xf32>,
    %c1_296 = arith.constant 1 : index
    %c2_297 = arith.constant 2 : index
    %c0_298 = arith.constant 0 : index
    %248 = vector.load %arg16[%c1_296, %c2_297, %c0_298] : memref<10x10x8xf32, #tpu.memory_space<vmem>>, vector<8x8x8xf32>
    %249 = vector.shape_cast %248 : vector<8x8x8xf32> to vector<64x8xf32>
    %250 = arith.truncf %249 : vector<64x8xf32> to vector<64x8xbf16>
    %c5_299 = arith.constant 5 : index
    %c0_300 = arith.constant 0 : index
    %c0_301 = arith.constant 0 : index
    %251 = vector.load %arg8[%c5_299, %c0_300, %c0_301] : memref<9x8x8xbf16, #tpu.memory_space<vmem>>, vector<1x8x8xbf16>
    %252 = vector.shape_cast %251 : vector<1x8x8xbf16> to vector<8x8xbf16>
    %cst_302 = arith.constant dense<0.000000e+00> : vector<64x8xf32>
    %253 = tpu.matmul %250, %252, %cst_302 {dimension_numbers = #tpu.dot_dimension_numbers<[1], [0], [0], [1], [0, 0, 1, 1], [], []>} : vector<64x8xbf16>, vector<8x8xbf16>, vector<64x8xf32> -> vector<64x8xf32>
    %c0_303 = arith.constant 0 : index
    %c0_304 = arith.constant 0 : index
    %254 = vector.load %arg17[%c0_303, %c0_304] : memref<64x8xf32, #tpu.memory_space<vmem>>, vector<64x8xf32>
    %255 = arith.addf %254, %253 : vector<64x8xf32>
    %c0_305 = arith.constant 0 : index
    %c0_306 = arith.constant 0 : index
    %256 = vector.load %arg17[%c0_305, %c0_306] : memref<64x8xf32, #tpu.memory_space<vmem>>, vector<64x8xf32>
    tpu.vector_store %arg17[%c0_305, %c0_306], %255 {strides = array<i32>} : memref<64x8xf32, #tpu.memory_space<vmem>>, vector<64x8xf32>,
    %c2_307 = arith.constant 2 : index
    %c0_308 = arith.constant 0 : index
    %c0_309 = arith.constant 0 : index
    %257 = vector.load %arg16[%c2_307, %c0_308, %c0_309] : memref<10x10x8xf32, #tpu.memory_space<vmem>>, vector<8x8x8xf32>
    %258 = vector.shape_cast %257 : vector<8x8x8xf32> to vector<64x8xf32>
    %259 = arith.truncf %258 : vector<64x8xf32> to vector<64x8xbf16>
    %c6_310 = arith.constant 6 : index
    %c0_311 = arith.constant 0 : index
    %c0_312 = arith.constant 0 : index
    %260 = vector.load %arg8[%c6_310, %c0_311, %c0_312] : memref<9x8x8xbf16, #tpu.memory_space<vmem>>, vector<1x8x8xbf16>
    %261 = vector.shape_cast %260 : vector<1x8x8xbf16> to vector<8x8xbf16>
    %cst_313 = arith.constant dense<0.000000e+00> : vector<64x8xf32>
    %262 = tpu.matmul %259, %261, %cst_313 {dimension_numbers = #tpu.dot_dimension_numbers<[1], [0], [0], [1], [0, 0, 1, 1], [], []>} : vector<64x8xbf16>, vector<8x8xbf16>, vector<64x8xf32> -> vector<64x8xf32>
    %c0_314 = arith.constant 0 : index
    %c0_315 = arith.constant 0 : index
    %263 = vector.load %arg17[%c0_314, %c0_315] : memref<64x8xf32, #tpu.memory_space<vmem>>, vector<64x8xf32>
    %264 = arith.addf %263, %262 : vector<64x8xf32>
    %c0_316 = arith.constant 0 : index
    %c0_317 = arith.constant 0 : index
    %265 = vector.load %arg17[%c0_316, %c0_317] : memref<64x8xf32, #tpu.memory_space<vmem>>, vector<64x8xf32>
    tpu.vector_store %arg17[%c0_316, %c0_317], %264 {strides = array<i32>} : memref<64x8xf32, #tpu.memory_space<vmem>>, vector<64x8xf32>,
    %c2_318 = arith.constant 2 : index
    %c1_319 = arith.constant 1 : index
    %c0_320 = arith.constant 0 : index
    %266 = vector.load %arg16[%c2_318, %c1_319, %c0_320] : memref<10x10x8xf32, #tpu.memory_space<vmem>>, vector<8x8x8xf32>
    %267 = vector.shape_cast %266 : vector<8x8x8xf32> to vector<64x8xf32>
    %268 = arith.truncf %267 : vector<64x8xf32> to vector<64x8xbf16>
    %c7_321 = arith.constant 7 : index
    %c0_322 = arith.constant 0 : index
    %c0_323 = arith.constant 0 : index
    %269 = vector.load %arg8[%c7_321, %c0_322, %c0_323] : memref<9x8x8xbf16, #tpu.memory_space<vmem>>, vector<1x8x8xbf16>
    %270 = vector.shape_cast %269 : vector<1x8x8xbf16> to vector<8x8xbf16>
    %cst_324 = arith.constant dense<0.000000e+00> : vector<64x8xf32>
    %271 = tpu.matmul %268, %270, %cst_324 {dimension_numbers = #tpu.dot_dimension_numbers<[1], [0], [0], [1], [0, 0, 1, 1], [], []>} : vector<64x8xbf16>, vector<8x8xbf16>, vector<64x8xf32> -> vector<64x8xf32>
    %c0_325 = arith.constant 0 : index
    %c0_326 = arith.constant 0 : index
    %272 = vector.load %arg17[%c0_325, %c0_326] : memref<64x8xf32, #tpu.memory_space<vmem>>, vector<64x8xf32>
    %273 = arith.addf %272, %271 : vector<64x8xf32>
    %c0_327 = arith.constant 0 : index
    %c0_328 = arith.constant 0 : index
    %274 = vector.load %arg17[%c0_327, %c0_328] : memref<64x8xf32, #tpu.memory_space<vmem>>, vector<64x8xf32>
    tpu.vector_store %arg17[%c0_327, %c0_328], %273 {strides = array<i32>} : memref<64x8xf32, #tpu.memory_space<vmem>>, vector<64x8xf32>,
    %c2_329 = arith.constant 2 : index
    %c2_330 = arith.constant 2 : index
    %c0_331 = arith.constant 0 : index
    %275 = vector.load %arg16[%c2_329, %c2_330, %c0_331] : memref<10x10x8xf32, #tpu.memory_space<vmem>>, vector<8x8x8xf32>
    %276 = vector.shape_cast %275 : vector<8x8x8xf32> to vector<64x8xf32>
    %277 = arith.truncf %276 : vector<64x8xf32> to vector<64x8xbf16>
    %c8_332 = arith.constant 8 : index
    %c0_333 = arith.constant 0 : index
    %c0_334 = arith.constant 0 : index
    %278 = vector.load %arg8[%c8_332, %c0_333, %c0_334] : memref<9x8x8xbf16, #tpu.memory_space<vmem>>, vector<1x8x8xbf16>
    %279 = vector.shape_cast %278 : vector<1x8x8xbf16> to vector<8x8xbf16>
    %cst_335 = arith.constant dense<0.000000e+00> : vector<64x8xf32>
    %280 = tpu.matmul %277, %279, %cst_335 {dimension_numbers = #tpu.dot_dimension_numbers<[1], [0], [0], [1], [0, 0, 1, 1], [], []>} : vector<64x8xbf16>, vector<8x8xbf16>, vector<64x8xf32> -> vector<64x8xf32>
    %c0_336 = arith.constant 0 : index
    %c0_337 = arith.constant 0 : index
    %281 = vector.load %arg17[%c0_336, %c0_337] : memref<64x8xf32, #tpu.memory_space<vmem>>, vector<64x8xf32>
    %282 = arith.addf %281, %280 : vector<64x8xf32>
    %c0_338 = arith.constant 0 : index
    %c0_339 = arith.constant 0 : index
    %283 = vector.load %arg17[%c0_338, %c0_339] : memref<64x8xf32, #tpu.memory_space<vmem>>, vector<64x8xf32>
    tpu.vector_store %arg17[%c0_338, %c0_339], %282 {strides = array<i32>} : memref<64x8xf32, #tpu.memory_space<vmem>>, vector<64x8xf32>,
    %c0_340 = arith.constant 0 : index
    %c0_341 = arith.constant 0 : index
    %284 = vector.load %arg17[%c0_340, %c0_341] : memref<64x8xf32, #tpu.memory_space<vmem>>, vector<64x8xf32>
    %c0_342 = arith.constant 0 : index
    %c0_343 = arith.constant 0 : index
    %285 = vector.load %arg18[%c0_342, %c0_343] : memref<64x8xf32, #tpu.memory_space<vmem>>, vector<64x8xf32>
    %286 = arith.addf %284, %285 : vector<64x8xf32>
    %c0_344 = arith.constant 0 : index
    %c0_345 = arith.constant 0 : index
    %287 = vector.load %arg17[%c0_344, %c0_345] : memref<64x8xf32, #tpu.memory_space<vmem>>, vector<64x8xf32>
    tpu.vector_store %arg17[%c0_344, %c0_345], %286 {strides = array<i32>} : memref<64x8xf32, #tpu.memory_space<vmem>>, vector<64x8xf32>,
    %c0_346 = arith.constant 0 : index
    %c0_347 = arith.constant 0 : index
    %288 = vector.load %arg17[%c0_346, %c0_347] : memref<64x8xf32, #tpu.memory_space<vmem>>, vector<64x8xf32>
    %c0_348 = arith.constant 0 : index
    %c0_349 = arith.constant 0 : index
    %289 = vector.load %arg18[%c0_348, %c0_349] : memref<64x8xf32, #tpu.memory_space<vmem>>, vector<64x8xf32>
    tpu.vector_store %arg18[%c0_348, %c0_349], %288 {strides = array<i32>} : memref<64x8xf32, #tpu.memory_space<vmem>>, vector<64x8xf32>,
    %c0_350 = arith.constant 0 : index
    %c0_351 = arith.constant 0 : index
    %290 = vector.load %arg17[%c0_350, %c0_351] : memref<64x8xf32, #tpu.memory_space<vmem>>, vector<64x8xf32>
    %c0_352 = arith.constant 0 : index
    %c0_353 = arith.constant 0 : index
    %291 = vector.load %arg9[%c0_352, %c0_353] : memref<1x8xf32, #tpu.memory_space<vmem>>, vector<1x8xf32>
    %292 = vector.broadcast %291 : vector<1x8xf32> to vector<64x8xf32>
    %293 = arith.mulf %290, %292 : vector<64x8xf32>
    %c0_354 = arith.constant 0 : index
    %c0_355 = arith.constant 0 : index
    %294 = vector.load %arg10[%c0_354, %c0_355] : memref<1x8xf32, #tpu.memory_space<vmem>>, vector<1x8xf32>
    %295 = vector.broadcast %294 : vector<1x8xf32> to vector<64x8xf32>
    %296 = arith.addf %293, %295 : vector<64x8xf32>
    %cst_356 = arith.constant 0.000000e+00 : f32
    %297 = vector.broadcast %cst_356 : f32 to vector<64x8xf32>
    %298 = arith.cmpf ogt, %296, %297 : vector<64x8xf32>
    %cst_357 = arith.constant 0.00999999977 : f32
    %299 = vector.broadcast %cst_357 : f32 to vector<64x8xf32>
    %300 = arith.mulf %299, %296 : vector<64x8xf32>
    %301 = arith.select %298, %296, %300 : vector<64x8xi1>, vector<64x8xf32>
    %302 = vector.shape_cast %301 : vector<64x8xf32> to vector<8x8x8xf32>
    %c1_358 = arith.constant 1 : index
    %c1_359 = arith.constant 1 : index
    %c0_360 = arith.constant 0 : index
    %303 = vector.load %arg16[%c1_358, %c1_359, %c0_360] : memref<10x10x8xf32, #tpu.memory_space<vmem>>, vector<8x8x8xf32>
    tpu.vector_store %arg16[%c1_358, %c1_359, %c0_360], %302 {strides = array<i32>} : memref<10x10x8xf32, #tpu.memory_space<vmem>>, vector<8x8x8xf32>,
    %c0_361 = arith.constant 0 : index
    %c0_362 = arith.constant 0 : index
    %c0_363 = arith.constant 0 : index
    %304 = vector.load %arg16[%c0_361, %c0_362, %c0_363] : memref<10x10x8xf32, #tpu.memory_space<vmem>>, vector<8x8x8xf32>
    %305 = vector.shape_cast %304 : vector<8x8x8xf32> to vector<64x8xf32>
    %306 = arith.truncf %305 : vector<64x8xf32> to vector<64x8xbf16>
    %c0_364 = arith.constant 0 : index
    %c0_365 = arith.constant 0 : index
    %c0_366 = arith.constant 0 : index
    %307 = vector.load %arg11[%c0_364, %c0_365, %c0_366] : memref<9x8x8xbf16, #tpu.memory_space<vmem>>, vector<1x8x8xbf16>
    %308 = vector.shape_cast %307 : vector<1x8x8xbf16> to vector<8x8xbf16>
    %cst_367 = arith.constant dense<0.000000e+00> : vector<64x8xf32>
    %309 = tpu.matmul %306, %308, %cst_367 {dimension_numbers = #tpu.dot_dimension_numbers<[1], [0], [0], [1], [0, 0, 1, 1], [], []>} : vector<64x8xbf16>, vector<8x8xbf16>, vector<64x8xf32> -> vector<64x8xf32>
    %c0_368 = arith.constant 0 : index
    %c0_369 = arith.constant 0 : index
    %310 = vector.load %arg17[%c0_368, %c0_369] : memref<64x8xf32, #tpu.memory_space<vmem>>, vector<64x8xf32>
    tpu.vector_store %arg17[%c0_368, %c0_369], %309 {strides = array<i32>} : memref<64x8xf32, #tpu.memory_space<vmem>>, vector<64x8xf32>,
    %c0_370 = arith.constant 0 : index
    %c1_371 = arith.constant 1 : index
    %c0_372 = arith.constant 0 : index
    %311 = vector.load %arg16[%c0_370, %c1_371, %c0_372] : memref<10x10x8xf32, #tpu.memory_space<vmem>>, vector<8x8x8xf32>
    %312 = vector.shape_cast %311 : vector<8x8x8xf32> to vector<64x8xf32>
    %313 = arith.truncf %312 : vector<64x8xf32> to vector<64x8xbf16>
    %c1_373 = arith.constant 1 : index
    %c0_374 = arith.constant 0 : index
    %c0_375 = arith.constant 0 : index
    %314 = vector.load %arg11[%c1_373, %c0_374, %c0_375] : memref<9x8x8xbf16, #tpu.memory_space<vmem>>, vector<1x8x8xbf16>
    %315 = vector.shape_cast %314 : vector<1x8x8xbf16> to vector<8x8xbf16>
    %cst_376 = arith.constant dense<0.000000e+00> : vector<64x8xf32>
    %316 = tpu.matmul %313, %315, %cst_376 {dimension_numbers = #tpu.dot_dimension_numbers<[1], [0], [0], [1], [0, 0, 1, 1], [], []>} : vector<64x8xbf16>, vector<8x8xbf16>, vector<64x8xf32> -> vector<64x8xf32>
    %c0_377 = arith.constant 0 : index
    %c0_378 = arith.constant 0 : index
    %317 = vector.load %arg17[%c0_377, %c0_378] : memref<64x8xf32, #tpu.memory_space<vmem>>, vector<64x8xf32>
    %318 = arith.addf %317, %316 : vector<64x8xf32>
    %c0_379 = arith.constant 0 : index
    %c0_380 = arith.constant 0 : index
    %319 = vector.load %arg17[%c0_379, %c0_380] : memref<64x8xf32, #tpu.memory_space<vmem>>, vector<64x8xf32>
    tpu.vector_store %arg17[%c0_379, %c0_380], %318 {strides = array<i32>} : memref<64x8xf32, #tpu.memory_space<vmem>>, vector<64x8xf32>,
    %c0_381 = arith.constant 0 : index
    %c2_382 = arith.constant 2 : index
    %c0_383 = arith.constant 0 : index
    %320 = vector.load %arg16[%c0_381, %c2_382, %c0_383] : memref<10x10x8xf32, #tpu.memory_space<vmem>>, vector<8x8x8xf32>
    %321 = vector.shape_cast %320 : vector<8x8x8xf32> to vector<64x8xf32>
    %322 = arith.truncf %321 : vector<64x8xf32> to vector<64x8xbf16>
    %c2_384 = arith.constant 2 : index
    %c0_385 = arith.constant 0 : index
    %c0_386 = arith.constant 0 : index
    %323 = vector.load %arg11[%c2_384, %c0_385, %c0_386] : memref<9x8x8xbf16, #tpu.memory_space<vmem>>, vector<1x8x8xbf16>
    %324 = vector.shape_cast %323 : vector<1x8x8xbf16> to vector<8x8xbf16>
    %cst_387 = arith.constant dense<0.000000e+00> : vector<64x8xf32>
    %325 = tpu.matmul %322, %324, %cst_387 {dimension_numbers = #tpu.dot_dimension_numbers<[1], [0], [0], [1], [0, 0, 1, 1], [], []>} : vector<64x8xbf16>, vector<8x8xbf16>, vector<64x8xf32> -> vector<64x8xf32>
    %c0_388 = arith.constant 0 : index
    %c0_389 = arith.constant 0 : index
    %326 = vector.load %arg17[%c0_388, %c0_389] : memref<64x8xf32, #tpu.memory_space<vmem>>, vector<64x8xf32>
    %327 = arith.addf %326, %325 : vector<64x8xf32>
    %c0_390 = arith.constant 0 : index
    %c0_391 = arith.constant 0 : index
    %328 = vector.load %arg17[%c0_390, %c0_391] : memref<64x8xf32, #tpu.memory_space<vmem>>, vector<64x8xf32>
    tpu.vector_store %arg17[%c0_390, %c0_391], %327 {strides = array<i32>} : memref<64x8xf32, #tpu.memory_space<vmem>>, vector<64x8xf32>,
    %c1_392 = arith.constant 1 : index
    %c0_393 = arith.constant 0 : index
    %c0_394 = arith.constant 0 : index
    %329 = vector.load %arg16[%c1_392, %c0_393, %c0_394] : memref<10x10x8xf32, #tpu.memory_space<vmem>>, vector<8x8x8xf32>
    %330 = vector.shape_cast %329 : vector<8x8x8xf32> to vector<64x8xf32>
    %331 = arith.truncf %330 : vector<64x8xf32> to vector<64x8xbf16>
    %c3_395 = arith.constant 3 : index
    %c0_396 = arith.constant 0 : index
    %c0_397 = arith.constant 0 : index
    %332 = vector.load %arg11[%c3_395, %c0_396, %c0_397] : memref<9x8x8xbf16, #tpu.memory_space<vmem>>, vector<1x8x8xbf16>
    %333 = vector.shape_cast %332 : vector<1x8x8xbf16> to vector<8x8xbf16>
    %cst_398 = arith.constant dense<0.000000e+00> : vector<64x8xf32>
    %334 = tpu.matmul %331, %333, %cst_398 {dimension_numbers = #tpu.dot_dimension_numbers<[1], [0], [0], [1], [0, 0, 1, 1], [], []>} : vector<64x8xbf16>, vector<8x8xbf16>, vector<64x8xf32> -> vector<64x8xf32>
    %c0_399 = arith.constant 0 : index
    %c0_400 = arith.constant 0 : index
    %335 = vector.load %arg17[%c0_399, %c0_400] : memref<64x8xf32, #tpu.memory_space<vmem>>, vector<64x8xf32>
    %336 = arith.addf %335, %334 : vector<64x8xf32>
    %c0_401 = arith.constant 0 : index
    %c0_402 = arith.constant 0 : index
    %337 = vector.load %arg17[%c0_401, %c0_402] : memref<64x8xf32, #tpu.memory_space<vmem>>, vector<64x8xf32>
    tpu.vector_store %arg17[%c0_401, %c0_402], %336 {strides = array<i32>} : memref<64x8xf32, #tpu.memory_space<vmem>>, vector<64x8xf32>,
    %c1_403 = arith.constant 1 : index
    %c1_404 = arith.constant 1 : index
    %c0_405 = arith.constant 0 : index
    %338 = vector.load %arg16[%c1_403, %c1_404, %c0_405] : memref<10x10x8xf32, #tpu.memory_space<vmem>>, vector<8x8x8xf32>
    %339 = vector.shape_cast %338 : vector<8x8x8xf32> to vector<64x8xf32>
    %340 = arith.truncf %339 : vector<64x8xf32> to vector<64x8xbf16>
    %c4_406 = arith.constant 4 : index
    %c0_407 = arith.constant 0 : index
    %c0_408 = arith.constant 0 : index
    %341 = vector.load %arg11[%c4_406, %c0_407, %c0_408] : memref<9x8x8xbf16, #tpu.memory_space<vmem>>, vector<1x8x8xbf16>
    %342 = vector.shape_cast %341 : vector<1x8x8xbf16> to vector<8x8xbf16>
    %cst_409 = arith.constant dense<0.000000e+00> : vector<64x8xf32>
    %343 = tpu.matmul %340, %342, %cst_409 {dimension_numbers = #tpu.dot_dimension_numbers<[1], [0], [0], [1], [0, 0, 1, 1], [], []>} : vector<64x8xbf16>, vector<8x8xbf16>, vector<64x8xf32> -> vector<64x8xf32>
    %c0_410 = arith.constant 0 : index
    %c0_411 = arith.constant 0 : index
    %344 = vector.load %arg17[%c0_410, %c0_411] : memref<64x8xf32, #tpu.memory_space<vmem>>, vector<64x8xf32>
    %345 = arith.addf %344, %343 : vector<64x8xf32>
    %c0_412 = arith.constant 0 : index
    %c0_413 = arith.constant 0 : index
    %346 = vector.load %arg17[%c0_412, %c0_413] : memref<64x8xf32, #tpu.memory_space<vmem>>, vector<64x8xf32>
    tpu.vector_store %arg17[%c0_412, %c0_413], %345 {strides = array<i32>} : memref<64x8xf32, #tpu.memory_space<vmem>>, vector<64x8xf32>,
    %c1_414 = arith.constant 1 : index
    %c2_415 = arith.constant 2 : index
    %c0_416 = arith.constant 0 : index
    %347 = vector.load %arg16[%c1_414, %c2_415, %c0_416] : memref<10x10x8xf32, #tpu.memory_space<vmem>>, vector<8x8x8xf32>
    %348 = vector.shape_cast %347 : vector<8x8x8xf32> to vector<64x8xf32>
    %349 = arith.truncf %348 : vector<64x8xf32> to vector<64x8xbf16>
    %c5_417 = arith.constant 5 : index
    %c0_418 = arith.constant 0 : index
    %c0_419 = arith.constant 0 : index
    %350 = vector.load %arg11[%c5_417, %c0_418, %c0_419] : memref<9x8x8xbf16, #tpu.memory_space<vmem>>, vector<1x8x8xbf16>
    %351 = vector.shape_cast %350 : vector<1x8x8xbf16> to vector<8x8xbf16>
    %cst_420 = arith.constant dense<0.000000e+00> : vector<64x8xf32>
    %352 = tpu.matmul %349, %351, %cst_420 {dimension_numbers = #tpu.dot_dimension_numbers<[1], [0], [0], [1], [0, 0, 1, 1], [], []>} : vector<64x8xbf16>, vector<8x8xbf16>, vector<64x8xf32> -> vector<64x8xf32>
    %c0_421 = arith.constant 0 : index
    %c0_422 = arith.constant 0 : index
    %353 = vector.load %arg17[%c0_421, %c0_422] : memref<64x8xf32, #tpu.memory_space<vmem>>, vector<64x8xf32>
    %354 = arith.addf %353, %352 : vector<64x8xf32>
    %c0_423 = arith.constant 0 : index
    %c0_424 = arith.constant 0 : index
    %355 = vector.load %arg17[%c0_423, %c0_424] : memref<64x8xf32, #tpu.memory_space<vmem>>, vector<64x8xf32>
    tpu.vector_store %arg17[%c0_423, %c0_424], %354 {strides = array<i32>} : memref<64x8xf32, #tpu.memory_space<vmem>>, vector<64x8xf32>,
    %c2_425 = arith.constant 2 : index
    %c0_426 = arith.constant 0 : index
    %c0_427 = arith.constant 0 : index
    %356 = vector.load %arg16[%c2_425, %c0_426, %c0_427] : memref<10x10x8xf32, #tpu.memory_space<vmem>>, vector<8x8x8xf32>
    %357 = vector.shape_cast %356 : vector<8x8x8xf32> to vector<64x8xf32>
    %358 = arith.truncf %357 : vector<64x8xf32> to vector<64x8xbf16>
    %c6_428 = arith.constant 6 : index
    %c0_429 = arith.constant 0 : index
    %c0_430 = arith.constant 0 : index
    %359 = vector.load %arg11[%c6_428, %c0_429, %c0_430] : memref<9x8x8xbf16, #tpu.memory_space<vmem>>, vector<1x8x8xbf16>
    %360 = vector.shape_cast %359 : vector<1x8x8xbf16> to vector<8x8xbf16>
    %cst_431 = arith.constant dense<0.000000e+00> : vector<64x8xf32>
    %361 = tpu.matmul %358, %360, %cst_431 {dimension_numbers = #tpu.dot_dimension_numbers<[1], [0], [0], [1], [0, 0, 1, 1], [], []>} : vector<64x8xbf16>, vector<8x8xbf16>, vector<64x8xf32> -> vector<64x8xf32>
    %c0_432 = arith.constant 0 : index
    %c0_433 = arith.constant 0 : index
    %362 = vector.load %arg17[%c0_432, %c0_433] : memref<64x8xf32, #tpu.memory_space<vmem>>, vector<64x8xf32>
    %363 = arith.addf %362, %361 : vector<64x8xf32>
    %c0_434 = arith.constant 0 : index
    %c0_435 = arith.constant 0 : index
    %364 = vector.load %arg17[%c0_434, %c0_435] : memref<64x8xf32, #tpu.memory_space<vmem>>, vector<64x8xf32>
    tpu.vector_store %arg17[%c0_434, %c0_435], %363 {strides = array<i32>} : memref<64x8xf32, #tpu.memory_space<vmem>>, vector<64x8xf32>,
    %c2_436 = arith.constant 2 : index
    %c1_437 = arith.constant 1 : index
    %c0_438 = arith.constant 0 : index
    %365 = vector.load %arg16[%c2_436, %c1_437, %c0_438] : memref<10x10x8xf32, #tpu.memory_space<vmem>>, vector<8x8x8xf32>
    %366 = vector.shape_cast %365 : vector<8x8x8xf32> to vector<64x8xf32>
    %367 = arith.truncf %366 : vector<64x8xf32> to vector<64x8xbf16>
    %c7_439 = arith.constant 7 : index
    %c0_440 = arith.constant 0 : index
    %c0_441 = arith.constant 0 : index
    %368 = vector.load %arg11[%c7_439, %c0_440, %c0_441] : memref<9x8x8xbf16, #tpu.memory_space<vmem>>, vector<1x8x8xbf16>
    %369 = vector.shape_cast %368 : vector<1x8x8xbf16> to vector<8x8xbf16>
    %cst_442 = arith.constant dense<0.000000e+00> : vector<64x8xf32>
    %370 = tpu.matmul %367, %369, %cst_442 {dimension_numbers = #tpu.dot_dimension_numbers<[1], [0], [0], [1], [0, 0, 1, 1], [], []>} : vector<64x8xbf16>, vector<8x8xbf16>, vector<64x8xf32> -> vector<64x8xf32>
    %c0_443 = arith.constant 0 : index
    %c0_444 = arith.constant 0 : index
    %371 = vector.load %arg17[%c0_443, %c0_444] : memref<64x8xf32, #tpu.memory_space<vmem>>, vector<64x8xf32>
    %372 = arith.addf %371, %370 : vector<64x8xf32>
    %c0_445 = arith.constant 0 : index
    %c0_446 = arith.constant 0 : index
    %373 = vector.load %arg17[%c0_445, %c0_446] : memref<64x8xf32, #tpu.memory_space<vmem>>, vector<64x8xf32>
    tpu.vector_store %arg17[%c0_445, %c0_446], %372 {strides = array<i32>} : memref<64x8xf32, #tpu.memory_space<vmem>>, vector<64x8xf32>,
    %c2_447 = arith.constant 2 : index
    %c2_448 = arith.constant 2 : index
    %c0_449 = arith.constant 0 : index
    %374 = vector.load %arg16[%c2_447, %c2_448, %c0_449] : memref<10x10x8xf32, #tpu.memory_space<vmem>>, vector<8x8x8xf32>
    %375 = vector.shape_cast %374 : vector<8x8x8xf32> to vector<64x8xf32>
    %376 = arith.truncf %375 : vector<64x8xf32> to vector<64x8xbf16>
    %c8_450 = arith.constant 8 : index
    %c0_451 = arith.constant 0 : index
    %c0_452 = arith.constant 0 : index
    %377 = vector.load %arg11[%c8_450, %c0_451, %c0_452] : memref<9x8x8xbf16, #tpu.memory_space<vmem>>, vector<1x8x8xbf16>
    %378 = vector.shape_cast %377 : vector<1x8x8xbf16> to vector<8x8xbf16>
    %cst_453 = arith.constant dense<0.000000e+00> : vector<64x8xf32>
    %379 = tpu.matmul %376, %378, %cst_453 {dimension_numbers = #tpu.dot_dimension_numbers<[1], [0], [0], [1], [0, 0, 1, 1], [], []>} : vector<64x8xbf16>, vector<8x8xbf16>, vector<64x8xf32> -> vector<64x8xf32>
    %c0_454 = arith.constant 0 : index
    %c0_455 = arith.constant 0 : index
    %380 = vector.load %arg17[%c0_454, %c0_455] : memref<64x8xf32, #tpu.memory_space<vmem>>, vector<64x8xf32>
    %381 = arith.addf %380, %379 : vector<64x8xf32>
    %c0_456 = arith.constant 0 : index
    %c0_457 = arith.constant 0 : index
    %382 = vector.load %arg17[%c0_456, %c0_457] : memref<64x8xf32, #tpu.memory_space<vmem>>, vector<64x8xf32>
    tpu.vector_store %arg17[%c0_456, %c0_457], %381 {strides = array<i32>} : memref<64x8xf32, #tpu.memory_space<vmem>>, vector<64x8xf32>,
    %c0_458 = arith.constant 0 : index
    %c0_459 = arith.constant 0 : index
    %383 = vector.load %arg17[%c0_458, %c0_459] : memref<64x8xf32, #tpu.memory_space<vmem>>, vector<64x8xf32>
    %c0_460 = arith.constant 0 : index
    %c0_461 = arith.constant 0 : index
    %384 = vector.load %arg12[%c0_460, %c0_461] : memref<1x8xf32, #tpu.memory_space<vmem>>, vector<1x8xf32>
    %385 = vector.broadcast %384 : vector<1x8xf32> to vector<64x8xf32>
    %386 = arith.mulf %383, %385 : vector<64x8xf32>
    %c0_462 = arith.constant 0 : index
    %c0_463 = arith.constant 0 : index
    %387 = vector.load %arg13[%c0_462, %c0_463] : memref<1x8xf32, #tpu.memory_space<vmem>>, vector<1x8xf32>
    %388 = vector.broadcast %387 : vector<1x8xf32> to vector<64x8xf32>
    %389 = arith.addf %386, %388 : vector<64x8xf32>
    %cst_464 = arith.constant 0.000000e+00 : f32
    %390 = vector.broadcast %cst_464 : f32 to vector<64x8xf32>
    %391 = arith.cmpf ogt, %389, %390 : vector<64x8xf32>
    %cst_465 = arith.constant 0.00999999977 : f32
    %392 = vector.broadcast %cst_465 : f32 to vector<64x8xf32>
    %393 = arith.mulf %392, %389 : vector<64x8xf32>
    %394 = arith.select %391, %389, %393 : vector<64x8xi1>, vector<64x8xf32>
    %395 = vector.shape_cast %394 : vector<64x8xf32> to vector<8x8x8xf32>
    %c1_466 = arith.constant 1 : index
    %c1_467 = arith.constant 1 : index
    %c0_468 = arith.constant 0 : index
    %396 = vector.load %arg16[%c1_466, %c1_467, %c0_468] : memref<10x10x8xf32, #tpu.memory_space<vmem>>, vector<8x8x8xf32>
    tpu.vector_store %arg16[%c1_466, %c1_467, %c0_468], %395 {strides = array<i32>} : memref<10x10x8xf32, #tpu.memory_space<vmem>>, vector<8x8x8xf32>,
    %c0_469 = arith.constant 0 : index
    %c0_470 = arith.constant 0 : index
    %c0_471 = arith.constant 0 : index
    %397 = vector.load %arg16[%c0_469, %c0_470, %c0_471] : memref<10x10x8xf32, #tpu.memory_space<vmem>>, vector<8x8x8xf32>
    %398 = vector.shape_cast %397 : vector<8x8x8xf32> to vector<64x8xf32>
    %399 = arith.truncf %398 : vector<64x8xf32> to vector<64x8xbf16>
    %c0_472 = arith.constant 0 : index
    %c0_473 = arith.constant 0 : index
    %c0_474 = arith.constant 0 : index
    %400 = vector.load %arg14[%c0_472, %c0_473, %c0_474] : memref<9x8x8xbf16, #tpu.memory_space<vmem>>, vector<1x8x8xbf16>
    %401 = vector.shape_cast %400 : vector<1x8x8xbf16> to vector<8x8xbf16>
    %cst_475 = arith.constant dense<0.000000e+00> : vector<64x8xf32>
    %402 = tpu.matmul %399, %401, %cst_475 {dimension_numbers = #tpu.dot_dimension_numbers<[1], [0], [0], [1], [0, 0, 1, 1], [], []>} : vector<64x8xbf16>, vector<8x8xbf16>, vector<64x8xf32> -> vector<64x8xf32>
    %c0_476 = arith.constant 0 : index
    %c0_477 = arith.constant 0 : index
    %403 = vector.load %arg17[%c0_476, %c0_477] : memref<64x8xf32, #tpu.memory_space<vmem>>, vector<64x8xf32>
    tpu.vector_store %arg17[%c0_476, %c0_477], %402 {strides = array<i32>} : memref<64x8xf32, #tpu.memory_space<vmem>>, vector<64x8xf32>,
    %c0_478 = arith.constant 0 : index
    %c1_479 = arith.constant 1 : index
    %c0_480 = arith.constant 0 : index
    %404 = vector.load %arg16[%c0_478, %c1_479, %c0_480] : memref<10x10x8xf32, #tpu.memory_space<vmem>>, vector<8x8x8xf32>
    %405 = vector.shape_cast %404 : vector<8x8x8xf32> to vector<64x8xf32>
    %406 = arith.truncf %405 : vector<64x8xf32> to vector<64x8xbf16>
    %c1_481 = arith.constant 1 : index
    %c0_482 = arith.constant 0 : index
    %c0_483 = arith.constant 0 : index
    %407 = vector.load %arg14[%c1_481, %c0_482, %c0_483] : memref<9x8x8xbf16, #tpu.memory_space<vmem>>, vector<1x8x8xbf16>
    %408 = vector.shape_cast %407 : vector<1x8x8xbf16> to vector<8x8xbf16>
    %cst_484 = arith.constant dense<0.000000e+00> : vector<64x8xf32>
    %409 = tpu.matmul %406, %408, %cst_484 {dimension_numbers = #tpu.dot_dimension_numbers<[1], [0], [0], [1], [0, 0, 1, 1], [], []>} : vector<64x8xbf16>, vector<8x8xbf16>, vector<64x8xf32> -> vector<64x8xf32>
    %c0_485 = arith.constant 0 : index
    %c0_486 = arith.constant 0 : index
    %410 = vector.load %arg17[%c0_485, %c0_486] : memref<64x8xf32, #tpu.memory_space<vmem>>, vector<64x8xf32>
    %411 = arith.addf %410, %409 : vector<64x8xf32>
    %c0_487 = arith.constant 0 : index
    %c0_488 = arith.constant 0 : index
    %412 = vector.load %arg17[%c0_487, %c0_488] : memref<64x8xf32, #tpu.memory_space<vmem>>, vector<64x8xf32>
    tpu.vector_store %arg17[%c0_487, %c0_488], %411 {strides = array<i32>} : memref<64x8xf32, #tpu.memory_space<vmem>>, vector<64x8xf32>,
    %c0_489 = arith.constant 0 : index
    %c2_490 = arith.constant 2 : index
    %c0_491 = arith.constant 0 : index
    %413 = vector.load %arg16[%c0_489, %c2_490, %c0_491] : memref<10x10x8xf32, #tpu.memory_space<vmem>>, vector<8x8x8xf32>
    %414 = vector.shape_cast %413 : vector<8x8x8xf32> to vector<64x8xf32>
    %415 = arith.truncf %414 : vector<64x8xf32> to vector<64x8xbf16>
    %c2_492 = arith.constant 2 : index
    %c0_493 = arith.constant 0 : index
    %c0_494 = arith.constant 0 : index
    %416 = vector.load %arg14[%c2_492, %c0_493, %c0_494] : memref<9x8x8xbf16, #tpu.memory_space<vmem>>, vector<1x8x8xbf16>
    %417 = vector.shape_cast %416 : vector<1x8x8xbf16> to vector<8x8xbf16>
    %cst_495 = arith.constant dense<0.000000e+00> : vector<64x8xf32>
    %418 = tpu.matmul %415, %417, %cst_495 {dimension_numbers = #tpu.dot_dimension_numbers<[1], [0], [0], [1], [0, 0, 1, 1], [], []>} : vector<64x8xbf16>, vector<8x8xbf16>, vector<64x8xf32> -> vector<64x8xf32>
    %c0_496 = arith.constant 0 : index
    %c0_497 = arith.constant 0 : index
    %419 = vector.load %arg17[%c0_496, %c0_497] : memref<64x8xf32, #tpu.memory_space<vmem>>, vector<64x8xf32>
    %420 = arith.addf %419, %418 : vector<64x8xf32>
    %c0_498 = arith.constant 0 : index
    %c0_499 = arith.constant 0 : index
    %421 = vector.load %arg17[%c0_498, %c0_499] : memref<64x8xf32, #tpu.memory_space<vmem>>, vector<64x8xf32>
    tpu.vector_store %arg17[%c0_498, %c0_499], %420 {strides = array<i32>} : memref<64x8xf32, #tpu.memory_space<vmem>>, vector<64x8xf32>,
    %c1_500 = arith.constant 1 : index
    %c0_501 = arith.constant 0 : index
    %c0_502 = arith.constant 0 : index
    %422 = vector.load %arg16[%c1_500, %c0_501, %c0_502] : memref<10x10x8xf32, #tpu.memory_space<vmem>>, vector<8x8x8xf32>
    %423 = vector.shape_cast %422 : vector<8x8x8xf32> to vector<64x8xf32>
    %424 = arith.truncf %423 : vector<64x8xf32> to vector<64x8xbf16>
    %c3_503 = arith.constant 3 : index
    %c0_504 = arith.constant 0 : index
    %c0_505 = arith.constant 0 : index
    %425 = vector.load %arg14[%c3_503, %c0_504, %c0_505] : memref<9x8x8xbf16, #tpu.memory_space<vmem>>, vector<1x8x8xbf16>
    %426 = vector.shape_cast %425 : vector<1x8x8xbf16> to vector<8x8xbf16>
    %cst_506 = arith.constant dense<0.000000e+00> : vector<64x8xf32>
    %427 = tpu.matmul %424, %426, %cst_506 {dimension_numbers = #tpu.dot_dimension_numbers<[1], [0], [0], [1], [0, 0, 1, 1], [], []>} : vector<64x8xbf16>, vector<8x8xbf16>, vector<64x8xf32> -> vector<64x8xf32>
    %c0_507 = arith.constant 0 : index
    %c0_508 = arith.constant 0 : index
    %428 = vector.load %arg17[%c0_507, %c0_508] : memref<64x8xf32, #tpu.memory_space<vmem>>, vector<64x8xf32>
    %429 = arith.addf %428, %427 : vector<64x8xf32>
    %c0_509 = arith.constant 0 : index
    %c0_510 = arith.constant 0 : index
    %430 = vector.load %arg17[%c0_509, %c0_510] : memref<64x8xf32, #tpu.memory_space<vmem>>, vector<64x8xf32>
    tpu.vector_store %arg17[%c0_509, %c0_510], %429 {strides = array<i32>} : memref<64x8xf32, #tpu.memory_space<vmem>>, vector<64x8xf32>,
    %c1_511 = arith.constant 1 : index
    %c1_512 = arith.constant 1 : index
    %c0_513 = arith.constant 0 : index
    %431 = vector.load %arg16[%c1_511, %c1_512, %c0_513] : memref<10x10x8xf32, #tpu.memory_space<vmem>>, vector<8x8x8xf32>
    %432 = vector.shape_cast %431 : vector<8x8x8xf32> to vector<64x8xf32>
    %433 = arith.truncf %432 : vector<64x8xf32> to vector<64x8xbf16>
    %c4_514 = arith.constant 4 : index
    %c0_515 = arith.constant 0 : index
    %c0_516 = arith.constant 0 : index
    %434 = vector.load %arg14[%c4_514, %c0_515, %c0_516] : memref<9x8x8xbf16, #tpu.memory_space<vmem>>, vector<1x8x8xbf16>
    %435 = vector.shape_cast %434 : vector<1x8x8xbf16> to vector<8x8xbf16>
    %cst_517 = arith.constant dense<0.000000e+00> : vector<64x8xf32>
    %436 = tpu.matmul %433, %435, %cst_517 {dimension_numbers = #tpu.dot_dimension_numbers<[1], [0], [0], [1], [0, 0, 1, 1], [], []>} : vector<64x8xbf16>, vector<8x8xbf16>, vector<64x8xf32> -> vector<64x8xf32>
    %c0_518 = arith.constant 0 : index
    %c0_519 = arith.constant 0 : index
    %437 = vector.load %arg17[%c0_518, %c0_519] : memref<64x8xf32, #tpu.memory_space<vmem>>, vector<64x8xf32>
    %438 = arith.addf %437, %436 : vector<64x8xf32>
    %c0_520 = arith.constant 0 : index
    %c0_521 = arith.constant 0 : index
    %439 = vector.load %arg17[%c0_520, %c0_521] : memref<64x8xf32, #tpu.memory_space<vmem>>, vector<64x8xf32>
    tpu.vector_store %arg17[%c0_520, %c0_521], %438 {strides = array<i32>} : memref<64x8xf32, #tpu.memory_space<vmem>>, vector<64x8xf32>,
    %c1_522 = arith.constant 1 : index
    %c2_523 = arith.constant 2 : index
    %c0_524 = arith.constant 0 : index
    %440 = vector.load %arg16[%c1_522, %c2_523, %c0_524] : memref<10x10x8xf32, #tpu.memory_space<vmem>>, vector<8x8x8xf32>
    %441 = vector.shape_cast %440 : vector<8x8x8xf32> to vector<64x8xf32>
    %442 = arith.truncf %441 : vector<64x8xf32> to vector<64x8xbf16>
    %c5_525 = arith.constant 5 : index
    %c0_526 = arith.constant 0 : index
    %c0_527 = arith.constant 0 : index
    %443 = vector.load %arg14[%c5_525, %c0_526, %c0_527] : memref<9x8x8xbf16, #tpu.memory_space<vmem>>, vector<1x8x8xbf16>
    %444 = vector.shape_cast %443 : vector<1x8x8xbf16> to vector<8x8xbf16>
    %cst_528 = arith.constant dense<0.000000e+00> : vector<64x8xf32>
    %445 = tpu.matmul %442, %444, %cst_528 {dimension_numbers = #tpu.dot_dimension_numbers<[1], [0], [0], [1], [0, 0, 1, 1], [], []>} : vector<64x8xbf16>, vector<8x8xbf16>, vector<64x8xf32> -> vector<64x8xf32>
    %c0_529 = arith.constant 0 : index
    %c0_530 = arith.constant 0 : index
    %446 = vector.load %arg17[%c0_529, %c0_530] : memref<64x8xf32, #tpu.memory_space<vmem>>, vector<64x8xf32>
    %447 = arith.addf %446, %445 : vector<64x8xf32>
    %c0_531 = arith.constant 0 : index
    %c0_532 = arith.constant 0 : index
    %448 = vector.load %arg17[%c0_531, %c0_532] : memref<64x8xf32, #tpu.memory_space<vmem>>, vector<64x8xf32>
    tpu.vector_store %arg17[%c0_531, %c0_532], %447 {strides = array<i32>} : memref<64x8xf32, #tpu.memory_space<vmem>>, vector<64x8xf32>,
    %c2_533 = arith.constant 2 : index
    %c0_534 = arith.constant 0 : index
    %c0_535 = arith.constant 0 : index
    %449 = vector.load %arg16[%c2_533, %c0_534, %c0_535] : memref<10x10x8xf32, #tpu.memory_space<vmem>>, vector<8x8x8xf32>
    %450 = vector.shape_cast %449 : vector<8x8x8xf32> to vector<64x8xf32>
    %451 = arith.truncf %450 : vector<64x8xf32> to vector<64x8xbf16>
    %c6_536 = arith.constant 6 : index
    %c0_537 = arith.constant 0 : index
    %c0_538 = arith.constant 0 : index
    %452 = vector.load %arg14[%c6_536, %c0_537, %c0_538] : memref<9x8x8xbf16, #tpu.memory_space<vmem>>, vector<1x8x8xbf16>
    %453 = vector.shape_cast %452 : vector<1x8x8xbf16> to vector<8x8xbf16>
    %cst_539 = arith.constant dense<0.000000e+00> : vector<64x8xf32>
    %454 = tpu.matmul %451, %453, %cst_539 {dimension_numbers = #tpu.dot_dimension_numbers<[1], [0], [0], [1], [0, 0, 1, 1], [], []>} : vector<64x8xbf16>, vector<8x8xbf16>, vector<64x8xf32> -> vector<64x8xf32>
    %c0_540 = arith.constant 0 : index
    %c0_541 = arith.constant 0 : index
    %455 = vector.load %arg17[%c0_540, %c0_541] : memref<64x8xf32, #tpu.memory_space<vmem>>, vector<64x8xf32>
    %456 = arith.addf %455, %454 : vector<64x8xf32>
    %c0_542 = arith.constant 0 : index
    %c0_543 = arith.constant 0 : index
    %457 = vector.load %arg17[%c0_542, %c0_543] : memref<64x8xf32, #tpu.memory_space<vmem>>, vector<64x8xf32>
    tpu.vector_store %arg17[%c0_542, %c0_543], %456 {strides = array<i32>} : memref<64x8xf32, #tpu.memory_space<vmem>>, vector<64x8xf32>,
    %c2_544 = arith.constant 2 : index
    %c1_545 = arith.constant 1 : index
    %c0_546 = arith.constant 0 : index
    %458 = vector.load %arg16[%c2_544, %c1_545, %c0_546] : memref<10x10x8xf32, #tpu.memory_space<vmem>>, vector<8x8x8xf32>
    %459 = vector.shape_cast %458 : vector<8x8x8xf32> to vector<64x8xf32>
    %460 = arith.truncf %459 : vector<64x8xf32> to vector<64x8xbf16>
    %c7_547 = arith.constant 7 : index
    %c0_548 = arith.constant 0 : index
    %c0_549 = arith.constant 0 : index
    %461 = vector.load %arg14[%c7_547, %c0_548, %c0_549] : memref<9x8x8xbf16, #tpu.memory_space<vmem>>, vector<1x8x8xbf16>
    %462 = vector.shape_cast %461 : vector<1x8x8xbf16> to vector<8x8xbf16>
    %cst_550 = arith.constant dense<0.000000e+00> : vector<64x8xf32>
    %463 = tpu.matmul %460, %462, %cst_550 {dimension_numbers = #tpu.dot_dimension_numbers<[1], [0], [0], [1], [0, 0, 1, 1], [], []>} : vector<64x8xbf16>, vector<8x8xbf16>, vector<64x8xf32> -> vector<64x8xf32>
    %c0_551 = arith.constant 0 : index
    %c0_552 = arith.constant 0 : index
    %464 = vector.load %arg17[%c0_551, %c0_552] : memref<64x8xf32, #tpu.memory_space<vmem>>, vector<64x8xf32>
    %465 = arith.addf %464, %463 : vector<64x8xf32>
    %c0_553 = arith.constant 0 : index
    %c0_554 = arith.constant 0 : index
    %466 = vector.load %arg17[%c0_553, %c0_554] : memref<64x8xf32, #tpu.memory_space<vmem>>, vector<64x8xf32>
    tpu.vector_store %arg17[%c0_553, %c0_554], %465 {strides = array<i32>} : memref<64x8xf32, #tpu.memory_space<vmem>>, vector<64x8xf32>,
    %c2_555 = arith.constant 2 : index
    %c2_556 = arith.constant 2 : index
    %c0_557 = arith.constant 0 : index
    %467 = vector.load %arg16[%c2_555, %c2_556, %c0_557] : memref<10x10x8xf32, #tpu.memory_space<vmem>>, vector<8x8x8xf32>
    %468 = vector.shape_cast %467 : vector<8x8x8xf32> to vector<64x8xf32>
    %469 = arith.truncf %468 : vector<64x8xf32> to vector<64x8xbf16>
    %c8_558 = arith.constant 8 : index
    %c0_559 = arith.constant 0 : index
    %c0_560 = arith.constant 0 : index
    %470 = vector.load %arg14[%c8_558, %c0_559, %c0_560] : memref<9x8x8xbf16, #tpu.memory_space<vmem>>, vector<1x8x8xbf16>
    %471 = vector.shape_cast %470 : vector<1x8x8xbf16> to vector<8x8xbf16>
    %cst_561 = arith.constant dense<0.000000e+00> : vector<64x8xf32>
    %472 = tpu.matmul %469, %471, %cst_561 {dimension_numbers = #tpu.dot_dimension_numbers<[1], [0], [0], [1], [0, 0, 1, 1], [], []>} : vector<64x8xbf16>, vector<8x8xbf16>, vector<64x8xf32> -> vector<64x8xf32>
    %c0_562 = arith.constant 0 : index
    %c0_563 = arith.constant 0 : index
    %473 = vector.load %arg17[%c0_562, %c0_563] : memref<64x8xf32, #tpu.memory_space<vmem>>, vector<64x8xf32>
    %474 = arith.addf %473, %472 : vector<64x8xf32>
    %c0_564 = arith.constant 0 : index
    %c0_565 = arith.constant 0 : index
    %475 = vector.load %arg17[%c0_564, %c0_565] : memref<64x8xf32, #tpu.memory_space<vmem>>, vector<64x8xf32>
    tpu.vector_store %arg17[%c0_564, %c0_565], %474 {strides = array<i32>} : memref<64x8xf32, #tpu.memory_space<vmem>>, vector<64x8xf32>,
    %c0_566 = arith.constant 0 : index
    %c0_567 = arith.constant 0 : index
    %476 = vector.load %arg17[%c0_566, %c0_567] : memref<64x8xf32, #tpu.memory_space<vmem>>, vector<64x8xf32>
    %c0_568 = arith.constant 0 : index
    %c0_569 = arith.constant 0 : index
    %477 = vector.load %arg18[%c0_568, %c0_569] : memref<64x8xf32, #tpu.memory_space<vmem>>, vector<64x8xf32>
    %478 = arith.addf %476, %477 : vector<64x8xf32>
    %c0_570 = arith.constant 0 : index
    %c0_571 = arith.constant 0 : index
    %479 = vector.load %arg17[%c0_570, %c0_571] : memref<64x8xf32, #tpu.memory_space<vmem>>, vector<64x8xf32>
    tpu.vector_store %arg17[%c0_570, %c0_571], %478 {strides = array<i32>} : memref<64x8xf32, #tpu.memory_space<vmem>>, vector<64x8xf32>,
    %c0_572 = arith.constant 0 : index
    %c0_573 = arith.constant 0 : index
    %480 = vector.load %arg17[%c0_572, %c0_573] : memref<64x8xf32, #tpu.memory_space<vmem>>, vector<64x8xf32>
    %c0_574 = arith.constant 0 : index
    %c0_575 = arith.constant 0 : index
    %c0_576 = arith.constant 0 : index
    %481 = vector.load %arg15[%c0_574, %c0_575, %c0_576] : memref<1x64x8xf32, #tpu.memory_space<vmem>>, vector<1x64x8xf32>
    %482 = vector.shape_cast %481 : vector<1x64x8xf32> to vector<64x8xf32>
    %483 = vector.shape_cast %480 : vector<64x8xf32> to vector<1x64x8xf32>
    tpu.vector_store %arg15[%c0_574, %c0_575, %c0_576], %483 {strides = array<i32>} : memref<1x64x8xf32, #tpu.memory_space<vmem>>, vector<1x64x8xf32>,
    return
  }
  func.func @transform_0(%arg0: i32) -> (i32, i32, i32, i32, i32) {
    %c0_i32 = arith.constant 0 : i32
    %c0_i32_0 = arith.constant 0 : i32
    %c0_i32_1 = arith.constant 0 : i32
    %c0_i32_2 = arith.constant 0 : i32
    %c0_i32_3 = arith.constant 0 : i32
    return %arg0, %c0_i32, %c0_i32_0, %c0_i32_1, %c0_i32_2 : i32, i32, i32, i32, i32
  }
  func.func @transform_1(%arg0: i32) -> (i32, i32, i32) {
    %c0_i32 = arith.constant 0 : i32
    %c0_i32_0 = arith.constant 0 : i32
    %c0_i32_1 = arith.constant 0 : i32
    %c0_i32_2 = arith.constant 0 : i32
    return %c0_i32, %c0_i32_0, %c0_i32_1 : i32, i32, i32
  }
  func.func @transform_2(%arg0: i32) -> (i32, i32) {
    %c0_i32 = arith.constant 0 : i32
    %c0_i32_0 = arith.constant 0 : i32
    %c0_i32_1 = arith.constant 0 : i32
    return %c0_i32, %c0_i32_0 : i32, i32
  }
  func.func @transform_3(%arg0: i32) -> (i32, i32) {
    %c0_i32 = arith.constant 0 : i32
    %c0_i32_0 = arith.constant 0 : i32
    %c0_i32_1 = arith.constant 0 : i32
    return %c0_i32, %c0_i32_0 : i32, i32
  }
  func.func @transform_4(%arg0: i32) -> (i32, i32, i32) {
    %c0_i32 = arith.constant 0 : i32
    %c0_i32_0 = arith.constant 0 : i32
    %c0_i32_1 = arith.constant 0 : i32
    %c0_i32_2 = arith.constant 0 : i32
    return %c0_i32, %c0_i32_0, %c0_i32_1 : i32, i32, i32
  }
  func.func @transform_5(%arg0: i32) -> (i32, i32) {
    %c0_i32 = arith.constant 0 : i32
    %c0_i32_0 = arith.constant 0 : i32
    %c0_i32_1 = arith.constant 0 : i32
    return %c0_i32, %c0_i32_0 : i32, i32
  }
  func.func @transform_6(%arg0: i32) -> (i32, i32) {
    %c0_i32 = arith.constant 0 : i32
    %c0_i32_0 = arith.constant 0 : i32
    %c0_i32_1 = arith.constant 0 : i32
    return %c0_i32, %c0_i32_0 : i32, i32
  }
  func.func @transform_7(%arg0: i32) -> (i32, i32, i32) {
    %c0_i32 = arith.constant 0 : i32
    %c0_i32_0 = arith.constant 0 : i32
    %c0_i32_1 = arith.constant 0 : i32
    %c0_i32_2 = arith.constant 0 : i32
    return %c0_i32, %c0_i32_0, %c0_i32_1 : i32, i32, i32
  }
  func.func @transform_8(%arg0: i32) -> (i32, i32) {
    %c0_i32 = arith.constant 0 : i32
    %c0_i32_0 = arith.constant 0 : i32
    %c0_i32_1 = arith.constant 0 : i32
    return %c0_i32, %c0_i32_0 : i32, i32
  }
  func.func @transform_9(%arg0: i32) -> (i32, i32) {
    %c0_i32 = arith.constant 0 : i32
    %c0_i32_0 = arith.constant 0 : i32
    %c0_i32_1 = arith.constant 0 : i32
    return %c0_i32, %c0_i32_0 : i32, i32
  }
  func.func @transform_10(%arg0: i32) -> (i32, i32, i32) {
    %c0_i32 = arith.constant 0 : i32
    %c0_i32_0 = arith.constant 0 : i32
    %c0_i32_1 = arith.constant 0 : i32
    %c0_i32_2 = arith.constant 0 : i32
    return %c0_i32, %c0_i32_0, %c0_i32_1 : i32, i32, i32
  }
  func.func @transform_11(%arg0: i32) -> (i32, i32) {
    %c0_i32 = arith.constant 0 : i32
    %c0_i32_0 = arith.constant 0 : i32
    %c0_i32_1 = arith.constant 0 : i32
    return %c0_i32, %c0_i32_0 : i32, i32
  }
  func.func @transform_12(%arg0: i32) -> (i32, i32) {
    %c0_i32 = arith.constant 0 : i32
    %c0_i32_0 = arith.constant 0 : i32
    %c0_i32_1 = arith.constant 0 : i32
    return %c0_i32, %c0_i32_0 : i32, i32
  }
  func.func @transform_13(%arg0: i32) -> (i32, i32, i32) {
    %c0_i32 = arith.constant 0 : i32
    %c0_i32_0 = arith.constant 0 : i32
    %c0_i32_1 = arith.constant 0 : i32
    %c0_i32_2 = arith.constant 0 : i32
    return %c0_i32, %c0_i32_0, %c0_i32_1 : i32, i32, i32
  }
  func.func @transform_14(%arg0: i32) -> (i32, i32, i32) {
    %c0_i32 = arith.constant 0 : i32
    %c0_i32_0 = arith.constant 0 : i32
    %c0_i32_1 = arith.constant 0 : i32
    return %arg0, %c0_i32, %c0_i32_0 : i32, i32, i32
  }
}

</mosaic_0001>

<llo_original>
// kernel: tpu_custom_call.1
$region0: #{tpu_custom_call.1}
  #allocation0 [shape = 'u32[]', space=smem, size = 0x4, offset = 0x4, fixed_abs, tag = 'smem constant byte address 0x4 - core index']
  #allocation1 [shape = 'u32[72,128]{1,0:T(1,128)}', space=vmem, size = 0x9000, scoped, tag = 'internal scratch']
  %s0 = inlined_call_operand.hbm [shape: f32[8,128], index: 0, kind: input, shape index: {}]
  %s1 = inlined_call_operand.hbm [shape: f32[16,128], index: 1, kind: input, shape index: {}]
  %s2 = inlined_call_operand.hbm [shape: f32[16,128], index: 2, kind: output, shape index: {}]
  %s3 = sld [smem:[#allocation0]]
  $region49: #{tpu_custom_call.1} parent=0
    _
  %s5 = ssub.s32 1, %s3
  %s6 = scalar_select 0, %s5, %s3
  $region1: #{tpu_custom_call.1} parent=0
    #allocation2 [shape = 'u8[4096]{0}', space=vmem, size = 0x1000, scoped, tag = 'input window, operand 0, single buffered']
    #allocation3 [shape = 's32[2]{0}', space=sflag, size = 0x8, scoped, tag = 'scoped memory for tpu_custom_call.1']
    #allocation4 [shape = 's32[2]{0}', space=sflag, size = 0x8, scoped, tag = 'scoped memory for tpu_custom_call.1']
    #allocation5 [shape = 'u8[8192]{0}', space=vmem, size = 0x2000, scoped, tag = 'input window, operand 1']
    #allocation6 [shape = 's32[2]{0}', space=sflag, size = 0x8, scoped, tag = 'scoped memory for tpu_custom_call.1']
    #allocation7 [shape = 'u8[8192]{0}', space=vmem, size = 0x2000, scoped, tag = 'output window, operand 0']
    %7 = vsyncpa [#allocation3], 0
    %8 = vsyncpa [#allocation6], 0
    %s9 = scalar_lea.sflag [#allocation6], 1
    %10 = vsyncpa %s9, 0
    %11 = vsyncpa [#allocation4], 0
    %s12 = scalar_lea.sflag [#allocation4], 1
    %13 = vsyncpa %s12, 0
    loop: start=0, step=1, limit=4
    $region2: #{tpu_custom_call.1} parent=1 // loop_pre_header
      _
    $region3: #{tpu_custom_call.1} parent=1 // loop_header
      %s15 = sphi 0, %s19
      %p16 = scmp.ge.s32.totalorder %s15, 4
      %s23 = sphi 0, %s23
      %s25 = sphi 0, %s23
      %s26 = sphi 0, %s25
      %s40 = sphi 0, %s26
      %s46 = sphi 0, %s48
      %s49 = sphi 0, %s46
      %s50 = sphi 0, %s49
      %s66 = sphi 0, %s50
      %s72 = sphi 0, %s74
      %s75 = sphi 0, %s72
      %s76 = sphi 0, %s75
      %s92 = sphi 0, %s76
    $region4: #{tpu_custom_call.1} parent=1 // loop_header_branch
      %18 = sbr.rel (%p16) target = $region8
    $region5: #{tpu_custom_call.1} parent=1 // loop_body
      %s20 = ssub.s32 %s15, 1
      %s21 = ssub.s32 %s15, 2
      %s22 = sadd.s32 %s15, 1
      %s24 = sadd.s32 %s23, 1
      %p27 = scmp.eq.s32.totalorder %s15, 1
      %p28 = scmp.ne.s32.totalorder %s23, %s25
      %p29 = scmp.eq.s32.totalorder %s15, 0
      %p30 = por %p28, %p29
      %p31 = scmp.ne.s32.totalorder %s23, %s25
      %p32 = scmp.eq.s32.totalorder %s20, 1
      %p33 = por %p31, %p32
      %p34 = scmp.ne.s32.totalorder %s25, %s26
      %p35 = scmp.eq.s32.totalorder %s20, 0
      %p36 = por %p34, %p35
      %p37 = scmp.ne.s32.totalorder %s25, %s26
      %p38 = scmp.eq.s32.totalorder %s21, 1
      %p39 = por %p37, %p38
      %p41 = scmp.ne.s32.totalorder %s26, %s40
      %p42 = scmp.eq.s32.totalorder %s21, 0
      %p43 = por %p41, %p42
      %s44 = ssub.s32 %s15, %s22
      %p45 = scmp.eq.s32.totalorder %s44, 0
      %s47 = sadd.s32 %s46, 1
      %s48 = scalar_select %p45, %s46, %s47
      %p51 = pneg %p45
      %p52 = scmp.eq.s32.totalorder %s15, 1
      %p53 = por %p51, %p52
      %p54 = scmp.ne.s32.totalorder %s46, %s49
      %p55 = scmp.eq.s32.totalorder %s15, 0
      %p56 = por %p54, %p55
      %p57 = scmp.ne.s32.totalorder %s46, %s49
      %p58 = scmp.eq.s32.totalorder %s20, 1
      %p59 = por %p57, %p58
      %p60 = scmp.ne.s32.totalorder %s49, %s50
      %p61 = scmp.eq.s32.totalorder %s20, 0
      %p62 = por %p60, %p61
      %p63 = scmp.ne.s32.totalorder %s49, %s50
      %p64 = scmp.eq.s32.totalorder %s21, 1
      %p65 = por %p63, %p64
      %p67 = scmp.ne.s32.totalorder %s50, %s66
      %p68 = scmp.eq.s32.totalorder %s21, 0
      %p69 = por %p67, %p68
      %s70 = ssub.s32 %s15, %s22
      %p71 = scmp.eq.s32.totalorder %s70, 0
      %s73 = sadd.s32 %s72, 1
      %s74 = scalar_select %p71, %s72, %s73
      %p77 = pneg %p71
      %p78 = scmp.eq.s32.totalorder %s15, 1
      %p79 = por %p77, %p78
      %p80 = scmp.ne.s32.totalorder %s72, %s75
      %p81 = scmp.eq.s32.totalorder %s15, 0
      %p82 = por %p80, %p81
      %p83 = scmp.ne.s32.totalorder %s72, %s75
      %p84 = scmp.eq.s32.totalorder %s20, 1
      %p85 = por %p83, %p84
      %p86 = scmp.ne.s32.totalorder %s75, %s76
      %p87 = scmp.eq.s32.totalorder %s20, 0
      %p88 = por %p86, %p87
      %p89 = scmp.ne.s32.totalorder %s75, %s76
      %p90 = scmp.eq.s32.totalorder %s21, 1
      %p91 = por %p89, %p90
      %p93 = scmp.ne.s32.totalorder %s76, %s92
      %p94 = scmp.eq.s32.totalorder %s21, 0
      %p95 = por %p93, %p94
      %p96 = scmp.le.s32.totalorder 1, %s15
      %p97 = scmp.lt.s32.totalorder %s15, 3
      %p98 = pnand %p96, %p97
      %p99 = pneg %p98
      // Predicated region
      $region9: #{tpu_custom_call.1} parent=5 // pred_check
        _
      $region10: #{tpu_custom_call.1} parent=5 // pred_check_branch
        %101 = sbr.rel (%p98) target = $region12
      $region11: #{tpu_custom_call.1} parent=5 // pred_region
        %s102 = ssub.s32 %s15, 1
        // Predicated region
        $region13: #{tpu_custom_call.1} parent=11 // pred_check
          %p103 = pneg %p36
        $region14: #{tpu_custom_call.1} parent=11 // pred_check_branch
          %105 = sbr.rel (%p103) target = $region16
        $region15: #{tpu_custom_call.1} parent=11 // pred_region
          %107 = vsyncadd [#allocation3], 0
          %s109 = sshll.u32 %s0, 4
          %s110 = int_to_ptr.hbm [resolvable:$true] %s109
          %s111 = sshll.u32 [#allocation2], 4
          %s112 = int_to_ptr.vmem [resolvable:$true] %s111
          %114 = dma.hbm_to_vmem [thread:$0]  %s110, 128, %s112, [#allocation3]
        $region16: #{tpu_custom_call.1} parent=11 // pred_fallthru
          _
      $region12: #{tpu_custom_call.1} parent=5 // pred_fallthru
        _
      %p115 = scmp.lt.s32.totalorder %s15, 2
      // Predicated region
      $region17: #{tpu_custom_call.1} parent=5 // pred_check
        %p116 = pneg %p115
      $region18: #{tpu_custom_call.1} parent=5 // pred_check_branch
        %118 = sbr.rel (%p116) target = $region20
      $region19: #{tpu_custom_call.1} parent=5 // pred_region
        // Predicated region
        $region21: #{tpu_custom_call.1} parent=19 // pred_check
          %p119 = pneg %p56
        $region22: #{tpu_custom_call.1} parent=19 // pred_check_branch
          %121 = sbr.rel (%p119) target = $region24
        $region23: #{tpu_custom_call.1} parent=19 // pred_region
          %s122 = sand.u32 %s46, 1
          %s123 = scalar_lea.sflag [#allocation6], %s122
          %s124 = sand.u32 %s46, 1
          %s125 = smul.addr %s124, 8
          %s126 = scalar_lea.vmem [#allocation5], %s125
          %128 = vsyncadd %s123, 0
          %s129 = smul.addr %s15, 8
          %s130 = scalar_lea.hbm %s1, %s129
          %s132 = sshll.u32 %s130, 4
          %s133 = int_to_ptr.hbm [resolvable:$true] %s132
          %s134 = sshll.u32 %s126, 4
          %s135 = int_to_ptr.vmem [resolvable:$true] %s134
          %137 = dma.hbm_to_vmem [thread:$0]  %s133, 128, %s135, %s123
        $region24: #{tpu_custom_call.1} parent=19 // pred_fallthru
          _
      $region20: #{tpu_custom_call.1} parent=5 // pred_fallthru
        _
      %p138 = scmp.le.s32.totalorder 1, %s15
      %p139 = scmp.lt.s32.totalorder %s15, 3
      %p140 = pnand %p138, %p139
      %p141 = pneg %p140
      // Predicated region
      $region25: #{tpu_custom_call.1} parent=5 // pred_check
        _
      $region26: #{tpu_custom_call.1} parent=5 // pred_check_branch
        %143 = sbr.rel (%p140) target = $region28
      $region27: #{tpu_custom_call.1} parent=5 // pred_region
        %s144 = ssub.s32 %s15, 1
        // Predicated region
        $region29: #{tpu_custom_call.1} parent=27 // pred_check
          %p145 = pneg %p36
        $region30: #{tpu_custom_call.1} parent=27 // pred_check_branch
          %147 = sbr.rel (%p145) target = $region32
        $region31: #{tpu_custom_call.1} parent=27 // pred_region
          %149 = dma.done [#allocation3], 128
        $region32: #{tpu_custom_call.1} parent=27 // pred_fallthru
          _
        %s150 = sand.u32 %s49, 1
        %s151 = scalar_lea.sflag [#allocation6], %s150
        %s152 = sand.u32 %s49, 1
        %s153 = smul.addr %s152, 8
        %s154 = scalar_lea.vmem [#allocation5], %s153
        // Predicated region
        $region33: #{tpu_custom_call.1} parent=27 // pred_check
          %p155 = pneg %p62
        $region34: #{tpu_custom_call.1} parent=27 // pred_check_branch
          %157 = sbr.rel (%p155) target = $region36
        $region35: #{tpu_custom_call.1} parent=27 // pred_region
          %159 = dma.done %s151, 128
        $region36: #{tpu_custom_call.1} parent=27 // pred_fallthru
          _
        %p160 = pneg %p36
        %p161 = pneg %p33
        %s162 = sand.u32 %s49, 1
        %s163 = scalar_lea.sflag [#allocation6], %s162
        %s164 = sand.u32 %s49, 1
        %s165 = smul.addr %s164, 8
        %s166 = scalar_lea.vmem [#allocation5], %s165
        %p167 = pneg %p62
        %p168 = pneg %p59
        %p169 = pneg %p88
        %p170 = pneg %p85
        %s171 = sand.u32 %s75, 1
        %s172 = scalar_lea.sflag [#allocation4], %s171
        %s173 = sand.u32 %s75, 1
        %s174 = smul.addr %s173, 8
        %s175 = scalar_lea.vmem [#allocation7], %s174
        %v176 = vld [vmem:[%s154] sm:$0xff]
        %v177 = vld [vmem:[#allocation2] sm:$0xff]
        %v178 = vadd.f32 %v176, %v177
        %179 = vst [vmem:[%s175] sm:$0xff] %v178
        %s180 = sand.u32 %s75, 1
        %s181 = scalar_lea.sflag [#allocation4], %s180
        %s182 = sand.u32 %s75, 1
        %s183 = smul.addr %s182, 8
        %s184 = scalar_lea.vmem [#allocation7], %s183
        // Predicated region
        $region37: #{tpu_custom_call.1} parent=27 // pred_check
          %p185 = pneg %p85
        $region38: #{tpu_custom_call.1} parent=27 // pred_check_branch
          %187 = sbr.rel (%p185) target = $region40
        $region39: #{tpu_custom_call.1} parent=27 // pred_region
          %189 = vsyncadd %s181, 0
          %s190 = smul.addr %s20, 8
          %s191 = scalar_lea.hbm %s2, %s190
          %s193 = sshll.u32 %s184, 4
          %s194 = int_to_ptr.vmem [resolvable:$true] %s193
          %s195 = sshll.u32 %s191, 4
          %s196 = int_to_ptr.hbm [resolvable:$true] %s195
          %198 = dma.vmem_to_hbm [thread:$0]  %s194, 128, %s196, %s181
        $region40: #{tpu_custom_call.1} parent=27 // pred_fallthru
          _
      $region28: #{tpu_custom_call.1} parent=5 // pred_fallthru
        _
      %p199 = scmp.le.s32.totalorder 2, %s15
      // Predicated region
      $region41: #{tpu_custom_call.1} parent=5 // pred_check
        %p200 = pneg %p199
      $region42: #{tpu_custom_call.1} parent=5 // pred_check_branch
        %202 = sbr.rel (%p200) target = $region44
      $region43: #{tpu_custom_call.1} parent=5 // pred_region
        %s203 = ssub.s32 %s15, 2
        // Predicated region
        $region45: #{tpu_custom_call.1} parent=43 // pred_check
          %p204 = pneg %p91
        $region46: #{tpu_custom_call.1} parent=43 // pred_check_branch
          %206 = sbr.rel (%p204) target = $region48
        $region47: #{tpu_custom_call.1} parent=43 // pred_region
          %s207 = sand.u32 %s76, 1
          %s208 = scalar_lea.sflag [#allocation4], %s207
          %s209 = sand.u32 %s76, 1
          %s210 = smul.addr %s209, 8
          %s211 = scalar_lea.vmem [#allocation7], %s210
          %213 = dma.done %s208, 128
        $region48: #{tpu_custom_call.1} parent=43 // pred_fallthru
          _
      $region44: #{tpu_custom_call.1} parent=5 // pred_fallthru
        _
    $region6: #{tpu_custom_call.1} parent=1 // loop_footer
      %s19 = sadd.s32 1, %s15
    $region7: #{tpu_custom_call.1} parent=1 // loop_footer_branch
      %14 = sbr.rel target = $region3
    $region8: #{tpu_custom_call.1} parent=1 // loop_exit
      _
    %214 = vsyncpa [#allocation3], 1
    %s215 = scalar_lea.sflag [#allocation3], 1
    %216 = vsyncpa %s215, 1
    %217 = vsyncpa [#allocation6], 1
    %s218 = scalar_lea.sflag [#allocation6], 1
    %219 = vsyncpa %s218, 1
    %220 = vsyncpa [#allocation4], 1
    %s221 = scalar_lea.sflag [#allocation4], 1
    %222 = vsyncpa %s221, 1

// kernel: down_forward.1
$region0: #{down_forward.1}
  #allocation0 [shape = 'u32[]', space=smem, size = 0x4, offset = 0x4, fixed_abs, tag = 'smem constant byte address 0x4 - core index']
  #allocation1 [shape = 'u32[72,128]{1,0:T(1,128)}', space=vmem, size = 0x9000, scoped, tag = 'internal scratch']
  #allocation2 [shape = 'f32[10,10,8]{2,1,0:T(8,128)}', space=vmem, size = 0x14000, scoped, tag = 'scratch operand']
  #allocation3 [shape = 'f32[64,8]{1,0:T(8,128)}', space=vmem, size = 0x8000, scoped, tag = 'scratch operand']
  #allocation4 [shape = 'f32[64,8]{1,0:T(8,128)}', space=vmem, size = 0x8000, scoped, tag = 'scratch operand']
  %s0 = inlined_call_operand.vmem [shape: f32[2,4,9,9,4], index: 0, kind: input, shape index: {}]
  %s1 = inlined_call_operand.vmem [shape: bf16[9,4,8], index: 1, kind: input, shape index: {}]
  %s2 = inlined_call_operand.vmem [shape: f32[1,8], index: 2, kind: input, shape index: {}]
  %s3 = inlined_call_operand.vmem [shape: f32[1,8], index: 3, kind: input, shape index: {}]
  %s4 = inlined_call_operand.vmem [shape: bf16[9,8,8], index: 4, kind: input, shape index: {}]
  %s5 = inlined_call_operand.vmem [shape: f32[1,8], index: 5, kind: input, shape index: {}]
  %s6 = inlined_call_operand.vmem [shape: f32[1,8], index: 6, kind: input, shape index: {}]
  %s7 = inlined_call_operand.vmem [shape: bf16[9,8,8], index: 7, kind: input, shape index: {}]
  %s8 = inlined_call_operand.vmem [shape: f32[1,8], index: 8, kind: input, shape index: {}]
  %s9 = inlined_call_operand.vmem [shape: f32[1,8], index: 9, kind: input, shape index: {}]
  %s10 = inlined_call_operand.vmem [shape: bf16[9,8,8], index: 10, kind: input, shape index: {}]
  %s11 = inlined_call_operand.vmem [shape: f32[1,8], index: 11, kind: input, shape index: {}]
  %s12 = inlined_call_operand.vmem [shape: f32[1,8], index: 12, kind: input, shape index: {}]
  %s13 = inlined_call_operand.vmem [shape: bf16[9,8,8], index: 13, kind: input, shape index: {}]
  %s14 = inlined_call_operand.vmem [shape: f32[2,64,8], index: 14, kind: output, shape index: {}]
  %s15 = sld [smem:[#allocation0]]
  $region89: #{down_forward.1} parent=0
    _
  %s17 = ssub.s32 1, %s15
  %s18 = scalar_select 0, %s17, %s15
  loop: start=0, step=1, limit=4
  $region2: #{down_forward.1} parent=0 // loop_pre_header
    _
  $region3: #{down_forward.1} parent=0 // loop_header
    %s20 = sphi 0, %s24
    %p21 = scmp.ge.s32.totalorder %s20, 4
    %s30 = sphi 0, %s32
    %s33 = sphi 0, %s30
    %s34 = sphi 0, %s33
    %s50 = sphi 0, %s34
    %s54 = sphi 0, %s54
    %s56 = sphi 0, %s54
    %s57 = sphi 0, %s56
    %s71 = sphi 0, %s57
    %s75 = sphi 0, %s75
    %s77 = sphi 0, %s75
    %s78 = sphi 0, %s77
    %s92 = sphi 0, %s78
    %s96 = sphi 0, %s96
    %s98 = sphi 0, %s96
    %s99 = sphi 0, %s98
    %s113 = sphi 0, %s99
    %s117 = sphi 0, %s117
    %s119 = sphi 0, %s117
    %s120 = sphi 0, %s119
    %s134 = sphi 0, %s120
    %s138 = sphi 0, %s138
    %s140 = sphi 0, %s138
    %s141 = sphi 0, %s140
    %s155 = sphi 0, %s141
    %s159 = sphi 0, %s159
    %s161 = sphi 0, %s159
    %s162 = sphi 0, %s161
    %s176 = sphi 0, %s162
    %s180 = sphi 0, %s180
    %s182 = sphi 0, %s180
    %s183 = sphi 0, %s182
    %s197 = sphi 0, %s183
    %s201 = sphi 0, %s201
    %s203 = sphi 0, %s201
    %s204 = sphi 0, %s203
    %s218 = sphi 0, %s204
    %s222 = sphi 0, %s222
    %s224 = sphi 0, %s222
    %s225 = sphi 0, %s224
    %s239 = sphi 0, %s225
    %s243 = sphi 0, %s243
    %s245 = sphi 0, %s243
    %s246 = sphi 0, %s245
    %s260 = sphi 0, %s246
    %s264 = sphi 0, %s264
    %s266 = sphi 0, %s264
    %s267 = sphi 0, %s266
    %s281 = sphi 0, %s267
    %s285 = sphi 0, %s285
    %s287 = sphi 0, %s285
    %s288 = sphi 0, %s287
    %s302 = sphi 0, %s288
    %s306 = sphi 0, %s306
    %s308 = sphi 0, %s306
    %s309 = sphi 0, %s308
    %s323 = sphi 0, %s309
    %s329 = sphi 0, %s331
    %s332 = sphi 0, %s329
    %s333 = sphi 0, %s332
    %s349 = sphi 0, %s333
  $region4: #{down_forward.1} parent=0 // loop_header_branch
    %23 = sbr.rel (%p21) target = $region8
  $region5: #{down_forward.1} parent=0 // loop_body
    %s25 = ssub.s32 %s20, 1
    %s26 = ssub.s32 %s20, 2
    %s27 = sadd.s32 %s20, 1
    %s28 = ssub.s32 %s20, %s27
    %p29 = scmp.eq.s32.totalorder %s28, 0
    %s31 = sadd.s32 %s30, 1
    %s32 = scalar_select %p29, %s30, %s31
    %p35 = pneg %p29
    %p36 = scmp.eq.s32.totalorder %s20, 1
    %p37 = por %p35, %p36
    %p38 = scmp.ne.s32.totalorder %s30, %s33
    %p39 = scmp.eq.s32.totalorder %s20, 0
    %p40 = por %p38, %p39
    %p41 = scmp.ne.s32.totalorder %s30, %s33
    %p42 = scmp.eq.s32.totalorder %s25, 1
    %p43 = por %p41, %p42
    %p44 = scmp.ne.s32.totalorder %s33, %s34
    %p45 = scmp.eq.s32.totalorder %s25, 0
    %p46 = por %p44, %p45
    %p47 = scmp.ne.s32.totalorder %s33, %s34
    %p48 = scmp.eq.s32.totalorder %s26, 1
    %p49 = por %p47, %p48
    %p51 = scmp.ne.s32.totalorder %s34, %s50
    %p52 = scmp.eq.s32.totalorder %s26, 0
    %p53 = por %p51, %p52
    %s55 = sadd.s32 %s54, 1
    %p58 = scmp.eq.s32.totalorder %s20, 1
    %p59 = scmp.ne.s32.totalorder %s54, %s56
    %p60 = scmp.eq.s32.totalorder %s20, 0
    %p61 = por %p59, %p60
    %p62 = scmp.ne.s32.totalorder %s54, %s56
    %p63 = scmp.eq.s32.totalorder %s25, 1
    %p64 = por %p62, %p63
    %p65 = scmp.ne.s32.totalorder %s56, %s57
    %p66 = scmp.eq.s32.totalorder %s25, 0
    %p67 = por %p65, %p66
    %p68 = scmp.ne.s32.totalorder %s56, %s57
    %p69 = scmp.eq.s32.totalorder %s26, 1
    %p70 = por %p68, %p69
    %p72 = scmp.ne.s32.totalorder %s57, %s71
    %p73 = scmp.eq.s32.totalorder %s26, 0
    %p74 = por %p72, %p73
    %s76 = sadd.s32 %s75, 1
    %p79 = scmp.eq.s32.totalorder %s20, 1
    %p80 = scmp.ne.s32.totalorder %s75, %s77
    %p81 = scmp.eq.s32.totalorder %s20, 0
    %p82 = por %p80, %p81
    %p83 = scmp.ne.s32.totalorder %s75, %s77
    %p84 = scmp.eq.s32.totalorder %s25, 1
    %p85 = por %p83, %p84
    %p86 = scmp.ne.s32.totalorder %s77, %s78
    %p87 = scmp.eq.s32.totalorder %s25, 0
    %p88 = por %p86, %p87
    %p89 = scmp.ne.s32.totalorder %s77, %s78
    %p90 = scmp.eq.s32.totalorder %s26, 1
    %p91 = por %p89, %p90
    %p93 = scmp.ne.s32.totalorder %s78, %s92
    %p94 = scmp.eq.s32.totalorder %s26, 0
    %p95 = por %p93, %p94
    %s97 = sadd.s32 %s96, 1
    %p100 = scmp.eq.s32.totalorder %s20, 1
    %p101 = scmp.ne.s32.totalorder %s96, %s98
    %p102 = scmp.eq.s32.totalorder %s20, 0
    %p103 = por %p101, %p102
    %p104 = scmp.ne.s32.totalorder %s96, %s98
    %p105 = scmp.eq.s32.totalorder %s25, 1
    %p106 = por %p104, %p105
    %p107 = scmp.ne.s32.totalorder %s98, %s99
    %p108 = scmp.eq.s32.totalorder %s25, 0
    %p109 = por %p107, %p108
    %p110 = scmp.ne.s32.totalorder %s98, %s99
    %p111 = scmp.eq.s32.totalorder %s26, 1
    %p112 = por %p110, %p111
    %p114 = scmp.ne.s32.totalorder %s99, %s113
    %p115 = scmp.eq.s32.totalorder %s26, 0
    %p116 = por %p114, %p115
    %s118 = sadd.s32 %s117, 1
    %p121 = scmp.eq.s32.totalorder %s20, 1
    %p122 = scmp.ne.s32.totalorder %s117, %s119
    %p123 = scmp.eq.s32.totalorder %s20, 0
    %p124 = por %p122, %p123
    %p125 = scmp.ne.s32.totalorder %s117, %s119
    %p126 = scmp.eq.s32.totalorder %s25, 1
    %p127 = por %p125, %p126
    %p128 = scmp.ne.s32.totalorder %s119, %s120
    %p129 = scmp.eq.s32.totalorder %s25, 0
    %p130 = por %p128, %p129
    %p131 = scmp.ne.s32.totalorder %s119, %s120
    %p132 = scmp.eq.s32.totalorder %s26, 1
    %p133 = por %p131, %p132
    %p135 = scmp.ne.s32.totalorder %s120, %s134
    %p136 = scmp.eq.s32.totalorder %s26, 0
    %p137 = por %p135, %p136
    %s139 = sadd.s32 %s138, 1
    %p142 = scmp.eq.s32.totalorder %s20, 1
    %p143 = scmp.ne.s32.totalorder %s138, %s140
    %p144 = scmp.eq.s32.totalorder %s20, 0
    %p145 = por %p143, %p144
    %p146 = scmp.ne.s32.totalorder %s138, %s140
    %p147 = scmp.eq.s32.totalorder %s25, 1
    %p148 = por %p146, %p147
    %p149 = scmp.ne.s32.totalorder %s140, %s141
    %p150 = scmp.eq.s32.totalorder %s25, 0
    %p151 = por %p149, %p150
    %p152 = scmp.ne.s32.totalorder %s140, %s141
    %p153 = scmp.eq.s32.totalorder %s26, 1
    %p154 = por %p152, %p153
    %p156 = scmp.ne.s32.totalorder %s141, %s155
    %p157 = scmp.eq.s32.totalorder %s26, 0
    %p158 = por %p156, %p157
    %s160 = sadd.s32 %s159, 1
    %p163 = scmp.eq.s32.totalorder %s20, 1
    %p164 = scmp.ne.s32.totalorder %s159, %s161
    %p165 = scmp.eq.s32.totalorder %s20, 0
    %p166 = por %p164, %p165
    %p167 = scmp.ne.s32.totalorder %s159, %s161
    %p168 = scmp.eq.s32.totalorder %s25, 1
    %p169 = por %p167, %p168
    %p170 = scmp.ne.s32.totalorder %s161, %s162
    %p171 = scmp.eq.s32.totalorder %s25, 0
    %p172 = por %p170, %p171
    %p173 = scmp.ne.s32.totalorder %s161, %s162
    %p174 = scmp.eq.s32.totalorder %s26, 1
    %p175 = por %p173, %p174
    %p177 = scmp.ne.s32.totalorder %s162, %s176
    %p178 = scmp.eq.s32.totalorder %s26, 0
    %p179 = por %p177, %p178
    %s181 = sadd.s32 %s180, 1
    %p184 = scmp.eq.s32.totalorder %s20, 1
    %p185 = scmp.ne.s32.totalorder %s180, %s182
    %p186 = scmp.eq.s32.totalorder %s20, 0
    %p187 = por %p185, %p186
    %p188 = scmp.ne.s32.totalorder %s180, %s182
    %p189 = scmp.eq.s32.totalorder %s25, 1
    %p190 = por %p188, %p189
    %p191 = scmp.ne.s32.totalorder %s182, %s183
    %p192 = scmp.eq.s32.totalorder %s25, 0
    %p193 = por %p191, %p192
    %p194 = scmp.ne.s32.totalorder %s182, %s183
    %p195 = scmp.eq.s32.totalorder %s26, 1
    %p196 = por %p194, %p195
    %p198 = scmp.ne.s32.totalorder %s183, %s197
    %p199 = scmp.eq.s32.totalorder %s26, 0
    %p200 = por %p198, %p199
    %s202 = sadd.s32 %s201, 1
    %p205 = scmp.eq.s32.totalorder %s20, 1
    %p206 = scmp.ne.s32.totalorder %s201, %s203
    %p207 = scmp.eq.s32.totalorder %s20, 0
    %p208 = por %p206, %p207
    %p209 = scmp.ne.s32.totalorder %s201, %s203
    %p210 = scmp.eq.s32.totalorder %s25, 1
    %p211 = por %p209, %p210
    %p212 = scmp.ne.s32.totalorder %s203, %s204
    %p213 = scmp.eq.s32.totalorder %s25, 0
    %p214 = por %p212, %p213
    %p215 = scmp.ne.s32.totalorder %s203, %s204
    %p216 = scmp.eq.s32.totalorder %s26, 1
    %p217 = por %p215, %p216
    %p219 = scmp.ne.s32.totalorder %s204, %s218
    %p220 = scmp.eq.s32.totalorder %s26, 0
    %p221 = por %p219, %p220
    %s223 = sadd.s32 %s222, 1
    %p226 = scmp.eq.s32.totalorder %s20, 1
    %p227 = scmp.ne.s32.totalorder %s222, %s224
    %p228 = scmp.eq.s32.totalorder %s20, 0
    %p229 = por %p227, %p228
    %p230 = scmp.ne.s32.totalorder %s222, %s224
    %p231 = scmp.eq.s32.totalorder %s25, 1
    %p232 = por %p230, %p231
    %p233 = scmp.ne.s32.totalorder %s224, %s225
    %p234 = scmp.eq.s32.totalorder %s25, 0
    %p235 = por %p233, %p234
    %p236 = scmp.ne.s32.totalorder %s224, %s225
    %p237 = scmp.eq.s32.totalorder %s26, 1
    %p238 = por %p236, %p237
    %p240 = scmp.ne.s32.totalorder %s225, %s239
    %p241 = scmp.eq.s32.totalorder %s26, 0
    %p242 = por %p240, %p241
    %s244 = sadd.s32 %s243, 1
    %p247 = scmp.eq.s32.totalorder %s20, 1
    %p248 = scmp.ne.s32.totalorder %s243, %s245
    %p249 = scmp.eq.s32.totalorder %s20, 0
    %p250 = por %p248, %p249
    %p251 = scmp.ne.s32.totalorder %s243, %s245
    %p252 = scmp.eq.s32.totalorder %s25, 1
    %p253 = por %p251, %p252
    %p254 = scmp.ne.s32.totalorder %s245, %s246
    %p255 = scmp.eq.s32.totalorder %s25, 0
    %p256 = por %p254, %p255
    %p257 = scmp.ne.s32.totalorder %s245, %s246
    %p258 = scmp.eq.s32.totalorder %s26, 1
    %p259 = por %p257, %p258
    %p261 = scmp.ne.s32.totalorder %s246, %s260
    %p262 = scmp.eq.s32.totalorder %s26, 0
    %p263 = por %p261, %p262
    %s265 = sadd.s32 %s264, 1
    %p268 = scmp.eq.s32.totalorder %s20, 1
    %p269 = scmp.ne.s32.totalorder %s264, %s266
    %p270 = scmp.eq.s32.totalorder %s20, 0
    %p271 = por %p269, %p270
    %p272 = scmp.ne.s32.totalorder %s264, %s266
    %p273 = scmp.eq.s32.totalorder %s25, 1
    %p274 = por %p272, %p273
    %p275 = scmp.ne.s32.totalorder %s266, %s267
    %p276 = scmp.eq.s32.totalorder %s25, 0
    %p277 = por %p275, %p276
    %p278 = scmp.ne.s32.totalorder %s266, %s267
    %p279 = scmp.eq.s32.totalorder %s26, 1
    %p280 = por %p278, %p279
    %p282 = scmp.ne.s32.totalorder %s267, %s281
    %p283 = scmp.eq.s32.totalorder %s26, 0
    %p284 = por %p282, %p283
    %s286 = sadd.s32 %s285, 1
    %p289 = scmp.eq.s32.totalorder %s20, 1
    %p290 = scmp.ne.s32.totalorder %s285, %s287
    %p291 = scmp.eq.s32.totalorder %s20, 0
    %p292 = por %p290, %p291
    %p293 = scmp.ne.s32.totalorder %s285, %s287
    %p294 = scmp.eq.s32.totalorder %s25, 1
    %p295 = por %p293, %p294
    %p296 = scmp.ne.s32.totalorder %s287, %s288
    %p297 = scmp.eq.s32.totalorder %s25, 0
    %p298 = por %p296, %p297
    %p299 = scmp.ne.s32.totalorder %s287, %s288
    %p300 = scmp.eq.s32.totalorder %s26, 1
    %p301 = por %p299, %p300
    %p303 = scmp.ne.s32.totalorder %s288, %s302
    %p304 = scmp.eq.s32.totalorder %s26, 0
    %p305 = por %p303, %p304
    %s307 = sadd.s32 %s306, 1
    %p310 = scmp.eq.s32.totalorder %s20, 1
    %p311 = scmp.ne.s32.totalorder %s306, %s308
    %p312 = scmp.eq.s32.totalorder %s20, 0
    %p313 = por %p311, %p312
    %p314 = scmp.ne.s32.totalorder %s306, %s308
    %p315 = scmp.eq.s32.totalorder %s25, 1
    %p316 = por %p314, %p315
    %p317 = scmp.ne.s32.totalorder %s308, %s309
    %p318 = scmp.eq.s32.totalorder %s25, 0
    %p319 = por %p317, %p318
    %p320 = scmp.ne.s32.totalorder %s308, %s309
    %p321 = scmp.eq.s32.totalorder %s26, 1
    %p322 = por %p320, %p321
    %p324 = scmp.ne.s32.totalorder %s309, %s323
    %p325 = scmp.eq.s32.totalorder %s26, 0
    %p326 = por %p324, %p325
    %s327 = ssub.s32 %s20, %s27
    %p328 = scmp.eq.s32.totalorder %s327, 0
    %s330 = sadd.s32 %s329, 1
    %s331 = scalar_select %p328, %s329, %s330
    %p334 = pneg %p328
    %p335 = scmp.eq.s32.totalorder %s20, 1
    %p336 = por %p334, %p335
    %p337 = scmp.ne.s32.totalorder %s329, %s332
    %p338 = scmp.eq.s32.totalorder %s20, 0
    %p339 = por %p337, %p338
    %p340 = scmp.ne.s32.totalorder %s329, %s332
    %p341 = scmp.eq.s32.totalorder %s25, 1
    %p342 = por %p340, %p341
    %p343 = scmp.ne.s32.totalorder %s332, %s333
    %p344 = scmp.eq.s32.totalorder %s25, 0
    %p345 = por %p343, %p344
    %p346 = scmp.ne.s32.totalorder %s332, %s333
    %p347 = scmp.eq.s32.totalorder %s26, 1
    %p348 = por %p346, %p347
    %p350 = scmp.ne.s32.totalorder %s333, %s349
    %p351 = scmp.eq.s32.totalorder %s26, 0
    %p352 = por %p350, %p351
    %p353 = scmp.le.s32.totalorder 1, %s20
    %p354 = scmp.lt.s32.totalorder %s20, 3
    %p355 = pnand %p353, %p354
    %p356 = pneg %p355
    // Predicated region
    $region9: #{down_forward.1} parent=5 // pred_check
      _
    $region10: #{down_forward.1} parent=5 // pred_check_branch
      %358 = sbr.rel (%p355) target = $region12
    $region11: #{down_forward.1} parent=5 // pred_region
      %s359 = ssub.s32 %s20, 1
      // Predicated region
      $region13: #{down_forward.1} parent=11 // pred_check
        %p360 = pneg %p67
      $region14: #{down_forward.1} parent=11 // pred_check_branch
        %362 = sbr.rel (%p360) target = $region16
      $region15: #{down_forward.1} parent=11 // pred_region
        _
      $region16: #{down_forward.1} parent=11 // pred_fallthru
        _
      // Predicated region
      $region17: #{down_forward.1} parent=11 // pred_check
        %p363 = pneg %p88
      $region18: #{down_forward.1} parent=11 // pred_check_branch
        %365 = sbr.rel (%p363) target = $region20
      $region19: #{down_forward.1} parent=11 // pred_region
        _
      $region20: #{down_forward.1} parent=11 // pred_fallthru
        _
      // Predicated region
      $region21: #{down_forward.1} parent=11 // pred_check
        %p366 = pneg %p109
      $region22: #{down_forward.1} parent=11 // pred_check_branch
        %368 = sbr.rel (%p366) target = $region24
      $region23: #{down_forward.1} parent=11 // pred_region
        _
      $region24: #{down_forward.1} parent=11 // pred_fallthru
        _
      // Predicated region
      $region25: #{down_forward.1} parent=11 // pred_check
        %p369 = pneg %p130
      $region26: #{down_forward.1} parent=11 // pred_check_branch
        %371 = sbr.rel (%p369) target = $region28
      $region27: #{down_forward.1} parent=11 // pred_region
        _
      $region28: #{down_forward.1} parent=11 // pred_fallthru
        _
      // Predicated region
      $region29: #{down_forward.1} parent=11 // pred_check
        %p372 = pneg %p151
      $region30: #{down_forward.1} parent=11 // pred_check_branch
        %374 = sbr.rel (%p372) target = $region32
      $region31: #{down_forward.1} parent=11 // pred_region
        _
      $region32: #{down_forward.1} parent=11 // pred_fallthru
        _
      // Predicated region
      $region33: #{down_forward.1} parent=11 // pred_check
        %p375 = pneg %p172
      $region34: #{down_forward.1} parent=11 // pred_check_branch
        %377 = sbr.rel (%p375) target = $region36
      $region35: #{down_forward.1} parent=11 // pred_region
        _
      $region36: #{down_forward.1} parent=11 // pred_fallthru
        _
      // Predicated region
      $region37: #{down_forward.1} parent=11 // pred_check
        %p378 = pneg %p193
      $region38: #{down_forward.1} parent=11 // pred_check_branch
        %380 = sbr.rel (%p378) target = $region40
      $region39: #{down_forward.1} parent=11 // pred_region
        _
      $region40: #{down_forward.1} parent=11 // pred_fallthru
        _
      // Predicated region
      $region41: #{down_forward.1} parent=11 // pred_check
        %p381 = pneg %p214
      $region42: #{down_forward.1} parent=11 // pred_check_branch
        %383 = sbr.rel (%p381) target = $region44
      $region43: #{down_forward.1} parent=11 // pred_region
        _
      $region44: #{down_forward.1} parent=11 // pred_fallthru
        _
      // Predicated region
      $region45: #{down_forward.1} parent=11 // pred_check
        %p384 = pneg %p235
      $region46: #{down_forward.1} parent=11 // pred_check_branch
        %386 = sbr.rel (%p384) target = $region48
      $region47: #{down_forward.1} parent=11 // pred_region
        _
      $region48: #{down_forward.1} parent=11 // pred_fallthru
        _
      // Predicated region
      $region49: #{down_forward.1} parent=11 // pred_check
        %p387 = pneg %p256
      $region50: #{down_forward.1} parent=11 // pred_check_branch
        %389 = sbr.rel (%p387) target = $region52
      $region51: #{down_forward.1} parent=11 // pred_region
        _
      $region52: #{down_forward.1} parent=11 // pred_fallthru
        _
      // Predicated region
      $region53: #{down_forward.1} parent=11 // pred_check
        %p390 = pneg %p277
      $region54: #{down_forward.1} parent=11 // pred_check_branch
        %392 = sbr.rel (%p390) target = $region56
      $region55: #{down_forward.1} parent=11 // pred_region
        _
      $region56: #{down_forward.1} parent=11 // pred_fallthru
        _
      // Predicated region
      $region57: #{down_forward.1} parent=11 // pred_check
        %p393 = pneg %p298
      $region58: #{down_forward.1} parent=11 // pred_check_branch
        %395 = sbr.rel (%p393) target = $region60
      $region59: #{down_forward.1} parent=11 // pred_region
        _
      $region60: #{down_forward.1} parent=11 // pred_fallthru
        _
      // Predicated region
      $region61: #{down_forward.1} parent=11 // pred_check
        %p396 = pneg %p319
      $region62: #{down_forward.1} parent=11 // pred_check_branch
        %398 = sbr.rel (%p396) target = $region64
      $region63: #{down_forward.1} parent=11 // pred_region
        _
      $region64: #{down_forward.1} parent=11 // pred_fallthru
        _
    $region12: #{down_forward.1} parent=5 // pred_fallthru
      _
    %p399 = scmp.lt.s32.totalorder %s20, 2
    // Predicated region
    $region65: #{down_forward.1} parent=5 // pred_check
      %p400 = pneg %p399
    $region66: #{down_forward.1} parent=5 // pred_check_branch
      %402 = sbr.rel (%p400) target = $region68
    $region67: #{down_forward.1} parent=5 // pred_region
      // Predicated region
      $region69: #{down_forward.1} parent=67 // pred_check
        %p403 = pneg %p40
      $region70: #{down_forward.1} parent=67 // pred_check_branch
        %405 = sbr.rel (%p403) target = $region72
      $region71: #{down_forward.1} parent=67 // pred_region
        %p406 = scmp.lt.s32.totalorder %s20, 1
        %s407 = scalar_select %p406, %s20, 1
        %s408 = smul.addr %s407, 72
        %s409 = smul.addr %s408, 8
        %s410 = scalar_lea.vmem %s0, %s409
      $region72: #{down_forward.1} parent=67 // pred_fallthru
        _
    $region68: #{down_forward.1} parent=5 // pred_fallthru
      _
    %p411 = scmp.le.s32.totalorder 1, %s20
    %p412 = scmp.lt.s32.totalorder %s20, 3
    %p413 = pnand %p411, %p412
    %p414 = pneg %p413
    // Predicated region
    $region73: #{down_forward.1} parent=5 // pred_check
      _
    $region74: #{down_forward.1} parent=5 // pred_check_branch
      %416 = sbr.rel (%p413) target = $region76
    $region75: #{down_forward.1} parent=5 // pred_region
      %s417 = ssub.s32 %s20, 1
      %p418 = scmp.lt.s32.totalorder %s25, 1
      %s419 = scalar_select %p418, %s25, 1
      %s420 = smul.addr %s419, 72
      %s421 = smul.addr %s420, 8
      %s422 = scalar_lea.vmem %s0, %s421
      %p423 = pneg %p46
      %p424 = pneg %p43
      %p425 = pneg %p67
      %p426 = pneg %p64
      %p427 = pneg %p88
      %p428 = pneg %p85
      %p429 = pneg %p109
      %p430 = pneg %p106
      %p431 = pneg %p130
      %p432 = pneg %p127
      %p433 = pneg %p151
      %p434 = pneg %p148
      %p435 = pneg %p172
      %p436 = pneg %p169
      %p437 = pneg %p193
      %p438 = pneg %p190
      %p439 = pneg %p214
      %p440 = pneg %p211
      %p441 = pneg %p235
      %p442 = pneg %p232
      %p443 = pneg %p256
      %p444 = pneg %p253
      %p445 = pneg %p277
      %p446 = pneg %p274
      %p447 = pneg %p298
      %p448 = pneg %p295
      %p449 = pneg %p319
      %p450 = pneg %p316
      %p451 = pneg %p345
      %p452 = pneg %p342
      %p453 = scmp.lt.s32.totalorder %s25, 1
      %s454 = scalar_select %p453, %s25, 1
      %s455 = smul.addr %s454, 8
      %s456 = smul.addr %s455, 8
      %s457 = scalar_lea.vmem %s14, %s456
      %p458 = scmp.lt.s32.totalorder %s25, 1
      %s459 = scalar_select %p458, %s25, 1
      %s460 = smul.addr %s459, 72
      %s461 = smul.addr %s460, 8
      %s462 = scalar_lea.vmem %s0, %s461
      %p463 = scmp.lt.s32.totalorder %s25, 1
      %s464 = scalar_select %p463, %s25, 1
      %s465 = smul.addr %s464, 8
      %s466 = smul.addr %s465, 8
      %s467 = scalar_lea.vmem %s14, %s466
      %vm469 = vcmask 64512
      %470 = vst.msk [vmem:[#allocation2] sm:$0xff] %vm469, 0.0
      %vm471 = vcmask 58368
      %472 = vst.msk [vmem:[#allocation2 + $0x8] sm:$0x3] %vm471, 0.0
      %s473 = scalar_lea.vmem [#allocation2], 144
      %474 = vst.msk [vmem:[%s473] sm:$0xff] %vm469, 0.0
      %475 = vst.msk [vmem:[%s473 + $0x8] sm:$0x3] %vm471, 0.0
      %vm476 = vcmask 57344
      %477 = vst.msk [vmem:[#allocation2] sm:$0x1] %vm476, 0.0
      %478 = vst.msk [vmem:[#allocation2 + $0x10] sm:$0x1] %vm476, 0.0
      %479 = vst.msk [vmem:[#allocation2 + $0x20] sm:$0x1] %vm476, 0.0
      %480 = vst.msk [vmem:[#allocation2 + $0x30] sm:$0x1] %vm476, 0.0
      %481 = vst.msk [vmem:[#allocation2 + $0x40] sm:$0x1] %vm476, 0.0
      %482 = vst.msk [vmem:[#allocation2 + $0x50] sm:$0x1] %vm476, 0.0
      %483 = vst.msk [vmem:[#allocation2 + $0x60] sm:$0x1] %vm476, 0.0
      %484 = vst.msk [vmem:[#allocation2 + $0x70] sm:$0x1] %vm476, 0.0
      %485 = vst.msk [vmem:[#allocation2 + $0x80] sm:$0x1] %vm476, 0.0
      %486 = vst.msk [vmem:[#allocation2 + $0x90] sm:$0x1] %vm476, 0.0
      %487 = vst.msk [vmem:[#allocation2 + $0x9] sm:$0x1] %vm476, 0.0
      %488 = vst.msk [vmem:[#allocation2 + $0x19] sm:$0x1] %vm476, 0.0
      %489 = vst.msk [vmem:[#allocation2 + $0x29] sm:$0x1] %vm476, 0.0
      %490 = vst.msk [vmem:[#allocation2 + $0x39] sm:$0x1] %vm476, 0.0
      %491 = vst.msk [vmem:[#allocation2 + $0x49] sm:$0x1] %vm476, 0.0
      %492 = vst.msk [vmem:[#allocation2 + $0x59] sm:$0x1] %vm476, 0.0
      %493 = vst.msk [vmem:[#allocation2 + $0x69] sm:$0x1] %vm476, 0.0
      %494 = vst.msk [vmem:[#allocation2 + $0x79] sm:$0x1] %vm476, 0.0
      %495 = vst.msk [vmem:[#allocation2 + $0x89] sm:$0x1] %vm476, 0.0
      %496 = vst.msk [vmem:[#allocation2 + $0x99] sm:$0x1] %vm476, 0.0
      %v497 = vld [vmem:[%s462] sm:$0xff]
      %v498 = vld [vmem:[%s462 + $0x10] sm:$0xff]
      %v499 = vld [vmem:[%s462 + $0x20] sm:$0xff]
      %v500 = vld [vmem:[%s462 + $0x30] sm:$0xff]
      %v501 = vld [vmem:[%s462 + $0x40] sm:$0xff]
      %v502 = vld [vmem:[%s462 + $0x50] sm:$0xff]
      %v503 = vld [vmem:[%s462 + $0x60] sm:$0xff]
      %v504 = vld [vmem:[%s462 + $0x70] sm:$0xff]
      %v505 = vpack.c.bf16 %v498, %v497
      %v506 = vpack.c.bf16 %v500, %v499
      %v507 = vpack.c.bf16 %v502, %v501
      %v508 = vpack.c.bf16 %v504, %v503
      %v509 = vld [vmem:[%s1] sm:$0x3]
      %vm510 = vcmask 31744
      %v512 = vsel %vm510, %v505, 0
      %v515 = vsel %vm510, %v506, 0
      %v518 = vsel %vm510, %v507, 0
      %v521 = vsel %vm510, %v508, 0
      %vm523 = vcmask 1041408
      %v525 = vsel %vm523, %v509, 0
      %527 = vmatpush.bf16.msra.mxu0 0
      %528 = vmatpush.bf16.msra.mxu0 0
      %529 = vmatpush.bf16.msra.mxu0 0
      %530 = vmatpush.bf16.msra.mxu0 0
      %531 = vmatpush.bf16.msra.mxu0 0
      %532 = vmatpush.bf16.msra.mxu0 0
      %533 = vmatpush.bf16.msra.mxu0 0
      %534 = vmatpush.bf16.msra.mxu0 %v525
      %535 = vmatmul.bf16.gmra.mxu0 %v512
      %v536 = vpop.f32.mrf.mxu0
      %v537 = vadd.f32 0.0, %v536
      %v538 = vpop.f32.mrf.mxu0
      %v539 = vadd.f32 0.0, %v538
      %540 = vmatmul.bf16.gmra.mxu0 %v515
      %v541 = vpop.f32.mrf.mxu0
      %v542 = vadd.f32 0.0, %v541
      %v543 = vpop.f32.mrf.mxu0
      %v544 = vadd.f32 0.0, %v543
      %545 = vmatmul.bf16.gmra.mxu0 %v518
      %v546 = vpop.f32.mrf.mxu0
      %v547 = vadd.f32 0.0, %v546
      %v548 = vpop.f32.mrf.mxu0
      %v549 = vadd.f32 0.0, %v548
      %550 = vmatmul.bf16.gmra.mxu0 %v521
      %v551 = vpop.f32.mrf.mxu0
      %v552 = vadd.f32 0.0, %v551
      %v553 = vpop.f32.mrf.mxu0
      %v554 = vadd.f32 0.0, %v553
      %555 = vdwg.mxu0
      %556 = vst.msk [vmem:[#allocation3] sm:$0xff] %vm469, %v537
      %557 = vst.msk [vmem:[#allocation3 + $0x8] sm:$0xff] %vm469, %v539
      %558 = vst.msk [vmem:[#allocation3 + $0x10] sm:$0xff] %vm469, %v542
      %559 = vst.msk [vmem:[#allocation3 + $0x18] sm:$0xff] %vm469, %v544
      %560 = vst.msk [vmem:[#allocation3 + $0x20] sm:$0xff] %vm469, %v547
      %561 = vst.msk [vmem:[#allocation3 + $0x28] sm:$0xff] %vm469, %v549
      %562 = vst.msk [vmem:[#allocation3 + $0x30] sm:$0xff] %vm469, %v552
      %563 = vst.msk [vmem:[#allocation3 + $0x38] sm:$0xff] %vm469, %v554
      %s564 = scalar_lea.vmem %s462, 144
      %v565 = vld [vmem:[%s564] sm:$0xff]
      %v566 = vld [vmem:[%s564 + $0x10] sm:$0xff]
      %v567 = vld [vmem:[%s564 + $0x20] sm:$0xff]
      %v568 = vld [vmem:[%s564 + $0x30] sm:$0xff]
      %v569 = vld [vmem:[%s564 + $0x40] sm:$0xff]
      %v570 = vld [vmem:[%s564 + $0x50] sm:$0xff]
      %v571 = vld [vmem:[%s564 + $0x60] sm:$0xff]
      %v572 = vld [vmem:[%s564 + $0x70] sm:$0xff]
      %v573 = vpack.c.bf16 %v566, %v565
      %v574 = vpack.c.bf16 %v568, %v567
      %v575 = vpack.c.bf16 %v570, %v569
      %v576 = vpack.c.bf16 %v572, %v571
      %s577 = scalar_lea.vmem %s1, 2
      %v578 = vld [vmem:[%s577] sm:$0x3]
      %v580 = vsel %vm510, %v573, 0
      %v583 = vsel %vm510, %v574, 0
      %v586 = vsel %vm510, %v575, 0
      %v589 = vsel %vm510, %v576, 0
      %v592 = vsel %vm523, %v578, 0
      %594 = vmatpush.bf16.msra.mxu0 0
      %595 = vmatpush.bf16.msra.mxu0 0
      %596 = vmatpush.bf16.msra.mxu0 0
      %597 = vmatpush.bf16.msra.mxu0 0
      %598 = vmatpush.bf16.msra.mxu0 0
      %599 = vmatpush.bf16.msra.mxu0 0
      %600 = vmatpush.bf16.msra.mxu0 0
      %601 = vmatpush.bf16.msra.mxu0 %v592
      %602 = vmatmul.bf16.gmra.mxu0 %v580
      %v603 = vpop.f32.mrf.mxu0
      %v604 = vadd.f32 0.0, %v603
      %v605 = vpop.f32.mrf.mxu0
      %v606 = vadd.f32 0.0, %v605
      %607 = vmatmul.bf16.gmra.mxu0 %v583
      %v608 = vpop.f32.mrf.mxu0
      %v609 = vadd.f32 0.0, %v608
      %v610 = vpop.f32.mrf.mxu0
      %v611 = vadd.f32 0.0, %v610
      %612 = vmatmul.bf16.gmra.mxu0 %v586
      %v613 = vpop.f32.mrf.mxu0
      %v614 = vadd.f32 0.0, %v613
      %v615 = vpop.f32.mrf.mxu0
      %v616 = vadd.f32 0.0, %v615
      %617 = vmatmul.bf16.gmra.mxu0 %v589
      %v618 = vpop.f32.mrf.mxu0
      %v619 = vadd.f32 0.0, %v618
      %v620 = vpop.f32.mrf.mxu0
      %v621 = vadd.f32 0.0, %v620
      %622 = vdwg.mxu0
      %v623 = vld [vmem:[#allocation3] sm:$0xff]
      %v624 = vld [vmem:[#allocation3 + $0x8] sm:$0xff]
      %v625 = vld [vmem:[#allocation3 + $0x10] sm:$0xff]
      %v626 = vld [vmem:[#allocation3 + $0x18] sm:$0xff]
      %v627 = vld [vmem:[#allocation3 + $0x20] sm:$0xff]
      %v628 = vld [vmem:[#allocation3 + $0x28] sm:$0xff]
      %v629 = vld [vmem:[#allocation3 + $0x30] sm:$0xff]
      %v630 = vld [vmem:[#allocation3 + $0x38] sm:$0xff]
      %v631 = vadd.f32 %v623, %v604
      %v632 = vadd.f32 %v624, %v606
      %v633 = vadd.f32 %v625, %v609
      %v634 = vadd.f32 %v626, %v611
      %v635 = vadd.f32 %v627, %v614
      %v636 = vadd.f32 %v628, %v616
      %v637 = vadd.f32 %v629, %v619
      %v638 = vadd.f32 %v630, %v621
      %639 = vst.msk [vmem:[#allocation3] sm:$0xff] %vm469, %v631
      %640 = vst.msk [vmem:[#allocation3 + $0x8] sm:$0xff] %vm469, %v632
      %641 = vst.msk [vmem:[#allocation3 + $0x10] sm:$0xff] %vm469, %v633
      %642 = vst.msk [vmem:[#allocation3 + $0x18] sm:$0xff] %vm469, %v634
      %643 = vst.msk [vmem:[#allocation3 + $0x20] sm:$0xff] %vm469, %v635
      %644 = vst.msk [vmem:[#allocation3 + $0x28] sm:$0xff] %vm469, %v636
      %645 = vst.msk [vmem:[#allocation3 + $0x30] sm:$0xff] %vm469, %v637
      %646 = vst.msk [vmem:[#allocation3 + $0x38] sm:$0xff] %vm469, %v638
      %v647 = vld [vmem:[%s462 + $0x1] sm:$0xff]
      %v648 = vld [vmem:[%s462 + $0x11] sm:$0xff]
      %v649 = vld [vmem:[%s462 + $0x21] sm:$0xff]
      %v650 = vld [vmem:[%s462 + $0x31] sm:$0xff]
      %v651 = vld [vmem:[%s462 + $0x41] sm:$0xff]
      %v652 = vld [vmem:[%s462 + $0x51] sm:$0xff]
      %v653 = vld [vmem:[%s462 + $0x61] sm:$0xff]
      %v654 = vld [vmem:[%s462 + $0x71] sm:$0xff]
      %v655 = vpack.c.bf16 %v648, %v647
      %v656 = vpack.c.bf16 %v650, %v649
      %v657 = vpack.c.bf16 %v652, %v651
      %v658 = vpack.c.bf16 %v654, %v653
      %s659 = scalar_lea.vmem %s1, 4
      %v660 = vld [vmem:[%s659] sm:$0x3]
      %v662 = vsel %vm510, %v655, 0
      %v665 = vsel %vm510, %v656, 0
      %v668 = vsel %vm510, %v657, 0
      %v671 = vsel %vm510, %v658, 0
      %v674 = vsel %vm523, %v660, 0
      %676 = vmatpush.bf16.msra.mxu0 0
      %677 = vmatpush.bf16.msra.mxu0 0
      %678 = vmatpush.bf16.msra.mxu0 0
      %679 = vmatpush.bf16.msra.mxu0 0
      %680 = vmatpush.bf16.msra.mxu0 0
      %681 = vmatpush.bf16.msra.mxu0 0
      %682 = vmatpush.bf16.msra.mxu0 0
      %683 = vmatpush.bf16.msra.mxu0 %v674
      %684 = vmatmul.bf16.gmra.mxu0 %v662
      %v685 = vpop.f32.mrf.mxu0
      %v686 = vadd.f32 0.0, %v685
      %v687 = vpop.f32.mrf.mxu0
      %v688 = vadd.f32 0.0, %v687
      %689 = vmatmul.bf16.gmra.mxu0 %v665
      %v690 = vpop.f32.mrf.mxu0
      %v691 = vadd.f32 0.0, %v690
      %v692 = vpop.f32.mrf.mxu0
      %v693 = vadd.f32 0.0, %v692
      %694 = vmatmul.bf16.gmra.mxu0 %v668
      %v695 = vpop.f32.mrf.mxu0
      %v696 = vadd.f32 0.0, %v695
      %v697 = vpop.f32.mrf.mxu0
      %v698 = vadd.f32 0.0, %v697
      %699 = vmatmul.bf16.gmra.mxu0 %v671
      %v700 = vpop.f32.mrf.mxu0
      %v701 = vadd.f32 0.0, %v700
      %v702 = vpop.f32.mrf.mxu0
      %v703 = vadd.f32 0.0, %v702
      %704 = vdwg.mxu0
      %v705 = vld [vmem:[#allocation3] sm:$0xff]
      %v706 = vld [vmem:[#allocation3 + $0x8] sm:$0xff]
      %v707 = vld [vmem:[#allocation3 + $0x10] sm:$0xff]
      %v708 = vld [vmem:[#allocation3 + $0x18] sm:$0xff]
      %v709 = vld [vmem:[#allocation3 + $0x20] sm:$0xff]
      %v710 = vld [vmem:[#allocation3 + $0x28] sm:$0xff]
      %v711 = vld [vmem:[#allocation3 + $0x30] sm:$0xff]
      %v712 = vld [vmem:[#allocation3 + $0x38] sm:$0xff]
      %v713 = vadd.f32 %v705, %v686
      %v714 = vadd.f32 %v706, %v688
      %v715 = vadd.f32 %v707, %v691
      %v716 = vadd.f32 %v708, %v693
      %v717 = vadd.f32 %v709, %v696
      %v718 = vadd.f32 %v710, %v698
      %v719 = vadd.f32 %v711, %v701
      %v720 = vadd.f32 %v712, %v703
      %721 = vst.msk [vmem:[#allocation3] sm:$0xff] %vm469, %v713
      %722 = vst.msk [vmem:[#allocation3 + $0x8] sm:$0xff] %vm469, %v714
      %723 = vst.msk [vmem:[#allocation3 + $0x10] sm:$0xff] %vm469, %v715
      %724 = vst.msk [vmem:[#allocation3 + $0x18] sm:$0xff] %vm469, %v716
      %725 = vst.msk [vmem:[#allocation3 + $0x20] sm:$0xff] %vm469, %v717
      %726 = vst.msk [vmem:[#allocation3 + $0x28] sm:$0xff] %vm469, %v718
      %727 = vst.msk [vmem:[#allocation3 + $0x30] sm:$0xff] %vm469, %v719
      %728 = vst.msk [vmem:[#allocation3 + $0x38] sm:$0xff] %vm469, %v720
      %s729 = scalar_lea.vmem %s462, 288
      %v730 = vld [vmem:[%s729] sm:$0xff]
      %v731 = vld [vmem:[%s729 + $0x10] sm:$0xff]
      %v732 = vld [vmem:[%s729 + $0x20] sm:$0xff]
      %v733 = vld [vmem:[%s729 + $0x30] sm:$0xff]
      %v734 = vld [vmem:[%s729 + $0x40] sm:$0xff]
      %v735 = vld [vmem:[%s729 + $0x50] sm:$0xff]
      %v736 = vld [vmem:[%s729 + $0x60] sm:$0xff]
      %v737 = vld [vmem:[%s729 + $0x70] sm:$0xff]
      %v738 = vpack.c.bf16 %v731, %v730
      %v739 = vpack.c.bf16 %v733, %v732
      %v740 = vpack.c.bf16 %v735, %v734
      %v741 = vpack.c.bf16 %v737, %v736
      %s742 = scalar_lea.vmem %s1, 6
      %v743 = vld [vmem:[%s742] sm:$0x3]
      %v745 = vsel %vm510, %v738, 0
      %v748 = vsel %vm510, %v739, 0
      %v751 = vsel %vm510, %v740, 0
      %v754 = vsel %vm510, %v741, 0
      %v757 = vsel %vm523, %v743, 0
      %759 = vmatpush.bf16.msra.mxu0 0
      %760 = vmatpush.bf16.msra.mxu0 0
      %761 = vmatpush.bf16.msra.mxu0 0
      %762 = vmatpush.bf16.msra.mxu0 0
      %763 = vmatpush.bf16.msra.mxu0 0
      %764 = vmatpush.bf16.msra.mxu0 0
      %765 = vmatpush.bf16.msra.mxu0 0
      %766 = vmatpush.bf16.msra.mxu0 %v757
      %767 = vmatmul.bf16.gmra.mxu0 %v745
      %v768 = vpop.f32.mrf.mxu0
      %v769 = vadd.f32 0.0, %v768
      %v770 = vpop.f32.mrf.mxu0
      %v771 = vadd.f32 0.0, %v770
      %772 = vmatmul.bf16.gmra.mxu0 %v748
      %v773 = vpop.f32.mrf.mxu0
      %v774 = vadd.f32 0.0, %v773
      %v775 = vpop.f32.mrf.mxu0
      %v776 = vadd.f32 0.0, %v775
      %777 = vmatmul.bf16.gmra.mxu0 %v751
      %v778 = vpop.f32.mrf.mxu0
      %v779 = vadd.f32 0.0, %v778
      %v780 = vpop.f32.mrf.mxu0
      %v781 = vadd.f32 0.0, %v780
      %782 = vmatmul.bf16.gmra.mxu0 %v754
      %v783 = vpop.f32.mrf.mxu0
      %v784 = vadd.f32 0.0, %v783
      %v785 = vpop.f32.mrf.mxu0
      %v786 = vadd.f32 0.0, %v785
      %787 = vdwg.mxu0
      %v788 = vld [vmem:[#allocation3] sm:$0xff]
      %v789 = vld [vmem:[#allocation3 + $0x8] sm:$0xff]
      %v790 = vld [vmem:[#allocation3 + $0x10] sm:$0xff]
      %v791 = vld [vmem:[#allocation3 + $0x18] sm:$0xff]
      %v792 = vld [vmem:[#allocation3 + $0x20] sm:$0xff]
      %v793 = vld [vmem:[#allocation3 + $0x28] sm:$0xff]
      %v794 = vld [vmem:[#allocation3 + $0x30] sm:$0xff]
      %v795 = vld [vmem:[#allocation3 + $0x38] sm:$0xff]
      %v796 = vadd.f32 %v788, %v769
      %v797 = vadd.f32 %v789, %v771
      %v798 = vadd.f32 %v790, %v774
      %v799 = vadd.f32 %v791, %v776
      %v800 = vadd.f32 %v792, %v779
      %v801 = vadd.f32 %v793, %v781
      %v802 = vadd.f32 %v794, %v784
      %v803 = vadd.f32 %v795, %v786
      %804 = vst.msk [vmem:[#allocation3] sm:$0xff] %vm469, %v796
      %805 = vst.msk [vmem:[#allocation3 + $0x8] sm:$0xff] %vm469, %v797
      %806 = vst.msk [vmem:[#allocation3 + $0x10] sm:$0xff] %vm469, %v798
      %807 = vst.msk [vmem:[#allocation3 + $0x18] sm:$0xff] %vm469, %v799
      %808 = vst.msk [vmem:[#allocation3 + $0x20] sm:$0xff] %vm469, %v800
      %809 = vst.msk [vmem:[#allocation3 + $0x28] sm:$0xff] %vm469, %v801
      %810 = vst.msk [vmem:[#allocation3 + $0x30] sm:$0xff] %vm469, %v802
      %811 = vst.msk [vmem:[#allocation3 + $0x38] sm:$0xff] %vm469, %v803
      %s812 = scalar_lea.vmem %s462, 432
      %v813 = vld [vmem:[%s812] sm:$0xff]
      %v814 = vld [vmem:[%s812 + $0x10] sm:$0xff]
      %v815 = vld [vmem:[%s812 + $0x20] sm:$0xff]
      %v816 = vld [vmem:[%s812 + $0x30] sm:$0xff]
      %v817 = vld [vmem:[%s812 + $0x40] sm:$0xff]
      %v818 = vld [vmem:[%s812 + $0x50] sm:$0xff]
      %v819 = vld [vmem:[%s812 + $0x60] sm:$0xff]
      %v820 = vld [vmem:[%s812 + $0x70] sm:$0xff]
      %v821 = vpack.c.bf16 %v814, %v813
      %v822 = vpack.c.bf16 %v816, %v815
      %v823 = vpack.c.bf16 %v818, %v817
      %v824 = vpack.c.bf16 %v820, %v819
      %s825 = scalar_lea.vmem %s1, 8
      %v826 = vld [vmem:[%s825] sm:$0x3]
      %v828 = vsel %vm510, %v821, 0
      %v831 = vsel %vm510, %v822, 0
      %v834 = vsel %vm510, %v823, 0
      %v837 = vsel %vm510, %v824, 0
      %v840 = vsel %vm523, %v826, 0
      %842 = vmatpush.bf16.msra.mxu0 0
      %843 = vmatpush.bf16.msra.mxu0 0
      %844 = vmatpush.bf16.msra.mxu0 0
      %845 = vmatpush.bf16.msra.mxu0 0
      %846 = vmatpush.bf16.msra.mxu0 0
      %847 = vmatpush.bf16.msra.mxu0 0
      %848 = vmatpush.bf16.msra.mxu0 0
      %849 = vmatpush.bf16.msra.mxu0 %v840
      %850 = vmatmul.bf16.gmra.mxu0 %v828
      %v851 = vpop.f32.mrf.mxu0
      %v852 = vadd.f32 0.0, %v851
      %v853 = vpop.f32.mrf.mxu0
      %v854 = vadd.f32 0.0, %v853
      %855 = vmatmul.bf16.gmra.mxu0 %v831
      %v856 = vpop.f32.mrf.mxu0
      %v857 = vadd.f32 0.0, %v856
      %v858 = vpop.f32.mrf.mxu0
      %v859 = vadd.f32 0.0, %v858
      %860 = vmatmul.bf16.gmra.mxu0 %v834
      %v861 = vpop.f32.mrf.mxu0
      %v862 = vadd.f32 0.0, %v861
      %v863 = vpop.f32.mrf.mxu0
      %v864 = vadd.f32 0.0, %v863
      %865 = vmatmul.bf16.gmra.mxu0 %v837
      %v866 = vpop.f32.mrf.mxu0
      %v867 = vadd.f32 0.0, %v866
      %v868 = vpop.f32.mrf.mxu0
      %v869 = vadd.f32 0.0, %v868
      %870 = vdwg.mxu0
      %v871 = vld [vmem:[#allocation3] sm:$0xff]
      %v872 = vld [vmem:[#allocation3 + $0x8] sm:$0xff]
      %v873 = vld [vmem:[#allocation3 + $0x10] sm:$0xff]
      %v874 = vld [vmem:[#allocation3 + $0x18] sm:$0xff]
      %v875 = vld [vmem:[#allocation3 + $0x20] sm:$0xff]
      %v876 = vld [vmem:[#allocation3 + $0x28] sm:$0xff]
      %v877 = vld [vmem:[#allocation3 + $0x30] sm:$0xff]
      %v878 = vld [vmem:[#allocation3 + $0x38] sm:$0xff]
      %v879 = vadd.f32 %v871, %v852
      %v880 = vadd.f32 %v872, %v854
      %v881 = vadd.f32 %v873, %v857
      %v882 = vadd.f32 %v874, %v859
      %v883 = vadd.f32 %v875, %v862
      %v884 = vadd.f32 %v876, %v864
      %v885 = vadd.f32 %v877, %v867
      %v886 = vadd.f32 %v878, %v869
      %887 = vst.msk [vmem:[#allocation3] sm:$0xff] %vm469, %v879
      %888 = vst.msk [vmem:[#allocation3 + $0x8] sm:$0xff] %vm469, %v880
      %889 = vst.msk [vmem:[#allocation3 + $0x10] sm:$0xff] %vm469, %v881
      %890 = vst.msk [vmem:[#allocation3 + $0x18] sm:$0xff] %vm469, %v882
      %891 = vst.msk [vmem:[#allocation3 + $0x20] sm:$0xff] %vm469, %v883
      %892 = vst.msk [vmem:[#allocation3 + $0x28] sm:$0xff] %vm469, %v884
      %893 = vst.msk [vmem:[#allocation3 + $0x30] sm:$0xff] %vm469, %v885
      %894 = vst.msk [vmem:[#allocation3 + $0x38] sm:$0xff] %vm469, %v886
      %v895 = vld [vmem:[%s729 + $0x1] sm:$0xff]
      %v896 = vld [vmem:[%s729 + $0x11] sm:$0xff]
      %v897 = vld [vmem:[%s729 + $0x21] sm:$0xff]
      %v898 = vld [vmem:[%s729 + $0x31] sm:$0xff]
      %v899 = vld [vmem:[%s729 + $0x41] sm:$0xff]
      %v900 = vld [vmem:[%s729 + $0x51] sm:$0xff]
      %v901 = vld [vmem:[%s729 + $0x61] sm:$0xff]
      %v902 = vld [vmem:[%s729 + $0x71] sm:$0xff]
      %v903 = vpack.c.bf16 %v896, %v895
      %v904 = vpack.c.bf16 %v898, %v897
      %v905 = vpack.c.bf16 %v900, %v899
      %v906 = vpack.c.bf16 %v902, %v901
      %s907 = scalar_lea.vmem %s1, 10
      %v908 = vld [vmem:[%s907] sm:$0x3]
      %v910 = vsel %vm510, %v903, 0
      %v913 = vsel %vm510, %v904, 0
      %v916 = vsel %vm510, %v905, 0
      %v919 = vsel %vm510, %v906, 0
      %v922 = vsel %vm523, %v908, 0
      %924 = vmatpush.bf16.msra.mxu0 0
      %925 = vmatpush.bf16.msra.mxu0 0
      %926 = vmatpush.bf16.msra.mxu0 0
      %927 = vmatpush.bf16.msra.mxu0 0
      %928 = vmatpush.bf16.msra.mxu0 0
      %929 = vmatpush.bf16.msra.mxu0 0
      %930 = vmatpush.bf16.msra.mxu0 0
      %931 = vmatpush.bf16.msra.mxu0 %v922
      %932 = vmatmul.bf16.gmra.mxu0 %v910
      %v933 = vpop.f32.mrf.mxu0
      %v934 = vadd.f32 0.0, %v933
      %v935 = vpop.f32.mrf.mxu0
      %v936 = vadd.f32 0.0, %v935
      %937 = vmatmul.bf16.gmra.mxu0 %v913
      %v938 = vpop.f32.mrf.mxu0
      %v939 = vadd.f32 0.0, %v938
      %v940 = vpop.f32.mrf.mxu0
      %v941 = vadd.f32 0.0, %v940
      %942 = vmatmul.bf16.gmra.mxu0 %v916
      %v943 = vpop.f32.mrf.mxu0
      %v944 = vadd.f32 0.0, %v943
      %v945 = vpop.f32.mrf.mxu0
      %v946 = vadd.f32 0.0, %v945
      %947 = vmatmul.bf16.gmra.mxu0 %v919
      %v948 = vpop.f32.mrf.mxu0
      %v949 = vadd.f32 0.0, %v948
      %v950 = vpop.f32.mrf.mxu0
      %v951 = vadd.f32 0.0, %v950
      %952 = vdwg.mxu0
      %v953 = vld [vmem:[#allocation3] sm:$0xff]
      %v954 = vld [vmem:[#allocation3 + $0x8] sm:$0xff]
      %v955 = vld [vmem:[#allocation3 + $0x10] sm:$0xff]
      %v956 = vld [vmem:[#allocation3 + $0x18] sm:$0xff]
      %v957 = vld [vmem:[#allocation3 + $0x20] sm:$0xff]
      %v958 = vld [vmem:[#allocation3 + $0x28] sm:$0xff]
      %v959 = vld [vmem:[#allocation3 + $0x30] sm:$0xff]
      %v960 = vld [vmem:[#allocation3 + $0x38] sm:$0xff]
      %v961 = vadd.f32 %v953, %v934
      %v962 = vadd.f32 %v954, %v936
      %v963 = vadd.f32 %v955, %v939
      %v964 = vadd.f32 %v956, %v941
      %v965 = vadd.f32 %v957, %v944
      %v966 = vadd.f32 %v958, %v946
      %v967 = vadd.f32 %v959, %v949
      %v968 = vadd.f32 %v960, %v951
      %969 = vst.msk [vmem:[#allocation3] sm:$0xff] %vm469, %v961
      %970 = vst.msk [vmem:[#allocation3 + $0x8] sm:$0xff] %vm469, %v962
      %971 = vst.msk [vmem:[#allocation3 + $0x10] sm:$0xff] %vm469, %v963
      %972 = vst.msk [vmem:[#allocation3 + $0x18] sm:$0xff] %vm469, %v964
      %973 = vst.msk [vmem:[#allocation3 + $0x20] sm:$0xff] %vm469, %v965
      %974 = vst.msk [vmem:[#allocation3 + $0x28] sm:$0xff] %vm469, %v966
      %975 = vst.msk [vmem:[#allocation3 + $0x30] sm:$0xff] %vm469, %v967
      %976 = vst.msk [vmem:[#allocation3 + $0x38] sm:$0xff] %vm469, %v968
      %s977 = scalar_lea.vmem %s462, 16
      %v978 = vld [vmem:[%s977] sm:$0xff]
      %v979 = vld [vmem:[%s977 + $0x10] sm:$0xff]
      %v980 = vld [vmem:[%s977 + $0x20] sm:$0xff]
      %v981 = vld [vmem:[%s977 + $0x30] sm:$0xff]
      %v982 = vld [vmem:[%s977 + $0x40] sm:$0xff]
      %v983 = vld [vmem:[%s977 + $0x50] sm:$0xff]
      %v984 = vld [vmem:[%s977 + $0x60] sm:$0xff]
      %v985 = vld [vmem:[%s977 + $0x70] sm:$0xff]
      %v986 = vpack.c.bf16 %v979, %v978
      %v987 = vpack.c.bf16 %v981, %v980
      %v988 = vpack.c.bf16 %v983, %v982
      %v989 = vpack.c.bf16 %v985, %v984
      %s990 = scalar_lea.vmem %s1, 12
      %v991 = vld [vmem:[%s990] sm:$0x3]
      %v993 = vsel %vm510, %v986, 0
      %v996 = vsel %vm510, %v987, 0
      %v999 = vsel %vm510, %v988, 0
      %v1002 = vsel %vm510, %v989, 0
      %v1005 = vsel %vm523, %v991, 0
      %1007 = vmatpush.bf16.msra.mxu0 0
      %1008 = vmatpush.bf16.msra.mxu0 0
      %1009 = vmatpush.bf16.msra.mxu0 0
      %1010 = vmatpush.bf16.msra.mxu0 0
      %1011 = vmatpush.bf16.msra.mxu0 0
      %1012 = vmatpush.bf16.msra.mxu0 0
      %1013 = vmatpush.bf16.msra.mxu0 0
      %1014 = vmatpush.bf16.msra.mxu0 %v1005
      %1015 = vmatmul.bf16.gmra.mxu0 %v993
      %v1016 = vpop.f32.mrf.mxu0
      %v1017 = vadd.f32 0.0, %v1016
      %v1018 = vpop.f32.mrf.mxu0
      %v1019 = vadd.f32 0.0, %v1018
      %1020 = vmatmul.bf16.gmra.mxu0 %v996
      %v1021 = vpop.f32.mrf.mxu0
      %v1022 = vadd.f32 0.0, %v1021
      %v1023 = vpop.f32.mrf.mxu0
      %v1024 = vadd.f32 0.0, %v1023
      %1025 = vmatmul.bf16.gmra.mxu0 %v999
      %v1026 = vpop.f32.mrf.mxu0
      %v1027 = vadd.f32 0.0, %v1026
      %v1028 = vpop.f32.mrf.mxu0
      %v1029 = vadd.f32 0.0, %v1028
      %1030 = vmatmul.bf16.gmra.mxu0 %v1002
      %v1031 = vpop.f32.mrf.mxu0
      %v1032 = vadd.f32 0.0, %v1031
      %v1033 = vpop.f32.mrf.mxu0
      %v1034 = vadd.f32 0.0, %v1033
      %1035 = vdwg.mxu0
      %v1036 = vld [vmem:[#allocation3] sm:$0xff]
      %v1037 = vld [vmem:[#allocation3 + $0x8] sm:$0xff]
      %v1038 = vld [vmem:[#allocation3 + $0x10] sm:$0xff]
      %v1039 = vld [vmem:[#allocation3 + $0x18] sm:$0xff]
      %v1040 = vld [vmem:[#allocation3 + $0x20] sm:$0xff]
      %v1041 = vld [vmem:[#allocation3 + $0x28] sm:$0xff]
      %v1042 = vld [vmem:[#allocation3 + $0x30] sm:$0xff]
      %v1043 = vld [vmem:[#allocation3 + $0x38] sm:$0xff]
      %v1044 = vadd.f32 %v1036, %v1017
      %v1045 = vadd.f32 %v1037, %v1019
      %v1046 = vadd.f32 %v1038, %v1022
      %v1047 = vadd.f32 %v1039, %v1024
      %v1048 = vadd.f32 %v1040, %v1027
      %v1049 = vadd.f32 %v1041, %v1029
      %v1050 = vadd.f32 %v1042, %v1032
      %v1051 = vadd.f32 %v1043, %v1034
      %1052 = vst.msk [vmem:[#allocation3] sm:$0xff] %vm469, %v1044
      %1053 = vst.msk [vmem:[#allocation3 + $0x8] sm:$0xff] %vm469, %v1045
      %1054 = vst.msk [vmem:[#allocation3 + $0x10] sm:$0xff] %vm469, %v1046
      %1055 = vst.msk [vmem:[#allocation3 + $0x18] sm:$0xff] %vm469, %v1047
      %1056 = vst.msk [vmem:[#allocation3 + $0x20] sm:$0xff] %vm469, %v1048
      %1057 = vst.msk [vmem:[#allocation3 + $0x28] sm:$0xff] %vm469, %v1049
      %1058 = vst.msk [vmem:[#allocation3 + $0x30] sm:$0xff] %vm469, %v1050
      %1059 = vst.msk [vmem:[#allocation3 + $0x38] sm:$0xff] %vm469, %v1051
      %s1060 = scalar_lea.vmem %s462, 160
      %v1061 = vld [vmem:[%s1060] sm:$0xff]
      %v1062 = vld [vmem:[%s1060 + $0x10] sm:$0xff]
      %v1063 = vld [vmem:[%s1060 + $0x20] sm:$0xff]
      %v1064 = vld [vmem:[%s1060 + $0x30] sm:$0xff]
      %v1065 = vld [vmem:[%s1060 + $0x40] sm:$0xff]
      %v1066 = vld [vmem:[%s1060 + $0x50] sm:$0xff]
      %v1067 = vld [vmem:[%s1060 + $0x60] sm:$0xff]
      %v1068 = vld [vmem:[%s1060 + $0x70] sm:$0xff]
      %v1069 = vpack.c.bf16 %v1062, %v1061
      %v1070 = vpack.c.bf16 %v1064, %v1063
      %v1071 = vpack.c.bf16 %v1066, %v1065
      %v1072 = vpack.c.bf16 %v1068, %v1067
      %s1073 = scalar_lea.vmem %s1, 14
      %v1074 = vld [vmem:[%s1073] sm:$0x3]
      %v1076 = vsel %vm510, %v1069, 0
      %v1079 = vsel %vm510, %v1070, 0
      %v1082 = vsel %vm510, %v1071, 0
      %v1085 = vsel %vm510, %v1072, 0
      %v1088 = vsel %vm523, %v1074, 0
      %1090 = vmatpush.bf16.msra.mxu0 0
      %1091 = vmatpush.bf16.msra.mxu0 0
      %1092 = vmatpush.bf16.msra.mxu0 0
      %1093 = vmatpush.bf16.msra.mxu0 0
      %1094 = vmatpush.bf16.msra.mxu0 0
      %1095 = vmatpush.bf16.msra.mxu0 0
      %1096 = vmatpush.bf16.msra.mxu0 0
      %1097 = vmatpush.bf16.msra.mxu0 %v1088
      %1098 = vmatmul.bf16.gmra.mxu0 %v1076
      %v1099 = vpop.f32.mrf.mxu0
      %v1100 = vadd.f32 0.0, %v1099
      %v1101 = vpop.f32.mrf.mxu0
      %v1102 = vadd.f32 0.0, %v1101
      %1103 = vmatmul.bf16.gmra.mxu0 %v1079
      %v1104 = vpop.f32.mrf.mxu0
      %v1105 = vadd.f32 0.0, %v1104
      %v1106 = vpop.f32.mrf.mxu0
      %v1107 = vadd.f32 0.0, %v1106
      %1108 = vmatmul.bf16.gmra.mxu0 %v1082
      %v1109 = vpop.f32.mrf.mxu0
      %v1110 = vadd.f32 0.0, %v1109
      %v1111 = vpop.f32.mrf.mxu0
      %v1112 = vadd.f32 0.0, %v1111
      %1113 = vmatmul.bf16.gmra.mxu0 %v1085
      %v1114 = vpop.f32.mrf.mxu0
      %v1115 = vadd.f32 0.0, %v1114
      %v1116 = vpop.f32.mrf.mxu0
      %v1117 = vadd.f32 0.0, %v1116
      %1118 = vdwg.mxu0
      %v1119 = vld [vmem:[#allocation3] sm:$0xff]
      %v1120 = vld [vmem:[#allocation3 + $0x8] sm:$0xff]
      %v1121 = vld [vmem:[#allocation3 + $0x10] sm:$0xff]
      %v1122 = vld [vmem:[#allocation3 + $0x18] sm:$0xff]
      %v1123 = vld [vmem:[#allocation3 + $0x20] sm:$0xff]
      %v1124 = vld [vmem:[#allocation3 + $0x28] sm:$0xff]
      %v1125 = vld [vmem:[#allocation3 + $0x30] sm:$0xff]
      %v1126 = vld [vmem:[#allocation3 + $0x38] sm:$0xff]
      %v1127 = vadd.f32 %v1119, %v1100
      %v1128 = vadd.f32 %v1120, %v1102
      %v1129 = vadd.f32 %v1121, %v1105
      %v1130 = vadd.f32 %v1122, %v1107
      %v1131 = vadd.f32 %v1123, %v1110
      %v1132 = vadd.f32 %v1124, %v1112
      %v1133 = vadd.f32 %v1125, %v1115
      %v1134 = vadd.f32 %v1126, %v1117
      %1135 = vst.msk [vmem:[#allocation3] sm:$0xff] %vm469, %v1127
      %1136 = vst.msk [vmem:[#allocation3 + $0x8] sm:$0xff] %vm469, %v1128
      %1137 = vst.msk [vmem:[#allocation3 + $0x10] sm:$0xff] %vm469, %v1129
      %1138 = vst.msk [vmem:[#allocation3 + $0x18] sm:$0xff] %vm469, %v1130
      %1139 = vst.msk [vmem:[#allocation3 + $0x20] sm:$0xff] %vm469, %v1131
      %1140 = vst.msk [vmem:[#allocation3 + $0x28] sm:$0xff] %vm469, %v1132
      %1141 = vst.msk [vmem:[#allocation3 + $0x30] sm:$0xff] %vm469, %v1133
      %1142 = vst.msk [vmem:[#allocation3 + $0x38] sm:$0xff] %vm469, %v1134
      %v1143 = vld [vmem:[%s977 + $0x1] sm:$0xff]
      %v1144 = vld [vmem:[%s977 + $0x11] sm:$0xff]
      %v1145 = vld [vmem:[%s977 + $0x21] sm:$0xff]
      %v1146 = vld [vmem:[%s977 + $0x31] sm:$0xff]
      %v1147 = vld [vmem:[%s977 + $0x41] sm:$0xff]
      %v1148 = vld [vmem:[%s977 + $0x51] sm:$0xff]
      %v1149 = vld [vmem:[%s977 + $0x61] sm:$0xff]
      %v1150 = vld [vmem:[%s977 + $0x71] sm:$0xff]
      %v1151 = vpack.c.bf16 %v1144, %v1143
      %v1152 = vpack.c.bf16 %v1146, %v1145
      %v1153 = vpack.c.bf16 %v1148, %v1147
      %v1154 = vpack.c.bf16 %v1150, %v1149
      %s1155 = scalar_lea.vmem %s1, 16
      %v1156 = vld [vmem:[%s1155] sm:$0x3]
      %v1158 = vsel %vm510, %v1151, 0
      %v1161 = vsel %vm510, %v1152, 0
      %v1164 = vsel %vm510, %v1153, 0
      %v1167 = vsel %vm510, %v1154, 0
      %v1170 = vsel %vm523, %v1156, 0
      %1172 = vmatpush.bf16.msra.mxu0 0
      %1173 = vmatpush.bf16.msra.mxu0 0
      %1174 = vmatpush.bf16.msra.mxu0 0
      %1175 = vmatpush.bf16.msra.mxu0 0
      %1176 = vmatpush.bf16.msra.mxu0 0
      %1177 = vmatpush.bf16.msra.mxu0 0
      %1178 = vmatpush.bf16.msra.mxu0 0
      %1179 = vmatpush.bf16.msra.mxu0 %v1170
      %1180 = vmatmul.bf16.gmra.mxu0 %v1158
      %v1181 = vpop.f32.mrf.mxu0
      %v1182 = vadd.f32 0.0, %v1181
      %v1183 = vpop.f32.mrf.mxu0
      %v1184 = vadd.f32 0.0, %v1183
      %1185 = vmatmul.bf16.gmra.mxu0 %v1161
      %v1186 = vpop.f32.mrf.mxu0
      %v1187 = vadd.f32 0.0, %v1186
      %v1188 = vpop.f32.mrf.mxu0
      %v1189 = vadd.f32 0.0, %v1188
      %1190 = vmatmul.bf16.gmra.mxu0 %v1164
      %v1191 = vpop.f32.mrf.mxu0
      %v1192 = vadd.f32 0.0, %v1191
      %v1193 = vpop.f32.mrf.mxu0
      %v1194 = vadd.f32 0.0, %v1193
      %1195 = vmatmul.bf16.gmra.mxu0 %v1167
      %v1196 = vpop.f32.mrf.mxu0
      %v1197 = vadd.f32 0.0, %v1196
      %v1198 = vpop.f32.mrf.mxu0
      %v1199 = vadd.f32 0.0, %v1198
      %1200 = vdwg.mxu0
      %v1201 = vld [vmem:[#allocation3] sm:$0xff]
      %v1202 = vld [vmem:[#allocation3 + $0x8] sm:$0xff]
      %v1203 = vld [vmem:[#allocation3 + $0x10] sm:$0xff]
      %v1204 = vld [vmem:[#allocation3 + $0x18] sm:$0xff]
      %v1205 = vld [vmem:[#allocation3 + $0x20] sm:$0xff]
      %v1206 = vld [vmem:[#allocation3 + $0x28] sm:$0xff]
      %v1207 = vld [vmem:[#allocation3 + $0x30] sm:$0xff]
      %v1208 = vld [vmem:[#allocation3 + $0x38] sm:$0xff]
      %v1209 = vadd.f32 %v1201, %v1182
      %v1210 = vadd.f32 %v1202, %v1184
      %v1211 = vadd.f32 %v1203, %v1187
      %v1212 = vadd.f32 %v1204, %v1189
      %v1213 = vadd.f32 %v1205, %v1192
      %v1214 = vadd.f32 %v1206, %v1194
      %v1215 = vadd.f32 %v1207, %v1197
      %v1216 = vadd.f32 %v1208, %v1199
      %1217 = vst.msk [vmem:[#allocation3] sm:$0xff] %vm469, %v1209
      %1218 = vst.msk [vmem:[#allocation3 + $0x8] sm:$0xff] %vm469, %v1210
      %1219 = vst.msk [vmem:[#allocation3 + $0x10] sm:$0xff] %vm469, %v1211
      %1220 = vst.msk [vmem:[#allocation3 + $0x18] sm:$0xff] %vm469, %v1212
      %1221 = vst.msk [vmem:[#allocation3 + $0x20] sm:$0xff] %vm469, %v1213
      %1222 = vst.msk [vmem:[#allocation3 + $0x28] sm:$0xff] %vm469, %v1214
      %1223 = vst.msk [vmem:[#allocation3 + $0x30] sm:$0xff] %vm469, %v1215
      %1224 = vst.msk [vmem:[#allocation3 + $0x38] sm:$0xff] %vm469, %v1216
      %v1225 = vld [vmem:[#allocation3] sm:$0xff]
      %v1226 = vld [vmem:[#allocation3 + $0x8] sm:$0xff]
      %v1227 = vld [vmem:[#allocation3 + $0x10] sm:$0xff]
      %v1228 = vld [vmem:[#allocation3 + $0x18] sm:$0xff]
      %v1229 = vld [vmem:[#allocation3 + $0x20] sm:$0xff]
      %v1230 = vld [vmem:[#allocation3 + $0x28] sm:$0xff]
      %v1231 = vld [vmem:[#allocation3 + $0x30] sm:$0xff]
      %v1232 = vld [vmem:[#allocation3 + $0x38] sm:$0xff]
      %1233 = vst.msk [vmem:[#allocation4] sm:$0xff] %vm469, %v1225
      %1234 = vst.msk [vmem:[#allocation4 + $0x8] sm:$0xff] %vm469, %v1226
      %1235 = vst.msk [vmem:[#allocation4 + $0x10] sm:$0xff] %vm469, %v1227
      %1236 = vst.msk [vmem:[#allocation4 + $0x18] sm:$0xff] %vm469, %v1228
      %1237 = vst.msk [vmem:[#allocation4 + $0x20] sm:$0xff] %vm469, %v1229
      %1238 = vst.msk [vmem:[#allocation4 + $0x28] sm:$0xff] %vm469, %v1230
      %1239 = vst.msk [vmem:[#allocation4 + $0x30] sm:$0xff] %vm469, %v1231
      %1240 = vst.msk [vmem:[#allocation4 + $0x38] sm:$0xff] %vm469, %v1232
      %v1241 = vld [vmem:[#allocation3] sm:$0xff]
      %v1242 = vld [vmem:[#allocation3 + $0x8] sm:$0xff]
      %v1243 = vld [vmem:[#allocation3 + $0x10] sm:$0xff]
      %v1244 = vld [vmem:[#allocation3 + $0x18] sm:$0xff]
      %v1245 = vld [vmem:[#allocation3 + $0x20] sm:$0xff]
      %v1246 = vld [vmem:[#allocation3 + $0x28] sm:$0xff]
      %v1247 = vld [vmem:[#allocation3 + $0x30] sm:$0xff]
      %v1248 = vld [vmem:[#allocation3 + $0x38] sm:$0xff]
      %v1249 = vld [vmem:[%s2] sm:$0x1]
      %v1251 = vperm.slane %v1249, 0
      %v1253 = vmul.f32 %v1241, %v1251
      %v1254 = vmul.f32 %v1242, %v1251
      %v1255 = vmul.f32 %v1243, %v1251
      %v1256 = vmul.f32 %v1244, %v1251
      %v1257 = vmul.f32 %v1245, %v1251
      %v1258 = vmul.f32 %v1246, %v1251
      %v1259 = vmul.f32 %v1247, %v1251
      %v1260 = vmul.f32 %v1248, %v1251
      %v1261 = vld [vmem:[%s3] sm:$0x1]
      %v1263 = vperm.slane %v1261, 0
      %v1265 = vadd.f32 %v1253, %v1263
      %v1266 = vadd.f32 %v1254, %v1263
      %v1267 = vadd.f32 %v1255, %v1263
      %v1268 = vadd.f32 %v1256, %v1263
      %v1269 = vadd.f32 %v1257, %v1263
      %v1270 = vadd.f32 %v1258, %v1263
      %v1271 = vadd.f32 %v1259, %v1263
      %v1272 = vadd.f32 %v1260, %v1263
      %vm1273 = vcmp.gt.f32.partialorder %v1265, 0.0
      %vm1274 = vcmp.gt.f32.partialorder %v1266, 0.0
      %vm1275 = vcmp.gt.f32.partialorder %v1267, 0.0
      %vm1276 = vcmp.gt.f32.partialorder %v1268, 0.0
      %vm1277 = vcmp.gt.f32.partialorder %v1269, 0.0
      %vm1278 = vcmp.gt.f32.partialorder %v1270, 0.0
      %vm1279 = vcmp.gt.f32.partialorder %v1271, 0.0
      %vm1280 = vcmp.gt.f32.partialorder %v1272, 0.0
      %v1281 = vmul.f32 %v1265, 0.01
      %v1282 = vmul.f32 %v1266, 0.01
      %v1283 = vmul.f32 %v1267, 0.01
      %v1284 = vmul.f32 %v1268, 0.01
      %v1285 = vmul.f32 %v1269, 0.01
      %v1286 = vmul.f32 %v1270, 0.01
      %v1287 = vmul.f32 %v1271, 0.01
      %v1288 = vmul.f32 %v1272, 0.01
      %v1289 = vsel %vm1273, %v1265, %v1281
      %v1290 = vsel %vm1274, %v1266, %v1282
      %v1291 = vsel %vm1275, %v1267, %v1283
      %v1292 = vsel %vm1276, %v1268, %v1284
      %v1293 = vsel %vm1277, %v1269, %v1285
      %v1294 = vsel %vm1278, %v1270, %v1286
      %v1295 = vsel %vm1279, %v1271, %v1287
      %v1296 = vsel %vm1280, %v1272, %v1288
      %s1297 = scalar_lea.vmem [#allocation2], 16
      %1298 = vst.msk [vmem:[%s1297 + $0x1] sm:$0xff] %vm469, %v1289
      %1299 = vst.msk [vmem:[%s1297 + $0x11] sm:$0xff] %vm469, %v1290
      %1300 = vst.msk [vmem:[%s1297 + $0x21] sm:$0xff] %vm469, %v1291
      %1301 = vst.msk [vmem:[%s1297 + $0x31] sm:$0xff] %vm469, %v1292
      %1302 = vst.msk [vmem:[%s1297 + $0x41] sm:$0xff] %vm469, %v1293
      %1303 = vst.msk [vmem:[%s1297 + $0x51] sm:$0xff] %vm469, %v1294
      %1304 = vst.msk [vmem:[%s1297 + $0x61] sm:$0xff] %vm469, %v1295
      %1305 = vst.msk [vmem:[%s1297 + $0x71] sm:$0xff] %vm469, %v1296
      %v1306 = vld [vmem:[#allocation2] sm:$0xff]
      %v1307 = vld [vmem:[#allocation2 + $0x10] sm:$0xff]
      %v1308 = vld [vmem:[#allocation2 + $0x20] sm:$0xff]
      %v1309 = vld [vmem:[#allocation2 + $0x30] sm:$0xff]
      %v1310 = vld [vmem:[#allocation2 + $0x40] sm:$0xff]
      %v1311 = vld [vmem:[#allocation2 + $0x50] sm:$0xff]
      %v1312 = vld [vmem:[#allocation2 + $0x60] sm:$0xff]
      %v1313 = vld [vmem:[#allocation2 + $0x70] sm:$0xff]
      %v1314 = vpack.c.bf16 %v1307, %v1306
      %v1315 = vpack.c.bf16 %v1309, %v1308
      %v1316 = vpack.c.bf16 %v1311, %v1310
      %v1317 = vpack.c.bf16 %v1313, %v1312
      %v1318 = vld [vmem:[%s4] sm:$0xf]
      %v1320 = vsel %vm469, %v1314, 0
      %v1323 = vsel %vm469, %v1315, 0
      %v1326 = vsel %vm469, %v1316, 0
      %v1329 = vsel %vm469, %v1317, 0
      %vm1331 = vcmask 1043456
      %v1333 = vsel %vm1331, %v1318, 0
      %1335 = vmatpush.bf16.msra.mxu0 0
      %1336 = vmatpush.bf16.msra.mxu0 0
      %1337 = vmatpush.bf16.msra.mxu0 0
      %1338 = vmatpush.bf16.msra.mxu0 0
      %1339 = vmatpush.bf16.msra.mxu0 0
      %1340 = vmatpush.bf16.msra.mxu0 0
      %1341 = vmatpush.bf16.msra.mxu0 0
      %1342 = vmatpush.bf16.msra.mxu0 %v1333
      %1343 = vmatmul.bf16.gmra.mxu0 %v1320
      %v1344 = vpop.f32.mrf.mxu0
      %v1345 = vadd.f32 0.0, %v1344
      %v1346 = vpop.f32.mrf.mxu0
      %v1347 = vadd.f32 0.0, %v1346
      %1348 = vmatmul.bf16.gmra.mxu0 %v1323
      %v1349 = vpop.f32.mrf.mxu0
      %v1350 = vadd.f32 0.0, %v1349
      %v1351 = vpop.f32.mrf.mxu0
      %v1352 = vadd.f32 0.0, %v1351
      %1353 = vmatmul.bf16.gmra.mxu0 %v1326
      %v1354 = vpop.f32.mrf.mxu0
      %v1355 = vadd.f32 0.0, %v1354
      %v1356 = vpop.f32.mrf.mxu0
      %v1357 = vadd.f32 0.0, %v1356
      %1358 = vmatmul.bf16.gmra.mxu0 %v1329
      %v1359 = vpop.f32.mrf.mxu0
      %v1360 = vadd.f32 0.0, %v1359
      %v1361 = vpop.f32.mrf.mxu0
      %v1362 = vadd.f32 0.0, %v1361
      %1363 = vdwg.mxu0
      %1364 = vst.msk [vmem:[#allocation3] sm:$0xff] %vm469, %v1345
      %1365 = vst.msk [vmem:[#allocation3 + $0x8] sm:$0xff] %vm469, %v1347
      %1366 = vst.msk [vmem:[#allocation3 + $0x10] sm:$0xff] %vm469, %v1350
      %1367 = vst.msk [vmem:[#allocation3 + $0x18] sm:$0xff] %vm469, %v1352
      %1368 = vst.msk [vmem:[#allocation3 + $0x20] sm:$0xff] %vm469, %v1355
      %1369 = vst.msk [vmem:[#allocation3 + $0x28] sm:$0xff] %vm469, %v1357
      %1370 = vst.msk [vmem:[#allocation3 + $0x30] sm:$0xff] %vm469, %v1360
      %1371 = vst.msk [vmem:[#allocation3 + $0x38] sm:$0xff] %vm469, %v1362
      %v1372 = vld [vmem:[#allocation2 + $0x1] sm:$0xff]
      %v1373 = vld [vmem:[#allocation2 + $0x11] sm:$0xff]
      %v1374 = vld [vmem:[#allocation2 + $0x21] sm:$0xff]
      %v1375 = vld [vmem:[#allocation2 + $0x31] sm:$0xff]
      %v1376 = vld [vmem:[#allocation2 + $0x41] sm:$0xff]
      %v1377 = vld [vmem:[#allocation2 + $0x51] sm:$0xff]
      %v1378 = vld [vmem:[#allocation2 + $0x61] sm:$0xff]
      %v1379 = vld [vmem:[#allocation2 + $0x71] sm:$0xff]
      %v1380 = vpack.c.bf16 %v1373, %v1372
      %v1381 = vpack.c.bf16 %v1375, %v1374
      %v1382 = vpack.c.bf16 %v1377, %v1376
      %v1383 = vpack.c.bf16 %v1379, %v1378
      %s1384 = scalar_lea.vmem %s4, 4
      %v1385 = vld [vmem:[%s1384] sm:$0xf]
      %v1387 = vsel %vm469, %v1380, 0
      %v1390 = vsel %vm469, %v1381, 0
      %v1393 = vsel %vm469, %v1382, 0
      %v1396 = vsel %vm469, %v1383, 0
      %v1399 = vsel %vm1331, %v1385, 0
      %1401 = vmatpush.bf16.msra.mxu0 0
      %1402 = vmatpush.bf16.msra.mxu0 0
      %1403 = vmatpush.bf16.msra.mxu0 0
      %1404 = vmatpush.bf16.msra.mxu0 0
      %1405 = vmatpush.bf16.msra.mxu0 0
      %1406 = vmatpush.bf16.msra.mxu0 0
      %1407 = vmatpush.bf16.msra.mxu0 0
      %1408 = vmatpush.bf16.msra.mxu0 %v1399
      %1409 = vmatmul.bf16.gmra.mxu0 %v1387
      %v1410 = vpop.f32.mrf.mxu0
      %v1411 = vadd.f32 0.0, %v1410
      %v1412 = vpop.f32.mrf.mxu0
      %v1413 = vadd.f32 0.0, %v1412
      %1414 = vmatmul.bf16.gmra.mxu0 %v1390
      %v1415 = vpop.f32.mrf.mxu0
      %v1416 = vadd.f32 0.0, %v1415
      %v1417 = vpop.f32.mrf.mxu0
      %v1418 = vadd.f32 0.0, %v1417
      %1419 = vmatmul.bf16.gmra.mxu0 %v1393
      %v1420 = vpop.f32.mrf.mxu0
      %v1421 = vadd.f32 0.0, %v1420
      %v1422 = vpop.f32.mrf.mxu0
      %v1423 = vadd.f32 0.0, %v1422
      %1424 = vmatmul.bf16.gmra.mxu0 %v1396
      %v1425 = vpop.f32.mrf.mxu0
      %v1426 = vadd.f32 0.0, %v1425
      %v1427 = vpop.f32.mrf.mxu0
      %v1428 = vadd.f32 0.0, %v1427
      %1429 = vdwg.mxu0
      %v1430 = vld [vmem:[#allocation3] sm:$0xff]
      %v1431 = vld [vmem:[#allocation3 + $0x8] sm:$0xff]
      %v1432 = vld [vmem:[#allocation3 + $0x10] sm:$0xff]
      %v1433 = vld [vmem:[#allocation3 + $0x18] sm:$0xff]
      %v1434 = vld [vmem:[#allocation3 + $0x20] sm:$0xff]
      %v1435 = vld [vmem:[#allocation3 + $0x28] sm:$0xff]
      %v1436 = vld [vmem:[#allocation3 + $0x30] sm:$0xff]
      %v1437 = vld [vmem:[#allocation3 + $0x38] sm:$0xff]
      %v1438 = vadd.f32 %v1430, %v1411
      %v1439 = vadd.f32 %v1431, %v1413
      %v1440 = vadd.f32 %v1432, %v1416
      %v1441 = vadd.f32 %v1433, %v1418
      %v1442 = vadd.f32 %v1434, %v1421
      %v1443 = vadd.f32 %v1435, %v1423
      %v1444 = vadd.f32 %v1436, %v1426
      %v1445 = vadd.f32 %v1437, %v1428
      %1446 = vst.msk [vmem:[#allocation3] sm:$0xff] %vm469, %v1438
      %1447 = vst.msk [vmem:[#allocation3 + $0x8] sm:$0xff] %vm469, %v1439
      %1448 = vst.msk [vmem:[#allocation3 + $0x10] sm:$0xff] %vm469, %v1440
      %1449 = vst.msk [vmem:[#allocation3 + $0x18] sm:$0xff] %vm469, %v1441
      %1450 = vst.msk [vmem:[#allocation3 + $0x20] sm:$0xff] %vm469, %v1442
      %1451 = vst.msk [vmem:[#allocation3 + $0x28] sm:$0xff] %vm469, %v1443
      %1452 = vst.msk [vmem:[#allocation3 + $0x30] sm:$0xff] %vm469, %v1444
      %1453 = vst.msk [vmem:[#allocation3 + $0x38] sm:$0xff] %vm469, %v1445
      %v1454 = vld [vmem:[#allocation2 + $0x2] sm:$0xff]
      %v1455 = vld [vmem:[#allocation2 + $0x12] sm:$0xff]
      %v1456 = vld [vmem:[#allocation2 + $0x22] sm:$0xff]
      %v1457 = vld [vmem:[#allocation2 + $0x32] sm:$0xff]
      %v1458 = vld [vmem:[#allocation2 + $0x42] sm:$0xff]
      %v1459 = vld [vmem:[#allocation2 + $0x52] sm:$0xff]
      %v1460 = vld [vmem:[#allocation2 + $0x62] sm:$0xff]
      %v1461 = vld [vmem:[#allocation2 + $0x72] sm:$0xff]
      %v1462 = vpack.c.bf16 %v1455, %v1454
      %v1463 = vpack.c.bf16 %v1457, %v1456
      %v1464 = vpack.c.bf16 %v1459, %v1458
      %v1465 = vpack.c.bf16 %v1461, %v1460
      %s1466 = scalar_lea.vmem %s4, 8
      %v1467 = vld [vmem:[%s1466] sm:$0xf]
      %v1469 = vsel %vm469, %v1462, 0
      %v1472 = vsel %vm469, %v1463, 0
      %v1475 = vsel %vm469, %v1464, 0
      %v1478 = vsel %vm469, %v1465, 0
      %v1481 = vsel %vm1331, %v1467, 0
      %1483 = vmatpush.bf16.msra.mxu0 0
      %1484 = vmatpush.bf16.msra.mxu0 0
      %1485 = vmatpush.bf16.msra.mxu0 0
      %1486 = vmatpush.bf16.msra.mxu0 0
      %1487 = vmatpush.bf16.msra.mxu0 0
      %1488 = vmatpush.bf16.msra.mxu0 0
      %1489 = vmatpush.bf16.msra.mxu0 0
      %1490 = vmatpush.bf16.msra.mxu0 %v1481
      %1491 = vmatmul.bf16.gmra.mxu0 %v1469
      %v1492 = vpop.f32.mrf.mxu0
      %v1493 = vadd.f32 0.0, %v1492
      %v1494 = vpop.f32.mrf.mxu0
      %v1495 = vadd.f32 0.0, %v1494
      %1496 = vmatmul.bf16.gmra.mxu0 %v1472
      %v1497 = vpop.f32.mrf.mxu0
      %v1498 = vadd.f32 0.0, %v1497
      %v1499 = vpop.f32.mrf.mxu0
      %v1500 = vadd.f32 0.0, %v1499
      %1501 = vmatmul.bf16.gmra.mxu0 %v1475
      %v1502 = vpop.f32.mrf.mxu0
      %v1503 = vadd.f32 0.0, %v1502
      %v1504 = vpop.f32.mrf.mxu0
      %v1505 = vadd.f32 0.0, %v1504
      %1506 = vmatmul.bf16.gmra.mxu0 %v1478
      %v1507 = vpop.f32.mrf.mxu0
      %v1508 = vadd.f32 0.0, %v1507
      %v1509 = vpop.f32.mrf.mxu0
      %v1510 = vadd.f32 0.0, %v1509
      %1511 = vdwg.mxu0
      %v1512 = vld [vmem:[#allocation3] sm:$0xff]
      %v1513 = vld [vmem:[#allocation3 + $0x8] sm:$0xff]
      %v1514 = vld [vmem:[#allocation3 + $0x10] sm:$0xff]
      %v1515 = vld [vmem:[#allocation3 + $0x18] sm:$0xff]
      %v1516 = vld [vmem:[#allocation3 + $0x20] sm:$0xff]
      %v1517 = vld [vmem:[#allocation3 + $0x28] sm:$0xff]
      %v1518 = vld [vmem:[#allocation3 + $0x30] sm:$0xff]
      %v1519 = vld [vmem:[#allocation3 + $0x38] sm:$0xff]
      %v1520 = vadd.f32 %v1512, %v1493
      %v1521 = vadd.f32 %v1513, %v1495
      %v1522 = vadd.f32 %v1514, %v1498
      %v1523 = vadd.f32 %v1515, %v1500
      %v1524 = vadd.f32 %v1516, %v1503
      %v1525 = vadd.f32 %v1517, %v1505
      %v1526 = vadd.f32 %v1518, %v1508
      %v1527 = vadd.f32 %v1519, %v1510
      %1528 = vst.msk [vmem:[#allocation3] sm:$0xff] %vm469, %v1520
      %1529 = vst.msk [vmem:[#allocation3 + $0x8] sm:$0xff] %vm469, %v1521
      %1530 = vst.msk [vmem:[#allocation3 + $0x10] sm:$0xff] %vm469, %v1522
      %1531 = vst.msk [vmem:[#allocation3 + $0x18] sm:$0xff] %vm469, %v1523
      %1532 = vst.msk [vmem:[#allocation3 + $0x20] sm:$0xff] %vm469, %v1524
      %1533 = vst.msk [vmem:[#allocation3 + $0x28] sm:$0xff] %vm469, %v1525
      %1534 = vst.msk [vmem:[#allocation3 + $0x30] sm:$0xff] %vm469, %v1526
      %1535 = vst.msk [vmem:[#allocation3 + $0x38] sm:$0xff] %vm469, %v1527
      %v1536 = vld [vmem:[%s1297] sm:$0xff]
      %v1537 = vld [vmem:[%s1297 + $0x10] sm:$0xff]
      %v1538 = vld [vmem:[%s1297 + $0x20] sm:$0xff]
      %v1539 = vld [vmem:[%s1297 + $0x30] sm:$0xff]
      %v1540 = vld [vmem:[%s1297 + $0x40] sm:$0xff]
      %v1541 = vld [vmem:[%s1297 + $0x50] sm:$0xff]
      %v1542 = vld [vmem:[%s1297 + $0x60] sm:$0xff]
      %v1543 = vld [vmem:[%s1297 + $0x70] sm:$0xff]
      %v1544 = vpack.c.bf16 %v1537, %v1536
      %v1545 = vpack.c.bf16 %v1539, %v1538
      %v1546 = vpack.c.bf16 %v1541, %v1540
      %v1547 = vpack.c.bf16 %v1543, %v1542
      %s1548 = scalar_lea.vmem %s4, 12
      %v1549 = vld [vmem:[%s1548] sm:$0xf]
      %v1551 = vsel %vm469, %v1544, 0
      %v1554 = vsel %vm469, %v1545, 0
      %v1557 = vsel %vm469, %v1546, 0
      %v1560 = vsel %vm469, %v1547, 0
      %v1563 = vsel %vm1331, %v1549, 0
      %1565 = vmatpush.bf16.msra.mxu0 0
      %1566 = vmatpush.bf16.msra.mxu0 0
      %1567 = vmatpush.bf16.msra.mxu0 0
      %1568 = vmatpush.bf16.msra.mxu0 0
      %1569 = vmatpush.bf16.msra.mxu0 0
      %1570 = vmatpush.bf16.msra.mxu0 0
      %1571 = vmatpush.bf16.msra.mxu0 0
      %1572 = vmatpush.bf16.msra.mxu0 %v1563
      %1573 = vmatmul.bf16.gmra.mxu0 %v1551
      %v1574 = vpop.f32.mrf.mxu0
      %v1575 = vadd.f32 0.0, %v1574
      %v1576 = vpop.f32.mrf.mxu0
      %v1577 = vadd.f32 0.0, %v1576
      %1578 = vmatmul.bf16.gmra.mxu0 %v1554
      %v1579 = vpop.f32.mrf.mxu0
      %v1580 = vadd.f32 0.0, %v1579
      %v1581 = vpop.f32.mrf.mxu0
      %v1582 = vadd.f32 0.0, %v1581
      %1583 = vmatmul.bf16.gmra.mxu0 %v1557
      %v1584 = vpop.f32.mrf.mxu0
      %v1585 = vadd.f32 0.0, %v1584
      %v1586 = vpop.f32.mrf.mxu0
      %v1587 = vadd.f32 0.0, %v1586
      %1588 = vmatmul.bf16.gmra.mxu0 %v1560
      %v1589 = vpop.f32.mrf.mxu0
      %v1590 = vadd.f32 0.0, %v1589
      %v1591 = vpop.f32.mrf.mxu0
      %v1592 = vadd.f32 0.0, %v1591
      %1593 = vdwg.mxu0
      %v1594 = vld [vmem:[#allocation3] sm:$0xff]
      %v1595 = vld [vmem:[#allocation3 + $0x8] sm:$0xff]
      %v1596 = vld [vmem:[#allocation3 + $0x10] sm:$0xff]
      %v1597 = vld [vmem:[#allocation3 + $0x18] sm:$0xff]
      %v1598 = vld [vmem:[#allocation3 + $0x20] sm:$0xff]
      %v1599 = vld [vmem:[#allocation3 + $0x28] sm:$0xff]
      %v1600 = vld [vmem:[#allocation3 + $0x30] sm:$0xff]
      %v1601 = vld [vmem:[#allocation3 + $0x38] sm:$0xff]
      %v1602 = vadd.f32 %v1594, %v1575
      %v1603 = vadd.f32 %v1595, %v1577
      %v1604 = vadd.f32 %v1596, %v1580
      %v1605 = vadd.f32 %v1597, %v1582
      %v1606 = vadd.f32 %v1598, %v1585
      %v1607 = vadd.f32 %v1599, %v1587
      %v1608 = vadd.f32 %v1600, %v1590
      %v1609 = vadd.f32 %v1601, %v1592
      %1610 = vst.msk [vmem:[#allocation3] sm:$0xff] %vm469, %v1602
      %1611 = vst.msk [vmem:[#allocation3 + $0x8] sm:$0xff] %vm469, %v1603
      %1612 = vst.msk [vmem:[#allocation3 + $0x10] sm:$0xff] %vm469, %v1604
      %1613 = vst.msk [vmem:[#allocation3 + $0x18] sm:$0xff] %vm469, %v1605
      %1614 = vst.msk [vmem:[#allocation3 + $0x20] sm:$0xff] %vm469, %v1606
      %1615 = vst.msk [vmem:[#allocation3 + $0x28] sm:$0xff] %vm469, %v1607
      %1616 = vst.msk [vmem:[#allocation3 + $0x30] sm:$0xff] %vm469, %v1608
      %1617 = vst.msk [vmem:[#allocation3 + $0x38] sm:$0xff] %vm469, %v1609
      %v1618 = vld [vmem:[%s1297 + $0x1] sm:$0xff]
      %v1619 = vld [vmem:[%s1297 + $0x11] sm:$0xff]
      %v1620 = vld [vmem:[%s1297 + $0x21] sm:$0xff]
      %v1621 = vld [vmem:[%s1297 + $0x31] sm:$0xff]
      %v1622 = vld [vmem:[%s1297 + $0x41] sm:$0xff]
      %v1623 = vld [vmem:[%s1297 + $0x51] sm:$0xff]
      %v1624 = vld [vmem:[%s1297 + $0x61] sm:$0xff]
      %v1625 = vld [vmem:[%s1297 + $0x71] sm:$0xff]
      %v1626 = vpack.c.bf16 %v1619, %v1618
      %v1627 = vpack.c.bf16 %v1621, %v1620
      %v1628 = vpack.c.bf16 %v1623, %v1622
      %v1629 = vpack.c.bf16 %v1625, %v1624
      %s1630 = scalar_lea.vmem %s4, 16
      %v1631 = vld [vmem:[%s1630] sm:$0xf]
      %v1633 = vsel %vm469, %v1626, 0
      %v1636 = vsel %vm469, %v1627, 0
      %v1639 = vsel %vm469, %v1628, 0
      %v1642 = vsel %vm469, %v1629, 0
      %v1645 = vsel %vm1331, %v1631, 0
      %1647 = vmatpush.bf16.msra.mxu0 0
      %1648 = vmatpush.bf16.msra.mxu0 0
      %1649 = vmatpush.bf16.msra.mxu0 0
      %1650 = vmatpush.bf16.msra.mxu0 0
      %1651 = vmatpush.bf16.msra.mxu0 0
      %1652 = vmatpush.bf16.msra.mxu0 0
      %1653 = vmatpush.bf16.msra.mxu0 0
      %1654 = vmatpush.bf16.msra.mxu0 %v1645
      %1655 = vmatmul.bf16.gmra.mxu0 %v1633
      %v1656 = vpop.f32.mrf.mxu0
      %v1657 = vadd.f32 0.0, %v1656
      %v1658 = vpop.f32.mrf.mxu0
      %v1659 = vadd.f32 0.0, %v1658
      %1660 = vmatmul.bf16.gmra.mxu0 %v1636
      %v1661 = vpop.f32.mrf.mxu0
      %v1662 = vadd.f32 0.0, %v1661
      %v1663 = vpop.f32.mrf.mxu0
      %v1664 = vadd.f32 0.0, %v1663
      %1665 = vmatmul.bf16.gmra.mxu0 %v1639
      %v1666 = vpop.f32.mrf.mxu0
      %v1667 = vadd.f32 0.0, %v1666
      %v1668 = vpop.f32.mrf.mxu0
      %v1669 = vadd.f32 0.0, %v1668
      %1670 = vmatmul.bf16.gmra.mxu0 %v1642
      %v1671 = vpop.f32.mrf.mxu0
      %v1672 = vadd.f32 0.0, %v1671
      %v1673 = vpop.f32.mrf.mxu0
      %v1674 = vadd.f32 0.0, %v1673
      %1675 = vdwg.mxu0
      %v1676 = vld [vmem:[#allocation3] sm:$0xff]
      %v1677 = vld [vmem:[#allocation3 + $0x8] sm:$0xff]
      %v1678 = vld [vmem:[#allocation3 + $0x10] sm:$0xff]
      %v1679 = vld [vmem:[#allocation3 + $0x18] sm:$0xff]
      %v1680 = vld [vmem:[#allocation3 + $0x20] sm:$0xff]
      %v1681 = vld [vmem:[#allocation3 + $0x28] sm:$0xff]
      %v1682 = vld [vmem:[#allocation3 + $0x30] sm:$0xff]
      %v1683 = vld [vmem:[#allocation3 + $0x38] sm:$0xff]
      %v1684 = vadd.f32 %v1676, %v1657
      %v1685 = vadd.f32 %v1677, %v1659
      %v1686 = vadd.f32 %v1678, %v1662
      %v1687 = vadd.f32 %v1679, %v1664
      %v1688 = vadd.f32 %v1680, %v1667
      %v1689 = vadd.f32 %v1681, %v1669
      %v1690 = vadd.f32 %v1682, %v1672
      %v1691 = vadd.f32 %v1683, %v1674
      %1692 = vst.msk [vmem:[#allocation3] sm:$0xff] %vm469, %v1684
      %1693 = vst.msk [vmem:[#allocation3 + $0x8] sm:$0xff] %vm469, %v1685
      %1694 = vst.msk [vmem:[#allocation3 + $0x10] sm:$0xff] %vm469, %v1686
      %1695 = vst.msk [vmem:[#allocation3 + $0x18] sm:$0xff] %vm469, %v1687
      %1696 = vst.msk [vmem:[#allocation3 + $0x20] sm:$0xff] %vm469, %v1688
      %1697 = vst.msk [vmem:[#allocation3 + $0x28] sm:$0xff] %vm469, %v1689
      %1698 = vst.msk [vmem:[#allocation3 + $0x30] sm:$0xff] %vm469, %v1690
      %1699 = vst.msk [vmem:[#allocation3 + $0x38] sm:$0xff] %vm469, %v1691
      %v1700 = vld [vmem:[%s1297 + $0x2] sm:$0xff]
      %v1701 = vld [vmem:[%s1297 + $0x12] sm:$0xff]
      %v1702 = vld [vmem:[%s1297 + $0x22] sm:$0xff]
      %v1703 = vld [vmem:[%s1297 + $0x32] sm:$0xff]
      %v1704 = vld [vmem:[%s1297 + $0x42] sm:$0xff]
      %v1705 = vld [vmem:[%s1297 + $0x52] sm:$0xff]
      %v1706 = vld [vmem:[%s1297 + $0x62] sm:$0xff]
      %v1707 = vld [vmem:[%s1297 + $0x72] sm:$0xff]
      %v1708 = vpack.c.bf16 %v1701, %v1700
      %v1709 = vpack.c.bf16 %v1703, %v1702
      %v1710 = vpack.c.bf16 %v1705, %v1704
      %v1711 = vpack.c.bf16 %v1707, %v1706
      %s1712 = scalar_lea.vmem %s4, 20
      %v1713 = vld [vmem:[%s1712] sm:$0xf]
      %v1715 = vsel %vm469, %v1708, 0
      %v1718 = vsel %vm469, %v1709, 0
      %v1721 = vsel %vm469, %v1710, 0
      %v1724 = vsel %vm469, %v1711, 0
      %v1727 = vsel %vm1331, %v1713, 0
      %1729 = vmatpush.bf16.msra.mxu0 0
      %1730 = vmatpush.bf16.msra.mxu0 0
      %1731 = vmatpush.bf16.msra.mxu0 0
      %1732 = vmatpush.bf16.msra.mxu0 0
      %1733 = vmatpush.bf16.msra.mxu0 0
      %1734 = vmatpush.bf16.msra.mxu0 0
      %1735 = vmatpush.bf16.msra.mxu0 0
      %1736 = vmatpush.bf16.msra.mxu0 %v1727
      %1737 = vmatmul.bf16.gmra.mxu0 %v1715
      %v1738 = vpop.f32.mrf.mxu0
      %v1739 = vadd.f32 0.0, %v1738
      %v1740 = vpop.f32.mrf.mxu0
      %v1741 = vadd.f32 0.0, %v1740
      %1742 = vmatmul.bf16.gmra.mxu0 %v1718
      %v1743 = vpop.f32.mrf.mxu0
      %v1744 = vadd.f32 0.0, %v1743
      %v1745 = vpop.f32.mrf.mxu0
      %v1746 = vadd.f32 0.0, %v1745
      %1747 = vmatmul.bf16.gmra.mxu0 %v1721
      %v1748 = vpop.f32.mrf.mxu0
      %v1749 = vadd.f32 0.0, %v1748
      %v1750 = vpop.f32.mrf.mxu0
      %v1751 = vadd.f32 0.0, %v1750
      %1752 = vmatmul.bf16.gmra.mxu0 %v1724
      %v1753 = vpop.f32.mrf.mxu0
      %v1754 = vadd.f32 0.0, %v1753
      %v1755 = vpop.f32.mrf.mxu0
      %v1756 = vadd.f32 0.0, %v1755
      %1757 = vdwg.mxu0
      %v1758 = vld [vmem:[#allocation3] sm:$0xff]
      %v1759 = vld [vmem:[#allocation3 + $0x8] sm:$0xff]
      %v1760 = vld [vmem:[#allocation3 + $0x10] sm:$0xff]
      %v1761 = vld [vmem:[#allocation3 + $0x18] sm:$0xff]
      %v1762 = vld [vmem:[#allocation3 + $0x20] sm:$0xff]
      %v1763 = vld [vmem:[#allocation3 + $0x28] sm:$0xff]
      %v1764 = vld [vmem:[#allocation3 + $0x30] sm:$0xff]
      %v1765 = vld [vmem:[#allocation3 + $0x38] sm:$0xff]
      %v1766 = vadd.f32 %v1758, %v1739
      %v1767 = vadd.f32 %v1759, %v1741
      %v1768 = vadd.f32 %v1760, %v1744
      %v1769 = vadd.f32 %v1761, %v1746
      %v1770 = vadd.f32 %v1762, %v1749
      %v1771 = vadd.f32 %v1763, %v1751
      %v1772 = vadd.f32 %v1764, %v1754
      %v1773 = vadd.f32 %v1765, %v1756
      %1774 = vst.msk [vmem:[#allocation3] sm:$0xff] %vm469, %v1766
      %1775 = vst.msk [vmem:[#allocation3 + $0x8] sm:$0xff] %vm469, %v1767
      %1776 = vst.msk [vmem:[#allocation3 + $0x10] sm:$0xff] %vm469, %v1768
      %1777 = vst.msk [vmem:[#allocation3 + $0x18] sm:$0xff] %vm469, %v1769
      %1778 = vst.msk [vmem:[#allocation3 + $0x20] sm:$0xff] %vm469, %v1770
      %1779 = vst.msk [vmem:[#allocation3 + $0x28] sm:$0xff] %vm469, %v1771
      %1780 = vst.msk [vmem:[#allocation3 + $0x30] sm:$0xff] %vm469, %v1772
      %1781 = vst.msk [vmem:[#allocation3 + $0x38] sm:$0xff] %vm469, %v1773
      %s1782 = scalar_lea.vmem [#allocation2], 32
      %v1783 = vld [vmem:[%s1782] sm:$0xff]
      %v1784 = vld [vmem:[%s1782 + $0x10] sm:$0xff]
      %v1785 = vld [vmem:[%s1782 + $0x20] sm:$0xff]
      %v1786 = vld [vmem:[%s1782 + $0x30] sm:$0xff]
      %v1787 = vld [vmem:[%s1782 + $0x40] sm:$0xff]
      %v1788 = vld [vmem:[%s1782 + $0x50] sm:$0xff]
      %v1789 = vld [vmem:[%s1782 + $0x60] sm:$0xff]
      %v1790 = vld [vmem:[%s1782 + $0x70] sm:$0xff]
      %v1791 = vpack.c.bf16 %v1784, %v1783
      %v1792 = vpack.c.bf16 %v1786, %v1785
      %v1793 = vpack.c.bf16 %v1788, %v1787
      %v1794 = vpack.c.bf16 %v1790, %v1789
      %s1795 = scalar_lea.vmem %s4, 24
      %v1796 = vld [vmem:[%s1795] sm:$0xf]
      %v1798 = vsel %vm469, %v1791, 0
      %v1801 = vsel %vm469, %v1792, 0
      %v1804 = vsel %vm469, %v1793, 0
      %v1807 = vsel %vm469, %v1794, 0
      %v1810 = vsel %vm1331, %v1796, 0
      %1812 = vmatpush.bf16.msra.mxu0 0
      %1813 = vmatpush.bf16.msra.mxu0 0
      %1814 = vmatpush.bf16.msra.mxu0 0
      %1815 = vmatpush.bf16.msra.mxu0 0
      %1816 = vmatpush.bf16.msra.mxu0 0
      %1817 = vmatpush.bf16.msra.mxu0 0
      %1818 = vmatpush.bf16.msra.mxu0 0
      %1819 = vmatpush.bf16.msra.mxu0 %v1810
      %1820 = vmatmul.bf16.gmra.mxu0 %v1798
      %v1821 = vpop.f32.mrf.mxu0
      %v1822 = vadd.f32 0.0, %v1821
      %v1823 = vpop.f32.mrf.mxu0
      %v1824 = vadd.f32 0.0, %v1823
      %1825 = vmatmul.bf16.gmra.mxu0 %v1801
      %v1826 = vpop.f32.mrf.mxu0
      %v1827 = vadd.f32 0.0, %v1826
      %v1828 = vpop.f32.mrf.mxu0
      %v1829 = vadd.f32 0.0, %v1828
      %1830 = vmatmul.bf16.gmra.mxu0 %v1804
      %v1831 = vpop.f32.mrf.mxu0
      %v1832 = vadd.f32 0.0, %v1831
      %v1833 = vpop.f32.mrf.mxu0
      %v1834 = vadd.f32 0.0, %v1833
      %1835 = vmatmul.bf16.gmra.mxu0 %v1807
      %v1836 = vpop.f32.mrf.mxu0
      %v1837 = vadd.f32 0.0, %v1836
      %v1838 = vpop.f32.mrf.mxu0
      %v1839 = vadd.f32 0.0, %v1838
      %1840 = vdwg.mxu0
      %v1841 = vld [vmem:[#allocation3] sm:$0xff]
      %v1842 = vld [vmem:[#allocation3 + $0x8] sm:$0xff]
      %v1843 = vld [vmem:[#allocation3 + $0x10] sm:$0xff]
      %v1844 = vld [vmem:[#allocation3 + $0x18] sm:$0xff]
      %v1845 = vld [vmem:[#allocation3 + $0x20] sm:$0xff]
      %v1846 = vld [vmem:[#allocation3 + $0x28] sm:$0xff]
      %v1847 = vld [vmem:[#allocation3 + $0x30] sm:$0xff]
      %v1848 = vld [vmem:[#allocation3 + $0x38] sm:$0xff]
      %v1849 = vadd.f32 %v1841, %v1822
      %v1850 = vadd.f32 %v1842, %v1824
      %v1851 = vadd.f32 %v1843, %v1827
      %v1852 = vadd.f32 %v1844, %v1829
      %v1853 = vadd.f32 %v1845, %v1832
      %v1854 = vadd.f32 %v1846, %v1834
      %v1855 = vadd.f32 %v1847, %v1837
      %v1856 = vadd.f32 %v1848, %v1839
      %1857 = vst.msk [vmem:[#allocation3] sm:$0xff] %vm469, %v1849
      %1858 = vst.msk [vmem:[#allocation3 + $0x8] sm:$0xff] %vm469, %v1850
      %1859 = vst.msk [vmem:[#allocation3 + $0x10] sm:$0xff] %vm469, %v1851
      %1860 = vst.msk [vmem:[#allocation3 + $0x18] sm:$0xff] %vm469, %v1852
      %1861 = vst.msk [vmem:[#allocation3 + $0x20] sm:$0xff] %vm469, %v1853
      %1862 = vst.msk [vmem:[#allocation3 + $0x28] sm:$0xff] %vm469, %v1854
      %1863 = vst.msk [vmem:[#allocation3 + $0x30] sm:$0xff] %vm469, %v1855
      %1864 = vst.msk [vmem:[#allocation3 + $0x38] sm:$0xff] %vm469, %v1856
      %v1865 = vld [vmem:[%s1782 + $0x1] sm:$0xff]
      %v1866 = vld [vmem:[%s1782 + $0x11] sm:$0xff]
      %v1867 = vld [vmem:[%s1782 + $0x21] sm:$0xff]
      %v1868 = vld [vmem:[%s1782 + $0x31] sm:$0xff]
      %v1869 = vld [vmem:[%s1782 + $0x41] sm:$0xff]
      %v1870 = vld [vmem:[%s1782 + $0x51] sm:$0xff]
      %v1871 = vld [vmem:[%s1782 + $0x61] sm:$0xff]
      %v1872 = vld [vmem:[%s1782 + $0x71] sm:$0xff]
      %v1873 = vpack.c.bf16 %v1866, %v1865
      %v1874 = vpack.c.bf16 %v1868, %v1867
      %v1875 = vpack.c.bf16 %v1870, %v1869
      %v1876 = vpack.c.bf16 %v1872, %v1871
      %s1877 = scalar_lea.vmem %s4, 28
      %v1878 = vld [vmem:[%s1877] sm:$0xf]
      %v1880 = vsel %vm469, %v1873, 0
      %v1883 = vsel %vm469, %v1874, 0
      %v1886 = vsel %vm469, %v1875, 0
      %v1889 = vsel %vm469, %v1876, 0
      %v1892 = vsel %vm1331, %v1878, 0
      %1894 = vmatpush.bf16.msra.mxu0 0
      %1895 = vmatpush.bf16.msra.mxu0 0
      %1896 = vmatpush.bf16.msra.mxu0 0
      %1897 = vmatpush.bf16.msra.mxu0 0
      %1898 = vmatpush.bf16.msra.mxu0 0
      %1899 = vmatpush.bf16.msra.mxu0 0
      %1900 = vmatpush.bf16.msra.mxu0 0
      %1901 = vmatpush.bf16.msra.mxu0 %v1892
      %1902 = vmatmul.bf16.gmra.mxu0 %v1880
      %v1903 = vpop.f32.mrf.mxu0
      %v1904 = vadd.f32 0.0, %v1903
      %v1905 = vpop.f32.mrf.mxu0
      %v1906 = vadd.f32 0.0, %v1905
      %1907 = vmatmul.bf16.gmra.mxu0 %v1883
      %v1908 = vpop.f32.mrf.mxu0
      %v1909 = vadd.f32 0.0, %v1908
      %v1910 = vpop.f32.mrf.mxu0
      %v1911 = vadd.f32 0.0, %v1910
      %1912 = vmatmul.bf16.gmra.mxu0 %v1886
      %v1913 = vpop.f32.mrf.mxu0
      %v1914 = vadd.f32 0.0, %v1913
      %v1915 = vpop.f32.mrf.mxu0
      %v1916 = vadd.f32 0.0, %v1915
      %1917 = vmatmul.bf16.gmra.mxu0 %v1889
      %v1918 = vpop.f32.mrf.mxu0
      %v1919 = vadd.f32 0.0, %v1918
      %v1920 = vpop.f32.mrf.mxu0
      %v1921 = vadd.f32 0.0, %v1920
      %1922 = vdwg.mxu0
      %v1923 = vld [vmem:[#allocation3] sm:$0xff]
      %v1924 = vld [vmem:[#allocation3 + $0x8] sm:$0xff]
      %v1925 = vld [vmem:[#allocation3 + $0x10] sm:$0xff]
      %v1926 = vld [vmem:[#allocation3 + $0x18] sm:$0xff]
      %v1927 = vld [vmem:[#allocation3 + $0x20] sm:$0xff]
      %v1928 = vld [vmem:[#allocation3 + $0x28] sm:$0xff]
      %v1929 = vld [vmem:[#allocation3 + $0x30] sm:$0xff]
      %v1930 = vld [vmem:[#allocation3 + $0x38] sm:$0xff]
      %v1931 = vadd.f32 %v1923, %v1904
      %v1932 = vadd.f32 %v1924, %v1906
      %v1933 = vadd.f32 %v1925, %v1909
      %v1934 = vadd.f32 %v1926, %v1911
      %v1935 = vadd.f32 %v1927, %v1914
      %v1936 = vadd.f32 %v1928, %v1916
      %v1937 = vadd.f32 %v1929, %v1919
      %v1938 = vadd.f32 %v1930, %v1921
      %1939 = vst.msk [vmem:[#allocation3] sm:$0xff] %vm469, %v1931
      %1940 = vst.msk [vmem:[#allocation3 + $0x8] sm:$0xff] %vm469, %v1932
      %1941 = vst.msk [vmem:[#allocation3 + $0x10] sm:$0xff] %vm469, %v1933
      %1942 = vst.msk [vmem:[#allocation3 + $0x18] sm:$0xff] %vm469, %v1934
      %1943 = vst.msk [vmem:[#allocation3 + $0x20] sm:$0xff] %vm469, %v1935
      %1944 = vst.msk [vmem:[#allocation3 + $0x28] sm:$0xff] %vm469, %v1936
      %1945 = vst.msk [vmem:[#allocation3 + $0x30] sm:$0xff] %vm469, %v1937
      %1946 = vst.msk [vmem:[#allocation3 + $0x38] sm:$0xff] %vm469, %v1938
      %v1947 = vld [vmem:[%s1782 + $0x2] sm:$0xff]
      %v1948 = vld [vmem:[%s1782 + $0x12] sm:$0xff]
      %v1949 = vld [vmem:[%s1782 + $0x22] sm:$0xff]
      %v1950 = vld [vmem:[%s1782 + $0x32] sm:$0xff]
      %v1951 = vld [vmem:[%s1782 + $0x42] sm:$0xff]
      %v1952 = vld [vmem:[%s1782 + $0x52] sm:$0xff]
      %v1953 = vld [vmem:[%s1782 + $0x62] sm:$0xff]
      %v1954 = vld [vmem:[%s1782 + $0x72] sm:$0xff]
      %v1955 = vpack.c.bf16 %v1948, %v1947
      %v1956 = vpack.c.bf16 %v1950, %v1949
      %v1957 = vpack.c.bf16 %v1952, %v1951
      %v1958 = vpack.c.bf16 %v1954, %v1953
      %s1959 = scalar_lea.vmem %s4, 32
      %v1960 = vld [vmem:[%s1959] sm:$0xf]
      %v1962 = vsel %vm469, %v1955, 0
      %v1965 = vsel %vm469, %v1956, 0
      %v1968 = vsel %vm469, %v1957, 0
      %v1971 = vsel %vm469, %v1958, 0
      %v1974 = vsel %vm1331, %v1960, 0
      %1976 = vmatpush.bf16.msra.mxu0 0
      %1977 = vmatpush.bf16.msra.mxu0 0
      %1978 = vmatpush.bf16.msra.mxu0 0
      %1979 = vmatpush.bf16.msra.mxu0 0
      %1980 = vmatpush.bf16.msra.mxu0 0
      %1981 = vmatpush.bf16.msra.mxu0 0
      %1982 = vmatpush.bf16.msra.mxu0 0
      %1983 = vmatpush.bf16.msra.mxu0 %v1974
      %1984 = vmatmul.bf16.gmra.mxu0 %v1962
      %v1985 = vpop.f32.mrf.mxu0
      %v1986 = vadd.f32 0.0, %v1985
      %v1987 = vpop.f32.mrf.mxu0
      %v1988 = vadd.f32 0.0, %v1987
      %1989 = vmatmul.bf16.gmra.mxu0 %v1965
      %v1990 = vpop.f32.mrf.mxu0
      %v1991 = vadd.f32 0.0, %v1990
      %v1992 = vpop.f32.mrf.mxu0
      %v1993 = vadd.f32 0.0, %v1992
      %1994 = vmatmul.bf16.gmra.mxu0 %v1968
      %v1995 = vpop.f32.mrf.mxu0
      %v1996 = vadd.f32 0.0, %v1995
      %v1997 = vpop.f32.mrf.mxu0
      %v1998 = vadd.f32 0.0, %v1997
      %1999 = vmatmul.bf16.gmra.mxu0 %v1971
      %v2000 = vpop.f32.mrf.mxu0
      %v2001 = vadd.f32 0.0, %v2000
      %v2002 = vpop.f32.mrf.mxu0
      %v2003 = vadd.f32 0.0, %v2002
      %2004 = vdwg.mxu0
      %v2005 = vld [vmem:[#allocation3] sm:$0xff]
      %v2006 = vld [vmem:[#allocation3 + $0x8] sm:$0xff]
      %v2007 = vld [vmem:[#allocation3 + $0x10] sm:$0xff]
      %v2008 = vld [vmem:[#allocation3 + $0x18] sm:$0xff]
      %v2009 = vld [vmem:[#allocation3 + $0x20] sm:$0xff]
      %v2010 = vld [vmem:[#allocation3 + $0x28] sm:$0xff]
      %v2011 = vld [vmem:[#allocation3 + $0x30] sm:$0xff]
      %v2012 = vld [vmem:[#allocation3 + $0x38] sm:$0xff]
      %v2013 = vadd.f32 %v2005, %v1986
      %v2014 = vadd.f32 %v2006, %v1988
      %v2015 = vadd.f32 %v2007, %v1991
      %v2016 = vadd.f32 %v2008, %v1993
      %v2017 = vadd.f32 %v2009, %v1996
      %v2018 = vadd.f32 %v2010, %v1998
      %v2019 = vadd.f32 %v2011, %v2001
      %v2020 = vadd.f32 %v2012, %v2003
      %2021 = vst.msk [vmem:[#allocation3] sm:$0xff] %vm469, %v2013
      %2022 = vst.msk [vmem:[#allocation3 + $0x8] sm:$0xff] %vm469, %v2014
      %2023 = vst.msk [vmem:[#allocation3 + $0x10] sm:$0xff] %vm469, %v2015
      %2024 = vst.msk [vmem:[#allocation3 + $0x18] sm:$0xff] %vm469, %v2016
      %2025 = vst.msk [vmem:[#allocation3 + $0x20] sm:$0xff] %vm469, %v2017
      %2026 = vst.msk [vmem:[#allocation3 + $0x28] sm:$0xff] %vm469, %v2018
      %2027 = vst.msk [vmem:[#allocation3 + $0x30] sm:$0xff] %vm469, %v2019
      %2028 = vst.msk [vmem:[#allocation3 + $0x38] sm:$0xff] %vm469, %v2020
      %v2029 = vld [vmem:[#allocation3] sm:$0xff]
      %v2030 = vld [vmem:[#allocation3 + $0x8] sm:$0xff]
      %v2031 = vld [vmem:[#allocation3 + $0x10] sm:$0xff]
      %v2032 = vld [vmem:[#allocation3 + $0x18] sm:$0xff]
      %v2033 = vld [vmem:[#allocation3 + $0x20] sm:$0xff]
      %v2034 = vld [vmem:[#allocation3 + $0x28] sm:$0xff]
      %v2035 = vld [vmem:[#allocation3 + $0x30] sm:$0xff]
      %v2036 = vld [vmem:[#allocation3 + $0x38] sm:$0xff]
      %v2037 = vld [vmem:[%s5] sm:$0x1]
      %v2039 = vperm.slane %v2037, 0
      %v2041 = vmul.f32 %v2029, %v2039
      %v2042 = vmul.f32 %v2030, %v2039
      %v2043 = vmul.f32 %v2031, %v2039
      %v2044 = vmul.f32 %v2032, %v2039
      %v2045 = vmul.f32 %v2033, %v2039
      %v2046 = vmul.f32 %v2034, %v2039
      %v2047 = vmul.f32 %v2035, %v2039
      %v2048 = vmul.f32 %v2036, %v2039
      %v2049 = vld [vmem:[%s6] sm:$0x1]
      %v2051 = vperm.slane %v2049, 0
      %v2053 = vadd.f32 %v2041, %v2051
      %v2054 = vadd.f32 %v2042, %v2051
      %v2055 = vadd.f32 %v2043, %v2051
      %v2056 = vadd.f32 %v2044, %v2051
      %v2057 = vadd.f32 %v2045, %v2051
      %v2058 = vadd.f32 %v2046, %v2051
      %v2059 = vadd.f32 %v2047, %v2051
      %v2060 = vadd.f32 %v2048, %v2051
      %vm2061 = vcmp.gt.f32.partialorder %v2053, 0.0
      %vm2062 = vcmp.gt.f32.partialorder %v2054, 0.0
      %vm2063 = vcmp.gt.f32.partialorder %v2055, 0.0
      %vm2064 = vcmp.gt.f32.partialorder %v2056, 0.0
      %vm2065 = vcmp.gt.f32.partialorder %v2057, 0.0
      %vm2066 = vcmp.gt.f32.partialorder %v2058, 0.0
      %vm2067 = vcmp.gt.f32.partialorder %v2059, 0.0
      %vm2068 = vcmp.gt.f32.partialorder %v2060, 0.0
      %v2069 = vmul.f32 %v2053, 0.01
      %v2070 = vmul.f32 %v2054, 0.01
      %v2071 = vmul.f32 %v2055, 0.01
      %v2072 = vmul.f32 %v2056, 0.01
      %v2073 = vmul.f32 %v2057, 0.01
      %v2074 = vmul.f32 %v2058, 0.01
      %v2075 = vmul.f32 %v2059, 0.01
      %v2076 = vmul.f32 %v2060, 0.01
      %v2077 = vsel %vm2061, %v2053, %v2069
      %v2078 = vsel %vm2062, %v2054, %v2070
      %v2079 = vsel %vm2063, %v2055, %v2071
      %v2080 = vsel %vm2064, %v2056, %v2072
      %v2081 = vsel %vm2065, %v2057, %v2073
      %v2082 = vsel %vm2066, %v2058, %v2074
      %v2083 = vsel %vm2067, %v2059, %v2075
      %v2084 = vsel %vm2068, %v2060, %v2076
      %2085 = vst.msk [vmem:[%s1297 + $0x1] sm:$0xff] %vm469, %v2077
      %2086 = vst.msk [vmem:[%s1297 + $0x11] sm:$0xff] %vm469, %v2078
      %2087 = vst.msk [vmem:[%s1297 + $0x21] sm:$0xff] %vm469, %v2079
      %2088 = vst.msk [vmem:[%s1297 + $0x31] sm:$0xff] %vm469, %v2080
      %2089 = vst.msk [vmem:[%s1297 + $0x41] sm:$0xff] %vm469, %v2081
      %2090 = vst.msk [vmem:[%s1297 + $0x51] sm:$0xff] %vm469, %v2082
      %2091 = vst.msk [vmem:[%s1297 + $0x61] sm:$0xff] %vm469, %v2083
      %2092 = vst.msk [vmem:[%s1297 + $0x71] sm:$0xff] %vm469, %v2084
      %v2093 = vld [vmem:[#allocation2] sm:$0xff]
      %v2094 = vld [vmem:[#allocation2 + $0x10] sm:$0xff]
      %v2095 = vld [vmem:[#allocation2 + $0x20] sm:$0xff]
      %v2096 = vld [vmem:[#allocation2 + $0x30] sm:$0xff]
      %v2097 = vld [vmem:[#allocation2 + $0x40] sm:$0xff]
      %v2098 = vld [vmem:[#allocation2 + $0x50] sm:$0xff]
      %v2099 = vld [vmem:[#allocation2 + $0x60] sm:$0xff]
      %v2100 = vld [vmem:[#allocation2 + $0x70] sm:$0xff]
      %v2101 = vpack.c.bf16 %v2094, %v2093
      %v2102 = vpack.c.bf16 %v2096, %v2095
      %v2103 = vpack.c.bf16 %v2098, %v2097
      %v2104 = vpack.c.bf16 %v2100, %v2099
      %v2105 = vld [vmem:[%s7] sm:$0xf]
      %v2107 = vsel %vm469, %v2101, 0
      %v2110 = vsel %vm469, %v2102, 0
      %v2113 = vsel %vm469, %v2103, 0
      %v2116 = vsel %vm469, %v2104, 0
      %v2119 = vsel %vm1331, %v2105, 0
      %2121 = vmatpush.bf16.msra.mxu0 0
      %2122 = vmatpush.bf16.msra.mxu0 0
      %2123 = vmatpush.bf16.msra.mxu0 0
      %2124 = vmatpush.bf16.msra.mxu0 0
      %2125 = vmatpush.bf16.msra.mxu0 0
      %2126 = vmatpush.bf16.msra.mxu0 0
      %2127 = vmatpush.bf16.msra.mxu0 0
      %2128 = vmatpush.bf16.msra.mxu0 %v2119
      %2129 = vmatmul.bf16.gmra.mxu0 %v2107
      %v2130 = vpop.f32.mrf.mxu0
      %v2131 = vadd.f32 0.0, %v2130
      %v2132 = vpop.f32.mrf.mxu0
      %v2133 = vadd.f32 0.0, %v2132
      %2134 = vmatmul.bf16.gmra.mxu0 %v2110
      %v2135 = vpop.f32.mrf.mxu0
      %v2136 = vadd.f32 0.0, %v2135
      %v2137 = vpop.f32.mrf.mxu0
      %v2138 = vadd.f32 0.0, %v2137
      %2139 = vmatmul.bf16.gmra.mxu0 %v2113
      %v2140 = vpop.f32.mrf.mxu0
      %v2141 = vadd.f32 0.0, %v2140
      %v2142 = vpop.f32.mrf.mxu0
      %v2143 = vadd.f32 0.0, %v2142
      %2144 = vmatmul.bf16.gmra.mxu0 %v2116
      %v2145 = vpop.f32.mrf.mxu0
      %v2146 = vadd.f32 0.0, %v2145
      %v2147 = vpop.f32.mrf.mxu0
      %v2148 = vadd.f32 0.0, %v2147
      %2149 = vdwg.mxu0
      %2150 = vst.msk [vmem:[#allocation3] sm:$0xff] %vm469, %v2131
      %2151 = vst.msk [vmem:[#allocation3 + $0x8] sm:$0xff] %vm469, %v2133
      %2152 = vst.msk [vmem:[#allocation3 + $0x10] sm:$0xff] %vm469, %v2136
      %2153 = vst.msk [vmem:[#allocation3 + $0x18] sm:$0xff] %vm469, %v2138
      %2154 = vst.msk [vmem:[#allocation3 + $0x20] sm:$0xff] %vm469, %v2141
      %2155 = vst.msk [vmem:[#allocation3 + $0x28] sm:$0xff] %vm469, %v2143
      %2156 = vst.msk [vmem:[#allocation3 + $0x30] sm:$0xff] %vm469, %v2146
      %2157 = vst.msk [vmem:[#allocation3 + $0x38] sm:$0xff] %vm469, %v2148
      %v2158 = vld [vmem:[#allocation2 + $0x1] sm:$0xff]
      %v2159 = vld [vmem:[#allocation2 + $0x11] sm:$0xff]
      %v2160 = vld [vmem:[#allocation2 + $0x21] sm:$0xff]
      %v2161 = vld [vmem:[#allocation2 + $0x31] sm:$0xff]
      %v2162 = vld [vmem:[#allocation2 + $0x41] sm:$0xff]
      %v2163 = vld [vmem:[#allocation2 + $0x51] sm:$0xff]
      %v2164 = vld [vmem:[#allocation2 + $0x61] sm:$0xff]
      %v2165 = vld [vmem:[#allocation2 + $0x71] sm:$0xff]
      %v2166 = vpack.c.bf16 %v2159, %v2158
      %v2167 = vpack.c.bf16 %v2161, %v2160
      %v2168 = vpack.c.bf16 %v2163, %v2162
      %v2169 = vpack.c.bf16 %v2165, %v2164
      %s2170 = scalar_lea.vmem %s7, 4
      %v2171 = vld [vmem:[%s2170] sm:$0xf]
      %v2173 = vsel %vm469, %v2166, 0
      %v2176 = vsel %vm469, %v2167, 0
      %v2179 = vsel %vm469, %v2168, 0
      %v2182 = vsel %vm469, %v2169, 0
      %v2185 = vsel %vm1331, %v2171, 0
      %2187 = vmatpush.bf16.msra.mxu0 0
      %2188 = vmatpush.bf16.msra.mxu0 0
      %2189 = vmatpush.bf16.msra.mxu0 0
      %2190 = vmatpush.bf16.msra.mxu0 0
      %2191 = vmatpush.bf16.msra.mxu0 0
      %2192 = vmatpush.bf16.msra.mxu0 0
      %2193 = vmatpush.bf16.msra.mxu0 0
      %2194 = vmatpush.bf16.msra.mxu0 %v2185
      %2195 = vmatmul.bf16.gmra.mxu0 %v2173
      %v2196 = vpop.f32.mrf.mxu0
      %v2197 = vadd.f32 0.0, %v2196
      %v2198 = vpop.f32.mrf.mxu0
      %v2199 = vadd.f32 0.0, %v2198
      %2200 = vmatmul.bf16.gmra.mxu0 %v2176
      %v2201 = vpop.f32.mrf.mxu0
      %v2202 = vadd.f32 0.0, %v2201
      %v2203 = vpop.f32.mrf.mxu0
      %v2204 = vadd.f32 0.0, %v2203
      %2205 = vmatmul.bf16.gmra.mxu0 %v2179
      %v2206 = vpop.f32.mrf.mxu0
      %v2207 = vadd.f32 0.0, %v2206
      %v2208 = vpop.f32.mrf.mxu0
      %v2209 = vadd.f32 0.0, %v2208
      %2210 = vmatmul.bf16.gmra.mxu0 %v2182
      %v2211 = vpop.f32.mrf.mxu0
      %v2212 = vadd.f32 0.0, %v2211
      %v2213 = vpop.f32.mrf.mxu0
      %v2214 = vadd.f32 0.0, %v2213
      %2215 = vdwg.mxu0
      %v2216 = vld [vmem:[#allocation3] sm:$0xff]
      %v2217 = vld [vmem:[#allocation3 + $0x8] sm:$0xff]
      %v2218 = vld [vmem:[#allocation3 + $0x10] sm:$0xff]
      %v2219 = vld [vmem:[#allocation3 + $0x18] sm:$0xff]
      %v2220 = vld [vmem:[#allocation3 + $0x20] sm:$0xff]
      %v2221 = vld [vmem:[#allocation3 + $0x28] sm:$0xff]
      %v2222 = vld [vmem:[#allocation3 + $0x30] sm:$0xff]
      %v2223 = vld [vmem:[#allocation3 + $0x38] sm:$0xff]
      %v2224 = vadd.f32 %v2216, %v2197
      %v2225 = vadd.f32 %v2217, %v2199
      %v2226 = vadd.f32 %v2218, %v2202
      %v2227 = vadd.f32 %v2219, %v2204
      %v2228 = vadd.f32 %v2220, %v2207
      %v2229 = vadd.f32 %v2221, %v2209
      %v2230 = vadd.f32 %v2222, %v2212
      %v2231 = vadd.f32 %v2223, %v2214
      %2232 = vst.msk [vmem:[#allocation3] sm:$0xff] %vm469, %v2224
      %2233 = vst.msk [vmem:[#allocation3 + $0x8] sm:$0xff] %vm469, %v2225
      %2234 = vst.msk [vmem:[#allocation3 + $0x10] sm:$0xff] %vm469, %v2226
      %2235 = vst.msk [vmem:[#allocation3 + $0x18] sm:$0xff] %vm469, %v2227
      %2236 = vst.msk [vmem:[#allocation3 + $0x20] sm:$0xff] %vm469, %v2228
      %2237 = vst.msk [vmem:[#allocation3 + $0x28] sm:$0xff] %vm469, %v2229
      %2238 = vst.msk [vmem:[#allocation3 + $0x30] sm:$0xff] %vm469, %v2230
      %2239 = vst.msk [vmem:[#allocation3 + $0x38] sm:$0xff] %vm469, %v2231
      %v2240 = vld [vmem:[#allocation2 + $0x2] sm:$0xff]
      %v2241 = vld [vmem:[#allocation2 + $0x12] sm:$0xff]
      %v2242 = vld [vmem:[#allocation2 + $0x22] sm:$0xff]
      %v2243 = vld [vmem:[#allocation2 + $0x32] sm:$0xff]
      %v2244 = vld [vmem:[#allocation2 + $0x42] sm:$0xff]
      %v2245 = vld [vmem:[#allocation2 + $0x52] sm:$0xff]
      %v2246 = vld [vmem:[#allocation2 + $0x62] sm:$0xff]
      %v2247 = vld [vmem:[#allocation2 + $0x72] sm:$0xff]
      %v2248 = vpack.c.bf16 %v2241, %v2240
      %v2249 = vpack.c.bf16 %v2243, %v2242
      %v2250 = vpack.c.bf16 %v2245, %v2244
      %v2251 = vpack.c.bf16 %v2247, %v2246
      %s2252 = scalar_lea.vmem %s7, 8
      %v2253 = vld [vmem:[%s2252] sm:$0xf]
      %v2255 = vsel %vm469, %v2248, 0
      %v2258 = vsel %vm469, %v2249, 0
      %v2261 = vsel %vm469, %v2250, 0
      %v2264 = vsel %vm469, %v2251, 0
      %v2267 = vsel %vm1331, %v2253, 0
      %2269 = vmatpush.bf16.msra.mxu0 0
      %2270 = vmatpush.bf16.msra.mxu0 0
      %2271 = vmatpush.bf16.msra.mxu0 0
      %2272 = vmatpush.bf16.msra.mxu0 0
      %2273 = vmatpush.bf16.msra.mxu0 0
      %2274 = vmatpush.bf16.msra.mxu0 0
      %2275 = vmatpush.bf16.msra.mxu0 0
      %2276 = vmatpush.bf16.msra.mxu0 %v2267
      %2277 = vmatmul.bf16.gmra.mxu0 %v2255
      %v2278 = vpop.f32.mrf.mxu0
      %v2279 = vadd.f32 0.0, %v2278
      %v2280 = vpop.f32.mrf.mxu0
      %v2281 = vadd.f32 0.0, %v2280
      %2282 = vmatmul.bf16.gmra.mxu0 %v2258
      %v2283 = vpop.f32.mrf.mxu0
      %v2284 = vadd.f32 0.0, %v2283
      %v2285 = vpop.f32.mrf.mxu0
      %v2286 = vadd.f32 0.0, %v2285
      %2287 = vmatmul.bf16.gmra.mxu0 %v2261
      %v2288 = vpop.f32.mrf.mxu0
      %v2289 = vadd.f32 0.0, %v2288
      %v2290 = vpop.f32.mrf.mxu0
      %v2291 = vadd.f32 0.0, %v2290
      %2292 = vmatmul.bf16.gmra.mxu0 %v2264
      %v2293 = vpop.f32.mrf.mxu0
      %v2294 = vadd.f32 0.0, %v2293
      %v2295 = vpop.f32.mrf.mxu0
      %v2296 = vadd.f32 0.0, %v2295
      %2297 = vdwg.mxu0
      %v2298 = vld [vmem:[#allocation3] sm:$0xff]
      %v2299 = vld [vmem:[#allocation3 + $0x8] sm:$0xff]
      %v2300 = vld [vmem:[#allocation3 + $0x10] sm:$0xff]
      %v2301 = vld [vmem:[#allocation3 + $0x18] sm:$0xff]
      %v2302 = vld [vmem:[#allocation3 + $0x20] sm:$0xff]
      %v2303 = vld [vmem:[#allocation3 + $0x28] sm:$0xff]
      %v2304 = vld [vmem:[#allocation3 + $0x30] sm:$0xff]
      %v2305 = vld [vmem:[#allocation3 + $0x38] sm:$0xff]
      %v2306 = vadd.f32 %v2298, %v2279
      %v2307 = vadd.f32 %v2299, %v2281
      %v2308 = vadd.f32 %v2300, %v2284
      %v2309 = vadd.f32 %v2301, %v2286
      %v2310 = vadd.f32 %v2302, %v2289
      %v2311 = vadd.f32 %v2303, %v2291
      %v2312 = vadd.f32 %v2304, %v2294
      %v2313 = vadd.f32 %v2305, %v2296
      %2314 = vst.msk [vmem:[#allocation3] sm:$0xff] %vm469, %v2306
      %2315 = vst.msk [vmem:[#allocation3 + $0x8] sm:$0xff] %vm469, %v2307
      %2316 = vst.msk [vmem:[#allocation3 + $0x10] sm:$0xff] %vm469, %v2308
      %2317 = vst.msk [vmem:[#allocation3 + $0x18] sm:$0xff] %vm469, %v2309
      %2318 = vst.msk [vmem:[#allocation3 + $0x20] sm:$0xff] %vm469, %v2310
      %2319 = vst.msk [vmem:[#allocation3 + $0x28] sm:$0xff] %vm469, %v2311
      %2320 = vst.msk [vmem:[#allocation3 + $0x30] sm:$0xff] %vm469, %v2312
      %2321 = vst.msk [vmem:[#allocation3 + $0x38] sm:$0xff] %vm469, %v2313
      %v2322 = vld [vmem:[%s1297] sm:$0xff]
      %v2323 = vld [vmem:[%s1297 + $0x10] sm:$0xff]
      %v2324 = vld [vmem:[%s1297 + $0x20] sm:$0xff]
      %v2325 = vld [vmem:[%s1297 + $0x30] sm:$0xff]
      %v2326 = vld [vmem:[%s1297 + $0x40] sm:$0xff]
      %v2327 = vld [vmem:[%s1297 + $0x50] sm:$0xff]
      %v2328 = vld [vmem:[%s1297 + $0x60] sm:$0xff]
      %v2329 = vld [vmem:[%s1297 + $0x70] sm:$0xff]
      %v2330 = vpack.c.bf16 %v2323, %v2322
      %v2331 = vpack.c.bf16 %v2325, %v2324
      %v2332 = vpack.c.bf16 %v2327, %v2326
      %v2333 = vpack.c.bf16 %v2329, %v2328
      %s2334 = scalar_lea.vmem %s7, 12
      %v2335 = vld [vmem:[%s2334] sm:$0xf]
      %v2337 = vsel %vm469, %v2330, 0
      %v2340 = vsel %vm469, %v2331, 0
      %v2343 = vsel %vm469, %v2332, 0
      %v2346 = vsel %vm469, %v2333, 0
      %v2349 = vsel %vm1331, %v2335, 0
      %2351 = vmatpush.bf16.msra.mxu0 0
      %2352 = vmatpush.bf16.msra.mxu0 0
      %2353 = vmatpush.bf16.msra.mxu0 0
      %2354 = vmatpush.bf16.msra.mxu0 0
      %2355 = vmatpush.bf16.msra.mxu0 0
      %2356 = vmatpush.bf16.msra.mxu0 0
      %2357 = vmatpush.bf16.msra.mxu0 0
      %2358 = vmatpush.bf16.msra.mxu0 %v2349
      %2359 = vmatmul.bf16.gmra.mxu0 %v2337
      %v2360 = vpop.f32.mrf.mxu0
      %v2361 = vadd.f32 0.0, %v2360
      %v2362 = vpop.f32.mrf.mxu0
      %v2363 = vadd.f32 0.0, %v2362
      %2364 = vmatmul.bf16.gmra.mxu0 %v2340
      %v2365 = vpop.f32.mrf.mxu0
      %v2366 = vadd.f32 0.0, %v2365
      %v2367 = vpop.f32.mrf.mxu0
      %v2368 = vadd.f32 0.0, %v2367
      %2369 = vmatmul.bf16.gmra.mxu0 %v2343
      %v2370 = vpop.f32.mrf.mxu0
      %v2371 = vadd.f32 0.0, %v2370
      %v2372 = vpop.f32.mrf.mxu0
      %v2373 = vadd.f32 0.0, %v2372
      %2374 = vmatmul.bf16.gmra.mxu0 %v2346
      %v2375 = vpop.f32.mrf.mxu0
      %v2376 = vadd.f32 0.0, %v2375
      %v2377 = vpop.f32.mrf.mxu0
      %v2378 = vadd.f32 0.0, %v2377
      %2379 = vdwg.mxu0
      %v2380 = vld [vmem:[#allocation3] sm:$0xff]
      %v2381 = vld [vmem:[#allocation3 + $0x8] sm:$0xff]
      %v2382 = vld [vmem:[#allocation3 + $0x10] sm:$0xff]
      %v2383 = vld [vmem:[#allocation3 + $0x18] sm:$0xff]
      %v2384 = vld [vmem:[#allocation3 + $0x20] sm:$0xff]
      %v2385 = vld [vmem:[#allocation3 + $0x28] sm:$0xff]
      %v2386 = vld [vmem:[#allocation3 + $0x30] sm:$0xff]
      %v2387 = vld [vmem:[#allocation3 + $0x38] sm:$0xff]
      %v2388 = vadd.f32 %v2380, %v2361
      %v2389 = vadd.f32 %v2381, %v2363
      %v2390 = vadd.f32 %v2382, %v2366
      %v2391 = vadd.f32 %v2383, %v2368
      %v2392 = vadd.f32 %v2384, %v2371
      %v2393 = vadd.f32 %v2385, %v2373
      %v2394 = vadd.f32 %v2386, %v2376
      %v2395 = vadd.f32 %v2387, %v2378
      %2396 = vst.msk [vmem:[#allocation3] sm:$0xff] %vm469, %v2388
      %2397 = vst.msk [vmem:[#allocation3 + $0x8] sm:$0xff] %vm469, %v2389
      %2398 = vst.msk [vmem:[#allocation3 + $0x10] sm:$0xff] %vm469, %v2390
      %2399 = vst.msk [vmem:[#allocation3 + $0x18] sm:$0xff] %vm469, %v2391
      %2400 = vst.msk [vmem:[#allocation3 + $0x20] sm:$0xff] %vm469, %v2392
      %2401 = vst.msk [vmem:[#allocation3 + $0x28] sm:$0xff] %vm469, %v2393
      %2402 = vst.msk [vmem:[#allocation3 + $0x30] sm:$0xff] %vm469, %v2394
      %2403 = vst.msk [vmem:[#allocation3 + $0x38] sm:$0xff] %vm469, %v2395
      %v2404 = vld [vmem:[%s1297 + $0x1] sm:$0xff]
      %v2405 = vld [vmem:[%s1297 + $0x11] sm:$0xff]
      %v2406 = vld [vmem:[%s1297 + $0x21] sm:$0xff]
      %v2407 = vld [vmem:[%s1297 + $0x31] sm:$0xff]
      %v2408 = vld [vmem:[%s1297 + $0x41] sm:$0xff]
      %v2409 = vld [vmem:[%s1297 + $0x51] sm:$0xff]
      %v2410 = vld [vmem:[%s1297 + $0x61] sm:$0xff]
      %v2411 = vld [vmem:[%s1297 + $0x71] sm:$0xff]
      %v2412 = vpack.c.bf16 %v2405, %v2404
      %v2413 = vpack.c.bf16 %v2407, %v2406
      %v2414 = vpack.c.bf16 %v2409, %v2408
      %v2415 = vpack.c.bf16 %v2411, %v2410
      %s2416 = scalar_lea.vmem %s7, 16
      %v2417 = vld [vmem:[%s2416] sm:$0xf]
      %v2419 = vsel %vm469, %v2412, 0
      %v2422 = vsel %vm469, %v2413, 0
      %v2425 = vsel %vm469, %v2414, 0
      %v2428 = vsel %vm469, %v2415, 0
      %v2431 = vsel %vm1331, %v2417, 0
      %2433 = vmatpush.bf16.msra.mxu0 0
      %2434 = vmatpush.bf16.msra.mxu0 0
      %2435 = vmatpush.bf16.msra.mxu0 0
      %2436 = vmatpush.bf16.msra.mxu0 0
      %2437 = vmatpush.bf16.msra.mxu0 0
      %2438 = vmatpush.bf16.msra.mxu0 0
      %2439 = vmatpush.bf16.msra.mxu0 0
      %2440 = vmatpush.bf16.msra.mxu0 %v2431
      %2441 = vmatmul.bf16.gmra.mxu0 %v2419
      %v2442 = vpop.f32.mrf.mxu0
      %v2443 = vadd.f32 0.0, %v2442
      %v2444 = vpop.f32.mrf.mxu0
      %v2445 = vadd.f32 0.0, %v2444
      %2446 = vmatmul.bf16.gmra.mxu0 %v2422
      %v2447 = vpop.f32.mrf.mxu0
      %v2448 = vadd.f32 0.0, %v2447
      %v2449 = vpop.f32.mrf.mxu0
      %v2450 = vadd.f32 0.0, %v2449
      %2451 = vmatmul.bf16.gmra.mxu0 %v2425
      %v2452 = vpop.f32.mrf.mxu0
      %v2453 = vadd.f32 0.0, %v2452
      %v2454 = vpop.f32.mrf.mxu0
      %v2455 = vadd.f32 0.0, %v2454
      %2456 = vmatmul.bf16.gmra.mxu0 %v2428
      %v2457 = vpop.f32.mrf.mxu0
      %v2458 = vadd.f32 0.0, %v2457
      %v2459 = vpop.f32.mrf.mxu0
      %v2460 = vadd.f32 0.0, %v2459
      %2461 = vdwg.mxu0
      %v2462 = vld [vmem:[#allocation3] sm:$0xff]
      %v2463 = vld [vmem:[#allocation3 + $0x8] sm:$0xff]
      %v2464 = vld [vmem:[#allocation3 + $0x10] sm:$0xff]
      %v2465 = vld [vmem:[#allocation3 + $0x18] sm:$0xff]
      %v2466 = vld [vmem:[#allocation3 + $0x20] sm:$0xff]
      %v2467 = vld [vmem:[#allocation3 + $0x28] sm:$0xff]
      %v2468 = vld [vmem:[#allocation3 + $0x30] sm:$0xff]
      %v2469 = vld [vmem:[#allocation3 + $0x38] sm:$0xff]
      %v2470 = vadd.f32 %v2462, %v2443
      %v2471 = vadd.f32 %v2463, %v2445
      %v2472 = vadd.f32 %v2464, %v2448
      %v2473 = vadd.f32 %v2465, %v2450
      %v2474 = vadd.f32 %v2466, %v2453
      %v2475 = vadd.f32 %v2467, %v2455
      %v2476 = vadd.f32 %v2468, %v2458
      %v2477 = vadd.f32 %v2469, %v2460
      %2478 = vst.msk [vmem:[#allocation3] sm:$0xff] %vm469, %v2470
      %2479 = vst.msk [vmem:[#allocation3 + $0x8] sm:$0xff] %vm469, %v2471
      %2480 = vst.msk [vmem:[#allocation3 + $0x10] sm:$0xff] %vm469, %v2472
      %2481 = vst.msk [vmem:[#allocation3 + $0x18] sm:$0xff] %vm469, %v2473
      %2482 = vst.msk [vmem:[#allocation3 + $0x20] sm:$0xff] %vm469, %v2474
      %2483 = vst.msk [vmem:[#allocation3 + $0x28] sm:$0xff] %vm469, %v2475
      %2484 = vst.msk [vmem:[#allocation3 + $0x30] sm:$0xff] %vm469, %v2476
      %2485 = vst.msk [vmem:[#allocation3 + $0x38] sm:$0xff] %vm469, %v2477
      %v2486 = vld [vmem:[%s1297 + $0x2] sm:$0xff]
      %v2487 = vld [vmem:[%s1297 + $0x12] sm:$0xff]
      %v2488 = vld [vmem:[%s1297 + $0x22] sm:$0xff]
      %v2489 = vld [vmem:[%s1297 + $0x32] sm:$0xff]
      %v2490 = vld [vmem:[%s1297 + $0x42] sm:$0xff]
      %v2491 = vld [vmem:[%s1297 + $0x52] sm:$0xff]
      %v2492 = vld [vmem:[%s1297 + $0x62] sm:$0xff]
      %v2493 = vld [vmem:[%s1297 + $0x72] sm:$0xff]
      %v2494 = vpack.c.bf16 %v2487, %v2486
      %v2495 = vpack.c.bf16 %v2489, %v2488
      %v2496 = vpack.c.bf16 %v2491, %v2490
      %v2497 = vpack.c.bf16 %v2493, %v2492
      %s2498 = scalar_lea.vmem %s7, 20
      %v2499 = vld [vmem:[%s2498] sm:$0xf]
      %v2501 = vsel %vm469, %v2494, 0
      %v2504 = vsel %vm469, %v2495, 0
      %v2507 = vsel %vm469, %v2496, 0
      %v2510 = vsel %vm469, %v2497, 0
      %v2513 = vsel %vm1331, %v2499, 0
      %2515 = vmatpush.bf16.msra.mxu0 0
      %2516 = vmatpush.bf16.msra.mxu0 0
      %2517 = vmatpush.bf16.msra.mxu0 0
      %2518 = vmatpush.bf16.msra.mxu0 0
      %2519 = vmatpush.bf16.msra.mxu0 0
      %2520 = vmatpush.bf16.msra.mxu0 0
      %2521 = vmatpush.bf16.msra.mxu0 0
      %2522 = vmatpush.bf16.msra.mxu0 %v2513
      %2523 = vmatmul.bf16.gmra.mxu0 %v2501
      %v2524 = vpop.f32.mrf.mxu0
      %v2525 = vadd.f32 0.0, %v2524
      %v2526 = vpop.f32.mrf.mxu0
      %v2527 = vadd.f32 0.0, %v2526
      %2528 = vmatmul.bf16.gmra.mxu0 %v2504
      %v2529 = vpop.f32.mrf.mxu0
      %v2530 = vadd.f32 0.0, %v2529
      %v2531 = vpop.f32.mrf.mxu0
      %v2532 = vadd.f32 0.0, %v2531
      %2533 = vmatmul.bf16.gmra.mxu0 %v2507
      %v2534 = vpop.f32.mrf.mxu0
      %v2535 = vadd.f32 0.0, %v2534
      %v2536 = vpop.f32.mrf.mxu0
      %v2537 = vadd.f32 0.0, %v2536
      %2538 = vmatmul.bf16.gmra.mxu0 %v2510
      %v2539 = vpop.f32.mrf.mxu0
      %v2540 = vadd.f32 0.0, %v2539
      %v2541 = vpop.f32.mrf.mxu0
      %v2542 = vadd.f32 0.0, %v2541
      %2543 = vdwg.mxu0
      %v2544 = vld [vmem:[#allocation3] sm:$0xff]
      %v2545 = vld [vmem:[#allocation3 + $0x8] sm:$0xff]
      %v2546 = vld [vmem:[#allocation3 + $0x10] sm:$0xff]
      %v2547 = vld [vmem:[#allocation3 + $0x18] sm:$0xff]
      %v2548 = vld [vmem:[#allocation3 + $0x20] sm:$0xff]
      %v2549 = vld [vmem:[#allocation3 + $0x28] sm:$0xff]
      %v2550 = vld [vmem:[#allocation3 + $0x30] sm:$0xff]
      %v2551 = vld [vmem:[#allocation3 + $0x38] sm:$0xff]
      %v2552 = vadd.f32 %v2544, %v2525
      %v2553 = vadd.f32 %v2545, %v2527
      %v2554 = vadd.f32 %v2546, %v2530
      %v2555 = vadd.f32 %v2547, %v2532
      %v2556 = vadd.f32 %v2548, %v2535
      %v2557 = vadd.f32 %v2549, %v2537
      %v2558 = vadd.f32 %v2550, %v2540
      %v2559 = vadd.f32 %v2551, %v2542
      %2560 = vst.msk [vmem:[#allocation3] sm:$0xff] %vm469, %v2552
      %2561 = vst.msk [vmem:[#allocation3 + $0x8] sm:$0xff] %vm469, %v2553
      %2562 = vst.msk [vmem:[#allocation3 + $0x10] sm:$0xff] %vm469, %v2554
      %2563 = vst.msk [vmem:[#allocation3 + $0x18] sm:$0xff] %vm469, %v2555
      %2564 = vst.msk [vmem:[#allocation3 + $0x20] sm:$0xff] %vm469, %v2556
      %2565 = vst.msk [vmem:[#allocation3 + $0x28] sm:$0xff] %vm469, %v2557
      %2566 = vst.msk [vmem:[#allocation3 + $0x30] sm:$0xff] %vm469, %v2558
      %2567 = vst.msk [vmem:[#allocation3 + $0x38] sm:$0xff] %vm469, %v2559
      %v2568 = vld [vmem:[%s1782] sm:$0xff]
      %v2569 = vld [vmem:[%s1782 + $0x10] sm:$0xff]
      %v2570 = vld [vmem:[%s1782 + $0x20] sm:$0xff]
      %v2571 = vld [vmem:[%s1782 + $0x30] sm:$0xff]
      %v2572 = vld [vmem:[%s1782 + $0x40] sm:$0xff]
      %v2573 = vld [vmem:[%s1782 + $0x50] sm:$0xff]
      %v2574 = vld [vmem:[%s1782 + $0x60] sm:$0xff]
      %v2575 = vld [vmem:[%s1782 + $0x70] sm:$0xff]
      %v2576 = vpack.c.bf16 %v2569, %v2568
      %v2577 = vpack.c.bf16 %v2571, %v2570
      %v2578 = vpack.c.bf16 %v2573, %v2572
      %v2579 = vpack.c.bf16 %v2575, %v2574
      %s2580 = scalar_lea.vmem %s7, 24
      %v2581 = vld [vmem:[%s2580] sm:$0xf]
      %v2583 = vsel %vm469, %v2576, 0
      %v2586 = vsel %vm469, %v2577, 0
      %v2589 = vsel %vm469, %v2578, 0
      %v2592 = vsel %vm469, %v2579, 0
      %v2595 = vsel %vm1331, %v2581, 0
      %2597 = vmatpush.bf16.msra.mxu0 0
      %2598 = vmatpush.bf16.msra.mxu0 0
      %2599 = vmatpush.bf16.msra.mxu0 0
      %2600 = vmatpush.bf16.msra.mxu0 0
      %2601 = vmatpush.bf16.msra.mxu0 0
      %2602 = vmatpush.bf16.msra.mxu0 0
      %2603 = vmatpush.bf16.msra.mxu0 0
      %2604 = vmatpush.bf16.msra.mxu0 %v2595
      %2605 = vmatmul.bf16.gmra.mxu0 %v2583
      %v2606 = vpop.f32.mrf.mxu0
      %v2607 = vadd.f32 0.0, %v2606
      %v2608 = vpop.f32.mrf.mxu0
      %v2609 = vadd.f32 0.0, %v2608
      %2610 = vmatmul.bf16.gmra.mxu0 %v2586
      %v2611 = vpop.f32.mrf.mxu0
      %v2612 = vadd.f32 0.0, %v2611
      %v2613 = vpop.f32.mrf.mxu0
      %v2614 = vadd.f32 0.0, %v2613
      %2615 = vmatmul.bf16.gmra.mxu0 %v2589
      %v2616 = vpop.f32.mrf.mxu0
      %v2617 = vadd.f32 0.0, %v2616
      %v2618 = vpop.f32.mrf.mxu0
      %v2619 = vadd.f32 0.0, %v2618
      %2620 = vmatmul.bf16.gmra.mxu0 %v2592
      %v2621 = vpop.f32.mrf.mxu0
      %v2622 = vadd.f32 0.0, %v2621
      %v2623 = vpop.f32.mrf.mxu0
      %v2624 = vadd.f32 0.0, %v2623
      %2625 = vdwg.mxu0
      %v2626 = vld [vmem:[#allocation3] sm:$0xff]
      %v2627 = vld [vmem:[#allocation3 + $0x8] sm:$0xff]
      %v2628 = vld [vmem:[#allocation3 + $0x10] sm:$0xff]
      %v2629 = vld [vmem:[#allocation3 + $0x18] sm:$0xff]
      %v2630 = vld [vmem:[#allocation3 + $0x20] sm:$0xff]
      %v2631 = vld [vmem:[#allocation3 + $0x28] sm:$0xff]
      %v2632 = vld [vmem:[#allocation3 + $0x30] sm:$0xff]
      %v2633 = vld [vmem:[#allocation3 + $0x38] sm:$0xff]
      %v2634 = vadd.f32 %v2626, %v2607
      %v2635 = vadd.f32 %v2627, %v2609
      %v2636 = vadd.f32 %v2628, %v2612
      %v2637 = vadd.f32 %v2629, %v2614
      %v2638 = vadd.f32 %v2630, %v2617
      %v2639 = vadd.f32 %v2631, %v2619
      %v2640 = vadd.f32 %v2632, %v2622
      %v2641 = vadd.f32 %v2633, %v2624
      %2642 = vst.msk [vmem:[#allocation3] sm:$0xff] %vm469, %v2634
      %2643 = vst.msk [vmem:[#allocation3 + $0x8] sm:$0xff] %vm469, %v2635
      %2644 = vst.msk [vmem:[#allocation3 + $0x10] sm:$0xff] %vm469, %v2636
      %2645 = vst.msk [vmem:[#allocation3 + $0x18] sm:$0xff] %vm469, %v2637
      %2646 = vst.msk [vmem:[#allocation3 + $0x20] sm:$0xff] %vm469, %v2638
      %2647 = vst.msk [vmem:[#allocation3 + $0x28] sm:$0xff] %vm469, %v2639
      %2648 = vst.msk [vmem:[#allocation3 + $0x30] sm:$0xff] %vm469, %v2640
      %2649 = vst.msk [vmem:[#allocation3 + $0x38] sm:$0xff] %vm469, %v2641
      %v2650 = vld [vmem:[%s1782 + $0x1] sm:$0xff]
      %v2651 = vld [vmem:[%s1782 + $0x11] sm:$0xff]
      %v2652 = vld [vmem:[%s1782 + $0x21] sm:$0xff]
      %v2653 = vld [vmem:[%s1782 + $0x31] sm:$0xff]
      %v2654 = vld [vmem:[%s1782 + $0x41] sm:$0xff]
      %v2655 = vld [vmem:[%s1782 + $0x51] sm:$0xff]
      %v2656 = vld [vmem:[%s1782 + $0x61] sm:$0xff]
      %v2657 = vld [vmem:[%s1782 + $0x71] sm:$0xff]
      %v2658 = vpack.c.bf16 %v2651, %v2650
      %v2659 = vpack.c.bf16 %v2653, %v2652
      %v2660 = vpack.c.bf16 %v2655, %v2654
      %v2661 = vpack.c.bf16 %v2657, %v2656
      %s2662 = scalar_lea.vmem %s7, 28
      %v2663 = vld [vmem:[%s2662] sm:$0xf]
      %v2665 = vsel %vm469, %v2658, 0
      %v2668 = vsel %vm469, %v2659, 0
      %v2671 = vsel %vm469, %v2660, 0
      %v2674 = vsel %vm469, %v2661, 0
      %v2677 = vsel %vm1331, %v2663, 0
      %2679 = vmatpush.bf16.msra.mxu0 0
      %2680 = vmatpush.bf16.msra.mxu0 0
      %2681 = vmatpush.bf16.msra.mxu0 0
      %2682 = vmatpush.bf16.msra.mxu0 0
      %2683 = vmatpush.bf16.msra.mxu0 0
      %2684 = vmatpush.bf16.msra.mxu0 0
      %2685 = vmatpush.bf16.msra.mxu0 0
      %2686 = vmatpush.bf16.msra.mxu0 %v2677
      %2687 = vmatmul.bf16.gmra.mxu0 %v2665
      %v2688 = vpop.f32.mrf.mxu0
      %v2689 = vadd.f32 0.0, %v2688
      %v2690 = vpop.f32.mrf.mxu0
      %v2691 = vadd.f32 0.0, %v2690
      %2692 = vmatmul.bf16.gmra.mxu0 %v2668
      %v2693 = vpop.f32.mrf.mxu0
      %v2694 = vadd.f32 0.0, %v2693
      %v2695 = vpop.f32.mrf.mxu0
      %v2696 = vadd.f32 0.0, %v2695
      %2697 = vmatmul.bf16.gmra.mxu0 %v2671
      %v2698 = vpop.f32.mrf.mxu0
      %v2699 = vadd.f32 0.0, %v2698
      %v2700 = vpop.f32.mrf.mxu0
      %v2701 = vadd.f32 0.0, %v2700
      %2702 = vmatmul.bf16.gmra.mxu0 %v2674
      %v2703 = vpop.f32.mrf.mxu0
      %v2704 = vadd.f32 0.0, %v2703
      %v2705 = vpop.f32.mrf.mxu0
      %v2706 = vadd.f32 0.0, %v2705
      %2707 = vdwg.mxu0
      %v2708 = vld [vmem:[#allocation3] sm:$0xff]
      %v2709 = vld [vmem:[#allocation3 + $0x8] sm:$0xff]
      %v2710 = vld [vmem:[#allocation3 + $0x10] sm:$0xff]
      %v2711 = vld [vmem:[#allocation3 + $0x18] sm:$0xff]
      %v2712 = vld [vmem:[#allocation3 + $0x20] sm:$0xff]
      %v2713 = vld [vmem:[#allocation3 + $0x28] sm:$0xff]
      %v2714 = vld [vmem:[#allocation3 + $0x30] sm:$0xff]
      %v2715 = vld [vmem:[#allocation3 + $0x38] sm:$0xff]
      %v2716 = vadd.f32 %v2708, %v2689
      %v2717 = vadd.f32 %v2709, %v2691
      %v2718 = vadd.f32 %v2710, %v2694
      %v2719 = vadd.f32 %v2711, %v2696
      %v2720 = vadd.f32 %v2712, %v2699
      %v2721 = vadd.f32 %v2713, %v2701
      %v2722 = vadd.f32 %v2714, %v2704
      %v2723 = vadd.f32 %v2715, %v2706
      %2724 = vst.msk [vmem:[#allocation3] sm:$0xff] %vm469, %v2716
      %2725 = vst.msk [vmem:[#allocation3 + $0x8] sm:$0xff] %vm469, %v2717
      %2726 = vst.msk [vmem:[#allocation3 + $0x10] sm:$0xff] %vm469, %v2718
      %2727 = vst.msk [vmem:[#allocation3 + $0x18] sm:$0xff] %vm469, %v2719
      %2728 = vst.msk [vmem:[#allocation3 + $0x20] sm:$0xff] %vm469, %v2720
      %2729 = vst.msk [vmem:[#allocation3 + $0x28] sm:$0xff] %vm469, %v2721
      %2730 = vst.msk [vmem:[#allocation3 + $0x30] sm:$0xff] %vm469, %v2722
      %2731 = vst.msk [vmem:[#allocation3 + $0x38] sm:$0xff] %vm469, %v2723
      %v2732 = vld [vmem:[%s1782 + $0x2] sm:$0xff]
      %v2733 = vld [vmem:[%s1782 + $0x12] sm:$0xff]
      %v2734 = vld [vmem:[%s1782 + $0x22] sm:$0xff]
      %v2735 = vld [vmem:[%s1782 + $0x32] sm:$0xff]
      %v2736 = vld [vmem:[%s1782 + $0x42] sm:$0xff]
      %v2737 = vld [vmem:[%s1782 + $0x52] sm:$0xff]
      %v2738 = vld [vmem:[%s1782 + $0x62] sm:$0xff]
      %v2739 = vld [vmem:[%s1782 + $0x72] sm:$0xff]
      %v2740 = vpack.c.bf16 %v2733, %v2732
      %v2741 = vpack.c.bf16 %v2735, %v2734
      %v2742 = vpack.c.bf16 %v2737, %v2736
      %v2743 = vpack.c.bf16 %v2739, %v2738
      %s2744 = scalar_lea.vmem %s7, 32
      %v2745 = vld [vmem:[%s2744] sm:$0xf]
      %v2747 = vsel %vm469, %v2740, 0
      %v2750 = vsel %vm469, %v2741, 0
      %v2753 = vsel %vm469, %v2742, 0
      %v2756 = vsel %vm469, %v2743, 0
      %v2759 = vsel %vm1331, %v2745, 0
      %2761 = vmatpush.bf16.msra.mxu0 0
      %2762 = vmatpush.bf16.msra.mxu0 0
      %2763 = vmatpush.bf16.msra.mxu0 0
      %2764 = vmatpush.bf16.msra.mxu0 0
      %2765 = vmatpush.bf16.msra.mxu0 0
      %2766 = vmatpush.bf16.msra.mxu0 0
      %2767 = vmatpush.bf16.msra.mxu0 0
      %2768 = vmatpush.bf16.msra.mxu0 %v2759
      %2769 = vmatmul.bf16.gmra.mxu0 %v2747
      %v2770 = vpop.f32.mrf.mxu0
      %v2771 = vadd.f32 0.0, %v2770
      %v2772 = vpop.f32.mrf.mxu0
      %v2773 = vadd.f32 0.0, %v2772
      %2774 = vmatmul.bf16.gmra.mxu0 %v2750
      %v2775 = vpop.f32.mrf.mxu0
      %v2776 = vadd.f32 0.0, %v2775
      %v2777 = vpop.f32.mrf.mxu0
      %v2778 = vadd.f32 0.0, %v2777
      %2779 = vmatmul.bf16.gmra.mxu0 %v2753
      %v2780 = vpop.f32.mrf.mxu0
      %v2781 = vadd.f32 0.0, %v2780
      %v2782 = vpop.f32.mrf.mxu0
      %v2783 = vadd.f32 0.0, %v2782
      %2784 = vmatmul.bf16.gmra.mxu0 %v2756
      %v2785 = vpop.f32.mrf.mxu0
      %v2786 = vadd.f32 0.0, %v2785
      %v2787 = vpop.f32.mrf.mxu0
      %v2788 = vadd.f32 0.0, %v2787
      %2789 = vdwg.mxu0
      %v2790 = vld [vmem:[#allocation3] sm:$0xff]
      %v2791 = vld [vmem:[#allocation3 + $0x8] sm:$0xff]
      %v2792 = vld [vmem:[#allocation3 + $0x10] sm:$0xff]
      %v2793 = vld [vmem:[#allocation3 + $0x18] sm:$0xff]
      %v2794 = vld [vmem:[#allocation3 + $0x20] sm:$0xff]
      %v2795 = vld [vmem:[#allocation3 + $0x28] sm:$0xff]
      %v2796 = vld [vmem:[#allocation3 + $0x30] sm:$0xff]
      %v2797 = vld [vmem:[#allocation3 + $0x38] sm:$0xff]
      %v2798 = vadd.f32 %v2790, %v2771
      %v2799 = vadd.f32 %v2791, %v2773
      %v2800 = vadd.f32 %v2792, %v2776
      %v2801 = vadd.f32 %v2793, %v2778
      %v2802 = vadd.f32 %v2794, %v2781
      %v2803 = vadd.f32 %v2795, %v2783
      %v2804 = vadd.f32 %v2796, %v2786
      %v2805 = vadd.f32 %v2797, %v2788
      %2806 = vst.msk [vmem:[#allocation3] sm:$0xff] %vm469, %v2798
      %2807 = vst.msk [vmem:[#allocation3 + $0x8] sm:$0xff] %vm469, %v2799
      %2808 = vst.msk [vmem:[#allocation3 + $0x10] sm:$0xff] %vm469, %v2800
      %2809 = vst.msk [vmem:[#allocation3 + $0x18] sm:$0xff] %vm469, %v2801
      %2810 = vst.msk [vmem:[#allocation3 + $0x20] sm:$0xff] %vm469, %v2802
      %2811 = vst.msk [vmem:[#allocation3 + $0x28] sm:$0xff] %vm469, %v2803
      %2812 = vst.msk [vmem:[#allocation3 + $0x30] sm:$0xff] %vm469, %v2804
      %2813 = vst.msk [vmem:[#allocation3 + $0x38] sm:$0xff] %vm469, %v2805
      %v2814 = vld [vmem:[#allocation3] sm:$0xff]
      %v2815 = vld [vmem:[#allocation3 + $0x8] sm:$0xff]
      %v2816 = vld [vmem:[#allocation3 + $0x10] sm:$0xff]
      %v2817 = vld [vmem:[#allocation3 + $0x18] sm:$0xff]
      %v2818 = vld [vmem:[#allocation3 + $0x20] sm:$0xff]
      %v2819 = vld [vmem:[#allocation3 + $0x28] sm:$0xff]
      %v2820 = vld [vmem:[#allocation3 + $0x30] sm:$0xff]
      %v2821 = vld [vmem:[#allocation3 + $0x38] sm:$0xff]
      %v2822 = vld [vmem:[#allocation4] sm:$0xff]
      %v2823 = vld [vmem:[#allocation4 + $0x8] sm:$0xff]
      %v2824 = vld [vmem:[#allocation4 + $0x10] sm:$0xff]
      %v2825 = vld [vmem:[#allocation4 + $0x18] sm:$0xff]
      %v2826 = vld [vmem:[#allocation4 + $0x20] sm:$0xff]
      %v2827 = vld [vmem:[#allocation4 + $0x28] sm:$0xff]
      %v2828 = vld [vmem:[#allocation4 + $0x30] sm:$0xff]
      %v2829 = vld [vmem:[#allocation4 + $0x38] sm:$0xff]
      %v2830 = vadd.f32 %v2814, %v2822
      %v2831 = vadd.f32 %v2815, %v2823
      %v2832 = vadd.f32 %v2816, %v2824
      %v2833 = vadd.f32 %v2817, %v2825
      %v2834 = vadd.f32 %v2818, %v2826
      %v2835 = vadd.f32 %v2819, %v2827
      %v2836 = vadd.f32 %v2820, %v2828
      %v2837 = vadd.f32 %v2821, %v2829
      %2838 = vst.msk [vmem:[#allocation3] sm:$0xff] %vm469, %v2830
      %2839 = vst.msk [vmem:[#allocation3 + $0x8] sm:$0xff] %vm469, %v2831
      %2840 = vst.msk [vmem:[#allocation3 + $0x10] sm:$0xff] %vm469, %v2832
      %2841 = vst.msk [vmem:[#allocation3 + $0x18] sm:$0xff] %vm469, %v2833
      %2842 = vst.msk [vmem:[#allocation3 + $0x20] sm:$0xff] %vm469, %v2834
      %2843 = vst.msk [vmem:[#allocation3 + $0x28] sm:$0xff] %vm469, %v2835
      %2844 = vst.msk [vmem:[#allocation3 + $0x30] sm:$0xff] %vm469, %v2836
      %2845 = vst.msk [vmem:[#allocation3 + $0x38] sm:$0xff] %vm469, %v2837
      %v2846 = vld [vmem:[#allocation3] sm:$0xff]
      %v2847 = vld [vmem:[#allocation3 + $0x8] sm:$0xff]
      %v2848 = vld [vmem:[#allocation3 + $0x10] sm:$0xff]
      %v2849 = vld [vmem:[#allocation3 + $0x18] sm:$0xff]
      %v2850 = vld [vmem:[#allocation3 + $0x20] sm:$0xff]
      %v2851 = vld [vmem:[#allocation3 + $0x28] sm:$0xff]
      %v2852 = vld [vmem:[#allocation3 + $0x30] sm:$0xff]
      %v2853 = vld [vmem:[#allocation3 + $0x38] sm:$0xff]
      %2854 = vst.msk [vmem:[#allocation4] sm:$0xff] %vm469, %v2846
      %2855 = vst.msk [vmem:[#allocation4 + $0x8] sm:$0xff] %vm469, %v2847
      %2856 = vst.msk [vmem:[#allocation4 + $0x10] sm:$0xff] %vm469, %v2848
      %2857 = vst.msk [vmem:[#allocation4 + $0x18] sm:$0xff] %vm469, %v2849
      %2858 = vst.msk [vmem:[#allocation4 + $0x20] sm:$0xff] %vm469, %v2850
      %2859 = vst.msk [vmem:[#allocation4 + $0x28] sm:$0xff] %vm469, %v2851
      %2860 = vst.msk [vmem:[#allocation4 + $0x30] sm:$0xff] %vm469, %v2852
      %2861 = vst.msk [vmem:[#allocation4 + $0x38] sm:$0xff] %vm469, %v2853
      %v2862 = vld [vmem:[#allocation3] sm:$0xff]
      %v2863 = vld [vmem:[#allocation3 + $0x8] sm:$0xff]
      %v2864 = vld [vmem:[#allocation3 + $0x10] sm:$0xff]
      %v2865 = vld [vmem:[#allocation3 + $0x18] sm:$0xff]
      %v2866 = vld [vmem:[#allocation3 + $0x20] sm:$0xff]
      %v2867 = vld [vmem:[#allocation3 + $0x28] sm:$0xff]
      %v2868 = vld [vmem:[#allocation3 + $0x30] sm:$0xff]
      %v2869 = vld [vmem:[#allocation3 + $0x38] sm:$0xff]
      %v2870 = vld [vmem:[%s8] sm:$0x1]
      %v2872 = vperm.slane %v2870, 0
      %v2874 = vmul.f32 %v2862, %v2872
      %v2875 = vmul.f32 %v2863, %v2872
      %v2876 = vmul.f32 %v2864, %v2872
      %v2877 = vmul.f32 %v2865, %v2872
      %v2878 = vmul.f32 %v2866, %v2872
      %v2879 = vmul.f32 %v2867, %v2872
      %v2880 = vmul.f32 %v2868, %v2872
      %v2881 = vmul.f32 %v2869, %v2872
      %v2882 = vld [vmem:[%s9] sm:$0x1]
      %v2884 = vperm.slane %v2882, 0
      %v2886 = vadd.f32 %v2874, %v2884
      %v2887 = vadd.f32 %v2875, %v2884
      %v2888 = vadd.f32 %v2876, %v2884
      %v2889 = vadd.f32 %v2877, %v2884
      %v2890 = vadd.f32 %v2878, %v2884
      %v2891 = vadd.f32 %v2879, %v2884
      %v2892 = vadd.f32 %v2880, %v2884
      %v2893 = vadd.f32 %v2881, %v2884
      %vm2894 = vcmp.gt.f32.partialorder %v2886, 0.0
      %vm2895 = vcmp.gt.f32.partialorder %v2887, 0.0
      %vm2896 = vcmp.gt.f32.partialorder %v2888, 0.0
      %vm2897 = vcmp.gt.f32.partialorder %v2889, 0.0
      %vm2898 = vcmp.gt.f32.partialorder %v2890, 0.0
      %vm2899 = vcmp.gt.f32.partialorder %v2891, 0.0
      %vm2900 = vcmp.gt.f32.partialorder %v2892, 0.0
      %vm2901 = vcmp.gt.f32.partialorder %v2893, 0.0
      %v2902 = vmul.f32 %v2886, 0.01
      %v2903 = vmul.f32 %v2887, 0.01
      %v2904 = vmul.f32 %v2888, 0.01
      %v2905 = vmul.f32 %v2889, 0.01
      %v2906 = vmul.f32 %v2890, 0.01
      %v2907 = vmul.f32 %v2891, 0.01
      %v2908 = vmul.f32 %v2892, 0.01
      %v2909 = vmul.f32 %v2893, 0.01
      %v2910 = vsel %vm2894, %v2886, %v2902
      %v2911 = vsel %vm2895, %v2887, %v2903
      %v2912 = vsel %vm2896, %v2888, %v2904
      %v2913 = vsel %vm2897, %v2889, %v2905
      %v2914 = vsel %vm2898, %v2890, %v2906
      %v2915 = vsel %vm2899, %v2891, %v2907
      %v2916 = vsel %vm2900, %v2892, %v2908
      %v2917 = vsel %vm2901, %v2893, %v2909
      %2918 = vst.msk [vmem:[%s1297 + $0x1] sm:$0xff] %vm469, %v2910
      %2919 = vst.msk [vmem:[%s1297 + $0x11] sm:$0xff] %vm469, %v2911
      %2920 = vst.msk [vmem:[%s1297 + $0x21] sm:$0xff] %vm469, %v2912
      %2921 = vst.msk [vmem:[%s1297 + $0x31] sm:$0xff] %vm469, %v2913
      %2922 = vst.msk [vmem:[%s1297 + $0x41] sm:$0xff] %vm469, %v2914
      %2923 = vst.msk [vmem:[%s1297 + $0x51] sm:$0xff] %vm469, %v2915
      %2924 = vst.msk [vmem:[%s1297 + $0x61] sm:$0xff] %vm469, %v2916
      %2925 = vst.msk [vmem:[%s1297 + $0x71] sm:$0xff] %vm469, %v2917
      %v2926 = vld [vmem:[#allocation2] sm:$0xff]
      %v2927 = vld [vmem:[#allocation2 + $0x10] sm:$0xff]
      %v2928 = vld [vmem:[#allocation2 + $0x20] sm:$0xff]
      %v2929 = vld [vmem:[#allocation2 + $0x30] sm:$0xff]
      %v2930 = vld [vmem:[#allocation2 + $0x40] sm:$0xff]
      %v2931 = vld [vmem:[#allocation2 + $0x50] sm:$0xff]
      %v2932 = vld [vmem:[#allocation2 + $0x60] sm:$0xff]
      %v2933 = vld [vmem:[#allocation2 + $0x70] sm:$0xff]
      %v2934 = vpack.c.bf16 %v2927, %v2926
      %v2935 = vpack.c.bf16 %v2929, %v2928
      %v2936 = vpack.c.bf16 %v2931, %v2930
      %v2937 = vpack.c.bf16 %v2933, %v2932
      %v2938 = vld [vmem:[%s10] sm:$0xf]
      %v2940 = vsel %vm469, %v2934, 0
      %v2943 = vsel %vm469, %v2935, 0
      %v2946 = vsel %vm469, %v2936, 0
      %v2949 = vsel %vm469, %v2937, 0
      %v2952 = vsel %vm1331, %v2938, 0
      %2954 = vmatpush.bf16.msra.mxu0 0
      %2955 = vmatpush.bf16.msra.mxu0 0
      %2956 = vmatpush.bf16.msra.mxu0 0
      %2957 = vmatpush.bf16.msra.mxu0 0
      %2958 = vmatpush.bf16.msra.mxu0 0
      %2959 = vmatpush.bf16.msra.mxu0 0
      %2960 = vmatpush.bf16.msra.mxu0 0
      %2961 = vmatpush.bf16.msra.mxu0 %v2952
      %2962 = vmatmul.bf16.gmra.mxu0 %v2940
      %v2963 = vpop.f32.mrf.mxu0
      %v2964 = vadd.f32 0.0, %v2963
      %v2965 = vpop.f32.mrf.mxu0
      %v2966 = vadd.f32 0.0, %v2965
      %2967 = vmatmul.bf16.gmra.mxu0 %v2943
      %v2968 = vpop.f32.mrf.mxu0
      %v2969 = vadd.f32 0.0, %v2968
      %v2970 = vpop.f32.mrf.mxu0
      %v2971 = vadd.f32 0.0, %v2970
      %2972 = vmatmul.bf16.gmra.mxu0 %v2946
      %v2973 = vpop.f32.mrf.mxu0
      %v2974 = vadd.f32 0.0, %v2973
      %v2975 = vpop.f32.mrf.mxu0
      %v2976 = vadd.f32 0.0, %v2975
      %2977 = vmatmul.bf16.gmra.mxu0 %v2949
      %v2978 = vpop.f32.mrf.mxu0
      %v2979 = vadd.f32 0.0, %v2978
      %v2980 = vpop.f32.mrf.mxu0
      %v2981 = vadd.f32 0.0, %v2980
      %2982 = vdwg.mxu0
      %2983 = vst.msk [vmem:[#allocation3] sm:$0xff] %vm469, %v2964
      %2984 = vst.msk [vmem:[#allocation3 + $0x8] sm:$0xff] %vm469, %v2966
      %2985 = vst.msk [vmem:[#allocation3 + $0x10] sm:$0xff] %vm469, %v2969
      %2986 = vst.msk [vmem:[#allocation3 + $0x18] sm:$0xff] %vm469, %v2971
      %2987 = vst.msk [vmem:[#allocation3 + $0x20] sm:$0xff] %vm469, %v2974
      %2988 = vst.msk [vmem:[#allocation3 + $0x28] sm:$0xff] %vm469, %v2976
      %2989 = vst.msk [vmem:[#allocation3 + $0x30] sm:$0xff] %vm469, %v2979
      %2990 = vst.msk [vmem:[#allocation3 + $0x38] sm:$0xff] %vm469, %v2981
      %v2991 = vld [vmem:[#allocation2 + $0x1] sm:$0xff]
      %v2992 = vld [vmem:[#allocation2 + $0x11] sm:$0xff]
      %v2993 = vld [vmem:[#allocation2 + $0x21] sm:$0xff]
      %v2994 = vld [vmem:[#allocation2 + $0x31] sm:$0xff]
      %v2995 = vld [vmem:[#allocation2 + $0x41] sm:$0xff]
      %v2996 = vld [vmem:[#allocation2 + $0x51] sm:$0xff]
      %v2997 = vld [vmem:[#allocation2 + $0x61] sm:$0xff]
      %v2998 = vld [vmem:[#allocation2 + $0x71] sm:$0xff]
      %v2999 = vpack.c.bf16 %v2992, %v2991
      %v3000 = vpack.c.bf16 %v2994, %v2993
      %v3001 = vpack.c.bf16 %v2996, %v2995
      %v3002 = vpack.c.bf16 %v2998, %v2997
      %s3003 = scalar_lea.vmem %s10, 4
      %v3004 = vld [vmem:[%s3003] sm:$0xf]
      %v3006 = vsel %vm469, %v2999, 0
      %v3009 = vsel %vm469, %v3000, 0
      %v3012 = vsel %vm469, %v3001, 0
      %v3015 = vsel %vm469, %v3002, 0
      %v3018 = vsel %vm1331, %v3004, 0
      %3020 = vmatpush.bf16.msra.mxu0 0
      %3021 = vmatpush.bf16.msra.mxu0 0
      %3022 = vmatpush.bf16.msra.mxu0 0
      %3023 = vmatpush.bf16.msra.mxu0 0
      %3024 = vmatpush.bf16.msra.mxu0 0
      %3025 = vmatpush.bf16.msra.mxu0 0
      %3026 = vmatpush.bf16.msra.mxu0 0
      %3027 = vmatpush.bf16.msra.mxu0 %v3018
      %3028 = vmatmul.bf16.gmra.mxu0 %v3006
      %v3029 = vpop.f32.mrf.mxu0
      %v3030 = vadd.f32 0.0, %v3029
      %v3031 = vpop.f32.mrf.mxu0
      %v3032 = vadd.f32 0.0, %v3031
      %3033 = vmatmul.bf16.gmra.mxu0 %v3009
      %v3034 = vpop.f32.mrf.mxu0
      %v3035 = vadd.f32 0.0, %v3034
      %v3036 = vpop.f32.mrf.mxu0
      %v3037 = vadd.f32 0.0, %v3036
      %3038 = vmatmul.bf16.gmra.mxu0 %v3012
      %v3039 = vpop.f32.mrf.mxu0
      %v3040 = vadd.f32 0.0, %v3039
      %v3041 = vpop.f32.mrf.mxu0
      %v3042 = vadd.f32 0.0, %v3041
      %3043 = vmatmul.bf16.gmra.mxu0 %v3015
      %v3044 = vpop.f32.mrf.mxu0
      %v3045 = vadd.f32 0.0, %v3044
      %v3046 = vpop.f32.mrf.mxu0
      %v3047 = vadd.f32 0.0, %v3046
      %3048 = vdwg.mxu0
      %v3049 = vld [vmem:[#allocation3] sm:$0xff]
      %v3050 = vld [vmem:[#allocation3 + $0x8] sm:$0xff]
      %v3051 = vld [vmem:[#allocation3 + $0x10] sm:$0xff]
      %v3052 = vld [vmem:[#allocation3 + $0x18] sm:$0xff]
      %v3053 = vld [vmem:[#allocation3 + $0x20] sm:$0xff]
      %v3054 = vld [vmem:[#allocation3 + $0x28] sm:$0xff]
      %v3055 = vld [vmem:[#allocation3 + $0x30] sm:$0xff]
      %v3056 = vld [vmem:[#allocation3 + $0x38] sm:$0xff]
      %v3057 = vadd.f32 %v3049, %v3030
      %v3058 = vadd.f32 %v3050, %v3032
      %v3059 = vadd.f32 %v3051, %v3035
      %v3060 = vadd.f32 %v3052, %v3037
      %v3061 = vadd.f32 %v3053, %v3040
      %v3062 = vadd.f32 %v3054, %v3042
      %v3063 = vadd.f32 %v3055, %v3045
      %v3064 = vadd.f32 %v3056, %v3047
      %3065 = vst.msk [vmem:[#allocation3] sm:$0xff] %vm469, %v3057
      %3066 = vst.msk [vmem:[#allocation3 + $0x8] sm:$0xff] %vm469, %v3058
      %3067 = vst.msk [vmem:[#allocation3 + $0x10] sm:$0xff] %vm469, %v3059
      %3068 = vst.msk [vmem:[#allocation3 + $0x18] sm:$0xff] %vm469, %v3060
      %3069 = vst.msk [vmem:[#allocation3 + $0x20] sm:$0xff] %vm469, %v3061
      %3070 = vst.msk [vmem:[#allocation3 + $0x28] sm:$0xff] %vm469, %v3062
      %3071 = vst.msk [vmem:[#allocation3 + $0x30] sm:$0xff] %vm469, %v3063
      %3072 = vst.msk [vmem:[#allocation3 + $0x38] sm:$0xff] %vm469, %v3064
      %v3073 = vld [vmem:[#allocation2 + $0x2] sm:$0xff]
      %v3074 = vld [vmem:[#allocation2 + $0x12] sm:$0xff]
      %v3075 = vld [vmem:[#allocation2 + $0x22] sm:$0xff]
      %v3076 = vld [vmem:[#allocation2 + $0x32] sm:$0xff]
      %v3077 = vld [vmem:[#allocation2 + $0x42] sm:$0xff]
      %v3078 = vld [vmem:[#allocation2 + $0x52] sm:$0xff]
      %v3079 = vld [vmem:[#allocation2 + $0x62] sm:$0xff]
      %v3080 = vld [vmem:[#allocation2 + $0x72] sm:$0xff]
      %v3081 = vpack.c.bf16 %v3074, %v3073
      %v3082 = vpack.c.bf16 %v3076, %v3075
      %v3083 = vpack.c.bf16 %v3078, %v3077
      %v3084 = vpack.c.bf16 %v3080, %v3079
      %s3085 = scalar_lea.vmem %s10, 8
      %v3086 = vld [vmem:[%s3085] sm:$0xf]
      %v3088 = vsel %vm469, %v3081, 0
      %v3091 = vsel %vm469, %v3082, 0
      %v3094 = vsel %vm469, %v3083, 0
      %v3097 = vsel %vm469, %v3084, 0
      %v3100 = vsel %vm1331, %v3086, 0
      %3102 = vmatpush.bf16.msra.mxu0 0
      %3103 = vmatpush.bf16.msra.mxu0 0
      %3104 = vmatpush.bf16.msra.mxu0 0
      %3105 = vmatpush.bf16.msra.mxu0 0
      %3106 = vmatpush.bf16.msra.mxu0 0
      %3107 = vmatpush.bf16.msra.mxu0 0
      %3108 = vmatpush.bf16.msra.mxu0 0
      %3109 = vmatpush.bf16.msra.mxu0 %v3100
      %3110 = vmatmul.bf16.gmra.mxu0 %v3088
      %v3111 = vpop.f32.mrf.mxu0
      %v3112 = vadd.f32 0.0, %v3111
      %v3113 = vpop.f32.mrf.mxu0
      %v3114 = vadd.f32 0.0, %v3113
      %3115 = vmatmul.bf16.gmra.mxu0 %v3091
      %v3116 = vpop.f32.mrf.mxu0
      %v3117 = vadd.f32 0.0, %v3116
      %v3118 = vpop.f32.mrf.mxu0
      %v3119 = vadd.f32 0.0, %v3118
      %3120 = vmatmul.bf16.gmra.mxu0 %v3094
      %v3121 = vpop.f32.mrf.mxu0
      %v3122 = vadd.f32 0.0, %v3121
      %v3123 = vpop.f32.mrf.mxu0
      %v3124 = vadd.f32 0.0, %v3123
      %3125 = vmatmul.bf16.gmra.mxu0 %v3097
      %v3126 = vpop.f32.mrf.mxu0
      %v3127 = vadd.f32 0.0, %v3126
      %v3128 = vpop.f32.mrf.mxu0
      %v3129 = vadd.f32 0.0, %v3128
      %3130 = vdwg.mxu0
      %v3131 = vld [vmem:[#allocation3] sm:$0xff]
      %v3132 = vld [vmem:[#allocation3 + $0x8] sm:$0xff]
      %v3133 = vld [vmem:[#allocation3 + $0x10] sm:$0xff]
      %v3134 = vld [vmem:[#allocation3 + $0x18] sm:$0xff]
      %v3135 = vld [vmem:[#allocation3 + $0x20] sm:$0xff]
      %v3136 = vld [vmem:[#allocation3 + $0x28] sm:$0xff]
      %v3137 = vld [vmem:[#allocation3 + $0x30] sm:$0xff]
      %v3138 = vld [vmem:[#allocation3 + $0x38] sm:$0xff]
      %v3139 = vadd.f32 %v3131, %v3112
      %v3140 = vadd.f32 %v3132, %v3114
      %v3141 = vadd.f32 %v3133, %v3117
      %v3142 = vadd.f32 %v3134, %v3119
      %v3143 = vadd.f32 %v3135, %v3122
      %v3144 = vadd.f32 %v3136, %v3124
      %v3145 = vadd.f32 %v3137, %v3127
      %v3146 = vadd.f32 %v3138, %v3129
      %3147 = vst.msk [vmem:[#allocation3] sm:$0xff] %vm469, %v3139
      %3148 = vst.msk [vmem:[#allocation3 + $0x8] sm:$0xff] %vm469, %v3140
      %3149 = vst.msk [vmem:[#allocation3 + $0x10] sm:$0xff] %vm469, %v3141
      %3150 = vst.msk [vmem:[#allocation3 + $0x18] sm:$0xff] %vm469, %v3142
      %3151 = vst.msk [vmem:[#allocation3 + $0x20] sm:$0xff] %vm469, %v3143
      %3152 = vst.msk [vmem:[#allocation3 + $0x28] sm:$0xff] %vm469, %v3144
      %3153 = vst.msk [vmem:[#allocation3 + $0x30] sm:$0xff] %vm469, %v3145
      %3154 = vst.msk [vmem:[#allocation3 + $0x38] sm:$0xff] %vm469, %v3146
      %v3155 = vld [vmem:[%s1297] sm:$0xff]
      %v3156 = vld [vmem:[%s1297 + $0x10] sm:$0xff]
      %v3157 = vld [vmem:[%s1297 + $0x20] sm:$0xff]
      %v3158 = vld [vmem:[%s1297 + $0x30] sm:$0xff]
      %v3159 = vld [vmem:[%s1297 + $0x40] sm:$0xff]
      %v3160 = vld [vmem:[%s1297 + $0x50] sm:$0xff]
      %v3161 = vld [vmem:[%s1297 + $0x60] sm:$0xff]
      %v3162 = vld [vmem:[%s1297 + $0x70] sm:$0xff]
      %v3163 = vpack.c.bf16 %v3156, %v3155
      %v3164 = vpack.c.bf16 %v3158, %v3157
      %v3165 = vpack.c.bf16 %v3160, %v3159
      %v3166 = vpack.c.bf16 %v3162, %v3161
      %s3167 = scalar_lea.vmem %s10, 12
      %v3168 = vld [vmem:[%s3167] sm:$0xf]
      %v3170 = vsel %vm469, %v3163, 0
      %v3173 = vsel %vm469, %v3164, 0
      %v3176 = vsel %vm469, %v3165, 0
      %v3179 = vsel %vm469, %v3166, 0
      %v3182 = vsel %vm1331, %v3168, 0
      %3184 = vmatpush.bf16.msra.mxu0 0
      %3185 = vmatpush.bf16.msra.mxu0 0
      %3186 = vmatpush.bf16.msra.mxu0 0
      %3187 = vmatpush.bf16.msra.mxu0 0
      %3188 = vmatpush.bf16.msra.mxu0 0
      %3189 = vmatpush.bf16.msra.mxu0 0
      %3190 = vmatpush.bf16.msra.mxu0 0
      %3191 = vmatpush.bf16.msra.mxu0 %v3182
      %3192 = vmatmul.bf16.gmra.mxu0 %v3170
      %v3193 = vpop.f32.mrf.mxu0
      %v3194 = vadd.f32 0.0, %v3193
      %v3195 = vpop.f32.mrf.mxu0
      %v3196 = vadd.f32 0.0, %v3195
      %3197 = vmatmul.bf16.gmra.mxu0 %v3173
      %v3198 = vpop.f32.mrf.mxu0
      %v3199 = vadd.f32 0.0, %v3198
      %v3200 = vpop.f32.mrf.mxu0
      %v3201 = vadd.f32 0.0, %v3200
      %3202 = vmatmul.bf16.gmra.mxu0 %v3176
      %v3203 = vpop.f32.mrf.mxu0
      %v3204 = vadd.f32 0.0, %v3203
      %v3205 = vpop.f32.mrf.mxu0
      %v3206 = vadd.f32 0.0, %v3205
      %3207 = vmatmul.bf16.gmra.mxu0 %v3179
      %v3208 = vpop.f32.mrf.mxu0
      %v3209 = vadd.f32 0.0, %v3208
      %v3210 = vpop.f32.mrf.mxu0
      %v3211 = vadd.f32 0.0, %v3210
      %3212 = vdwg.mxu0
      %v3213 = vld [vmem:[#allocation3] sm:$0xff]
      %v3214 = vld [vmem:[#allocation3 + $0x8] sm:$0xff]
      %v3215 = vld [vmem:[#allocation3 + $0x10] sm:$0xff]
      %v3216 = vld [vmem:[#allocation3 + $0x18] sm:$0xff]
      %v3217 = vld [vmem:[#allocation3 + $0x20] sm:$0xff]
      %v3218 = vld [vmem:[#allocation3 + $0x28] sm:$0xff]
      %v3219 = vld [vmem:[#allocation3 + $0x30] sm:$0xff]
      %v3220 = vld [vmem:[#allocation3 + $0x38] sm:$0xff]
      %v3221 = vadd.f32 %v3213, %v3194
      %v3222 = vadd.f32 %v3214, %v3196
      %v3223 = vadd.f32 %v3215, %v3199
      %v3224 = vadd.f32 %v3216, %v3201
      %v3225 = vadd.f32 %v3217, %v3204
      %v3226 = vadd.f32 %v3218, %v3206
      %v3227 = vadd.f32 %v3219, %v3209
      %v3228 = vadd.f32 %v3220, %v3211
      %3229 = vst.msk [vmem:[#allocation3] sm:$0xff] %vm469, %v3221
      %3230 = vst.msk [vmem:[#allocation3 + $0x8] sm:$0xff] %vm469, %v3222
      %3231 = vst.msk [vmem:[#allocation3 + $0x10] sm:$0xff] %vm469, %v3223
      %3232 = vst.msk [vmem:[#allocation3 + $0x18] sm:$0xff] %vm469, %v3224
      %3233 = vst.msk [vmem:[#allocation3 + $0x20] sm:$0xff] %vm469, %v3225
      %3234 = vst.msk [vmem:[#allocation3 + $0x28] sm:$0xff] %vm469, %v3226
      %3235 = vst.msk [vmem:[#allocation3 + $0x30] sm:$0xff] %vm469, %v3227
      %3236 = vst.msk [vmem:[#allocation3 + $0x38] sm:$0xff] %vm469, %v3228
      %v3237 = vld [vmem:[%s1297 + $0x1] sm:$0xff]
      %v3238 = vld [vmem:[%s1297 + $0x11] sm:$0xff]
      %v3239 = vld [vmem:[%s1297 + $0x21] sm:$0xff]
      %v3240 = vld [vmem:[%s1297 + $0x31] sm:$0xff]
      %v3241 = vld [vmem:[%s1297 + $0x41] sm:$0xff]
      %v3242 = vld [vmem:[%s1297 + $0x51] sm:$0xff]
      %v3243 = vld [vmem:[%s1297 + $0x61] sm:$0xff]
      %v3244 = vld [vmem:[%s1297 + $0x71] sm:$0xff]
      %v3245 = vpack.c.bf16 %v3238, %v3237
      %v3246 = vpack.c.bf16 %v3240, %v3239
      %v3247 = vpack.c.bf16 %v3242, %v3241
      %v3248 = vpack.c.bf16 %v3244, %v3243
      %s3249 = scalar_lea.vmem %s10, 16
      %v3250 = vld [vmem:[%s3249] sm:$0xf]
      %v3252 = vsel %vm469, %v3245, 0
      %v3255 = vsel %vm469, %v3246, 0
      %v3258 = vsel %vm469, %v3247, 0
      %v3261 = vsel %vm469, %v3248, 0
      %v3264 = vsel %vm1331, %v3250, 0
      %3266 = vmatpush.bf16.msra.mxu0 0
      %3267 = vmatpush.bf16.msra.mxu0 0
      %3268 = vmatpush.bf16.msra.mxu0 0
      %3269 = vmatpush.bf16.msra.mxu0 0
      %3270 = vmatpush.bf16.msra.mxu0 0
      %3271 = vmatpush.bf16.msra.mxu0 0
      %3272 = vmatpush.bf16.msra.mxu0 0
      %3273 = vmatpush.bf16.msra.mxu0 %v3264
      %3274 = vmatmul.bf16.gmra.mxu0 %v3252
      %v3275 = vpop.f32.mrf.mxu0
      %v3276 = vadd.f32 0.0, %v3275
      %v3277 = vpop.f32.mrf.mxu0
      %v3278 = vadd.f32 0.0, %v3277
      %3279 = vmatmul.bf16.gmra.mxu0 %v3255
      %v3280 = vpop.f32.mrf.mxu0
      %v3281 = vadd.f32 0.0, %v3280
      %v3282 = vpop.f32.mrf.mxu0
      %v3283 = vadd.f32 0.0, %v3282
      %3284 = vmatmul.bf16.gmra.mxu0 %v3258
      %v3285 = vpop.f32.mrf.mxu0
      %v3286 = vadd.f32 0.0, %v3285
      %v3287 = vpop.f32.mrf.mxu0
      %v3288 = vadd.f32 0.0, %v3287
      %3289 = vmatmul.bf16.gmra.mxu0 %v3261
      %v3290 = vpop.f32.mrf.mxu0
      %v3291 = vadd.f32 0.0, %v3290
      %v3292 = vpop.f32.mrf.mxu0
      %v3293 = vadd.f32 0.0, %v3292
      %3294 = vdwg.mxu0
      %v3295 = vld [vmem:[#allocation3] sm:$0xff]
      %v3296 = vld [vmem:[#allocation3 + $0x8] sm:$0xff]
      %v3297 = vld [vmem:[#allocation3 + $0x10] sm:$0xff]
      %v3298 = vld [vmem:[#allocation3 + $0x18] sm:$0xff]
      %v3299 = vld [vmem:[#allocation3 + $0x20] sm:$0xff]
      %v3300 = vld [vmem:[#allocation3 + $0x28] sm:$0xff]
      %v3301 = vld [vmem:[#allocation3 + $0x30] sm:$0xff]
      %v3302 = vld [vmem:[#allocation3 + $0x38] sm:$0xff]
      %v3303 = vadd.f32 %v3295, %v3276
      %v3304 = vadd.f32 %v3296, %v3278
      %v3305 = vadd.f32 %v3297, %v3281
      %v3306 = vadd.f32 %v3298, %v3283
      %v3307 = vadd.f32 %v3299, %v3286
      %v3308 = vadd.f32 %v3300, %v3288
      %v3309 = vadd.f32 %v3301, %v3291
      %v3310 = vadd.f32 %v3302, %v3293
      %3311 = vst.msk [vmem:[#allocation3] sm:$0xff] %vm469, %v3303
      %3312 = vst.msk [vmem:[#allocation3 + $0x8] sm:$0xff] %vm469, %v3304
      %3313 = vst.msk [vmem:[#allocation3 + $0x10] sm:$0xff] %vm469, %v3305
      %3314 = vst.msk [vmem:[#allocation3 + $0x18] sm:$0xff] %vm469, %v3306
      %3315 = vst.msk [vmem:[#allocation3 + $0x20] sm:$0xff] %vm469, %v3307
      %3316 = vst.msk [vmem:[#allocation3 + $0x28] sm:$0xff] %vm469, %v3308
      %3317 = vst.msk [vmem:[#allocation3 + $0x30] sm:$0xff] %vm469, %v3309
      %3318 = vst.msk [vmem:[#allocation3 + $0x38] sm:$0xff] %vm469, %v3310
      %v3319 = vld [vmem:[%s1297 + $0x2] sm:$0xff]
      %v3320 = vld [vmem:[%s1297 + $0x12] sm:$0xff]
      %v3321 = vld [vmem:[%s1297 + $0x22] sm:$0xff]
      %v3322 = vld [vmem:[%s1297 + $0x32] sm:$0xff]
      %v3323 = vld [vmem:[%s1297 + $0x42] sm:$0xff]
      %v3324 = vld [vmem:[%s1297 + $0x52] sm:$0xff]
      %v3325 = vld [vmem:[%s1297 + $0x62] sm:$0xff]
      %v3326 = vld [vmem:[%s1297 + $0x72] sm:$0xff]
      %v3327 = vpack.c.bf16 %v3320, %v3319
      %v3328 = vpack.c.bf16 %v3322, %v3321
      %v3329 = vpack.c.bf16 %v3324, %v3323
      %v3330 = vpack.c.bf16 %v3326, %v3325
      %s3331 = scalar_lea.vmem %s10, 20
      %v3332 = vld [vmem:[%s3331] sm:$0xf]
      %v3334 = vsel %vm469, %v3327, 0
      %v3337 = vsel %vm469, %v3328, 0
      %v3340 = vsel %vm469, %v3329, 0
      %v3343 = vsel %vm469, %v3330, 0
      %v3346 = vsel %vm1331, %v3332, 0
      %3348 = vmatpush.bf16.msra.mxu0 0
      %3349 = vmatpush.bf16.msra.mxu0 0
      %3350 = vmatpush.bf16.msra.mxu0 0
      %3351 = vmatpush.bf16.msra.mxu0 0
      %3352 = vmatpush.bf16.msra.mxu0 0
      %3353 = vmatpush.bf16.msra.mxu0 0
      %3354 = vmatpush.bf16.msra.mxu0 0
      %3355 = vmatpush.bf16.msra.mxu0 %v3346
      %3356 = vmatmul.bf16.gmra.mxu0 %v3334
      %v3357 = vpop.f32.mrf.mxu0
      %v3358 = vadd.f32 0.0, %v3357
      %v3359 = vpop.f32.mrf.mxu0
      %v3360 = vadd.f32 0.0, %v3359
      %3361 = vmatmul.bf16.gmra.mxu0 %v3337
      %v3362 = vpop.f32.mrf.mxu0
      %v3363 = vadd.f32 0.0, %v3362
      %v3364 = vpop.f32.mrf.mxu0
      %v3365 = vadd.f32 0.0, %v3364
      %3366 = vmatmul.bf16.gmra.mxu0 %v3340
      %v3367 = vpop.f32.mrf.mxu0
      %v3368 = vadd.f32 0.0, %v3367
      %v3369 = vpop.f32.mrf.mxu0
      %v3370 = vadd.f32 0.0, %v3369
      %3371 = vmatmul.bf16.gmra.mxu0 %v3343
      %v3372 = vpop.f32.mrf.mxu0
      %v3373 = vadd.f32 0.0, %v3372
      %v3374 = vpop.f32.mrf.mxu0
      %v3375 = vadd.f32 0.0, %v3374
      %3376 = vdwg.mxu0
      %v3377 = vld [vmem:[#allocation3] sm:$0xff]
      %v3378 = vld [vmem:[#allocation3 + $0x8] sm:$0xff]
      %v3379 = vld [vmem:[#allocation3 + $0x10] sm:$0xff]
      %v3380 = vld [vmem:[#allocation3 + $0x18] sm:$0xff]
      %v3381 = vld [vmem:[#allocation3 + $0x20] sm:$0xff]
      %v3382 = vld [vmem:[#allocation3 + $0x28] sm:$0xff]
      %v3383 = vld [vmem:[#allocation3 + $0x30] sm:$0xff]
      %v3384 = vld [vmem:[#allocation3 + $0x38] sm:$0xff]
      %v3385 = vadd.f32 %v3377, %v3358
      %v3386 = vadd.f32 %v3378, %v3360
      %v3387 = vadd.f32 %v3379, %v3363
      %v3388 = vadd.f32 %v3380, %v3365
      %v3389 = vadd.f32 %v3381, %v3368
      %v3390 = vadd.f32 %v3382, %v3370
      %v3391 = vadd.f32 %v3383, %v3373
      %v3392 = vadd.f32 %v3384, %v3375
      %3393 = vst.msk [vmem:[#allocation3] sm:$0xff] %vm469, %v3385
      %3394 = vst.msk [vmem:[#allocation3 + $0x8] sm:$0xff] %vm469, %v3386
      %3395 = vst.msk [vmem:[#allocation3 + $0x10] sm:$0xff] %vm469, %v3387
      %3396 = vst.msk [vmem:[#allocation3 + $0x18] sm:$0xff] %vm469, %v3388
      %3397 = vst.msk [vmem:[#allocation3 + $0x20] sm:$0xff] %vm469, %v3389
      %3398 = vst.msk [vmem:[#allocation3 + $0x28] sm:$0xff] %vm469, %v3390
      %3399 = vst.msk [vmem:[#allocation3 + $0x30] sm:$0xff] %vm469, %v3391
      %3400 = vst.msk [vmem:[#allocation3 + $0x38] sm:$0xff] %vm469, %v3392
      %v3401 = vld [vmem:[%s1782] sm:$0xff]
      %v3402 = vld [vmem:[%s1782 + $0x10] sm:$0xff]
      %v3403 = vld [vmem:[%s1782 + $0x20] sm:$0xff]
      %v3404 = vld [vmem:[%s1782 + $0x30] sm:$0xff]
      %v3405 = vld [vmem:[%s1782 + $0x40] sm:$0xff]
      %v3406 = vld [vmem:[%s1782 + $0x50] sm:$0xff]
      %v3407 = vld [vmem:[%s1782 + $0x60] sm:$0xff]
      %v3408 = vld [vmem:[%s1782 + $0x70] sm:$0xff]
      %v3409 = vpack.c.bf16 %v3402, %v3401
      %v3410 = vpack.c.bf16 %v3404, %v3403
      %v3411 = vpack.c.bf16 %v3406, %v3405
      %v3412 = vpack.c.bf16 %v3408, %v3407
      %s3413 = scalar_lea.vmem %s10, 24
      %v3414 = vld [vmem:[%s3413] sm:$0xf]
      %v3416 = vsel %vm469, %v3409, 0
      %v3419 = vsel %vm469, %v3410, 0
      %v3422 = vsel %vm469, %v3411, 0
      %v3425 = vsel %vm469, %v3412, 0
      %v3428 = vsel %vm1331, %v3414, 0
      %3430 = vmatpush.bf16.msra.mxu0 0
      %3431 = vmatpush.bf16.msra.mxu0 0
      %3432 = vmatpush.bf16.msra.mxu0 0
      %3433 = vmatpush.bf16.msra.mxu0 0
      %3434 = vmatpush.bf16.msra.mxu0 0
      %3435 = vmatpush.bf16.msra.mxu0 0
      %3436 = vmatpush.bf16.msra.mxu0 0
      %3437 = vmatpush.bf16.msra.mxu0 %v3428
      %3438 = vmatmul.bf16.gmra.mxu0 %v3416
      %v3439 = vpop.f32.mrf.mxu0
      %v3440 = vadd.f32 0.0, %v3439
      %v3441 = vpop.f32.mrf.mxu0
      %v3442 = vadd.f32 0.0, %v3441
      %3443 = vmatmul.bf16.gmra.mxu0 %v3419
      %v3444 = vpop.f32.mrf.mxu0
      %v3445 = vadd.f32 0.0, %v3444
      %v3446 = vpop.f32.mrf.mxu0
      %v3447 = vadd.f32 0.0, %v3446
      %3448 = vmatmul.bf16.gmra.mxu0 %v3422
      %v3449 = vpop.f32.mrf.mxu0
      %v3450 = vadd.f32 0.0, %v3449
      %v3451 = vpop.f32.mrf.mxu0
      %v3452 = vadd.f32 0.0, %v3451
      %3453 = vmatmul.bf16.gmra.mxu0 %v3425
      %v3454 = vpop.f32.mrf.mxu0
      %v3455 = vadd.f32 0.0, %v3454
      %v3456 = vpop.f32.mrf.mxu0
      %v3457 = vadd.f32 0.0, %v3456
      %3458 = vdwg.mxu0
      %v3459 = vld [vmem:[#allocation3] sm:$0xff]
      %v3460 = vld [vmem:[#allocation3 + $0x8] sm:$0xff]
      %v3461 = vld [vmem:[#allocation3 + $0x10] sm:$0xff]
      %v3462 = vld [vmem:[#allocation3 + $0x18] sm:$0xff]
      %v3463 = vld [vmem:[#allocation3 + $0x20] sm:$0xff]
      %v3464 = vld [vmem:[#allocation3 + $0x28] sm:$0xff]
      %v3465 = vld [vmem:[#allocation3 + $0x30] sm:$0xff]
      %v3466 = vld [vmem:[#allocation3 + $0x38] sm:$0xff]
      %v3467 = vadd.f32 %v3459, %v3440
      %v3468 = vadd.f32 %v3460, %v3442
      %v3469 = vadd.f32 %v3461, %v3445
      %v3470 = vadd.f32 %v3462, %v3447
      %v3471 = vadd.f32 %v3463, %v3450
      %v3472 = vadd.f32 %v3464, %v3452
      %v3473 = vadd.f32 %v3465, %v3455
      %v3474 = vadd.f32 %v3466, %v3457
      %3475 = vst.msk [vmem:[#allocation3] sm:$0xff] %vm469, %v3467
      %3476 = vst.msk [vmem:[#allocation3 + $0x8] sm:$0xff] %vm469, %v3468
      %3477 = vst.msk [vmem:[#allocation3 + $0x10] sm:$0xff] %vm469, %v3469
      %3478 = vst.msk [vmem:[#allocation3 + $0x18] sm:$0xff] %vm469, %v3470
      %3479 = vst.msk [vmem:[#allocation3 + $0x20] sm:$0xff] %vm469, %v3471
      %3480 = vst.msk [vmem:[#allocation3 + $0x28] sm:$0xff] %vm469, %v3472
      %3481 = vst.msk [vmem:[#allocation3 + $0x30] sm:$0xff] %vm469, %v3473
      %3482 = vst.msk [vmem:[#allocation3 + $0x38] sm:$0xff] %vm469, %v3474
      %v3483 = vld [vmem:[%s1782 + $0x1] sm:$0xff]
      %v3484 = vld [vmem:[%s1782 + $0x11] sm:$0xff]
      %v3485 = vld [vmem:[%s1782 + $0x21] sm:$0xff]
      %v3486 = vld [vmem:[%s1782 + $0x31] sm:$0xff]
      %v3487 = vld [vmem:[%s1782 + $0x41] sm:$0xff]
      %v3488 = vld [vmem:[%s1782 + $0x51] sm:$0xff]
      %v3489 = vld [vmem:[%s1782 + $0x61] sm:$0xff]
      %v3490 = vld [vmem:[%s1782 + $0x71] sm:$0xff]
      %v3491 = vpack.c.bf16 %v3484, %v3483
      %v3492 = vpack.c.bf16 %v3486, %v3485
      %v3493 = vpack.c.bf16 %v3488, %v3487
      %v3494 = vpack.c.bf16 %v3490, %v3489
      %s3495 = scalar_lea.vmem %s10, 28
      %v3496 = vld [vmem:[%s3495] sm:$0xf]
      %v3498 = vsel %vm469, %v3491, 0
      %v3501 = vsel %vm469, %v3492, 0
      %v3504 = vsel %vm469, %v3493, 0
      %v3507 = vsel %vm469, %v3494, 0
      %v3510 = vsel %vm1331, %v3496, 0
      %3512 = vmatpush.bf16.msra.mxu0 0
      %3513 = vmatpush.bf16.msra.mxu0 0
      %3514 = vmatpush.bf16.msra.mxu0 0
      %3515 = vmatpush.bf16.msra.mxu0 0
      %3516 = vmatpush.bf16.msra.mxu0 0
      %3517 = vmatpush.bf16.msra.mxu0 0
      %3518 = vmatpush.bf16.msra.mxu0 0
      %3519 = vmatpush.bf16.msra.mxu0 %v3510
      %3520 = vmatmul.bf16.gmra.mxu0 %v3498
      %v3521 = vpop.f32.mrf.mxu0
      %v3522 = vadd.f32 0.0, %v3521
      %v3523 = vpop.f32.mrf.mxu0
      %v3524 = vadd.f32 0.0, %v3523
      %3525 = vmatmul.bf16.gmra.mxu0 %v3501
      %v3526 = vpop.f32.mrf.mxu0
      %v3527 = vadd.f32 0.0, %v3526
      %v3528 = vpop.f32.mrf.mxu0
      %v3529 = vadd.f32 0.0, %v3528
      %3530 = vmatmul.bf16.gmra.mxu0 %v3504
      %v3531 = vpop.f32.mrf.mxu0
      %v3532 = vadd.f32 0.0, %v3531
      %v3533 = vpop.f32.mrf.mxu0
      %v3534 = vadd.f32 0.0, %v3533
      %3535 = vmatmul.bf16.gmra.mxu0 %v3507
      %v3536 = vpop.f32.mrf.mxu0
      %v3537 = vadd.f32 0.0, %v3536
      %v3538 = vpop.f32.mrf.mxu0
      %v3539 = vadd.f32 0.0, %v3538
      %3540 = vdwg.mxu0
      %v3541 = vld [vmem:[#allocation3] sm:$0xff]
      %v3542 = vld [vmem:[#allocation3 + $0x8] sm:$0xff]
      %v3543 = vld [vmem:[#allocation3 + $0x10] sm:$0xff]
      %v3544 = vld [vmem:[#allocation3 + $0x18] sm:$0xff]
      %v3545 = vld [vmem:[#allocation3 + $0x20] sm:$0xff]
      %v3546 = vld [vmem:[#allocation3 + $0x28] sm:$0xff]
      %v3547 = vld [vmem:[#allocation3 + $0x30] sm:$0xff]
      %v3548 = vld [vmem:[#allocation3 + $0x38] sm:$0xff]
      %v3549 = vadd.f32 %v3541, %v3522
      %v3550 = vadd.f32 %v3542, %v3524
      %v3551 = vadd.f32 %v3543, %v3527
      %v3552 = vadd.f32 %v3544, %v3529
      %v3553 = vadd.f32 %v3545, %v3532
      %v3554 = vadd.f32 %v3546, %v3534
      %v3555 = vadd.f32 %v3547, %v3537
      %v3556 = vadd.f32 %v3548, %v3539
      %3557 = vst.msk [vmem:[#allocation3] sm:$0xff] %vm469, %v3549
      %3558 = vst.msk [vmem:[#allocation3 + $0x8] sm:$0xff] %vm469, %v3550
      %3559 = vst.msk [vmem:[#allocation3 + $0x10] sm:$0xff] %vm469, %v3551
      %3560 = vst.msk [vmem:[#allocation3 + $0x18] sm:$0xff] %vm469, %v3552
      %3561 = vst.msk [vmem:[#allocation3 + $0x20] sm:$0xff] %vm469, %v3553
      %3562 = vst.msk [vmem:[#allocation3 + $0x28] sm:$0xff] %vm469, %v3554
      %3563 = vst.msk [vmem:[#allocation3 + $0x30] sm:$0xff] %vm469, %v3555
      %3564 = vst.msk [vmem:[#allocation3 + $0x38] sm:$0xff] %vm469, %v3556
      %v3565 = vld [vmem:[%s1782 + $0x2] sm:$0xff]
      %v3566 = vld [vmem:[%s1782 + $0x12] sm:$0xff]
      %v3567 = vld [vmem:[%s1782 + $0x22] sm:$0xff]
      %v3568 = vld [vmem:[%s1782 + $0x32] sm:$0xff]
      %v3569 = vld [vmem:[%s1782 + $0x42] sm:$0xff]
      %v3570 = vld [vmem:[%s1782 + $0x52] sm:$0xff]
      %v3571 = vld [vmem:[%s1782 + $0x62] sm:$0xff]
      %v3572 = vld [vmem:[%s1782 + $0x72] sm:$0xff]
      %v3573 = vpack.c.bf16 %v3566, %v3565
      %v3574 = vpack.c.bf16 %v3568, %v3567
      %v3575 = vpack.c.bf16 %v3570, %v3569
      %v3576 = vpack.c.bf16 %v3572, %v3571
      %s3577 = scalar_lea.vmem %s10, 32
      %v3578 = vld [vmem:[%s3577] sm:$0xf]
      %v3580 = vsel %vm469, %v3573, 0
      %v3583 = vsel %vm469, %v3574, 0
      %v3586 = vsel %vm469, %v3575, 0
      %v3589 = vsel %vm469, %v3576, 0
      %v3592 = vsel %vm1331, %v3578, 0
      %3594 = vmatpush.bf16.msra.mxu0 0
      %3595 = vmatpush.bf16.msra.mxu0 0
      %3596 = vmatpush.bf16.msra.mxu0 0
      %3597 = vmatpush.bf16.msra.mxu0 0
      %3598 = vmatpush.bf16.msra.mxu0 0
      %3599 = vmatpush.bf16.msra.mxu0 0
      %3600 = vmatpush.bf16.msra.mxu0 0
      %3601 = vmatpush.bf16.msra.mxu0 %v3592
      %3602 = vmatmul.bf16.gmra.mxu0 %v3580
      %v3603 = vpop.f32.mrf.mxu0
      %v3604 = vadd.f32 0.0, %v3603
      %v3605 = vpop.f32.mrf.mxu0
      %v3606 = vadd.f32 0.0, %v3605
      %3607 = vmatmul.bf16.gmra.mxu0 %v3583
      %v3608 = vpop.f32.mrf.mxu0
      %v3609 = vadd.f32 0.0, %v3608
      %v3610 = vpop.f32.mrf.mxu0
      %v3611 = vadd.f32 0.0, %v3610
      %3612 = vmatmul.bf16.gmra.mxu0 %v3586
      %v3613 = vpop.f32.mrf.mxu0
      %v3614 = vadd.f32 0.0, %v3613
      %v3615 = vpop.f32.mrf.mxu0
      %v3616 = vadd.f32 0.0, %v3615
      %3617 = vmatmul.bf16.gmra.mxu0 %v3589
      %v3618 = vpop.f32.mrf.mxu0
      %v3619 = vadd.f32 0.0, %v3618
      %v3620 = vpop.f32.mrf.mxu0
      %v3621 = vadd.f32 0.0, %v3620
      %3622 = vdwg.mxu0
      %v3623 = vld [vmem:[#allocation3] sm:$0xff]
      %v3624 = vld [vmem:[#allocation3 + $0x8] sm:$0xff]
      %v3625 = vld [vmem:[#allocation3 + $0x10] sm:$0xff]
      %v3626 = vld [vmem:[#allocation3 + $0x18] sm:$0xff]
      %v3627 = vld [vmem:[#allocation3 + $0x20] sm:$0xff]
      %v3628 = vld [vmem:[#allocation3 + $0x28] sm:$0xff]
      %v3629 = vld [vmem:[#allocation3 + $0x30] sm:$0xff]
      %v3630 = vld [vmem:[#allocation3 + $0x38] sm:$0xff]
      %v3631 = vadd.f32 %v3623, %v3604
      %v3632 = vadd.f32 %v3624, %v3606
      %v3633 = vadd.f32 %v3625, %v3609
      %v3634 = vadd.f32 %v3626, %v3611
      %v3635 = vadd.f32 %v3627, %v3614
      %v3636 = vadd.f32 %v3628, %v3616
      %v3637 = vadd.f32 %v3629, %v3619
      %v3638 = vadd.f32 %v3630, %v3621
      %3639 = vst.msk [vmem:[#allocation3] sm:$0xff] %vm469, %v3631
      %3640 = vst.msk [vmem:[#allocation3 + $0x8] sm:$0xff] %vm469, %v3632
      %3641 = vst.msk [vmem:[#allocation3 + $0x10] sm:$0xff] %vm469, %v3633
      %3642 = vst.msk [vmem:[#allocation3 + $0x18] sm:$0xff] %vm469, %v3634
      %3643 = vst.msk [vmem:[#allocation3 + $0x20] sm:$0xff] %vm469, %v3635
      %3644 = vst.msk [vmem:[#allocation3 + $0x28] sm:$0xff] %vm469, %v3636
      %3645 = vst.msk [vmem:[#allocation3 + $0x30] sm:$0xff] %vm469, %v3637
      %3646 = vst.msk [vmem:[#allocation3 + $0x38] sm:$0xff] %vm469, %v3638
      %v3647 = vld [vmem:[#allocation3] sm:$0xff]
      %v3648 = vld [vmem:[#allocation3 + $0x8] sm:$0xff]
      %v3649 = vld [vmem:[#allocation3 + $0x10] sm:$0xff]
      %v3650 = vld [vmem:[#allocation3 + $0x18] sm:$0xff]
      %v3651 = vld [vmem:[#allocation3 + $0x20] sm:$0xff]
      %v3652 = vld [vmem:[#allocation3 + $0x28] sm:$0xff]
      %v3653 = vld [vmem:[#allocation3 + $0x30] sm:$0xff]
      %v3654 = vld [vmem:[#allocation3 + $0x38] sm:$0xff]
      %v3655 = vld [vmem:[%s11] sm:$0x1]
      %v3657 = vperm.slane %v3655, 0
      %v3659 = vmul.f32 %v3647, %v3657
      %v3660 = vmul.f32 %v3648, %v3657
      %v3661 = vmul.f32 %v3649, %v3657
      %v3662 = vmul.f32 %v3650, %v3657
      %v3663 = vmul.f32 %v3651, %v3657
      %v3664 = vmul.f32 %v3652, %v3657
      %v3665 = vmul.f32 %v3653, %v3657
      %v3666 = vmul.f32 %v3654, %v3657
      %v3667 = vld [vmem:[%s12] sm:$0x1]
      %v3669 = vperm.slane %v3667, 0
      %v3671 = vadd.f32 %v3659, %v3669
      %v3672 = vadd.f32 %v3660, %v3669
      %v3673 = vadd.f32 %v3661, %v3669
      %v3674 = vadd.f32 %v3662, %v3669
      %v3675 = vadd.f32 %v3663, %v3669
      %v3676 = vadd.f32 %v3664, %v3669
      %v3677 = vadd.f32 %v3665, %v3669
      %v3678 = vadd.f32 %v3666, %v3669
      %vm3679 = vcmp.gt.f32.partialorder %v3671, 0.0
      %vm3680 = vcmp.gt.f32.partialorder %v3672, 0.0
      %vm3681 = vcmp.gt.f32.partialorder %v3673, 0.0
      %vm3682 = vcmp.gt.f32.partialorder %v3674, 0.0
      %vm3683 = vcmp.gt.f32.partialorder %v3675, 0.0
      %vm3684 = vcmp.gt.f32.partialorder %v3676, 0.0
      %vm3685 = vcmp.gt.f32.partialorder %v3677, 0.0
      %vm3686 = vcmp.gt.f32.partialorder %v3678, 0.0
      %v3687 = vmul.f32 %v3671, 0.01
      %v3688 = vmul.f32 %v3672, 0.01
      %v3689 = vmul.f32 %v3673, 0.01
      %v3690 = vmul.f32 %v3674, 0.01
      %v3691 = vmul.f32 %v3675, 0.01
      %v3692 = vmul.f32 %v3676, 0.01
      %v3693 = vmul.f32 %v3677, 0.01
      %v3694 = vmul.f32 %v3678, 0.01
      %v3695 = vsel %vm3679, %v3671, %v3687
      %v3696 = vsel %vm3680, %v3672, %v3688
      %v3697 = vsel %vm3681, %v3673, %v3689
      %v3698 = vsel %vm3682, %v3674, %v3690
      %v3699 = vsel %vm3683, %v3675, %v3691
      %v3700 = vsel %vm3684, %v3676, %v3692
      %v3701 = vsel %vm3685, %v3677, %v3693
      %v3702 = vsel %vm3686, %v3678, %v3694
      %3703 = vst.msk [vmem:[%s1297 + $0x1] sm:$0xff] %vm469, %v3695
      %3704 = vst.msk [vmem:[%s1297 + $0x11] sm:$0xff] %vm469, %v3696
      %3705 = vst.msk [vmem:[%s1297 + $0x21] sm:$0xff] %vm469, %v3697
      %3706 = vst.msk [vmem:[%s1297 + $0x31] sm:$0xff] %vm469, %v3698
      %3707 = vst.msk [vmem:[%s1297 + $0x41] sm:$0xff] %vm469, %v3699
      %3708 = vst.msk [vmem:[%s1297 + $0x51] sm:$0xff] %vm469, %v3700
      %3709 = vst.msk [vmem:[%s1297 + $0x61] sm:$0xff] %vm469, %v3701
      %3710 = vst.msk [vmem:[%s1297 + $0x71] sm:$0xff] %vm469, %v3702
      %v3711 = vld [vmem:[#allocation2] sm:$0xff]
      %v3712 = vld [vmem:[#allocation2 + $0x10] sm:$0xff]
      %v3713 = vld [vmem:[#allocation2 + $0x20] sm:$0xff]
      %v3714 = vld [vmem:[#allocation2 + $0x30] sm:$0xff]
      %v3715 = vld [vmem:[#allocation2 + $0x40] sm:$0xff]
      %v3716 = vld [vmem:[#allocation2 + $0x50] sm:$0xff]
      %v3717 = vld [vmem:[#allocation2 + $0x60] sm:$0xff]
      %v3718 = vld [vmem:[#allocation2 + $0x70] sm:$0xff]
      %v3719 = vpack.c.bf16 %v3712, %v3711
      %v3720 = vpack.c.bf16 %v3714, %v3713
      %v3721 = vpack.c.bf16 %v3716, %v3715
      %v3722 = vpack.c.bf16 %v3718, %v3717
      %v3723 = vld [vmem:[%s13] sm:$0xf]
      %v3725 = vsel %vm469, %v3719, 0
      %v3728 = vsel %vm469, %v3720, 0
      %v3731 = vsel %vm469, %v3721, 0
      %v3734 = vsel %vm469, %v3722, 0
      %v3737 = vsel %vm1331, %v3723, 0
      %3739 = vmatpush.bf16.msra.mxu0 0
      %3740 = vmatpush.bf16.msra.mxu0 0
      %3741 = vmatpush.bf16.msra.mxu0 0
      %3742 = vmatpush.bf16.msra.mxu0 0
      %3743 = vmatpush.bf16.msra.mxu0 0
      %3744 = vmatpush.bf16.msra.mxu0 0
      %3745 = vmatpush.bf16.msra.mxu0 0
      %3746 = vmatpush.bf16.msra.mxu0 %v3737
      %3747 = vmatmul.bf16.gmra.mxu0 %v3725
      %v3748 = vpop.f32.mrf.mxu0
      %v3749 = vadd.f32 0.0, %v3748
      %v3750 = vpop.f32.mrf.mxu0
      %v3751 = vadd.f32 0.0, %v3750
      %3752 = vmatmul.bf16.gmra.mxu0 %v3728
      %v3753 = vpop.f32.mrf.mxu0
      %v3754 = vadd.f32 0.0, %v3753
      %v3755 = vpop.f32.mrf.mxu0
      %v3756 = vadd.f32 0.0, %v3755
      %3757 = vmatmul.bf16.gmra.mxu0 %v3731
      %v3758 = vpop.f32.mrf.mxu0
      %v3759 = vadd.f32 0.0, %v3758
      %v3760 = vpop.f32.mrf.mxu0
      %v3761 = vadd.f32 0.0, %v3760
      %3762 = vmatmul.bf16.gmra.mxu0 %v3734
      %v3763 = vpop.f32.mrf.mxu0
      %v3764 = vadd.f32 0.0, %v3763
      %v3765 = vpop.f32.mrf.mxu0
      %v3766 = vadd.f32 0.0, %v3765
      %3767 = vdwg.mxu0
      %3768 = vst.msk [vmem:[#allocation3] sm:$0xff] %vm469, %v3749
      %3769 = vst.msk [vmem:[#allocation3 + $0x8] sm:$0xff] %vm469, %v3751
      %3770 = vst.msk [vmem:[#allocation3 + $0x10] sm:$0xff] %vm469, %v3754
      %3771 = vst.msk [vmem:[#allocation3 + $0x18] sm:$0xff] %vm469, %v3756
      %3772 = vst.msk [vmem:[#allocation3 + $0x20] sm:$0xff] %vm469, %v3759
      %3773 = vst.msk [vmem:[#allocation3 + $0x28] sm:$0xff] %vm469, %v3761
      %3774 = vst.msk [vmem:[#allocation3 + $0x30] sm:$0xff] %vm469, %v3764
      %3775 = vst.msk [vmem:[#allocation3 + $0x38] sm:$0xff] %vm469, %v3766
      %v3776 = vld [vmem:[#allocation2 + $0x1] sm:$0xff]
      %v3777 = vld [vmem:[#allocation2 + $0x11] sm:$0xff]
      %v3778 = vld [vmem:[#allocation2 + $0x21] sm:$0xff]
      %v3779 = vld [vmem:[#allocation2 + $0x31] sm:$0xff]
      %v3780 = vld [vmem:[#allocation2 + $0x41] sm:$0xff]
      %v3781 = vld [vmem:[#allocation2 + $0x51] sm:$0xff]
      %v3782 = vld [vmem:[#allocation2 + $0x61] sm:$0xff]
      %v3783 = vld [vmem:[#allocation2 + $0x71] sm:$0xff]
      %v3784 = vpack.c.bf16 %v3777, %v3776
      %v3785 = vpack.c.bf16 %v3779, %v3778
      %v3786 = vpack.c.bf16 %v3781, %v3780
      %v3787 = vpack.c.bf16 %v3783, %v3782
      %s3788 = scalar_lea.vmem %s13, 4
      %v3789 = vld [vmem:[%s3788] sm:$0xf]
      %v3791 = vsel %vm469, %v3784, 0
      %v3794 = vsel %vm469, %v3785, 0
      %v3797 = vsel %vm469, %v3786, 0
      %v3800 = vsel %vm469, %v3787, 0
      %v3803 = vsel %vm1331, %v3789, 0
      %3805 = vmatpush.bf16.msra.mxu0 0
      %3806 = vmatpush.bf16.msra.mxu0 0
      %3807 = vmatpush.bf16.msra.mxu0 0
      %3808 = vmatpush.bf16.msra.mxu0 0
      %3809 = vmatpush.bf16.msra.mxu0 0
      %3810 = vmatpush.bf16.msra.mxu0 0
      %3811 = vmatpush.bf16.msra.mxu0 0
      %3812 = vmatpush.bf16.msra.mxu0 %v3803
      %3813 = vmatmul.bf16.gmra.mxu0 %v3791
      %v3814 = vpop.f32.mrf.mxu0
      %v3815 = vadd.f32 0.0, %v3814
      %v3816 = vpop.f32.mrf.mxu0
      %v3817 = vadd.f32 0.0, %v3816
      %3818 = vmatmul.bf16.gmra.mxu0 %v3794
      %v3819 = vpop.f32.mrf.mxu0
      %v3820 = vadd.f32 0.0, %v3819
      %v3821 = vpop.f32.mrf.mxu0
      %v3822 = vadd.f32 0.0, %v3821
      %3823 = vmatmul.bf16.gmra.mxu0 %v3797
      %v3824 = vpop.f32.mrf.mxu0
      %v3825 = vadd.f32 0.0, %v3824
      %v3826 = vpop.f32.mrf.mxu0
      %v3827 = vadd.f32 0.0, %v3826
      %3828 = vmatmul.bf16.gmra.mxu0 %v3800
      %v3829 = vpop.f32.mrf.mxu0
      %v3830 = vadd.f32 0.0, %v3829
      %v3831 = vpop.f32.mrf.mxu0
      %v3832 = vadd.f32 0.0, %v3831
      %3833 = vdwg.mxu0
      %v3834 = vld [vmem:[#allocation3] sm:$0xff]
      %v3835 = vld [vmem:[#allocation3 + $0x8] sm:$0xff]
      %v3836 = vld [vmem:[#allocation3 + $0x10] sm:$0xff]
      %v3837 = vld [vmem:[#allocation3 + $0x18] sm:$0xff]
      %v3838 = vld [vmem:[#allocation3 + $0x20] sm:$0xff]
      %v3839 = vld [vmem:[#allocation3 + $0x28] sm:$0xff]
      %v3840 = vld [vmem:[#allocation3 + $0x30] sm:$0xff]
      %v3841 = vld [vmem:[#allocation3 + $0x38] sm:$0xff]
      %v3842 = vadd.f32 %v3834, %v3815
      %v3843 = vadd.f32 %v3835, %v3817
      %v3844 = vadd.f32 %v3836, %v3820
      %v3845 = vadd.f32 %v3837, %v3822
      %v3846 = vadd.f32 %v3838, %v3825
      %v3847 = vadd.f32 %v3839, %v3827
      %v3848 = vadd.f32 %v3840, %v3830
      %v3849 = vadd.f32 %v3841, %v3832
      %3850 = vst.msk [vmem:[#allocation3] sm:$0xff] %vm469, %v3842
      %3851 = vst.msk [vmem:[#allocation3 + $0x8] sm:$0xff] %vm469, %v3843
      %3852 = vst.msk [vmem:[#allocation3 + $0x10] sm:$0xff] %vm469, %v3844
      %3853 = vst.msk [vmem:[#allocation3 + $0x18] sm:$0xff] %vm469, %v3845
      %3854 = vst.msk [vmem:[#allocation3 + $0x20] sm:$0xff] %vm469, %v3846
      %3855 = vst.msk [vmem:[#allocation3 + $0x28] sm:$0xff] %vm469, %v3847
      %3856 = vst.msk [vmem:[#allocation3 + $0x30] sm:$0xff] %vm469, %v3848
      %3857 = vst.msk [vmem:[#allocation3 + $0x38] sm:$0xff] %vm469, %v3849
      %v3858 = vld [vmem:[#allocation2 + $0x2] sm:$0xff]
      %v3859 = vld [vmem:[#allocation2 + $0x12] sm:$0xff]
      %v3860 = vld [vmem:[#allocation2 + $0x22] sm:$0xff]
      %v3861 = vld [vmem:[#allocation2 + $0x32] sm:$0xff]
      %v3862 = vld [vmem:[#allocation2 + $0x42] sm:$0xff]
      %v3863 = vld [vmem:[#allocation2 + $0x52] sm:$0xff]
      %v3864 = vld [vmem:[#allocation2 + $0x62] sm:$0xff]
      %v3865 = vld [vmem:[#allocation2 + $0x72] sm:$0xff]
      %v3866 = vpack.c.bf16 %v3859, %v3858
      %v3867 = vpack.c.bf16 %v3861, %v3860
      %v3868 = vpack.c.bf16 %v3863, %v3862
      %v3869 = vpack.c.bf16 %v3865, %v3864
      %s3870 = scalar_lea.vmem %s13, 8
      %v3871 = vld [vmem:[%s3870] sm:$0xf]
      %v3873 = vsel %vm469, %v3866, 0
      %v3876 = vsel %vm469, %v3867, 0
      %v3879 = vsel %vm469, %v3868, 0
      %v3882 = vsel %vm469, %v3869, 0
      %v3885 = vsel %vm1331, %v3871, 0
      %3887 = vmatpush.bf16.msra.mxu0 0
      %3888 = vmatpush.bf16.msra.mxu0 0
      %3889 = vmatpush.bf16.msra.mxu0 0
      %3890 = vmatpush.bf16.msra.mxu0 0
      %3891 = vmatpush.bf16.msra.mxu0 0
      %3892 = vmatpush.bf16.msra.mxu0 0
      %3893 = vmatpush.bf16.msra.mxu0 0
      %3894 = vmatpush.bf16.msra.mxu0 %v3885
      %3895 = vmatmul.bf16.gmra.mxu0 %v3873
      %v3896 = vpop.f32.mrf.mxu0
      %v3897 = vadd.f32 0.0, %v3896
      %v3898 = vpop.f32.mrf.mxu0
      %v3899 = vadd.f32 0.0, %v3898
      %3900 = vmatmul.bf16.gmra.mxu0 %v3876
      %v3901 = vpop.f32.mrf.mxu0
      %v3902 = vadd.f32 0.0, %v3901
      %v3903 = vpop.f32.mrf.mxu0
      %v3904 = vadd.f32 0.0, %v3903
      %3905 = vmatmul.bf16.gmra.mxu0 %v3879
      %v3906 = vpop.f32.mrf.mxu0
      %v3907 = vadd.f32 0.0, %v3906
      %v3908 = vpop.f32.mrf.mxu0
      %v3909 = vadd.f32 0.0, %v3908
      %3910 = vmatmul.bf16.gmra.mxu0 %v3882
      %v3911 = vpop.f32.mrf.mxu0
      %v3912 = vadd.f32 0.0, %v3911
      %v3913 = vpop.f32.mrf.mxu0
      %v3914 = vadd.f32 0.0, %v3913
      %3915 = vdwg.mxu0
      %v3916 = vld [vmem:[#allocation3] sm:$0xff]
      %v3917 = vld [vmem:[#allocation3 + $0x8] sm:$0xff]
      %v3918 = vld [vmem:[#allocation3 + $0x10] sm:$0xff]
      %v3919 = vld [vmem:[#allocation3 + $0x18] sm:$0xff]
      %v3920 = vld [vmem:[#allocation3 + $0x20] sm:$0xff]
      %v3921 = vld [vmem:[#allocation3 + $0x28] sm:$0xff]
      %v3922 = vld [vmem:[#allocation3 + $0x30] sm:$0xff]
      %v3923 = vld [vmem:[#allocation3 + $0x38] sm:$0xff]
      %v3924 = vadd.f32 %v3916, %v3897
      %v3925 = vadd.f32 %v3917, %v3899
      %v3926 = vadd.f32 %v3918, %v3902
      %v3927 = vadd.f32 %v3919, %v3904
      %v3928 = vadd.f32 %v3920, %v3907
      %v3929 = vadd.f32 %v3921, %v3909
      %v3930 = vadd.f32 %v3922, %v3912
      %v3931 = vadd.f32 %v3923, %v3914
      %3932 = vst.msk [vmem:[#allocation3] sm:$0xff] %vm469, %v3924
      %3933 = vst.msk [vmem:[#allocation3 + $0x8] sm:$0xff] %vm469, %v3925
      %3934 = vst.msk [vmem:[#allocation3 + $0x10] sm:$0xff] %vm469, %v3926
      %3935 = vst.msk [vmem:[#allocation3 + $0x18] sm:$0xff] %vm469, %v3927
      %3936 = vst.msk [vmem:[#allocation3 + $0x20] sm:$0xff] %vm469, %v3928
      %3937 = vst.msk [vmem:[#allocation3 + $0x28] sm:$0xff] %vm469, %v3929
      %3938 = vst.msk [vmem:[#allocation3 + $0x30] sm:$0xff] %vm469, %v3930
      %3939 = vst.msk [vmem:[#allocation3 + $0x38] sm:$0xff] %vm469, %v3931
      %v3940 = vld [vmem:[%s1297] sm:$0xff]
      %v3941 = vld [vmem:[%s1297 + $0x10] sm:$0xff]
      %v3942 = vld [vmem:[%s1297 + $0x20] sm:$0xff]
      %v3943 = vld [vmem:[%s1297 + $0x30] sm:$0xff]
      %v3944 = vld [vmem:[%s1297 + $0x40] sm:$0xff]
      %v3945 = vld [vmem:[%s1297 + $0x50] sm:$0xff]
      %v3946 = vld [vmem:[%s1297 + $0x60] sm:$0xff]
      %v3947 = vld [vmem:[%s1297 + $0x70] sm:$0xff]
      %v3948 = vpack.c.bf16 %v3941, %v3940
      %v3949 = vpack.c.bf16 %v3943, %v3942
      %v3950 = vpack.c.bf16 %v3945, %v3944
      %v3951 = vpack.c.bf16 %v3947, %v3946
      %s3952 = scalar_lea.vmem %s13, 12
      %v3953 = vld [vmem:[%s3952] sm:$0xf]
      %v3955 = vsel %vm469, %v3948, 0
      %v3958 = vsel %vm469, %v3949, 0
      %v3961 = vsel %vm469, %v3950, 0
      %v3964 = vsel %vm469, %v3951, 0
      %v3967 = vsel %vm1331, %v3953, 0
      %3969 = vmatpush.bf16.msra.mxu0 0
      %3970 = vmatpush.bf16.msra.mxu0 0
      %3971 = vmatpush.bf16.msra.mxu0 0
      %3972 = vmatpush.bf16.msra.mxu0 0
      %3973 = vmatpush.bf16.msra.mxu0 0
      %3974 = vmatpush.bf16.msra.mxu0 0
      %3975 = vmatpush.bf16.msra.mxu0 0
      %3976 = vmatpush.bf16.msra.mxu0 %v3967
      %3977 = vmatmul.bf16.gmra.mxu0 %v3955
      %v3978 = vpop.f32.mrf.mxu0
      %v3979 = vadd.f32 0.0, %v3978
      %v3980 = vpop.f32.mrf.mxu0
      %v3981 = vadd.f32 0.0, %v3980
      %3982 = vmatmul.bf16.gmra.mxu0 %v3958
      %v3983 = vpop.f32.mrf.mxu0
      %v3984 = vadd.f32 0.0, %v3983
      %v3985 = vpop.f32.mrf.mxu0
      %v3986 = vadd.f32 0.0, %v3985
      %3987 = vmatmul.bf16.gmra.mxu0 %v3961
      %v3988 = vpop.f32.mrf.mxu0
      %v3989 = vadd.f32 0.0, %v3988
      %v3990 = vpop.f32.mrf.mxu0
      %v3991 = vadd.f32 0.0, %v3990
      %3992 = vmatmul.bf16.gmra.mxu0 %v3964
      %v3993 = vpop.f32.mrf.mxu0
      %v3994 = vadd.f32 0.0, %v3993
      %v3995 = vpop.f32.mrf.mxu0
      %v3996 = vadd.f32 0.0, %v3995
      %3997 = vdwg.mxu0
      %v3998 = vld [vmem:[#allocation3] sm:$0xff]
      %v3999 = vld [vmem:[#allocation3 + $0x8] sm:$0xff]
      %v4000 = vld [vmem:[#allocation3 + $0x10] sm:$0xff]
      %v4001 = vld [vmem:[#allocation3 + $0x18] sm:$0xff]
      %v4002 = vld [vmem:[#allocation3 + $0x20] sm:$0xff]
      %v4003 = vld [vmem:[#allocation3 + $0x28] sm:$0xff]
      %v4004 = vld [vmem:[#allocation3 + $0x30] sm:$0xff]
      %v4005 = vld [vmem:[#allocation3 + $0x38] sm:$0xff]
      %v4006 = vadd.f32 %v3998, %v3979
      %v4007 = vadd.f32 %v3999, %v3981
      %v4008 = vadd.f32 %v4000, %v3984
      %v4009 = vadd.f32 %v4001, %v3986
      %v4010 = vadd.f32 %v4002, %v3989
      %v4011 = vadd.f32 %v4003, %v3991
      %v4012 = vadd.f32 %v4004, %v3994
      %v4013 = vadd.f32 %v4005, %v3996
      %4014 = vst.msk [vmem:[#allocation3] sm:$0xff] %vm469, %v4006
      %4015 = vst.msk [vmem:[#allocation3 + $0x8] sm:$0xff] %vm469, %v4007
      %4016 = vst.msk [vmem:[#allocation3 + $0x10] sm:$0xff] %vm469, %v4008
      %4017 = vst.msk [vmem:[#allocation3 + $0x18] sm:$0xff] %vm469, %v4009
      %4018 = vst.msk [vmem:[#allocation3 + $0x20] sm:$0xff] %vm469, %v4010
      %4019 = vst.msk [vmem:[#allocation3 + $0x28] sm:$0xff] %vm469, %v4011
      %4020 = vst.msk [vmem:[#allocation3 + $0x30] sm:$0xff] %vm469, %v4012
      %4021 = vst.msk [vmem:[#allocation3 + $0x38] sm:$0xff] %vm469, %v4013
      %v4022 = vld [vmem:[%s1297 + $0x1] sm:$0xff]
      %v4023 = vld [vmem:[%s1297 + $0x11] sm:$0xff]
      %v4024 = vld [vmem:[%s1297 + $0x21] sm:$0xff]
      %v4025 = vld [vmem:[%s1297 + $0x31] sm:$0xff]
      %v4026 = vld [vmem:[%s1297 + $0x41] sm:$0xff]
      %v4027 = vld [vmem:[%s1297 + $0x51] sm:$0xff]
      %v4028 = vld [vmem:[%s1297 + $0x61] sm:$0xff]
      %v4029 = vld [vmem:[%s1297 + $0x71] sm:$0xff]
      %v4030 = vpack.c.bf16 %v4023, %v4022
      %v4031 = vpack.c.bf16 %v4025, %v4024
      %v4032 = vpack.c.bf16 %v4027, %v4026
      %v4033 = vpack.c.bf16 %v4029, %v4028
      %s4034 = scalar_lea.vmem %s13, 16
      %v4035 = vld [vmem:[%s4034] sm:$0xf]
      %v4037 = vsel %vm469, %v4030, 0
      %v4040 = vsel %vm469, %v4031, 0
      %v4043 = vsel %vm469, %v4032, 0
      %v4046 = vsel %vm469, %v4033, 0
      %v4049 = vsel %vm1331, %v4035, 0
      %4051 = vmatpush.bf16.msra.mxu0 0
      %4052 = vmatpush.bf16.msra.mxu0 0
      %4053 = vmatpush.bf16.msra.mxu0 0
      %4054 = vmatpush.bf16.msra.mxu0 0
      %4055 = vmatpush.bf16.msra.mxu0 0
      %4056 = vmatpush.bf16.msra.mxu0 0
      %4057 = vmatpush.bf16.msra.mxu0 0
      %4058 = vmatpush.bf16.msra.mxu0 %v4049
      %4059 = vmatmul.bf16.gmra.mxu0 %v4037
      %v4060 = vpop.f32.mrf.mxu0
      %v4061 = vadd.f32 0.0, %v4060
      %v4062 = vpop.f32.mrf.mxu0
      %v4063 = vadd.f32 0.0, %v4062
      %4064 = vmatmul.bf16.gmra.mxu0 %v4040
      %v4065 = vpop.f32.mrf.mxu0
      %v4066 = vadd.f32 0.0, %v4065
      %v4067 = vpop.f32.mrf.mxu0
      %v4068 = vadd.f32 0.0, %v4067
      %4069 = vmatmul.bf16.gmra.mxu0 %v4043
      %v4070 = vpop.f32.mrf.mxu0
      %v4071 = vadd.f32 0.0, %v4070
      %v4072 = vpop.f32.mrf.mxu0
      %v4073 = vadd.f32 0.0, %v4072
      %4074 = vmatmul.bf16.gmra.mxu0 %v4046
      %v4075 = vpop.f32.mrf.mxu0
      %v4076 = vadd.f32 0.0, %v4075
      %v4077 = vpop.f32.mrf.mxu0
      %v4078 = vadd.f32 0.0, %v4077
      %4079 = vdwg.mxu0
      %v4080 = vld [vmem:[#allocation3] sm:$0xff]
      %v4081 = vld [vmem:[#allocation3 + $0x8] sm:$0xff]
      %v4082 = vld [vmem:[#allocation3 + $0x10] sm:$0xff]
      %v4083 = vld [vmem:[#allocation3 + $0x18] sm:$0xff]
      %v4084 = vld [vmem:[#allocation3 + $0x20] sm:$0xff]
      %v4085 = vld [vmem:[#allocation3 + $0x28] sm:$0xff]
      %v4086 = vld [vmem:[#allocation3 + $0x30] sm:$0xff]
      %v4087 = vld [vmem:[#allocation3 + $0x38] sm:$0xff]
      %v4088 = vadd.f32 %v4080, %v4061
      %v4089 = vadd.f32 %v4081, %v4063
      %v4090 = vadd.f32 %v4082, %v4066
      %v4091 = vadd.f32 %v4083, %v4068
      %v4092 = vadd.f32 %v4084, %v4071
      %v4093 = vadd.f32 %v4085, %v4073
      %v4094 = vadd.f32 %v4086, %v4076
      %v4095 = vadd.f32 %v4087, %v4078
      %4096 = vst.msk [vmem:[#allocation3] sm:$0xff] %vm469, %v4088
      %4097 = vst.msk [vmem:[#allocation3 + $0x8] sm:$0xff] %vm469, %v4089
      %4098 = vst.msk [vmem:[#allocation3 + $0x10] sm:$0xff] %vm469, %v4090
      %4099 = vst.msk [vmem:[#allocation3 + $0x18] sm:$0xff] %vm469, %v4091
      %4100 = vst.msk [vmem:[#allocation3 + $0x20] sm:$0xff] %vm469, %v4092
      %4101 = vst.msk [vmem:[#allocation3 + $0x28] sm:$0xff] %vm469, %v4093
      %4102 = vst.msk [vmem:[#allocation3 + $0x30] sm:$0xff] %vm469, %v4094
      %4103 = vst.msk [vmem:[#allocation3 + $0x38] sm:$0xff] %vm469, %v4095
      %v4104 = vld [vmem:[%s1297 + $0x2] sm:$0xff]
      %v4105 = vld [vmem:[%s1297 + $0x12] sm:$0xff]
      %v4106 = vld [vmem:[%s1297 + $0x22] sm:$0xff]
      %v4107 = vld [vmem:[%s1297 + $0x32] sm:$0xff]
      %v4108 = vld [vmem:[%s1297 + $0x42] sm:$0xff]
      %v4109 = vld [vmem:[%s1297 + $0x52] sm:$0xff]
      %v4110 = vld [vmem:[%s1297 + $0x62] sm:$0xff]
      %v4111 = vld [vmem:[%s1297 + $0x72] sm:$0xff]
      %v4112 = vpack.c.bf16 %v4105, %v4104
      %v4113 = vpack.c.bf16 %v4107, %v4106
      %v4114 = vpack.c.bf16 %v4109, %v4108
      %v4115 = vpack.c.bf16 %v4111, %v4110
      %s4116 = scalar_lea.vmem %s13, 20
      %v4117 = vld [vmem:[%s4116] sm:$0xf]
      %v4119 = vsel %vm469, %v4112, 0
      %v4122 = vsel %vm469, %v4113, 0
      %v4125 = vsel %vm469, %v4114, 0
      %v4128 = vsel %vm469, %v4115, 0
      %v4131 = vsel %vm1331, %v4117, 0
      %4133 = vmatpush.bf16.msra.mxu0 0
      %4134 = vmatpush.bf16.msra.mxu0 0
      %4135 = vmatpush.bf16.msra.mxu0 0
      %4136 = vmatpush.bf16.msra.mxu0 0
      %4137 = vmatpush.bf16.msra.mxu0 0
      %4138 = vmatpush.bf16.msra.mxu0 0
      %4139 = vmatpush.bf16.msra.mxu0 0
      %4140 = vmatpush.bf16.msra.mxu0 %v4131
      %4141 = vmatmul.bf16.gmra.mxu0 %v4119
      %v4142 = vpop.f32.mrf.mxu0
      %v4143 = vadd.f32 0.0, %v4142
      %v4144 = vpop.f32.mrf.mxu0
      %v4145 = vadd.f32 0.0, %v4144
      %4146 = vmatmul.bf16.gmra.mxu0 %v4122
      %v4147 = vpop.f32.mrf.mxu0
      %v4148 = vadd.f32 0.0, %v4147
      %v4149 = vpop.f32.mrf.mxu0
      %v4150 = vadd.f32 0.0, %v4149
      %4151 = vmatmul.bf16.gmra.mxu0 %v4125
      %v4152 = vpop.f32.mrf.mxu0
      %v4153 = vadd.f32 0.0, %v4152
      %v4154 = vpop.f32.mrf.mxu0
      %v4155 = vadd.f32 0.0, %v4154
      %4156 = vmatmul.bf16.gmra.mxu0 %v4128
      %v4157 = vpop.f32.mrf.mxu0
      %v4158 = vadd.f32 0.0, %v4157
      %v4159 = vpop.f32.mrf.mxu0
      %v4160 = vadd.f32 0.0, %v4159
      %4161 = vdwg.mxu0
      %v4162 = vld [vmem:[#allocation3] sm:$0xff]
      %v4163 = vld [vmem:[#allocation3 + $0x8] sm:$0xff]
      %v4164 = vld [vmem:[#allocation3 + $0x10] sm:$0xff]
      %v4165 = vld [vmem:[#allocation3 + $0x18] sm:$0xff]
      %v4166 = vld [vmem:[#allocation3 + $0x20] sm:$0xff]
      %v4167 = vld [vmem:[#allocation3 + $0x28] sm:$0xff]
      %v4168 = vld [vmem:[#allocation3 + $0x30] sm:$0xff]
      %v4169 = vld [vmem:[#allocation3 + $0x38] sm:$0xff]
      %v4170 = vadd.f32 %v4162, %v4143
      %v4171 = vadd.f32 %v4163, %v4145
      %v4172 = vadd.f32 %v4164, %v4148
      %v4173 = vadd.f32 %v4165, %v4150
      %v4174 = vadd.f32 %v4166, %v4153
      %v4175 = vadd.f32 %v4167, %v4155
      %v4176 = vadd.f32 %v4168, %v4158
      %v4177 = vadd.f32 %v4169, %v4160
      %4178 = vst.msk [vmem:[#allocation3] sm:$0xff] %vm469, %v4170
      %4179 = vst.msk [vmem:[#allocation3 + $0x8] sm:$0xff] %vm469, %v4171
      %4180 = vst.msk [vmem:[#allocation3 + $0x10] sm:$0xff] %vm469, %v4172
      %4181 = vst.msk [vmem:[#allocation3 + $0x18] sm:$0xff] %vm469, %v4173
      %4182 = vst.msk [vmem:[#allocation3 + $0x20] sm:$0xff] %vm469, %v4174
      %4183 = vst.msk [vmem:[#allocation3 + $0x28] sm:$0xff] %vm469, %v4175
      %4184 = vst.msk [vmem:[#allocation3 + $0x30] sm:$0xff] %vm469, %v4176
      %4185 = vst.msk [vmem:[#allocation3 + $0x38] sm:$0xff] %vm469, %v4177
      %v4186 = vld [vmem:[%s1782] sm:$0xff]
      %v4187 = vld [vmem:[%s1782 + $0x10] sm:$0xff]
      %v4188 = vld [vmem:[%s1782 + $0x20] sm:$0xff]
      %v4189 = vld [vmem:[%s1782 + $0x30] sm:$0xff]
      %v4190 = vld [vmem:[%s1782 + $0x40] sm:$0xff]
      %v4191 = vld [vmem:[%s1782 + $0x50] sm:$0xff]
      %v4192 = vld [vmem:[%s1782 + $0x60] sm:$0xff]
      %v4193 = vld [vmem:[%s1782 + $0x70] sm:$0xff]
      %v4194 = vpack.c.bf16 %v4187, %v4186
      %v4195 = vpack.c.bf16 %v4189, %v4188
      %v4196 = vpack.c.bf16 %v4191, %v4190
      %v4197 = vpack.c.bf16 %v4193, %v4192
      %s4198 = scalar_lea.vmem %s13, 24
      %v4199 = vld [vmem:[%s4198] sm:$0xf]
      %v4201 = vsel %vm469, %v4194, 0
      %v4204 = vsel %vm469, %v4195, 0
      %v4207 = vsel %vm469, %v4196, 0
      %v4210 = vsel %vm469, %v4197, 0
      %v4213 = vsel %vm1331, %v4199, 0
      %4215 = vmatpush.bf16.msra.mxu0 0
      %4216 = vmatpush.bf16.msra.mxu0 0
      %4217 = vmatpush.bf16.msra.mxu0 0
      %4218 = vmatpush.bf16.msra.mxu0 0
      %4219 = vmatpush.bf16.msra.mxu0 0
      %4220 = vmatpush.bf16.msra.mxu0 0
      %4221 = vmatpush.bf16.msra.mxu0 0
      %4222 = vmatpush.bf16.msra.mxu0 %v4213
      %4223 = vmatmul.bf16.gmra.mxu0 %v4201
      %v4224 = vpop.f32.mrf.mxu0
      %v4225 = vadd.f32 0.0, %v4224
      %v4226 = vpop.f32.mrf.mxu0
      %v4227 = vadd.f32 0.0, %v4226
      %4228 = vmatmul.bf16.gmra.mxu0 %v4204
      %v4229 = vpop.f32.mrf.mxu0
      %v4230 = vadd.f32 0.0, %v4229
      %v4231 = vpop.f32.mrf.mxu0
      %v4232 = vadd.f32 0.0, %v4231
      %4233 = vmatmul.bf16.gmra.mxu0 %v4207
      %v4234 = vpop.f32.mrf.mxu0
      %v4235 = vadd.f32 0.0, %v4234
      %v4236 = vpop.f32.mrf.mxu0
      %v4237 = vadd.f32 0.0, %v4236
      %4238 = vmatmul.bf16.gmra.mxu0 %v4210
      %v4239 = vpop.f32.mrf.mxu0
      %v4240 = vadd.f32 0.0, %v4239
      %v4241 = vpop.f32.mrf.mxu0
      %v4242 = vadd.f32 0.0, %v4241
      %4243 = vdwg.mxu0
      %v4244 = vld [vmem:[#allocation3] sm:$0xff]
      %v4245 = vld [vmem:[#allocation3 + $0x8] sm:$0xff]
      %v4246 = vld [vmem:[#allocation3 + $0x10] sm:$0xff]
      %v4247 = vld [vmem:[#allocation3 + $0x18] sm:$0xff]
      %v4248 = vld [vmem:[#allocation3 + $0x20] sm:$0xff]
      %v4249 = vld [vmem:[#allocation3 + $0x28] sm:$0xff]
      %v4250 = vld [vmem:[#allocation3 + $0x30] sm:$0xff]
      %v4251 = vld [vmem:[#allocation3 + $0x38] sm:$0xff]
      %v4252 = vadd.f32 %v4244, %v4225
      %v4253 = vadd.f32 %v4245, %v4227
      %v4254 = vadd.f32 %v4246, %v4230
      %v4255 = vadd.f32 %v4247, %v4232
      %v4256 = vadd.f32 %v4248, %v4235
      %v4257 = vadd.f32 %v4249, %v4237
      %v4258 = vadd.f32 %v4250, %v4240
      %v4259 = vadd.f32 %v4251, %v4242
      %4260 = vst.msk [vmem:[#allocation3] sm:$0xff] %vm469, %v4252
      %4261 = vst.msk [vmem:[#allocation3 + $0x8] sm:$0xff] %vm469, %v4253
      %4262 = vst.msk [vmem:[#allocation3 + $0x10] sm:$0xff] %vm469, %v4254
      %4263 = vst.msk [vmem:[#allocation3 + $0x18] sm:$0xff] %vm469, %v4255
      %4264 = vst.msk [vmem:[#allocation3 + $0x20] sm:$0xff] %vm469, %v4256
      %4265 = vst.msk [vmem:[#allocation3 + $0x28] sm:$0xff] %vm469, %v4257
      %4266 = vst.msk [vmem:[#allocation3 + $0x30] sm:$0xff] %vm469, %v4258
      %4267 = vst.msk [vmem:[#allocation3 + $0x38] sm:$0xff] %vm469, %v4259
      %v4268 = vld [vmem:[%s1782 + $0x1] sm:$0xff]
      %v4269 = vld [vmem:[%s1782 + $0x11] sm:$0xff]
      %v4270 = vld [vmem:[%s1782 + $0x21] sm:$0xff]
      %v4271 = vld [vmem:[%s1782 + $0x31] sm:$0xff]
      %v4272 = vld [vmem:[%s1782 + $0x41] sm:$0xff]
      %v4273 = vld [vmem:[%s1782 + $0x51] sm:$0xff]
      %v4274 = vld [vmem:[%s1782 + $0x61] sm:$0xff]
      %v4275 = vld [vmem:[%s1782 + $0x71] sm:$0xff]
      %v4276 = vpack.c.bf16 %v4269, %v4268
      %v4277 = vpack.c.bf16 %v4271, %v4270
      %v4278 = vpack.c.bf16 %v4273, %v4272
      %v4279 = vpack.c.bf16 %v4275, %v4274
      %s4280 = scalar_lea.vmem %s13, 28
      %v4281 = vld [vmem:[%s4280] sm:$0xf]
      %v4283 = vsel %vm469, %v4276, 0
      %v4286 = vsel %vm469, %v4277, 0
      %v4289 = vsel %vm469, %v4278, 0
      %v4292 = vsel %vm469, %v4279, 0
      %v4295 = vsel %vm1331, %v4281, 0
      %4297 = vmatpush.bf16.msra.mxu0 0
      %4298 = vmatpush.bf16.msra.mxu0 0
      %4299 = vmatpush.bf16.msra.mxu0 0
      %4300 = vmatpush.bf16.msra.mxu0 0
      %4301 = vmatpush.bf16.msra.mxu0 0
      %4302 = vmatpush.bf16.msra.mxu0 0
      %4303 = vmatpush.bf16.msra.mxu0 0
      %4304 = vmatpush.bf16.msra.mxu0 %v4295
      %4305 = vmatmul.bf16.gmra.mxu0 %v4283
      %v4306 = vpop.f32.mrf.mxu0
      %v4307 = vadd.f32 0.0, %v4306
      %v4308 = vpop.f32.mrf.mxu0
      %v4309 = vadd.f32 0.0, %v4308
      %4310 = vmatmul.bf16.gmra.mxu0 %v4286
      %v4311 = vpop.f32.mrf.mxu0
      %v4312 = vadd.f32 0.0, %v4311
      %v4313 = vpop.f32.mrf.mxu0
      %v4314 = vadd.f32 0.0, %v4313
      %4315 = vmatmul.bf16.gmra.mxu0 %v4289
      %v4316 = vpop.f32.mrf.mxu0
      %v4317 = vadd.f32 0.0, %v4316
      %v4318 = vpop.f32.mrf.mxu0
      %v4319 = vadd.f32 0.0, %v4318
      %4320 = vmatmul.bf16.gmra.mxu0 %v4292
      %v4321 = vpop.f32.mrf.mxu0
      %v4322 = vadd.f32 0.0, %v4321
      %v4323 = vpop.f32.mrf.mxu0
      %v4324 = vadd.f32 0.0, %v4323
      %4325 = vdwg.mxu0
      %v4326 = vld [vmem:[#allocation3] sm:$0xff]
      %v4327 = vld [vmem:[#allocation3 + $0x8] sm:$0xff]
      %v4328 = vld [vmem:[#allocation3 + $0x10] sm:$0xff]
      %v4329 = vld [vmem:[#allocation3 + $0x18] sm:$0xff]
      %v4330 = vld [vmem:[#allocation3 + $0x20] sm:$0xff]
      %v4331 = vld [vmem:[#allocation3 + $0x28] sm:$0xff]
      %v4332 = vld [vmem:[#allocation3 + $0x30] sm:$0xff]
      %v4333 = vld [vmem:[#allocation3 + $0x38] sm:$0xff]
      %v4334 = vadd.f32 %v4326, %v4307
      %v4335 = vadd.f32 %v4327, %v4309
      %v4336 = vadd.f32 %v4328, %v4312
      %v4337 = vadd.f32 %v4329, %v4314
      %v4338 = vadd.f32 %v4330, %v4317
      %v4339 = vadd.f32 %v4331, %v4319
      %v4340 = vadd.f32 %v4332, %v4322
      %v4341 = vadd.f32 %v4333, %v4324
      %4342 = vst.msk [vmem:[#allocation3] sm:$0xff] %vm469, %v4334
      %4343 = vst.msk [vmem:[#allocation3 + $0x8] sm:$0xff] %vm469, %v4335
      %4344 = vst.msk [vmem:[#allocation3 + $0x10] sm:$0xff] %vm469, %v4336
      %4345 = vst.msk [vmem:[#allocation3 + $0x18] sm:$0xff] %vm469, %v4337
      %4346 = vst.msk [vmem:[#allocation3 + $0x20] sm:$0xff] %vm469, %v4338
      %4347 = vst.msk [vmem:[#allocation3 + $0x28] sm:$0xff] %vm469, %v4339
      %4348 = vst.msk [vmem:[#allocation3 + $0x30] sm:$0xff] %vm469, %v4340
      %4349 = vst.msk [vmem:[#allocation3 + $0x38] sm:$0xff] %vm469, %v4341
      %v4350 = vld [vmem:[%s1782 + $0x2] sm:$0xff]
      %v4351 = vld [vmem:[%s1782 + $0x12] sm:$0xff]
      %v4352 = vld [vmem:[%s1782 + $0x22] sm:$0xff]
      %v4353 = vld [vmem:[%s1782 + $0x32] sm:$0xff]
      %v4354 = vld [vmem:[%s1782 + $0x42] sm:$0xff]
      %v4355 = vld [vmem:[%s1782 + $0x52] sm:$0xff]
      %v4356 = vld [vmem:[%s1782 + $0x62] sm:$0xff]
      %v4357 = vld [vmem:[%s1782 + $0x72] sm:$0xff]
      %v4358 = vpack.c.bf16 %v4351, %v4350
      %v4359 = vpack.c.bf16 %v4353, %v4352
      %v4360 = vpack.c.bf16 %v4355, %v4354
      %v4361 = vpack.c.bf16 %v4357, %v4356
      %s4362 = scalar_lea.vmem %s13, 32
      %v4363 = vld [vmem:[%s4362] sm:$0xf]
      %v4365 = vsel %vm469, %v4358, 0
      %v4368 = vsel %vm469, %v4359, 0
      %v4371 = vsel %vm469, %v4360, 0
      %v4374 = vsel %vm469, %v4361, 0
      %v4377 = vsel %vm1331, %v4363, 0
      %4379 = vmatpush.bf16.msra.mxu0 0
      %4380 = vmatpush.bf16.msra.mxu0 0
      %4381 = vmatpush.bf16.msra.mxu0 0
      %4382 = vmatpush.bf16.msra.mxu0 0
      %4383 = vmatpush.bf16.msra.mxu0 0
      %4384 = vmatpush.bf16.msra.mxu0 0
      %4385 = vmatpush.bf16.msra.mxu0 0
      %4386 = vmatpush.bf16.msra.mxu0 %v4377
      %4387 = vmatmul.bf16.gmra.mxu0 %v4365
      %v4388 = vpop.f32.mrf.mxu0
      %v4389 = vadd.f32 0.0, %v4388
      %v4390 = vpop.f32.mrf.mxu0
      %v4391 = vadd.f32 0.0, %v4390
      %4392 = vmatmul.bf16.gmra.mxu0 %v4368
      %v4393 = vpop.f32.mrf.mxu0
      %v4394 = vadd.f32 0.0, %v4393
      %v4395 = vpop.f32.mrf.mxu0
      %v4396 = vadd.f32 0.0, %v4395
      %4397 = vmatmul.bf16.gmra.mxu0 %v4371
      %v4398 = vpop.f32.mrf.mxu0
      %v4399 = vadd.f32 0.0, %v4398
      %v4400 = vpop.f32.mrf.mxu0
      %v4401 = vadd.f32 0.0, %v4400
      %4402 = vmatmul.bf16.gmra.mxu0 %v4374
      %v4403 = vpop.f32.mrf.mxu0
      %v4404 = vadd.f32 0.0, %v4403
      %v4405 = vpop.f32.mrf.mxu0
      %v4406 = vadd.f32 0.0, %v4405
      %4407 = vdwg.mxu0
      %v4408 = vld [vmem:[#allocation3] sm:$0xff]
      %v4409 = vld [vmem:[#allocation3 + $0x8] sm:$0xff]
      %v4410 = vld [vmem:[#allocation3 + $0x10] sm:$0xff]
      %v4411 = vld [vmem:[#allocation3 + $0x18] sm:$0xff]
      %v4412 = vld [vmem:[#allocation3 + $0x20] sm:$0xff]
      %v4413 = vld [vmem:[#allocation3 + $0x28] sm:$0xff]
      %v4414 = vld [vmem:[#allocation3 + $0x30] sm:$0xff]
      %v4415 = vld [vmem:[#allocation3 + $0x38] sm:$0xff]
      %v4416 = vadd.f32 %v4408, %v4389
      %v4417 = vadd.f32 %v4409, %v4391
      %v4418 = vadd.f32 %v4410, %v4394
      %v4419 = vadd.f32 %v4411, %v4396
      %v4420 = vadd.f32 %v4412, %v4399
      %v4421 = vadd.f32 %v4413, %v4401
      %v4422 = vadd.f32 %v4414, %v4404
      %v4423 = vadd.f32 %v4415, %v4406
      %4424 = vst.msk [vmem:[#allocation3] sm:$0xff] %vm469, %v4416
      %4425 = vst.msk [vmem:[#allocation3 + $0x8] sm:$0xff] %vm469, %v4417
      %4426 = vst.msk [vmem:[#allocation3 + $0x10] sm:$0xff] %vm469, %v4418
      %4427 = vst.msk [vmem:[#allocation3 + $0x18] sm:$0xff] %vm469, %v4419
      %4428 = vst.msk [vmem:[#allocation3 + $0x20] sm:$0xff] %vm469, %v4420
      %4429 = vst.msk [vmem:[#allocation3 + $0x28] sm:$0xff] %vm469, %v4421
      %4430 = vst.msk [vmem:[#allocation3 + $0x30] sm:$0xff] %vm469, %v4422
      %4431 = vst.msk [vmem:[#allocation3 + $0x38] sm:$0xff] %vm469, %v4423
      %v4432 = vld [vmem:[#allocation3] sm:$0xff]
      %v4433 = vld [vmem:[#allocation3 + $0x8] sm:$0xff]
      %v4434 = vld [vmem:[#allocation3 + $0x10] sm:$0xff]
      %v4435 = vld [vmem:[#allocation3 + $0x18] sm:$0xff]
      %v4436 = vld [vmem:[#allocation3 + $0x20] sm:$0xff]
      %v4437 = vld [vmem:[#allocation3 + $0x28] sm:$0xff]
      %v4438 = vld [vmem:[#allocation3 + $0x30] sm:$0xff]
      %v4439 = vld [vmem:[#allocation3 + $0x38] sm:$0xff]
      %v4440 = vld [vmem:[#allocation4] sm:$0xff]
      %v4441 = vld [vmem:[#allocation4 + $0x8] sm:$0xff]
      %v4442 = vld [vmem:[#allocation4 + $0x10] sm:$0xff]
      %v4443 = vld [vmem:[#allocation4 + $0x18] sm:$0xff]
      %v4444 = vld [vmem:[#allocation4 + $0x20] sm:$0xff]
      %v4445 = vld [vmem:[#allocation4 + $0x28] sm:$0xff]
      %v4446 = vld [vmem:[#allocation4 + $0x30] sm:$0xff]
      %v4447 = vld [vmem:[#allocation4 + $0x38] sm:$0xff]
      %v4448 = vadd.f32 %v4432, %v4440
      %v4449 = vadd.f32 %v4433, %v4441
      %v4450 = vadd.f32 %v4434, %v4442
      %v4451 = vadd.f32 %v4435, %v4443
      %v4452 = vadd.f32 %v4436, %v4444
      %v4453 = vadd.f32 %v4437, %v4445
      %v4454 = vadd.f32 %v4438, %v4446
      %v4455 = vadd.f32 %v4439, %v4447
      %4456 = vst.msk [vmem:[#allocation3] sm:$0xff] %vm469, %v4448
      %4457 = vst.msk [vmem:[#allocation3 + $0x8] sm:$0xff] %vm469, %v4449
      %4458 = vst.msk [vmem:[#allocation3 + $0x10] sm:$0xff] %vm469, %v4450
      %4459 = vst.msk [vmem:[#allocation3 + $0x18] sm:$0xff] %vm469, %v4451
      %4460 = vst.msk [vmem:[#allocation3 + $0x20] sm:$0xff] %vm469, %v4452
      %4461 = vst.msk [vmem:[#allocation3 + $0x28] sm:$0xff] %vm469, %v4453
      %4462 = vst.msk [vmem:[#allocation3 + $0x30] sm:$0xff] %vm469, %v4454
      %4463 = vst.msk [vmem:[#allocation3 + $0x38] sm:$0xff] %vm469, %v4455
      %v4464 = vld [vmem:[#allocation3] sm:$0xff]
      %v4465 = vld [vmem:[#allocation3 + $0x8] sm:$0xff]
      %v4466 = vld [vmem:[#allocation3 + $0x10] sm:$0xff]
      %v4467 = vld [vmem:[#allocation3 + $0x18] sm:$0xff]
      %v4468 = vld [vmem:[#allocation3 + $0x20] sm:$0xff]
      %v4469 = vld [vmem:[#allocation3 + $0x28] sm:$0xff]
      %v4470 = vld [vmem:[#allocation3 + $0x30] sm:$0xff]
      %v4471 = vld [vmem:[#allocation3 + $0x38] sm:$0xff]
      %4472 = vst.msk [vmem:[%s467] sm:$0xff] %vm469, %v4464
      %4473 = vst.msk [vmem:[%s467 + $0x8] sm:$0xff] %vm469, %v4465
      %4474 = vst.msk [vmem:[%s467 + $0x10] sm:$0xff] %vm469, %v4466
      %4475 = vst.msk [vmem:[%s467 + $0x18] sm:$0xff] %vm469, %v4467
      %4476 = vst.msk [vmem:[%s467 + $0x20] sm:$0xff] %vm469, %v4468
      %4477 = vst.msk [vmem:[%s467 + $0x28] sm:$0xff] %vm469, %v4469
      %4478 = vst.msk [vmem:[%s467 + $0x30] sm:$0xff] %vm469, %v4470
      %4479 = vst.msk [vmem:[%s467 + $0x38] sm:$0xff] %vm469, %v4471
      %p4480 = scmp.lt.s32.totalorder %s25, 1
      %s4481 = scalar_select %p4480, %s25, 1
      %s4482 = smul.addr %s4481, 8
      %s4483 = smul.addr %s4482, 8
      %s4484 = scalar_lea.vmem %s14, %s4483
      // Predicated region
      $region77: #{down_forward.1} parent=75 // pred_check
        %p4485 = pneg %p342
      $region78: #{down_forward.1} parent=75 // pred_check_branch
        %4487 = sbr.rel (%p4485) target = $region80
      $region79: #{down_forward.1} parent=75 // pred_region
        _
      $region80: #{down_forward.1} parent=75 // pred_fallthru
        _
    $region76: #{down_forward.1} parent=5 // pred_fallthru
      _
    %p4488 = scmp.le.s32.totalorder 2, %s20
    // Predicated region
    $region81: #{down_forward.1} parent=5 // pred_check
      %p4489 = pneg %p4488
    $region82: #{down_forward.1} parent=5 // pred_check_branch
      %4491 = sbr.rel (%p4489) target = $region84
    $region83: #{down_forward.1} parent=5 // pred_region
      %s4492 = ssub.s32 %s20, 2
      // Predicated region
      $region85: #{down_forward.1} parent=83 // pred_check
        %p4493 = pneg %p348
      $region86: #{down_forward.1} parent=83 // pred_check_branch
        %4495 = sbr.rel (%p4493) target = $region88
      $region87: #{down_forward.1} parent=83 // pred_region
        %p4496 = scmp.lt.s32.totalorder %s26, 1
        %s4497 = scalar_select %p4496, %s26, 1
        %s4498 = smul.addr %s4497, 8
        %s4499 = smul.addr %s4498, 8
        %s4500 = scalar_lea.vmem %s14, %s4499
      $region88: #{down_forward.1} parent=83 // pred_fallthru
        _
    $region84: #{down_forward.1} parent=5 // pred_fallthru
      _
  $region6: #{down_forward.1} parent=0 // loop_footer
    %s24 = sadd.s32 1, %s20
  $region7: #{down_forward.1} parent=0 // loop_footer_branch
    %19 = sbr.rel target = $region3
  $region8: #{down_forward.1} parent=0 // loop_exit
    _

</llo_original>
